<compile_context>
chip_gen: v5e
topology: v5e:2x2
jax: 0.10.0
libtpu: 0.0.40
codegen_flags: <defaults>
</compile_context>

<pallas_src>
import functools

import jax
import jax.numpy as jnp
from jax.experimental import pallas as pl
from jax.experimental.pallas import tpu as pltpu

BN_EPS = 1e-5

# Conv stack of the PyTorch module: (kernel, stride, C_out)
CONV_CFG = [(8, 4, 32), (4, 2, 64), (3, 1, 64), (3, 1, 128)]


def _conv_out(size, k, s):
    return (size - k) // s + 1


# ------------------------------ fused kernel -------------------------------- #

def _bn_train(y, gamma, beta):
    """Train-mode BatchNorm over axis 0 (biased variance), single-pass stats, f32."""
    m = y.shape[0]
    mean = jnp.sum(y, axis=0, keepdims=True) * (1.0 / m)
    var = jnp.sum(y * y, axis=0, keepdims=True) * (1.0 / m) - mean * mean
    var = jnp.maximum(var, 0.0)  # guard against f32 cancellation
    return gamma * (y - mean) * jax.lax.rsqrt(var + BN_EPS) + beta


def _fused_dqn_kernel(*refs, n, hh1, ho2, ho3, num_actions, atoms):
    (p1_ref, w1_ref, b1_ref, g1_ref, bt1_ref,
     w2_ref, b2_ref, g2_ref, bt2_ref,
     w3_ref, b3_ref, g3_ref, bt3_ref,
     w4_ref, b4_ref, g4_ref, bt4_ref,
     bf1_ref, bf2_ref, bf3_ref,
     wf1_hbm, wf2_hbm, wf3_hbm,
     o_ref,
     y1_ref, p2_ref, y2_ref, p3_ref, y3_ref, p4_ref,
     wf1_vmem, wf2_vmem, wf3_vmem, sems) = refs

    c1 = w1_ref.shape[1]   # 32
    c2 = w2_ref.shape[1]   # 64
    c3 = w3_ref.shape[1]   # 64

    # Prefetch all fc weights (HBM -> VMEM) so the DMAs overlap the conv stack
    # instead of sitting in the exposed input prologue.
    wf1_copy = pltpu.make_async_copy(wf1_hbm, wf1_vmem, sems.at[0])
    wf2_copy = pltpu.make_async_copy(wf2_hbm, wf2_vmem, sems.at[1])
    wf3_copy = pltpu.make_async_copy(wf3_hbm, wf3_vmem, sems.at[2])
    wf1_copy.start()
    wf2_copy.start()
    wf3_copy.start()

    # ---- conv1 + ReLU + BN; stage bf16 result in VMEM --------------------------
    # p1 rows are ordered (ho1 % 2, wo1 % 2, n, ho1 // 2, wo1 // 2): a
    # space-to-batch layout so conv2's stride-2 gathers below are contiguous.
    y1 = jnp.dot(p1_ref[...], w1_ref[...], preferred_element_type=jnp.float32)
    y1 = jnp.maximum(y1 + b1_ref[...], 0.0)
    y1_ref[...] = _bn_train(y1, g1_ref[...], bt1_ref[...]).astype(jnp.bfloat16)

    # ---- conv2 (k=4, s=2): coalesced im2col, one lane-dense store per row-run ----
    for nn in range(n):
        for ho in range(ho2):
            dst0 = (nn * ho2 + ho) * ho2
            pieces = []
            for i in range(4):
                for j in range(4):
                    pi, dh = i % 2, i // 2
                    qj, dw = j % 2, j // 2
                    src0 = (((pi * 2 + qj) * n + nn) * hh1 + (ho + dh)) * hh1 + dw
                    pieces.append(y1_ref[src0:src0 + ho2, :])
            p2_ref[dst0:dst0 + ho2, :] = jnp.concatenate(pieces, axis=-1)

    y2 = jnp.dot(p2_ref[...], w2_ref[...], preferred_element_type=jnp.float32)
    y2 = jnp.maximum(y2 + b2_ref[...], 0.0)
    y2_ref[...] = _bn_train(y2, g2_ref[...], bt2_ref[...]).astype(jnp.bfloat16)

    # ---- conv3 (k=3, s=1): coalesced im2col ------------------------------------
    for nn in range(n):
        for ho in range(ho3):
            dst0 = (nn * ho3 + ho) * ho3
            pieces = []
            for i in range(3):
                for j in range(3):
                    src0 = (nn * ho2 + (ho + i)) * ho2 + j
                    pieces.append(y2_ref[src0:src0 + ho3, :])
            p3_ref[dst0:dst0 + ho3, :] = jnp.concatenate(pieces, axis=-1)

    y3 = jnp.dot(p3_ref[...], w3_ref[...], preferred_element_type=jnp.float32)
    y3 = jnp.maximum(y3 + b3_ref[...], 0.0)
    y3_ref[...] = _bn_train(y3, g3_ref[...], bt3_ref[...]).astype(jnp.bfloat16)

    # ---- conv4 (k=3, s=1, 1x1 output): coalesced im2col -------------------------
    for nn in range(n):
        pieces = []
        for i in range(3):
            for j in range(3):
                src0 = (nn * ho3 + i) * ho3 + j
                pieces.append(y3_ref[src0:src0 + 1, :])
        p4_ref[nn:nn + 1, :] = jnp.concatenate(pieces, axis=-1)

    y4 = jnp.dot(p4_ref[...], w4_ref[...], preferred_element_type=jnp.float32)
    y4 = jnp.maximum(y4 + b4_ref[...], 0.0)
    feat = _bn_train(y4, g4_ref[...], bt4_ref[...])          # (n, 128) f32

    # ---- fc1 / fc2 / fc3 + per-action softmax -----------------------------------
    wf1_copy.wait()
    h = jnp.dot(feat.astype(jnp.bfloat16), wf1_vmem[...],
                preferred_element_type=jnp.float32)
    h = jnp.maximum(h + bf1_ref[...], 0.0)

    wf2_copy.wait()
    h = jnp.dot(h.astype(jnp.bfloat16), wf2_vmem[...],
                preferred_element_type=jnp.float32)
    h = jnp.maximum(h + bf2_ref[...], 0.0)

    wf3_copy.wait()
    logits = jnp.dot(h.astype(jnp.bfloat16), wf3_vmem[...],
                     preferred_element_type=jnp.float32) + bf3_ref[...]   # (n, A*atoms)

    outs = []
    for a in range(num_actions):
        sl = logits[:, a * atoms:(a + 1) * atoms]
        m = jnp.max(sl, axis=-1, keepdims=True)
        e = jnp.exp(sl - m)
        # exact reciprocal (correctness: approx recip can violate sum-to-1 tolerance)
        outs.append(e * (1.0 / jnp.sum(e, axis=-1, keepdims=True)))
    o_ref[...] = jnp.concatenate(outs, axis=-1)   # single lane-dense output store


# ------------------------------ JAX-side glue -------------------------------- #

def _conv1_patches_s2b(x, k, s):
    """im2col for conv1 on the raw input (runs once, in XLA).

    Rows are ordered (ho % 2, wo % 2, n, ho // 2, wo // 2) so that the fused
    kernel's stride-2 conv2 patch extraction needs only contiguous row slices.
    Columns are ordered (kh, kw, c_in), matching the conv weight layout.
    """
    n, h, w, c = x.shape
    ho = _conv_out(h, k, s)
    wo = _conv_out(w, k, s)
    cols = []
    for i in range(k):
        for j in range(k):
            cols.append(x[:, i:i + s * ho:s, j:j + s * wo:s, :])
    p = jnp.stack(cols, axis=3)                               # (n, ho, wo, k*k, c)
    p = p.reshape(n, ho // 2, 2, wo // 2, 2, k * k * c)       # (n, hh, p, ww, q, f)
    p = jnp.transpose(p, (2, 4, 0, 1, 3, 5))                  # (p, q, n, hh, ww, f)
    return p.reshape(4 * n * (ho // 2) * (wo // 2), k * k * c)


def _block_all(arr):
    shape = arr.shape
    return pl.BlockSpec(shape, lambda i, _z=(0,) * len(shape): _z)


def categorical_dqn_forward(x_nchw, params, num_actions, atoms):
    n, _, hgt, wdt = x_nchw.shape
    assert hgt == wdt, "square inputs only"
    x = jnp.transpose(x_nchw, (0, 2, 3, 1)).astype(jnp.float32)   # NCHW -> NHWC

    ho1 = _conv_out(hgt, 8, 4)
    ho2 = _conv_out(ho1, 4, 2)
    ho3 = _conv_out(ho2, 3, 1)
    ho4 = _conv_out(ho3, 3, 1)
    assert ho1 % 2 == 0 and ho4 == 1, "kernel specialized to 1x1 conv4 output"

    patches1 = _conv1_patches_s2b(x, k=8, s=4).astype(jnp.bfloat16)

    (w1, b1, g1, bt1) = params["conv1"]
    (w2, b2, g2, bt2) = params["conv2"]
    (w3, b3, g3, bt3) = params["conv3"]
    (w4, b4, g4, bt4) = params["conv4"]
    (wf1, bf1) = params["fc1"]
    (wf2, bf2) = params["fc2"]
    (wf3, bf3) = params["fc3"]
    c1, c2, c3 = w1.shape[1], w2.shape[1], w3.shape[1]

    vmem_args = [patches1,
                 w1, b1, g1, bt1, w2, b2, g2, bt2, w3, b3, g3, bt3,
                 w4, b4, g4, bt4, bf1, bf2, bf3]
    hbm_args = [wf1, wf2, wf3]   # fc weights: stay in HBM, manually prefetched in-kernel
    args = vmem_args + hbm_args

    in_specs = ([_block_all(a) for a in vmem_args]
                + [pl.BlockSpec(memory_space=pl.ANY) for _ in hbm_args])

    kernel = functools.partial(
        _fused_dqn_kernel, n=n, hh1=ho1 // 2, ho2=ho2, ho3=ho3,
        num_actions=num_actions, atoms=atoms)

    # Advisory cost estimate so XLA schedules around the custom call sensibly.
    macs = (patches1.shape[0] * patches1.shape[1] * c1
            + (n * ho2 * ho2) * (16 * c1) * c2
            + (n * ho3 * ho3) * (9 * c2) * c3
            + n * (9 * c3) * w4.shape[1]
            + n * wf1.shape[0] * wf1.shape[1]
            + n * wf2.shape[0] * wf2.shape[1]
            + n * wf3.shape[0] * wf3.shape[1])
    bytes_accessed = (sum(int(a.size) * a.dtype.itemsize for a in args)
                      + n * num_actions * atoms * 4)
    cost = pl.CostEstimate(flops=2 * macs,
                           transcendentals=n * num_actions * atoms + 512,
                           bytes_accessed=bytes_accessed)

    out = pl.pallas_call(
        kernel,
        grid=(1,),
        out_shape=jax.ShapeDtypeStruct((n, num_actions * atoms), jnp.float32),
        in_specs=in_specs,
        out_specs=pl.BlockSpec((n, num_actions * atoms), lambda i: (0, 0)),
        scratch_shapes=[
            pltpu.VMEM((4 * n * (ho1 // 2) ** 2, c1), jnp.bfloat16),  # staged y1 (post-BN)
            pltpu.VMEM((n * ho2 * ho2, 16 * c1), jnp.bfloat16),       # conv2 im2col patches
            pltpu.VMEM((n * ho2 * ho2, c2), jnp.bfloat16),            # staged y2 (post-BN)
            pltpu.VMEM((n * ho3 * ho3, 9 * c2), jnp.bfloat16),        # conv3 im2col patches
            pltpu.VMEM((n * ho3 * ho3, c3), jnp.bfloat16),            # staged y3 (post-BN)
            pltpu.VMEM((n, 9 * c3), jnp.bfloat16),                    # conv4 im2col patches
            pltpu.VMEM(wf1.shape, wf1.dtype),                         # prefetched fc1 weight
            pltpu.VMEM(wf2.shape, wf2.dtype),                         # prefetched fc2 weight
            pltpu.VMEM(wf3.shape, wf3.dtype),                         # prefetched fc3 weight
            pltpu.SemaphoreType.DMA((3,)),
        ],
        compiler_params=pltpu.CompilerParams(dimension_semantics=("arbitrary",)),
        cost_estimate=cost,
    )(*args)
    return out.reshape(n, num_actions, atoms)


# ------------------------ pure-JAX reference (correctness) -------------------- #

def reference_forward(x_nchw, params, num_actions, atoms):
    """Plain JAX conv+BN+fc forward with the same bf16/f32 precision choices."""
    a = jnp.transpose(x_nchw, (0, 2, 3, 1)).astype(jnp.float32)   # NHWC
    for li, (k, s, c_out) in enumerate(CONV_CFG):
        w, b, g, bt = params[f"conv{li + 1}"]
        w_hwio = w.reshape(k, k, -1, c_out)
        y = jax.lax.conv_general_dilated(
            a.astype(jnp.bfloat16), w_hwio, window_strides=(s, s), padding="VALID",
            dimension_numbers=("NHWC", "HWIO", "NHWC"),
            preferred_element_type=jnp.float32)
        y = jnp.maximum(y + b.reshape(1, 1, 1, -1), 0.0)
        mean = jnp.mean(y, axis=(0, 1, 2), keepdims=True)
        var = jnp.mean(jnp.square(y - mean), axis=(0, 1, 2), keepdims=True)
        a = (g.reshape(1, 1, 1, -1) * (y - mean) * jax.lax.rsqrt(var + BN_EPS)
             + bt.reshape(1, 1, 1, -1))
    feat = a.reshape(a.shape[0], -1)                              # 1x1 spatial -> (n, 128)
    wf1, bf1 = params["fc1"]
    wf2, bf2 = params["fc2"]
    wf3, bf3 = params["fc3"]
    h = jnp.maximum(jnp.dot(feat.astype(jnp.bfloat16), wf1,
                            preferred_element_type=jnp.float32) + bf1, 0.0)
    h = jnp.maximum(jnp.dot(h.astype(jnp.bfloat16), wf2,
                            preferred_element_type=jnp.float32) + bf2, 0.0)
    logits = jnp.dot(h.astype(jnp.bfloat16), wf3,
                     preferred_element_type=jnp.float32) + bf3
    return jax.nn.softmax(logits.reshape(-1, num_actions, atoms), axis=-1)


# ---------------------------------- params ------------------------------------ #

def init_params(key, in_channels, spatial, num_actions, atoms):
    keys = iter(jax.random.split(key, 16))

    def uinit(k, shape, fan_in):
        bound = 1.0 / float(fan_in) ** 0.5
        return jax.random.uniform(k, shape, jnp.float32, -bound, bound)

    params = {}
    c_in, s = in_channels, spatial
    for li, (ksz, stride, c_out) in enumerate(CONV_CFG):
        fan_in = ksz * ksz * c_in
        params[f"conv{li + 1}"] = (
            uinit(next(keys), (fan_in, c_out), fan_in).astype(jnp.bfloat16),  # W (kh*kw*Cin, Cout)
            uinit(next(keys), (1, c_out), fan_in),                            # bias (f32)
            jnp.ones((1, c_out), jnp.float32),                                # BN gamma
            jnp.zeros((1, c_out), jnp.float32),                               # BN beta
        )
        c_in = c_out
        s = _conv_out(s, ksz, stride)

    feature_size = c_in * s * s
    params["fc1"] = (uinit(next(keys), (feature_size, 1024), feature_size).astype(jnp.bfloat16),
                     uinit(next(keys), (1, 1024), feature_size))
    params["fc2"] = (uinit(next(keys), (1024, 512), 1024).astype(jnp.bfloat16),
                     uinit(next(keys), (1, 512), 1024))
    params["fc3"] = (uinit(next(keys), (512, num_actions * atoms), 512).astype(jnp.bfloat16),
                     uinit(next(keys), (1, num_actions * atoms), 512))
    return params


# ---------------------------------- main -------------------------------------- #

if __name__ == "__main__":
    key = jax.random.PRNGKey(0)
    k_x, k_p = jax.random.split(key)

    # Smallest square input that survives the conv stack (k8s4, k4s2, k3s1, k3s1)
    # down to a 1x1 conv4 output (feature_size = 128).
    N, C, H, W = 2, 4, 52, 52
    num_actions, atoms = 6, 51

    x = jax.random.normal(k_x, (N, C, H, W), jnp.float32)
    params = init_params(k_p, C, H, num_actions, atoms)

    fwd = jax.jit(functools.partial(categorical_dqn_forward,
                                    num_actions=num_actions, atoms=atoms))
    out = jax.block_until_ready(fwd(x, params))

    assert out.shape == (N, num_actions, atoms), out.shape
    assert out.dtype == jnp.float32
    assert bool(jnp.all(jnp.isfinite(out)))
    assert bool(jnp.allclose(jnp.sum(out, axis=-1), 1.0, atol=1e-4))

    # Reference comparison (validates the space-to-batch im2col index arithmetic).
    ref = jax.jit(functools.partial(reference_forward,
                                    num_actions=num_actions, atoms=atoms))(x, params)
    max_diff = float(jnp.max(jnp.abs(out - ref)))
    assert max_diff < 1e-2, f"kernel vs reference max |diff| = {max_diff}"

    print("KERNEL_OK")
</pallas_src>

<mosaic_0001>
module attributes {stable_mosaic.version = 11 : i64} {
  func.func @_fused_dqn_kernel(%arg0: i32, %arg1: memref<288x256xbf16, #tpu.memory_space<vmem>>, %arg2: memref<256x32xbf16, #tpu.memory_space<vmem>>, %arg3: memref<1x32xf32, #tpu.memory_space<vmem>>, %arg4: memref<1x32xf32, #tpu.memory_space<vmem>>, %arg5: memref<1x32xf32, #tpu.memory_space<vmem>>, %arg6: memref<512x64xbf16, #tpu.memory_space<vmem>>, %arg7: memref<1x64xf32, #tpu.memory_space<vmem>>, %arg8: memref<1x64xf32, #tpu.memory_space<vmem>>, %arg9: memref<1x64xf32, #tpu.memory_space<vmem>>, %arg10: memref<576x64xbf16, #tpu.memory_space<vmem>>, %arg11: memref<1x64xf32, #tpu.memory_space<vmem>>, %arg12: memref<1x64xf32, #tpu.memory_space<vmem>>, %arg13: memref<1x64xf32, #tpu.memory_space<vmem>>, %arg14: memref<576x128xbf16, #tpu.memory_space<vmem>>, %arg15: memref<1x128xf32, #tpu.memory_space<vmem>>, %arg16: memref<1x128xf32, #tpu.memory_space<vmem>>, %arg17: memref<1x128xf32, #tpu.memory_space<vmem>>, %arg18: memref<1x1024xf32, #tpu.memory_space<vmem>>, %arg19: memref<1x512xf32, #tpu.memory_space<vmem>>, %arg20: memref<1x306xf32, #tpu.memory_space<vmem>>, %arg21: memref<128x1024xbf16, #tpu.memory_space<any>>, %arg22: memref<1024x512xbf16, #tpu.memory_space<any>>, %arg23: memref<512x306xbf16, #tpu.memory_space<any>>, %arg24: memref<2x306xf32, #tpu.memory_space<vmem>>, %arg25: memref<288x32xbf16, #tpu.memory_space<vmem>>, %arg26: memref<50x512xbf16, #tpu.memory_space<vmem>>, %arg27: memref<50x64xbf16, #tpu.memory_space<vmem>>, %arg28: memref<18x576xbf16, #tpu.memory_space<vmem>>, %arg29: memref<18x64xbf16, #tpu.memory_space<vmem>>, %arg30: memref<2x576xbf16, #tpu.memory_space<vmem>>, %arg31: memref<128x1024xbf16, #tpu.memory_space<vmem>>, %arg32: memref<1024x512xbf16, #tpu.memory_space<vmem>>, %arg33: memref<512x306xbf16, #tpu.memory_space<vmem>>, %arg34: memref<3x!tpu.dma_semaphore, #tpu.memory_space<semaphore_mem>>) attributes {dimension_semantics = [#tpu.dimension_semantics<arbitrary>], iteration_bounds = array<i64: 1>, scalar_prefetch = 0 : i64, scratch_operands = 10 : i64, tpu.core_type = #tpu.core_type<tc>, window_params = [{pipeline_mode = #tpu.pipeline_mode<synchronous>, transform_indices = @transform_0, window_bounds = array<i64: 288, 256>}, {pipeline_mode = #tpu.pipeline_mode<synchronous>, transform_indices = @transform_1, window_bounds = array<i64: 256, 32>}, {pipeline_mode = #tpu.pipeline_mode<synchronous>, transform_indices = @transform_2, window_bounds = array<i64: 1, 32>}, {pipeline_mode = #tpu.pipeline_mode<synchronous>, transform_indices = @transform_3, window_bounds = array<i64: 1, 32>}, {pipeline_mode = #tpu.pipeline_mode<synchronous>, transform_indices = @transform_4, window_bounds = array<i64: 1, 32>}, {pipeline_mode = #tpu.pipeline_mode<synchronous>, transform_indices = @transform_5, window_bounds = array<i64: 512, 64>}, {pipeline_mode = #tpu.pipeline_mode<synchronous>, transform_indices = @transform_6, window_bounds = array<i64: 1, 64>}, {pipeline_mode = #tpu.pipeline_mode<synchronous>, transform_indices = @transform_7, window_bounds = array<i64: 1, 64>}, {pipeline_mode = #tpu.pipeline_mode<synchronous>, transform_indices = @transform_8, window_bounds = array<i64: 1, 64>}, {pipeline_mode = #tpu.pipeline_mode<synchronous>, transform_indices = @transform_9, window_bounds = array<i64: 576, 64>}, {pipeline_mode = #tpu.pipeline_mode<synchronous>, transform_indices = @transform_10, window_bounds = array<i64: 1, 64>}, {pipeline_mode = #tpu.pipeline_mode<synchronous>, transform_indices = @transform_11, window_bounds = array<i64: 1, 64>}, {pipeline_mode = #tpu.pipeline_mode<synchronous>, transform_indices = @transform_12, window_bounds = array<i64: 1, 64>}, {pipeline_mode = #tpu.pipeline_mode<synchronous>, transform_indices = @transform_13, window_bounds = array<i64: 576, 128>}, {pipeline_mode = #tpu.pipeline_mode<synchronous>, transform_indices = @transform_14, window_bounds = array<i64: 1, 128>}, {pipeline_mode = #tpu.pipeline_mode<synchronous>, transform_indices = @transform_15, window_bounds = array<i64: 1, 128>}, {pipeline_mode = #tpu.pipeline_mode<synchronous>, transform_indices = @transform_16, window_bounds = array<i64: 1, 128>}, {pipeline_mode = #tpu.pipeline_mode<synchronous>, transform_indices = @transform_17, window_bounds = array<i64: 1, 1024>}, {pipeline_mode = #tpu.pipeline_mode<synchronous>, transform_indices = @transform_18, window_bounds = array<i64: 1, 512>}, {pipeline_mode = #tpu.pipeline_mode<synchronous>, transform_indices = @transform_19, window_bounds = array<i64: 1, 306>}, {}, {}, {}, {pipeline_mode = #tpu.pipeline_mode<synchronous>, transform_indices = @transform_23, window_bounds = array<i64: 2, 306>}]} {
    %c0_i32 = arith.constant 0 : i32
    %0 = tpu.memref_slice %arg34[%c0_i32] : memref<3x!tpu.dma_semaphore, #tpu.memory_space<semaphore_mem>> -> memref<1x!tpu.dma_semaphore, #tpu.memory_space<semaphore_mem>>
    %1 = tpu.memref_squeeze %0 : memref<1x!tpu.dma_semaphore, #tpu.memory_space<semaphore_mem>> -> memref<!tpu.dma_semaphore, #tpu.memory_space<semaphore_mem>>
    tpu.enqueue_dma source(%arg21 : memref<128x1024xbf16, #tpu.memory_space<any>>) target(%arg31 : memref<128x1024xbf16, #tpu.memory_space<vmem>>) target_semaphore(%1 : memref<!tpu.dma_semaphore, #tpu.memory_space<semaphore_mem>>)
    %c1_i32 = arith.constant 1 : i32
    %2 = tpu.memref_slice %arg34[%c1_i32] : memref<3x!tpu.dma_semaphore, #tpu.memory_space<semaphore_mem>> -> memref<1x!tpu.dma_semaphore, #tpu.memory_space<semaphore_mem>>
    %3 = tpu.memref_squeeze %2 : memref<1x!tpu.dma_semaphore, #tpu.memory_space<semaphore_mem>> -> memref<!tpu.dma_semaphore, #tpu.memory_space<semaphore_mem>>
    tpu.enqueue_dma source(%arg22 : memref<1024x512xbf16, #tpu.memory_space<any>>) target(%arg32 : memref<1024x512xbf16, #tpu.memory_space<vmem>>) target_semaphore(%3 : memref<!tpu.dma_semaphore, #tpu.memory_space<semaphore_mem>>)
    %c2_i32 = arith.constant 2 : i32
    %4 = tpu.memref_slice %arg34[%c2_i32] : memref<3x!tpu.dma_semaphore, #tpu.memory_space<semaphore_mem>> -> memref<1x!tpu.dma_semaphore, #tpu.memory_space<semaphore_mem>>
    %5 = tpu.memref_squeeze %4 : memref<1x!tpu.dma_semaphore, #tpu.memory_space<semaphore_mem>> -> memref<!tpu.dma_semaphore, #tpu.memory_space<semaphore_mem>>
    tpu.enqueue_dma source(%arg23 : memref<512x306xbf16, #tpu.memory_space<any>>) target(%arg33 : memref<512x306xbf16, #tpu.memory_space<vmem>>) target_semaphore(%5 : memref<!tpu.dma_semaphore, #tpu.memory_space<semaphore_mem>>)
    %c0 = arith.constant 0 : index
    %c0_0 = arith.constant 0 : index
    %6 = vector.load %arg1[%c0, %c0_0] : memref<288x256xbf16, #tpu.memory_space<vmem>>, vector<288x256xbf16>
    %c0_1 = arith.constant 0 : index
    %c0_2 = arith.constant 0 : index
    %7 = vector.load %arg2[%c0_1, %c0_2] : memref<256x32xbf16, #tpu.memory_space<vmem>>, vector<256x32xbf16>
    %cst = arith.constant dense<0.000000e+00> : vector<288x32xf32>
    %8 = tpu.matmul %6, %7, %cst {dimension_numbers = #tpu.dot_dimension_numbers<[1], [0], [0], [1], [0, 0, 1, 1], [], []>} : vector<288x256xbf16>, vector<256x32xbf16>, vector<288x32xf32> -> vector<288x32xf32>
    %c0_3 = arith.constant 0 : index
    %c0_4 = arith.constant 0 : index
    %9 = vector.load %arg3[%c0_3, %c0_4] : memref<1x32xf32, #tpu.memory_space<vmem>>, vector<1x32xf32>
    %10 = vector.broadcast %9 : vector<1x32xf32> to vector<288x32xf32>
    %11 = arith.addf %8, %10 : vector<288x32xf32>
    %cst_5 = arith.constant 0.000000e+00 : f32
    %12 = vector.broadcast %cst_5 : f32 to vector<288x32xf32>
    %13 = arith.maximumf %11, %12 : vector<288x32xf32>
    %c0_6 = arith.constant 0 : index
    %c0_7 = arith.constant 0 : index
    %14 = vector.load %arg4[%c0_6, %c0_7] : memref<1x32xf32, #tpu.memory_space<vmem>>, vector<1x32xf32>
    %c0_8 = arith.constant 0 : index
    %c0_9 = arith.constant 0 : index
    %15 = vector.load %arg5[%c0_8, %c0_9] : memref<1x32xf32, #tpu.memory_space<vmem>>, vector<1x32xf32>
    %cst_10 = arith.constant dense<0.000000e+00> : vector<32xf32>
    %16 = vector.multi_reduction <add>, %13, %cst_10 [0] : vector<288x32xf32> to vector<32xf32>
    %17 = vector.shape_cast %16 : vector<32xf32> to vector<1x32xf32>
    %cst_11 = arith.constant 0.00347222225 : f32
    %18 = vector.broadcast %cst_11 : f32 to vector<1x32xf32>
    %19 = arith.mulf %17, %18 : vector<1x32xf32>
    %20 = arith.mulf %13, %13 : vector<288x32xf32>
    %cst_12 = arith.constant dense<0.000000e+00> : vector<32xf32>
    %21 = vector.multi_reduction <add>, %20, %cst_12 [0] : vector<288x32xf32> to vector<32xf32>
    %22 = vector.shape_cast %21 : vector<32xf32> to vector<1x32xf32>
    %cst_13 = arith.constant 0.00347222225 : f32
    %23 = vector.broadcast %cst_13 : f32 to vector<1x32xf32>
    %24 = arith.mulf %22, %23 : vector<1x32xf32>
    %25 = arith.mulf %19, %19 : vector<1x32xf32>
    %26 = arith.subf %24, %25 : vector<1x32xf32>
    %cst_14 = arith.constant 0.000000e+00 : f32
    %27 = vector.broadcast %cst_14 : f32 to vector<1x32xf32>
    %28 = arith.maximumf %26, %27 : vector<1x32xf32>
    %29 = vector.broadcast %19 : vector<1x32xf32> to vector<288x32xf32>
    %30 = arith.subf %13, %29 : vector<288x32xf32>
    %31 = vector.broadcast %14 : vector<1x32xf32> to vector<288x32xf32>
    %32 = arith.mulf %31, %30 : vector<288x32xf32>
    %cst_15 = arith.constant 9.99999974E-6 : f32
    %33 = vector.broadcast %cst_15 : f32 to vector<1x32xf32>
    %34 = arith.addf %28, %33 : vector<1x32xf32>
    %35 = math.rsqrt %34 : vector<1x32xf32>
    %36 = vector.broadcast %35 : vector<1x32xf32> to vector<288x32xf32>
    %37 = arith.mulf %32, %36 : vector<288x32xf32>
    %38 = vector.broadcast %15 : vector<1x32xf32> to vector<288x32xf32>
    %39 = arith.addf %37, %38 : vector<288x32xf32>
    %40 = arith.truncf %39 : vector<288x32xf32> to vector<288x32xbf16>
    %c0_16 = arith.constant 0 : index
    %c0_17 = arith.constant 0 : index
    %41 = vector.load %arg25[%c0_16, %c0_17] : memref<288x32xbf16, #tpu.memory_space<vmem>>, vector<288x32xbf16>
    tpu.vector_store %arg25[%c0_16, %c0_17], %40 {strides = array<i32>} : memref<288x32xbf16, #tpu.memory_space<vmem>>, vector<288x32xbf16>,
    %c0_18 = arith.constant 0 : index
    %c0_19 = arith.constant 0 : index
    %42 = vector.load %arg25[%c0_18, %c0_19] : memref<288x32xbf16, #tpu.memory_space<vmem>>, vector<5x32xbf16>
    %c72 = arith.constant 72 : index
    %c0_20 = arith.constant 0 : index
    %43 = vector.load %arg25[%c72, %c0_20] : memref<288x32xbf16, #tpu.memory_space<vmem>>, vector<5x32xbf16>
    %c1 = arith.constant 1 : index
    %c0_21 = arith.constant 0 : index
    %44 = vector.load %arg25[%c1, %c0_21] : memref<288x32xbf16, #tpu.memory_space<vmem>>, vector<5x32xbf16>
    %c73 = arith.constant 73 : index
    %c0_22 = arith.constant 0 : index
    %45 = vector.load %arg25[%c73, %c0_22] : memref<288x32xbf16, #tpu.memory_space<vmem>>, vector<5x32xbf16>
    %c144 = arith.constant 144 : index
    %c0_23 = arith.constant 0 : index
    %46 = vector.load %arg25[%c144, %c0_23] : memref<288x32xbf16, #tpu.memory_space<vmem>>, vector<5x32xbf16>
    %c216 = arith.constant 216 : index
    %c0_24 = arith.constant 0 : index
    %47 = vector.load %arg25[%c216, %c0_24] : memref<288x32xbf16, #tpu.memory_space<vmem>>, vector<5x32xbf16>
    %c145 = arith.constant 145 : index
    %c0_25 = arith.constant 0 : index
    %48 = vector.load %arg25[%c145, %c0_25] : memref<288x32xbf16, #tpu.memory_space<vmem>>, vector<5x32xbf16>
    %c217 = arith.constant 217 : index
    %c0_26 = arith.constant 0 : index
    %49 = vector.load %arg25[%c217, %c0_26] : memref<288x32xbf16, #tpu.memory_space<vmem>>, vector<5x32xbf16>
    %c6 = arith.constant 6 : index
    %c0_27 = arith.constant 0 : index
    %50 = vector.load %arg25[%c6, %c0_27] : memref<288x32xbf16, #tpu.memory_space<vmem>>, vector<5x32xbf16>
    %c78 = arith.constant 78 : index
    %c0_28 = arith.constant 0 : index
    %51 = vector.load %arg25[%c78, %c0_28] : memref<288x32xbf16, #tpu.memory_space<vmem>>, vector<5x32xbf16>
    %c7 = arith.constant 7 : index
    %c0_29 = arith.constant 0 : index
    %52 = vector.load %arg25[%c7, %c0_29] : memref<288x32xbf16, #tpu.memory_space<vmem>>, vector<5x32xbf16>
    %c79 = arith.constant 79 : index
    %c0_30 = arith.constant 0 : index
    %53 = vector.load %arg25[%c79, %c0_30] : memref<288x32xbf16, #tpu.memory_space<vmem>>, vector<5x32xbf16>
    %c150 = arith.constant 150 : index
    %c0_31 = arith.constant 0 : index
    %54 = vector.load %arg25[%c150, %c0_31] : memref<288x32xbf16, #tpu.memory_space<vmem>>, vector<5x32xbf16>
    %c222 = arith.constant 222 : index
    %c0_32 = arith.constant 0 : index
    %55 = vector.load %arg25[%c222, %c0_32] : memref<288x32xbf16, #tpu.memory_space<vmem>>, vector<5x32xbf16>
    %c151 = arith.constant 151 : index
    %c0_33 = arith.constant 0 : index
    %56 = vector.load %arg25[%c151, %c0_33] : memref<288x32xbf16, #tpu.memory_space<vmem>>, vector<5x32xbf16>
    %c223 = arith.constant 223 : index
    %c0_34 = arith.constant 0 : index
    %57 = vector.load %arg25[%c223, %c0_34] : memref<288x32xbf16, #tpu.memory_space<vmem>>, vector<5x32xbf16>
    %58 = tpu.concatenate %42, %43, %44, %45, %46, %47, %48, %49, %50, %51, %52, %53, %54, %55, %56, %57 in 1 : vector<5x32xbf16>, vector<5x32xbf16>, vector<5x32xbf16>, vector<5x32xbf16>, vector<5x32xbf16>, vector<5x32xbf16>, vector<5x32xbf16>, vector<5x32xbf16>, vector<5x32xbf16>, vector<5x32xbf16>, vector<5x32xbf16>, vector<5x32xbf16>, vector<5x32xbf16>, vector<5x32xbf16>, vector<5x32xbf16>, vector<5x32xbf16> -> vector<5x512xbf16>
    %c0_35 = arith.constant 0 : index
    %c0_36 = arith.constant 0 : index
    %59 = vector.load %arg26[%c0_35, %c0_36] : memref<50x512xbf16, #tpu.memory_space<vmem>>, vector<5x512xbf16>
    tpu.vector_store %arg26[%c0_35, %c0_36], %58 {strides = array<i32>} : memref<50x512xbf16, #tpu.memory_space<vmem>>, vector<5x512xbf16>,
    %c6_37 = arith.constant 6 : index
    %c0_38 = arith.constant 0 : index
    %60 = vector.load %arg25[%c6_37, %c0_38] : memref<288x32xbf16, #tpu.memory_space<vmem>>, vector<5x32xbf16>
    %c78_39 = arith.constant 78 : index
    %c0_40 = arith.constant 0 : index
    %61 = vector.load %arg25[%c78_39, %c0_40] : memref<288x32xbf16, #tpu.memory_space<vmem>>, vector<5x32xbf16>
    %c7_41 = arith.constant 7 : index
    %c0_42 = arith.constant 0 : index
    %62 = vector.load %arg25[%c7_41, %c0_42] : memref<288x32xbf16, #tpu.memory_space<vmem>>, vector<5x32xbf16>
    %c79_43 = arith.constant 79 : index
    %c0_44 = arith.constant 0 : index
    %63 = vector.load %arg25[%c79_43, %c0_44] : memref<288x32xbf16, #tpu.memory_space<vmem>>, vector<5x32xbf16>
    %c150_45 = arith.constant 150 : index
    %c0_46 = arith.constant 0 : index
    %64 = vector.load %arg25[%c150_45, %c0_46] : memref<288x32xbf16, #tpu.memory_space<vmem>>, vector<5x32xbf16>
    %c222_47 = arith.constant 222 : index
    %c0_48 = arith.constant 0 : index
    %65 = vector.load %arg25[%c222_47, %c0_48] : memref<288x32xbf16, #tpu.memory_space<vmem>>, vector<5x32xbf16>
    %c151_49 = arith.constant 151 : index
    %c0_50 = arith.constant 0 : index
    %66 = vector.load %arg25[%c151_49, %c0_50] : memref<288x32xbf16, #tpu.memory_space<vmem>>, vector<5x32xbf16>
    %c223_51 = arith.constant 223 : index
    %c0_52 = arith.constant 0 : index
    %67 = vector.load %arg25[%c223_51, %c0_52] : memref<288x32xbf16, #tpu.memory_space<vmem>>, vector<5x32xbf16>
    %c12 = arith.constant 12 : index
    %c0_53 = arith.constant 0 : index
    %68 = vector.load %arg25[%c12, %c0_53] : memref<288x32xbf16, #tpu.memory_space<vmem>>, vector<5x32xbf16>
    %c84 = arith.constant 84 : index
    %c0_54 = arith.constant 0 : index
    %69 = vector.load %arg25[%c84, %c0_54] : memref<288x32xbf16, #tpu.memory_space<vmem>>, vector<5x32xbf16>
    %c13 = arith.constant 13 : index
    %c0_55 = arith.constant 0 : index
    %70 = vector.load %arg25[%c13, %c0_55] : memref<288x32xbf16, #tpu.memory_space<vmem>>, vector<5x32xbf16>
    %c85 = arith.constant 85 : index
    %c0_56 = arith.constant 0 : index
    %71 = vector.load %arg25[%c85, %c0_56] : memref<288x32xbf16, #tpu.memory_space<vmem>>, vector<5x32xbf16>
    %c156 = arith.constant 156 : index
    %c0_57 = arith.constant 0 : index
    %72 = vector.load %arg25[%c156, %c0_57] : memref<288x32xbf16, #tpu.memory_space<vmem>>, vector<5x32xbf16>
    %c228 = arith.constant 228 : index
    %c0_58 = arith.constant 0 : index
    %73 = vector.load %arg25[%c228, %c0_58] : memref<288x32xbf16, #tpu.memory_space<vmem>>, vector<5x32xbf16>
    %c157 = arith.constant 157 : index
    %c0_59 = arith.constant 0 : index
    %74 = vector.load %arg25[%c157, %c0_59] : memref<288x32xbf16, #tpu.memory_space<vmem>>, vector<5x32xbf16>
    %c229 = arith.constant 229 : index
    %c0_60 = arith.constant 0 : index
    %75 = vector.load %arg25[%c229, %c0_60] : memref<288x32xbf16, #tpu.memory_space<vmem>>, vector<5x32xbf16>
    %76 = tpu.concatenate %60, %61, %62, %63, %64, %65, %66, %67, %68, %69, %70, %71, %72, %73, %74, %75 in 1 : vector<5x32xbf16>, vector<5x32xbf16>, vector<5x32xbf16>, vector<5x32xbf16>, vector<5x32xbf16>, vector<5x32xbf16>, vector<5x32xbf16>, vector<5x32xbf16>, vector<5x32xbf16>, vector<5x32xbf16>, vector<5x32xbf16>, vector<5x32xbf16>, vector<5x32xbf16>, vector<5x32xbf16>, vector<5x32xbf16>, vector<5x32xbf16> -> vector<5x512xbf16>
    %c5 = arith.constant 5 : index
    %c0_61 = arith.constant 0 : index
    %77 = vector.load %arg26[%c5, %c0_61] : memref<50x512xbf16, #tpu.memory_space<vmem>>, vector<5x512xbf16>
    tpu.vector_store %arg26[%c5, %c0_61], %76 {strides = array<i32>} : memref<50x512xbf16, #tpu.memory_space<vmem>>, vector<5x512xbf16>,
    %c12_62 = arith.constant 12 : index
    %c0_63 = arith.constant 0 : index
    %78 = vector.load %arg25[%c12_62, %c0_63] : memref<288x32xbf16, #tpu.memory_space<vmem>>, vector<5x32xbf16>
    %c84_64 = arith.constant 84 : index
    %c0_65 = arith.constant 0 : index
    %79 = vector.load %arg25[%c84_64, %c0_65] : memref<288x32xbf16, #tpu.memory_space<vmem>>, vector<5x32xbf16>
    %c13_66 = arith.constant 13 : index
    %c0_67 = arith.constant 0 : index
    %80 = vector.load %arg25[%c13_66, %c0_67] : memref<288x32xbf16, #tpu.memory_space<vmem>>, vector<5x32xbf16>
    %c85_68 = arith.constant 85 : index
    %c0_69 = arith.constant 0 : index
    %81 = vector.load %arg25[%c85_68, %c0_69] : memref<288x32xbf16, #tpu.memory_space<vmem>>, vector<5x32xbf16>
    %c156_70 = arith.constant 156 : index
    %c0_71 = arith.constant 0 : index
    %82 = vector.load %arg25[%c156_70, %c0_71] : memref<288x32xbf16, #tpu.memory_space<vmem>>, vector<5x32xbf16>
    %c228_72 = arith.constant 228 : index
    %c0_73 = arith.constant 0 : index
    %83 = vector.load %arg25[%c228_72, %c0_73] : memref<288x32xbf16, #tpu.memory_space<vmem>>, vector<5x32xbf16>
    %c157_74 = arith.constant 157 : index
    %c0_75 = arith.constant 0 : index
    %84 = vector.load %arg25[%c157_74, %c0_75] : memref<288x32xbf16, #tpu.memory_space<vmem>>, vector<5x32xbf16>
    %c229_76 = arith.constant 229 : index
    %c0_77 = arith.constant 0 : index
    %85 = vector.load %arg25[%c229_76, %c0_77] : memref<288x32xbf16, #tpu.memory_space<vmem>>, vector<5x32xbf16>
    %c18 = arith.constant 18 : index
    %c0_78 = arith.constant 0 : index
    %86 = vector.load %arg25[%c18, %c0_78] : memref<288x32xbf16, #tpu.memory_space<vmem>>, vector<5x32xbf16>
    %c90 = arith.constant 90 : index
    %c0_79 = arith.constant 0 : index
    %87 = vector.load %arg25[%c90, %c0_79] : memref<288x32xbf16, #tpu.memory_space<vmem>>, vector<5x32xbf16>
    %c19 = arith.constant 19 : index
    %c0_80 = arith.constant 0 : index
    %88 = vector.load %arg25[%c19, %c0_80] : memref<288x32xbf16, #tpu.memory_space<vmem>>, vector<5x32xbf16>
    %c91 = arith.constant 91 : index
    %c0_81 = arith.constant 0 : index
    %89 = vector.load %arg25[%c91, %c0_81] : memref<288x32xbf16, #tpu.memory_space<vmem>>, vector<5x32xbf16>
    %c162 = arith.constant 162 : index
    %c0_82 = arith.constant 0 : index
    %90 = vector.load %arg25[%c162, %c0_82] : memref<288x32xbf16, #tpu.memory_space<vmem>>, vector<5x32xbf16>
    %c234 = arith.constant 234 : index
    %c0_83 = arith.constant 0 : index
    %91 = vector.load %arg25[%c234, %c0_83] : memref<288x32xbf16, #tpu.memory_space<vmem>>, vector<5x32xbf16>
    %c163 = arith.constant 163 : index
    %c0_84 = arith.constant 0 : index
    %92 = vector.load %arg25[%c163, %c0_84] : memref<288x32xbf16, #tpu.memory_space<vmem>>, vector<5x32xbf16>
    %c235 = arith.constant 235 : index
    %c0_85 = arith.constant 0 : index
    %93 = vector.load %arg25[%c235, %c0_85] : memref<288x32xbf16, #tpu.memory_space<vmem>>, vector<5x32xbf16>
    %94 = tpu.concatenate %78, %79, %80, %81, %82, %83, %84, %85, %86, %87, %88, %89, %90, %91, %92, %93 in 1 : vector<5x32xbf16>, vector<5x32xbf16>, vector<5x32xbf16>, vector<5x32xbf16>, vector<5x32xbf16>, vector<5x32xbf16>, vector<5x32xbf16>, vector<5x32xbf16>, vector<5x32xbf16>, vector<5x32xbf16>, vector<5x32xbf16>, vector<5x32xbf16>, vector<5x32xbf16>, vector<5x32xbf16>, vector<5x32xbf16>, vector<5x32xbf16> -> vector<5x512xbf16>
    %c10 = arith.constant 10 : index
    %c0_86 = arith.constant 0 : index
    %95 = vector.load %arg26[%c10, %c0_86] : memref<50x512xbf16, #tpu.memory_space<vmem>>, vector<5x512xbf16>
    tpu.vector_store %arg26[%c10, %c0_86], %94 {strides = array<i32>} : memref<50x512xbf16, #tpu.memory_space<vmem>>, vector<5x512xbf16>,
    %c18_87 = arith.constant 18 : index
    %c0_88 = arith.constant 0 : index
    %96 = vector.load %arg25[%c18_87, %c0_88] : memref<288x32xbf16, #tpu.memory_space<vmem>>, vector<5x32xbf16>
    %c90_89 = arith.constant 90 : index
    %c0_90 = arith.constant 0 : index
    %97 = vector.load %arg25[%c90_89, %c0_90] : memref<288x32xbf16, #tpu.memory_space<vmem>>, vector<5x32xbf16>
    %c19_91 = arith.constant 19 : index
    %c0_92 = arith.constant 0 : index
    %98 = vector.load %arg25[%c19_91, %c0_92] : memref<288x32xbf16, #tpu.memory_space<vmem>>, vector<5x32xbf16>
    %c91_93 = arith.constant 91 : index
    %c0_94 = arith.constant 0 : index
    %99 = vector.load %arg25[%c91_93, %c0_94] : memref<288x32xbf16, #tpu.memory_space<vmem>>, vector<5x32xbf16>
    %c162_95 = arith.constant 162 : index
    %c0_96 = arith.constant 0 : index
    %100 = vector.load %arg25[%c162_95, %c0_96] : memref<288x32xbf16, #tpu.memory_space<vmem>>, vector<5x32xbf16>
    %c234_97 = arith.constant 234 : index
    %c0_98 = arith.constant 0 : index
    %101 = vector.load %arg25[%c234_97, %c0_98] : memref<288x32xbf16, #tpu.memory_space<vmem>>, vector<5x32xbf16>
    %c163_99 = arith.constant 163 : index
    %c0_100 = arith.constant 0 : index
    %102 = vector.load %arg25[%c163_99, %c0_100] : memref<288x32xbf16, #tpu.memory_space<vmem>>, vector<5x32xbf16>
    %c235_101 = arith.constant 235 : index
    %c0_102 = arith.constant 0 : index
    %103 = vector.load %arg25[%c235_101, %c0_102] : memref<288x32xbf16, #tpu.memory_space<vmem>>, vector<5x32xbf16>
    %c24 = arith.constant 24 : index
    %c0_103 = arith.constant 0 : index
    %104 = vector.load %arg25[%c24, %c0_103] : memref<288x32xbf16, #tpu.memory_space<vmem>>, vector<5x32xbf16>
    %c96 = arith.constant 96 : index
    %c0_104 = arith.constant 0 : index
    %105 = vector.load %arg25[%c96, %c0_104] : memref<288x32xbf16, #tpu.memory_space<vmem>>, vector<5x32xbf16>
    %c25 = arith.constant 25 : index
    %c0_105 = arith.constant 0 : index
    %106 = vector.load %arg25[%c25, %c0_105] : memref<288x32xbf16, #tpu.memory_space<vmem>>, vector<5x32xbf16>
    %c97 = arith.constant 97 : index
    %c0_106 = arith.constant 0 : index
    %107 = vector.load %arg25[%c97, %c0_106] : memref<288x32xbf16, #tpu.memory_space<vmem>>, vector<5x32xbf16>
    %c168 = arith.constant 168 : index
    %c0_107 = arith.constant 0 : index
    %108 = vector.load %arg25[%c168, %c0_107] : memref<288x32xbf16, #tpu.memory_space<vmem>>, vector<5x32xbf16>
    %c240 = arith.constant 240 : index
    %c0_108 = arith.constant 0 : index
    %109 = vector.load %arg25[%c240, %c0_108] : memref<288x32xbf16, #tpu.memory_space<vmem>>, vector<5x32xbf16>
    %c169 = arith.constant 169 : index
    %c0_109 = arith.constant 0 : index
    %110 = vector.load %arg25[%c169, %c0_109] : memref<288x32xbf16, #tpu.memory_space<vmem>>, vector<5x32xbf16>
    %c241 = arith.constant 241 : index
    %c0_110 = arith.constant 0 : index
    %111 = vector.load %arg25[%c241, %c0_110] : memref<288x32xbf16, #tpu.memory_space<vmem>>, vector<5x32xbf16>
    %112 = tpu.concatenate %96, %97, %98, %99, %100, %101, %102, %103, %104, %105, %106, %107, %108, %109, %110, %111 in 1 : vector<5x32xbf16>, vector<5x32xbf16>, vector<5x32xbf16>, vector<5x32xbf16>, vector<5x32xbf16>, vector<5x32xbf16>, vector<5x32xbf16>, vector<5x32xbf16>, vector<5x32xbf16>, vector<5x32xbf16>, vector<5x32xbf16>, vector<5x32xbf16>, vector<5x32xbf16>, vector<5x32xbf16>, vector<5x32xbf16>, vector<5x32xbf16> -> vector<5x512xbf16>
    %c15 = arith.constant 15 : index
    %c0_111 = arith.constant 0 : index
    %113 = vector.load %arg26[%c15, %c0_111] : memref<50x512xbf16, #tpu.memory_space<vmem>>, vector<5x512xbf16>
    tpu.vector_store %arg26[%c15, %c0_111], %112 {strides = array<i32>} : memref<50x512xbf16, #tpu.memory_space<vmem>>, vector<5x512xbf16>,
    %c24_112 = arith.constant 24 : index
    %c0_113 = arith.constant 0 : index
    %114 = vector.load %arg25[%c24_112, %c0_113] : memref<288x32xbf16, #tpu.memory_space<vmem>>, vector<5x32xbf16>
    %c96_114 = arith.constant 96 : index
    %c0_115 = arith.constant 0 : index
    %115 = vector.load %arg25[%c96_114, %c0_115] : memref<288x32xbf16, #tpu.memory_space<vmem>>, vector<5x32xbf16>
    %c25_116 = arith.constant 25 : index
    %c0_117 = arith.constant 0 : index
    %116 = vector.load %arg25[%c25_116, %c0_117] : memref<288x32xbf16, #tpu.memory_space<vmem>>, vector<5x32xbf16>
    %c97_118 = arith.constant 97 : index
    %c0_119 = arith.constant 0 : index
    %117 = vector.load %arg25[%c97_118, %c0_119] : memref<288x32xbf16, #tpu.memory_space<vmem>>, vector<5x32xbf16>
    %c168_120 = arith.constant 168 : index
    %c0_121 = arith.constant 0 : index
    %118 = vector.load %arg25[%c168_120, %c0_121] : memref<288x32xbf16, #tpu.memory_space<vmem>>, vector<5x32xbf16>
    %c240_122 = arith.constant 240 : index
    %c0_123 = arith.constant 0 : index
    %119 = vector.load %arg25[%c240_122, %c0_123] : memref<288x32xbf16, #tpu.memory_space<vmem>>, vector<5x32xbf16>
    %c169_124 = arith.constant 169 : index
    %c0_125 = arith.constant 0 : index
    %120 = vector.load %arg25[%c169_124, %c0_125] : memref<288x32xbf16, #tpu.memory_space<vmem>>, vector<5x32xbf16>
    %c241_126 = arith.constant 241 : index
    %c0_127 = arith.constant 0 : index
    %121 = vector.load %arg25[%c241_126, %c0_127] : memref<288x32xbf16, #tpu.memory_space<vmem>>, vector<5x32xbf16>
    %c30 = arith.constant 30 : index
    %c0_128 = arith.constant 0 : index
    %122 = vector.load %arg25[%c30, %c0_128] : memref<288x32xbf16, #tpu.memory_space<vmem>>, vector<5x32xbf16>
    %c102 = arith.constant 102 : index
    %c0_129 = arith.constant 0 : index
    %123 = vector.load %arg25[%c102, %c0_129] : memref<288x32xbf16, #tpu.memory_space<vmem>>, vector<5x32xbf16>
    %c31 = arith.constant 31 : index
    %c0_130 = arith.constant 0 : index
    %124 = vector.load %arg25[%c31, %c0_130] : memref<288x32xbf16, #tpu.memory_space<vmem>>, vector<5x32xbf16>
    %c103 = arith.constant 103 : index
    %c0_131 = arith.constant 0 : index
    %125 = vector.load %arg25[%c103, %c0_131] : memref<288x32xbf16, #tpu.memory_space<vmem>>, vector<5x32xbf16>
    %c174 = arith.constant 174 : index
    %c0_132 = arith.constant 0 : index
    %126 = vector.load %arg25[%c174, %c0_132] : memref<288x32xbf16, #tpu.memory_space<vmem>>, vector<5x32xbf16>
    %c246 = arith.constant 246 : index
    %c0_133 = arith.constant 0 : index
    %127 = vector.load %arg25[%c246, %c0_133] : memref<288x32xbf16, #tpu.memory_space<vmem>>, vector<5x32xbf16>
    %c175 = arith.constant 175 : index
    %c0_134 = arith.constant 0 : index
    %128 = vector.load %arg25[%c175, %c0_134] : memref<288x32xbf16, #tpu.memory_space<vmem>>, vector<5x32xbf16>
    %c247 = arith.constant 247 : index
    %c0_135 = arith.constant 0 : index
    %129 = vector.load %arg25[%c247, %c0_135] : memref<288x32xbf16, #tpu.memory_space<vmem>>, vector<5x32xbf16>
    %130 = tpu.concatenate %114, %115, %116, %117, %118, %119, %120, %121, %122, %123, %124, %125, %126, %127, %128, %129 in 1 : vector<5x32xbf16>, vector<5x32xbf16>, vector<5x32xbf16>, vector<5x32xbf16>, vector<5x32xbf16>, vector<5x32xbf16>, vector<5x32xbf16>, vector<5x32xbf16>, vector<5x32xbf16>, vector<5x32xbf16>, vector<5x32xbf16>, vector<5x32xbf16>, vector<5x32xbf16>, vector<5x32xbf16>, vector<5x32xbf16>, vector<5x32xbf16> -> vector<5x512xbf16>
    %c20 = arith.constant 20 : index
    %c0_136 = arith.constant 0 : index
    %131 = vector.load %arg26[%c20, %c0_136] : memref<50x512xbf16, #tpu.memory_space<vmem>>, vector<5x512xbf16>
    tpu.vector_store %arg26[%c20, %c0_136], %130 {strides = array<i32>} : memref<50x512xbf16, #tpu.memory_space<vmem>>, vector<5x512xbf16>,
    %c36 = arith.constant 36 : index
    %c0_137 = arith.constant 0 : index
    %132 = vector.load %arg25[%c36, %c0_137] : memref<288x32xbf16, #tpu.memory_space<vmem>>, vector<5x32xbf16>
    %c108 = arith.constant 108 : index
    %c0_138 = arith.constant 0 : index
    %133 = vector.load %arg25[%c108, %c0_138] : memref<288x32xbf16, #tpu.memory_space<vmem>>, vector<5x32xbf16>
    %c37 = arith.constant 37 : index
    %c0_139 = arith.constant 0 : index
    %134 = vector.load %arg25[%c37, %c0_139] : memref<288x32xbf16, #tpu.memory_space<vmem>>, vector<5x32xbf16>
    %c109 = arith.constant 109 : index
    %c0_140 = arith.constant 0 : index
    %135 = vector.load %arg25[%c109, %c0_140] : memref<288x32xbf16, #tpu.memory_space<vmem>>, vector<5x32xbf16>
    %c180 = arith.constant 180 : index
    %c0_141 = arith.constant 0 : index
    %136 = vector.load %arg25[%c180, %c0_141] : memref<288x32xbf16, #tpu.memory_space<vmem>>, vector<5x32xbf16>
    %c252 = arith.constant 252 : index
    %c0_142 = arith.constant 0 : index
    %137 = vector.load %arg25[%c252, %c0_142] : memref<288x32xbf16, #tpu.memory_space<vmem>>, vector<5x32xbf16>
    %c181 = arith.constant 181 : index
    %c0_143 = arith.constant 0 : index
    %138 = vector.load %arg25[%c181, %c0_143] : memref<288x32xbf16, #tpu.memory_space<vmem>>, vector<5x32xbf16>
    %c253 = arith.constant 253 : index
    %c0_144 = arith.constant 0 : index
    %139 = vector.load %arg25[%c253, %c0_144] : memref<288x32xbf16, #tpu.memory_space<vmem>>, vector<5x32xbf16>
    %c42 = arith.constant 42 : index
    %c0_145 = arith.constant 0 : index
    %140 = vector.load %arg25[%c42, %c0_145] : memref<288x32xbf16, #tpu.memory_space<vmem>>, vector<5x32xbf16>
    %c114 = arith.constant 114 : index
    %c0_146 = arith.constant 0 : index
    %141 = vector.load %arg25[%c114, %c0_146] : memref<288x32xbf16, #tpu.memory_space<vmem>>, vector<5x32xbf16>
    %c43 = arith.constant 43 : index
    %c0_147 = arith.constant 0 : index
    %142 = vector.load %arg25[%c43, %c0_147] : memref<288x32xbf16, #tpu.memory_space<vmem>>, vector<5x32xbf16>
    %c115 = arith.constant 115 : index
    %c0_148 = arith.constant 0 : index
    %143 = vector.load %arg25[%c115, %c0_148] : memref<288x32xbf16, #tpu.memory_space<vmem>>, vector<5x32xbf16>
    %c186 = arith.constant 186 : index
    %c0_149 = arith.constant 0 : index
    %144 = vector.load %arg25[%c186, %c0_149] : memref<288x32xbf16, #tpu.memory_space<vmem>>, vector<5x32xbf16>
    %c258 = arith.constant 258 : index
    %c0_150 = arith.constant 0 : index
    %145 = vector.load %arg25[%c258, %c0_150] : memref<288x32xbf16, #tpu.memory_space<vmem>>, vector<5x32xbf16>
    %c187 = arith.constant 187 : index
    %c0_151 = arith.constant 0 : index
    %146 = vector.load %arg25[%c187, %c0_151] : memref<288x32xbf16, #tpu.memory_space<vmem>>, vector<5x32xbf16>
    %c259 = arith.constant 259 : index
    %c0_152 = arith.constant 0 : index
    %147 = vector.load %arg25[%c259, %c0_152] : memref<288x32xbf16, #tpu.memory_space<vmem>>, vector<5x32xbf16>
    %148 = tpu.concatenate %132, %133, %134, %135, %136, %137, %138, %139, %140, %141, %142, %143, %144, %145, %146, %147 in 1 : vector<5x32xbf16>, vector<5x32xbf16>, vector<5x32xbf16>, vector<5x32xbf16>, vector<5x32xbf16>, vector<5x32xbf16>, vector<5x32xbf16>, vector<5x32xbf16>, vector<5x32xbf16>, vector<5x32xbf16>, vector<5x32xbf16>, vector<5x32xbf16>, vector<5x32xbf16>, vector<5x32xbf16>, vector<5x32xbf16>, vector<5x32xbf16> -> vector<5x512xbf16>
    %c25_153 = arith.constant 25 : index
    %c0_154 = arith.constant 0 : index
    %149 = vector.load %arg26[%c25_153, %c0_154] : memref<50x512xbf16, #tpu.memory_space<vmem>>, vector<5x512xbf16>
    tpu.vector_store %arg26[%c25_153, %c0_154], %148 {strides = array<i32>} : memref<50x512xbf16, #tpu.memory_space<vmem>>, vector<5x512xbf16>,
    %c42_155 = arith.constant 42 : index
    %c0_156 = arith.constant 0 : index
    %150 = vector.load %arg25[%c42_155, %c0_156] : memref<288x32xbf16, #tpu.memory_space<vmem>>, vector<5x32xbf16>
    %c114_157 = arith.constant 114 : index
    %c0_158 = arith.constant 0 : index
    %151 = vector.load %arg25[%c114_157, %c0_158] : memref<288x32xbf16, #tpu.memory_space<vmem>>, vector<5x32xbf16>
    %c43_159 = arith.constant 43 : index
    %c0_160 = arith.constant 0 : index
    %152 = vector.load %arg25[%c43_159, %c0_160] : memref<288x32xbf16, #tpu.memory_space<vmem>>, vector<5x32xbf16>
    %c115_161 = arith.constant 115 : index
    %c0_162 = arith.constant 0 : index
    %153 = vector.load %arg25[%c115_161, %c0_162] : memref<288x32xbf16, #tpu.memory_space<vmem>>, vector<5x32xbf16>
    %c186_163 = arith.constant 186 : index
    %c0_164 = arith.constant 0 : index
    %154 = vector.load %arg25[%c186_163, %c0_164] : memref<288x32xbf16, #tpu.memory_space<vmem>>, vector<5x32xbf16>
    %c258_165 = arith.constant 258 : index
    %c0_166 = arith.constant 0 : index
    %155 = vector.load %arg25[%c258_165, %c0_166] : memref<288x32xbf16, #tpu.memory_space<vmem>>, vector<5x32xbf16>
    %c187_167 = arith.constant 187 : index
    %c0_168 = arith.constant 0 : index
    %156 = vector.load %arg25[%c187_167, %c0_168] : memref<288x32xbf16, #tpu.memory_space<vmem>>, vector<5x32xbf16>
    %c259_169 = arith.constant 259 : index
    %c0_170 = arith.constant 0 : index
    %157 = vector.load %arg25[%c259_169, %c0_170] : memref<288x32xbf16, #tpu.memory_space<vmem>>, vector<5x32xbf16>
    %c48 = arith.constant 48 : index
    %c0_171 = arith.constant 0 : index
    %158 = vector.load %arg25[%c48, %c0_171] : memref<288x32xbf16, #tpu.memory_space<vmem>>, vector<5x32xbf16>
    %c120 = arith.constant 120 : index
    %c0_172 = arith.constant 0 : index
    %159 = vector.load %arg25[%c120, %c0_172] : memref<288x32xbf16, #tpu.memory_space<vmem>>, vector<5x32xbf16>
    %c49 = arith.constant 49 : index
    %c0_173 = arith.constant 0 : index
    %160 = vector.load %arg25[%c49, %c0_173] : memref<288x32xbf16, #tpu.memory_space<vmem>>, vector<5x32xbf16>
    %c121 = arith.constant 121 : index
    %c0_174 = arith.constant 0 : index
    %161 = vector.load %arg25[%c121, %c0_174] : memref<288x32xbf16, #tpu.memory_space<vmem>>, vector<5x32xbf16>
    %c192 = arith.constant 192 : index
    %c0_175 = arith.constant 0 : index
    %162 = vector.load %arg25[%c192, %c0_175] : memref<288x32xbf16, #tpu.memory_space<vmem>>, vector<5x32xbf16>
    %c264 = arith.constant 264 : index
    %c0_176 = arith.constant 0 : index
    %163 = vector.load %arg25[%c264, %c0_176] : memref<288x32xbf16, #tpu.memory_space<vmem>>, vector<5x32xbf16>
    %c193 = arith.constant 193 : index
    %c0_177 = arith.constant 0 : index
    %164 = vector.load %arg25[%c193, %c0_177] : memref<288x32xbf16, #tpu.memory_space<vmem>>, vector<5x32xbf16>
    %c265 = arith.constant 265 : index
    %c0_178 = arith.constant 0 : index
    %165 = vector.load %arg25[%c265, %c0_178] : memref<288x32xbf16, #tpu.memory_space<vmem>>, vector<5x32xbf16>
    %166 = tpu.concatenate %150, %151, %152, %153, %154, %155, %156, %157, %158, %159, %160, %161, %162, %163, %164, %165 in 1 : vector<5x32xbf16>, vector<5x32xbf16>, vector<5x32xbf16>, vector<5x32xbf16>, vector<5x32xbf16>, vector<5x32xbf16>, vector<5x32xbf16>, vector<5x32xbf16>, vector<5x32xbf16>, vector<5x32xbf16>, vector<5x32xbf16>, vector<5x32xbf16>, vector<5x32xbf16>, vector<5x32xbf16>, vector<5x32xbf16>, vector<5x32xbf16> -> vector<5x512xbf16>
    %c30_179 = arith.constant 30 : index
    %c0_180 = arith.constant 0 : index
    %167 = vector.load %arg26[%c30_179, %c0_180] : memref<50x512xbf16, #tpu.memory_space<vmem>>, vector<5x512xbf16>
    tpu.vector_store %arg26[%c30_179, %c0_180], %166 {strides = array<i32>} : memref<50x512xbf16, #tpu.memory_space<vmem>>, vector<5x512xbf16>,
    %c48_181 = arith.constant 48 : index
    %c0_182 = arith.constant 0 : index
    %168 = vector.load %arg25[%c48_181, %c0_182] : memref<288x32xbf16, #tpu.memory_space<vmem>>, vector<5x32xbf16>
    %c120_183 = arith.constant 120 : index
    %c0_184 = arith.constant 0 : index
    %169 = vector.load %arg25[%c120_183, %c0_184] : memref<288x32xbf16, #tpu.memory_space<vmem>>, vector<5x32xbf16>
    %c49_185 = arith.constant 49 : index
    %c0_186 = arith.constant 0 : index
    %170 = vector.load %arg25[%c49_185, %c0_186] : memref<288x32xbf16, #tpu.memory_space<vmem>>, vector<5x32xbf16>
    %c121_187 = arith.constant 121 : index
    %c0_188 = arith.constant 0 : index
    %171 = vector.load %arg25[%c121_187, %c0_188] : memref<288x32xbf16, #tpu.memory_space<vmem>>, vector<5x32xbf16>
    %c192_189 = arith.constant 192 : index
    %c0_190 = arith.constant 0 : index
    %172 = vector.load %arg25[%c192_189, %c0_190] : memref<288x32xbf16, #tpu.memory_space<vmem>>, vector<5x32xbf16>
    %c264_191 = arith.constant 264 : index
    %c0_192 = arith.constant 0 : index
    %173 = vector.load %arg25[%c264_191, %c0_192] : memref<288x32xbf16, #tpu.memory_space<vmem>>, vector<5x32xbf16>
    %c193_193 = arith.constant 193 : index
    %c0_194 = arith.constant 0 : index
    %174 = vector.load %arg25[%c193_193, %c0_194] : memref<288x32xbf16, #tpu.memory_space<vmem>>, vector<5x32xbf16>
    %c265_195 = arith.constant 265 : index
    %c0_196 = arith.constant 0 : index
    %175 = vector.load %arg25[%c265_195, %c0_196] : memref<288x32xbf16, #tpu.memory_space<vmem>>, vector<5x32xbf16>
    %c54 = arith.constant 54 : index
    %c0_197 = arith.constant 0 : index
    %176 = vector.load %arg25[%c54, %c0_197] : memref<288x32xbf16, #tpu.memory_space<vmem>>, vector<5x32xbf16>
    %c126 = arith.constant 126 : index
    %c0_198 = arith.constant 0 : index
    %177 = vector.load %arg25[%c126, %c0_198] : memref<288x32xbf16, #tpu.memory_space<vmem>>, vector<5x32xbf16>
    %c55 = arith.constant 55 : index
    %c0_199 = arith.constant 0 : index
    %178 = vector.load %arg25[%c55, %c0_199] : memref<288x32xbf16, #tpu.memory_space<vmem>>, vector<5x32xbf16>
    %c127 = arith.constant 127 : index
    %c0_200 = arith.constant 0 : index
    %179 = vector.load %arg25[%c127, %c0_200] : memref<288x32xbf16, #tpu.memory_space<vmem>>, vector<5x32xbf16>
    %c198 = arith.constant 198 : index
    %c0_201 = arith.constant 0 : index
    %180 = vector.load %arg25[%c198, %c0_201] : memref<288x32xbf16, #tpu.memory_space<vmem>>, vector<5x32xbf16>
    %c270 = arith.constant 270 : index
    %c0_202 = arith.constant 0 : index
    %181 = vector.load %arg25[%c270, %c0_202] : memref<288x32xbf16, #tpu.memory_space<vmem>>, vector<5x32xbf16>
    %c199 = arith.constant 199 : index
    %c0_203 = arith.constant 0 : index
    %182 = vector.load %arg25[%c199, %c0_203] : memref<288x32xbf16, #tpu.memory_space<vmem>>, vector<5x32xbf16>
    %c271 = arith.constant 271 : index
    %c0_204 = arith.constant 0 : index
    %183 = vector.load %arg25[%c271, %c0_204] : memref<288x32xbf16, #tpu.memory_space<vmem>>, vector<5x32xbf16>
    %184 = tpu.concatenate %168, %169, %170, %171, %172, %173, %174, %175, %176, %177, %178, %179, %180, %181, %182, %183 in 1 : vector<5x32xbf16>, vector<5x32xbf16>, vector<5x32xbf16>, vector<5x32xbf16>, vector<5x32xbf16>, vector<5x32xbf16>, vector<5x32xbf16>, vector<5x32xbf16>, vector<5x32xbf16>, vector<5x32xbf16>, vector<5x32xbf16>, vector<5x32xbf16>, vector<5x32xbf16>, vector<5x32xbf16>, vector<5x32xbf16>, vector<5x32xbf16> -> vector<5x512xbf16>
    %c35 = arith.constant 35 : index
    %c0_205 = arith.constant 0 : index
    %185 = vector.load %arg26[%c35, %c0_205] : memref<50x512xbf16, #tpu.memory_space<vmem>>, vector<5x512xbf16>
    tpu.vector_store %arg26[%c35, %c0_205], %184 {strides = array<i32>} : memref<50x512xbf16, #tpu.memory_space<vmem>>, vector<5x512xbf16>,
    %c54_206 = arith.constant 54 : index
    %c0_207 = arith.constant 0 : index
    %186 = vector.load %arg25[%c54_206, %c0_207] : memref<288x32xbf16, #tpu.memory_space<vmem>>, vector<5x32xbf16>
    %c126_208 = arith.constant 126 : index
    %c0_209 = arith.constant 0 : index
    %187 = vector.load %arg25[%c126_208, %c0_209] : memref<288x32xbf16, #tpu.memory_space<vmem>>, vector<5x32xbf16>
    %c55_210 = arith.constant 55 : index
    %c0_211 = arith.constant 0 : index
    %188 = vector.load %arg25[%c55_210, %c0_211] : memref<288x32xbf16, #tpu.memory_space<vmem>>, vector<5x32xbf16>
    %c127_212 = arith.constant 127 : index
    %c0_213 = arith.constant 0 : index
    %189 = vector.load %arg25[%c127_212, %c0_213] : memref<288x32xbf16, #tpu.memory_space<vmem>>, vector<5x32xbf16>
    %c198_214 = arith.constant 198 : index
    %c0_215 = arith.constant 0 : index
    %190 = vector.load %arg25[%c198_214, %c0_215] : memref<288x32xbf16, #tpu.memory_space<vmem>>, vector<5x32xbf16>
    %c270_216 = arith.constant 270 : index
    %c0_217 = arith.constant 0 : index
    %191 = vector.load %arg25[%c270_216, %c0_217] : memref<288x32xbf16, #tpu.memory_space<vmem>>, vector<5x32xbf16>
    %c199_218 = arith.constant 199 : index
    %c0_219 = arith.constant 0 : index
    %192 = vector.load %arg25[%c199_218, %c0_219] : memref<288x32xbf16, #tpu.memory_space<vmem>>, vector<5x32xbf16>
    %c271_220 = arith.constant 271 : index
    %c0_221 = arith.constant 0 : index
    %193 = vector.load %arg25[%c271_220, %c0_221] : memref<288x32xbf16, #tpu.memory_space<vmem>>, vector<5x32xbf16>
    %c60 = arith.constant 60 : index
    %c0_222 = arith.constant 0 : index
    %194 = vector.load %arg25[%c60, %c0_222] : memref<288x32xbf16, #tpu.memory_space<vmem>>, vector<5x32xbf16>
    %c132 = arith.constant 132 : index
    %c0_223 = arith.constant 0 : index
    %195 = vector.load %arg25[%c132, %c0_223] : memref<288x32xbf16, #tpu.memory_space<vmem>>, vector<5x32xbf16>
    %c61 = arith.constant 61 : index
    %c0_224 = arith.constant 0 : index
    %196 = vector.load %arg25[%c61, %c0_224] : memref<288x32xbf16, #tpu.memory_space<vmem>>, vector<5x32xbf16>
    %c133 = arith.constant 133 : index
    %c0_225 = arith.constant 0 : index
    %197 = vector.load %arg25[%c133, %c0_225] : memref<288x32xbf16, #tpu.memory_space<vmem>>, vector<5x32xbf16>
    %c204 = arith.constant 204 : index
    %c0_226 = arith.constant 0 : index
    %198 = vector.load %arg25[%c204, %c0_226] : memref<288x32xbf16, #tpu.memory_space<vmem>>, vector<5x32xbf16>
    %c276 = arith.constant 276 : index
    %c0_227 = arith.constant 0 : index
    %199 = vector.load %arg25[%c276, %c0_227] : memref<288x32xbf16, #tpu.memory_space<vmem>>, vector<5x32xbf16>
    %c205 = arith.constant 205 : index
    %c0_228 = arith.constant 0 : index
    %200 = vector.load %arg25[%c205, %c0_228] : memref<288x32xbf16, #tpu.memory_space<vmem>>, vector<5x32xbf16>
    %c277 = arith.constant 277 : index
    %c0_229 = arith.constant 0 : index
    %201 = vector.load %arg25[%c277, %c0_229] : memref<288x32xbf16, #tpu.memory_space<vmem>>, vector<5x32xbf16>
    %202 = tpu.concatenate %186, %187, %188, %189, %190, %191, %192, %193, %194, %195, %196, %197, %198, %199, %200, %201 in 1 : vector<5x32xbf16>, vector<5x32xbf16>, vector<5x32xbf16>, vector<5x32xbf16>, vector<5x32xbf16>, vector<5x32xbf16>, vector<5x32xbf16>, vector<5x32xbf16>, vector<5x32xbf16>, vector<5x32xbf16>, vector<5x32xbf16>, vector<5x32xbf16>, vector<5x32xbf16>, vector<5x32xbf16>, vector<5x32xbf16>, vector<5x32xbf16> -> vector<5x512xbf16>
    %c40 = arith.constant 40 : index
    %c0_230 = arith.constant 0 : index
    %203 = vector.load %arg26[%c40, %c0_230] : memref<50x512xbf16, #tpu.memory_space<vmem>>, vector<5x512xbf16>
    tpu.vector_store %arg26[%c40, %c0_230], %202 {strides = array<i32>} : memref<50x512xbf16, #tpu.memory_space<vmem>>, vector<5x512xbf16>,
    %c60_231 = arith.constant 60 : index
    %c0_232 = arith.constant 0 : index
    %204 = vector.load %arg25[%c60_231, %c0_232] : memref<288x32xbf16, #tpu.memory_space<vmem>>, vector<5x32xbf16>
    %c132_233 = arith.constant 132 : index
    %c0_234 = arith.constant 0 : index
    %205 = vector.load %arg25[%c132_233, %c0_234] : memref<288x32xbf16, #tpu.memory_space<vmem>>, vector<5x32xbf16>
    %c61_235 = arith.constant 61 : index
    %c0_236 = arith.constant 0 : index
    %206 = vector.load %arg25[%c61_235, %c0_236] : memref<288x32xbf16, #tpu.memory_space<vmem>>, vector<5x32xbf16>
    %c133_237 = arith.constant 133 : index
    %c0_238 = arith.constant 0 : index
    %207 = vector.load %arg25[%c133_237, %c0_238] : memref<288x32xbf16, #tpu.memory_space<vmem>>, vector<5x32xbf16>
    %c204_239 = arith.constant 204 : index
    %c0_240 = arith.constant 0 : index
    %208 = vector.load %arg25[%c204_239, %c0_240] : memref<288x32xbf16, #tpu.memory_space<vmem>>, vector<5x32xbf16>
    %c276_241 = arith.constant 276 : index
    %c0_242 = arith.constant 0 : index
    %209 = vector.load %arg25[%c276_241, %c0_242] : memref<288x32xbf16, #tpu.memory_space<vmem>>, vector<5x32xbf16>
    %c205_243 = arith.constant 205 : index
    %c0_244 = arith.constant 0 : index
    %210 = vector.load %arg25[%c205_243, %c0_244] : memref<288x32xbf16, #tpu.memory_space<vmem>>, vector<5x32xbf16>
    %c277_245 = arith.constant 277 : index
    %c0_246 = arith.constant 0 : index
    %211 = vector.load %arg25[%c277_245, %c0_246] : memref<288x32xbf16, #tpu.memory_space<vmem>>, vector<5x32xbf16>
    %c66 = arith.constant 66 : index
    %c0_247 = arith.constant 0 : index
    %212 = vector.load %arg25[%c66, %c0_247] : memref<288x32xbf16, #tpu.memory_space<vmem>>, vector<5x32xbf16>
    %c138 = arith.constant 138 : index
    %c0_248 = arith.constant 0 : index
    %213 = vector.load %arg25[%c138, %c0_248] : memref<288x32xbf16, #tpu.memory_space<vmem>>, vector<5x32xbf16>
    %c67 = arith.constant 67 : index
    %c0_249 = arith.constant 0 : index
    %214 = vector.load %arg25[%c67, %c0_249] : memref<288x32xbf16, #tpu.memory_space<vmem>>, vector<5x32xbf16>
    %c139 = arith.constant 139 : index
    %c0_250 = arith.constant 0 : index
    %215 = vector.load %arg25[%c139, %c0_250] : memref<288x32xbf16, #tpu.memory_space<vmem>>, vector<5x32xbf16>
    %c210 = arith.constant 210 : index
    %c0_251 = arith.constant 0 : index
    %216 = vector.load %arg25[%c210, %c0_251] : memref<288x32xbf16, #tpu.memory_space<vmem>>, vector<5x32xbf16>
    %c282 = arith.constant 282 : index
    %c0_252 = arith.constant 0 : index
    %217 = vector.load %arg25[%c282, %c0_252] : memref<288x32xbf16, #tpu.memory_space<vmem>>, vector<5x32xbf16>
    %c211 = arith.constant 211 : index
    %c0_253 = arith.constant 0 : index
    %218 = vector.load %arg25[%c211, %c0_253] : memref<288x32xbf16, #tpu.memory_space<vmem>>, vector<5x32xbf16>
    %c283 = arith.constant 283 : index
    %c0_254 = arith.constant 0 : index
    %219 = vector.load %arg25[%c283, %c0_254] : memref<288x32xbf16, #tpu.memory_space<vmem>>, vector<5x32xbf16>
    %220 = tpu.concatenate %204, %205, %206, %207, %208, %209, %210, %211, %212, %213, %214, %215, %216, %217, %218, %219 in 1 : vector<5x32xbf16>, vector<5x32xbf16>, vector<5x32xbf16>, vector<5x32xbf16>, vector<5x32xbf16>, vector<5x32xbf16>, vector<5x32xbf16>, vector<5x32xbf16>, vector<5x32xbf16>, vector<5x32xbf16>, vector<5x32xbf16>, vector<5x32xbf16>, vector<5x32xbf16>, vector<5x32xbf16>, vector<5x32xbf16>, vector<5x32xbf16> -> vector<5x512xbf16>
    %c45 = arith.constant 45 : index
    %c0_255 = arith.constant 0 : index
    %221 = vector.load %arg26[%c45, %c0_255] : memref<50x512xbf16, #tpu.memory_space<vmem>>, vector<5x512xbf16>
    tpu.vector_store %arg26[%c45, %c0_255], %220 {strides = array<i32>} : memref<50x512xbf16, #tpu.memory_space<vmem>>, vector<5x512xbf16>,
    %c0_256 = arith.constant 0 : index
    %c0_257 = arith.constant 0 : index
    %222 = vector.load %arg26[%c0_256, %c0_257] : memref<50x512xbf16, #tpu.memory_space<vmem>>, vector<50x512xbf16>
    %c0_258 = arith.constant 0 : index
    %c0_259 = arith.constant 0 : index
    %223 = vector.load %arg6[%c0_258, %c0_259] : memref<512x64xbf16, #tpu.memory_space<vmem>>, vector<512x64xbf16>
    %cst_260 = arith.constant dense<0.000000e+00> : vector<50x64xf32>
    %224 = tpu.matmul %222, %223, %cst_260 {dimension_numbers = #tpu.dot_dimension_numbers<[1], [0], [0], [1], [0, 0, 1, 1], [], []>} : vector<50x512xbf16>, vector<512x64xbf16>, vector<50x64xf32> -> vector<50x64xf32>
    %c0_261 = arith.constant 0 : index
    %c0_262 = arith.constant 0 : index
    %225 = vector.load %arg7[%c0_261, %c0_262] : memref<1x64xf32, #tpu.memory_space<vmem>>, vector<1x64xf32>
    %226 = vector.broadcast %225 : vector<1x64xf32> to vector<50x64xf32>
    %227 = arith.addf %224, %226 : vector<50x64xf32>
    %cst_263 = arith.constant 0.000000e+00 : f32
    %228 = vector.broadcast %cst_263 : f32 to vector<50x64xf32>
    %229 = arith.maximumf %227, %228 : vector<50x64xf32>
    %c0_264 = arith.constant 0 : index
    %c0_265 = arith.constant 0 : index
    %230 = vector.load %arg8[%c0_264, %c0_265] : memref<1x64xf32, #tpu.memory_space<vmem>>, vector<1x64xf32>
    %c0_266 = arith.constant 0 : index
    %c0_267 = arith.constant 0 : index
    %231 = vector.load %arg9[%c0_266, %c0_267] : memref<1x64xf32, #tpu.memory_space<vmem>>, vector<1x64xf32>
    %cst_268 = arith.constant dense<0.000000e+00> : vector<64xf32>
    %232 = vector.multi_reduction <add>, %229, %cst_268 [0] : vector<50x64xf32> to vector<64xf32>
    %233 = vector.shape_cast %232 : vector<64xf32> to vector<1x64xf32>
    %cst_269 = arith.constant 2.000000e-02 : f32
    %234 = vector.broadcast %cst_269 : f32 to vector<1x64xf32>
    %235 = arith.mulf %233, %234 : vector<1x64xf32>
    %236 = arith.mulf %229, %229 : vector<50x64xf32>
    %cst_270 = arith.constant dense<0.000000e+00> : vector<64xf32>
    %237 = vector.multi_reduction <add>, %236, %cst_270 [0] : vector<50x64xf32> to vector<64xf32>
    %238 = vector.shape_cast %237 : vector<64xf32> to vector<1x64xf32>
    %cst_271 = arith.constant 2.000000e-02 : f32
    %239 = vector.broadcast %cst_271 : f32 to vector<1x64xf32>
    %240 = arith.mulf %238, %239 : vector<1x64xf32>
    %241 = arith.mulf %235, %235 : vector<1x64xf32>
    %242 = arith.subf %240, %241 : vector<1x64xf32>
    %cst_272 = arith.constant 0.000000e+00 : f32
    %243 = vector.broadcast %cst_272 : f32 to vector<1x64xf32>
    %244 = arith.maximumf %242, %243 : vector<1x64xf32>
    %245 = vector.broadcast %235 : vector<1x64xf32> to vector<50x64xf32>
    %246 = arith.subf %229, %245 : vector<50x64xf32>
    %247 = vector.broadcast %230 : vector<1x64xf32> to vector<50x64xf32>
    %248 = arith.mulf %247, %246 : vector<50x64xf32>
    %cst_273 = arith.constant 9.99999974E-6 : f32
    %249 = vector.broadcast %cst_273 : f32 to vector<1x64xf32>
    %250 = arith.addf %244, %249 : vector<1x64xf32>
    %251 = math.rsqrt %250 : vector<1x64xf32>
    %252 = vector.broadcast %251 : vector<1x64xf32> to vector<50x64xf32>
    %253 = arith.mulf %248, %252 : vector<50x64xf32>
    %254 = vector.broadcast %231 : vector<1x64xf32> to vector<50x64xf32>
    %255 = arith.addf %253, %254 : vector<50x64xf32>
    %256 = arith.truncf %255 : vector<50x64xf32> to vector<50x64xbf16>
    %c0_274 = arith.constant 0 : index
    %c0_275 = arith.constant 0 : index
    %257 = vector.load %arg27[%c0_274, %c0_275] : memref<50x64xbf16, #tpu.memory_space<vmem>>, vector<50x64xbf16>
    tpu.vector_store %arg27[%c0_274, %c0_275], %256 {strides = array<i32>} : memref<50x64xbf16, #tpu.memory_space<vmem>>, vector<50x64xbf16>,
    %c0_276 = arith.constant 0 : index
    %c0_277 = arith.constant 0 : index
    %258 = vector.load %arg27[%c0_276, %c0_277] : memref<50x64xbf16, #tpu.memory_space<vmem>>, vector<3x64xbf16>
    %c1_278 = arith.constant 1 : index
    %c0_279 = arith.constant 0 : index
    %259 = vector.load %arg27[%c1_278, %c0_279] : memref<50x64xbf16, #tpu.memory_space<vmem>>, vector<3x64xbf16>
    %c2 = arith.constant 2 : index
    %c0_280 = arith.constant 0 : index
    %260 = vector.load %arg27[%c2, %c0_280] : memref<50x64xbf16, #tpu.memory_space<vmem>>, vector<3x64xbf16>
    %c5_281 = arith.constant 5 : index
    %c0_282 = arith.constant 0 : index
    %261 = vector.load %arg27[%c5_281, %c0_282] : memref<50x64xbf16, #tpu.memory_space<vmem>>, vector<3x64xbf16>
    %c6_283 = arith.constant 6 : index
    %c0_284 = arith.constant 0 : index
    %262 = vector.load %arg27[%c6_283, %c0_284] : memref<50x64xbf16, #tpu.memory_space<vmem>>, vector<3x64xbf16>
    %c7_285 = arith.constant 7 : index
    %c0_286 = arith.constant 0 : index
    %263 = vector.load %arg27[%c7_285, %c0_286] : memref<50x64xbf16, #tpu.memory_space<vmem>>, vector<3x64xbf16>
    %c10_287 = arith.constant 10 : index
    %c0_288 = arith.constant 0 : index
    %264 = vector.load %arg27[%c10_287, %c0_288] : memref<50x64xbf16, #tpu.memory_space<vmem>>, vector<3x64xbf16>
    %c11 = arith.constant 11 : index
    %c0_289 = arith.constant 0 : index
    %265 = vector.load %arg27[%c11, %c0_289] : memref<50x64xbf16, #tpu.memory_space<vmem>>, vector<3x64xbf16>
    %c12_290 = arith.constant 12 : index
    %c0_291 = arith.constant 0 : index
    %266 = vector.load %arg27[%c12_290, %c0_291] : memref<50x64xbf16, #tpu.memory_space<vmem>>, vector<3x64xbf16>
    %267 = tpu.concatenate %258, %259, %260, %261, %262, %263, %264, %265, %266 in 1 : vector<3x64xbf16>, vector<3x64xbf16>, vector<3x64xbf16>, vector<3x64xbf16>, vector<3x64xbf16>, vector<3x64xbf16>, vector<3x64xbf16>, vector<3x64xbf16>, vector<3x64xbf16> -> vector<3x576xbf16>
    %c0_292 = arith.constant 0 : index
    %c0_293 = arith.constant 0 : index
    %268 = vector.load %arg28[%c0_292, %c0_293] : memref<18x576xbf16, #tpu.memory_space<vmem>>, vector<3x576xbf16>
    tpu.vector_store %arg28[%c0_292, %c0_293], %267 {strides = array<i32>} : memref<18x576xbf16, #tpu.memory_space<vmem>>, vector<3x576xbf16>,
    %c5_294 = arith.constant 5 : index
    %c0_295 = arith.constant 0 : index
    %269 = vector.load %arg27[%c5_294, %c0_295] : memref<50x64xbf16, #tpu.memory_space<vmem>>, vector<3x64xbf16>
    %c6_296 = arith.constant 6 : index
    %c0_297 = arith.constant 0 : index
    %270 = vector.load %arg27[%c6_296, %c0_297] : memref<50x64xbf16, #tpu.memory_space<vmem>>, vector<3x64xbf16>
    %c7_298 = arith.constant 7 : index
    %c0_299 = arith.constant 0 : index
    %271 = vector.load %arg27[%c7_298, %c0_299] : memref<50x64xbf16, #tpu.memory_space<vmem>>, vector<3x64xbf16>
    %c10_300 = arith.constant 10 : index
    %c0_301 = arith.constant 0 : index
    %272 = vector.load %arg27[%c10_300, %c0_301] : memref<50x64xbf16, #tpu.memory_space<vmem>>, vector<3x64xbf16>
    %c11_302 = arith.constant 11 : index
    %c0_303 = arith.constant 0 : index
    %273 = vector.load %arg27[%c11_302, %c0_303] : memref<50x64xbf16, #tpu.memory_space<vmem>>, vector<3x64xbf16>
    %c12_304 = arith.constant 12 : index
    %c0_305 = arith.constant 0 : index
    %274 = vector.load %arg27[%c12_304, %c0_305] : memref<50x64xbf16, #tpu.memory_space<vmem>>, vector<3x64xbf16>
    %c15_306 = arith.constant 15 : index
    %c0_307 = arith.constant 0 : index
    %275 = vector.load %arg27[%c15_306, %c0_307] : memref<50x64xbf16, #tpu.memory_space<vmem>>, vector<3x64xbf16>
    %c16 = arith.constant 16 : index
    %c0_308 = arith.constant 0 : index
    %276 = vector.load %arg27[%c16, %c0_308] : memref<50x64xbf16, #tpu.memory_space<vmem>>, vector<3x64xbf16>
    %c17 = arith.constant 17 : index
    %c0_309 = arith.constant 0 : index
    %277 = vector.load %arg27[%c17, %c0_309] : memref<50x64xbf16, #tpu.memory_space<vmem>>, vector<3x64xbf16>
    %278 = tpu.concatenate %269, %270, %271, %272, %273, %274, %275, %276, %277 in 1 : vector<3x64xbf16>, vector<3x64xbf16>, vector<3x64xbf16>, vector<3x64xbf16>, vector<3x64xbf16>, vector<3x64xbf16>, vector<3x64xbf16>, vector<3x64xbf16>, vector<3x64xbf16> -> vector<3x576xbf16>
    %c3 = arith.constant 3 : index
    %c0_310 = arith.constant 0 : index
    %279 = vector.load %arg28[%c3, %c0_310] : memref<18x576xbf16, #tpu.memory_space<vmem>>, vector<3x576xbf16>
    tpu.vector_store %arg28[%c3, %c0_310], %278 {strides = array<i32>} : memref<18x576xbf16, #tpu.memory_space<vmem>>, vector<3x576xbf16>,
    %c10_311 = arith.constant 10 : index
    %c0_312 = arith.constant 0 : index
    %280 = vector.load %arg27[%c10_311, %c0_312] : memref<50x64xbf16, #tpu.memory_space<vmem>>, vector<3x64xbf16>
    %c11_313 = arith.constant 11 : index
    %c0_314 = arith.constant 0 : index
    %281 = vector.load %arg27[%c11_313, %c0_314] : memref<50x64xbf16, #tpu.memory_space<vmem>>, vector<3x64xbf16>
    %c12_315 = arith.constant 12 : index
    %c0_316 = arith.constant 0 : index
    %282 = vector.load %arg27[%c12_315, %c0_316] : memref<50x64xbf16, #tpu.memory_space<vmem>>, vector<3x64xbf16>
    %c15_317 = arith.constant 15 : index
    %c0_318 = arith.constant 0 : index
    %283 = vector.load %arg27[%c15_317, %c0_318] : memref<50x64xbf16, #tpu.memory_space<vmem>>, vector<3x64xbf16>
    %c16_319 = arith.constant 16 : index
    %c0_320 = arith.constant 0 : index
    %284 = vector.load %arg27[%c16_319, %c0_320] : memref<50x64xbf16, #tpu.memory_space<vmem>>, vector<3x64xbf16>
    %c17_321 = arith.constant 17 : index
    %c0_322 = arith.constant 0 : index
    %285 = vector.load %arg27[%c17_321, %c0_322] : memref<50x64xbf16, #tpu.memory_space<vmem>>, vector<3x64xbf16>
    %c20_323 = arith.constant 20 : index
    %c0_324 = arith.constant 0 : index
    %286 = vector.load %arg27[%c20_323, %c0_324] : memref<50x64xbf16, #tpu.memory_space<vmem>>, vector<3x64xbf16>
    %c21 = arith.constant 21 : index
    %c0_325 = arith.constant 0 : index
    %287 = vector.load %arg27[%c21, %c0_325] : memref<50x64xbf16, #tpu.memory_space<vmem>>, vector<3x64xbf16>
    %c22 = arith.constant 22 : index
    %c0_326 = arith.constant 0 : index
    %288 = vector.load %arg27[%c22, %c0_326] : memref<50x64xbf16, #tpu.memory_space<vmem>>, vector<3x64xbf16>
    %289 = tpu.concatenate %280, %281, %282, %283, %284, %285, %286, %287, %288 in 1 : vector<3x64xbf16>, vector<3x64xbf16>, vector<3x64xbf16>, vector<3x64xbf16>, vector<3x64xbf16>, vector<3x64xbf16>, vector<3x64xbf16>, vector<3x64xbf16>, vector<3x64xbf16> -> vector<3x576xbf16>
    %c6_327 = arith.constant 6 : index
    %c0_328 = arith.constant 0 : index
    %290 = vector.load %arg28[%c6_327, %c0_328] : memref<18x576xbf16, #tpu.memory_space<vmem>>, vector<3x576xbf16>
    tpu.vector_store %arg28[%c6_327, %c0_328], %289 {strides = array<i32>} : memref<18x576xbf16, #tpu.memory_space<vmem>>, vector<3x576xbf16>,
    %c25_329 = arith.constant 25 : index
    %c0_330 = arith.constant 0 : index
    %291 = vector.load %arg27[%c25_329, %c0_330] : memref<50x64xbf16, #tpu.memory_space<vmem>>, vector<3x64xbf16>
    %c26 = arith.constant 26 : index
    %c0_331 = arith.constant 0 : index
    %292 = vector.load %arg27[%c26, %c0_331] : memref<50x64xbf16, #tpu.memory_space<vmem>>, vector<3x64xbf16>
    %c27 = arith.constant 27 : index
    %c0_332 = arith.constant 0 : index
    %293 = vector.load %arg27[%c27, %c0_332] : memref<50x64xbf16, #tpu.memory_space<vmem>>, vector<3x64xbf16>
    %c30_333 = arith.constant 30 : index
    %c0_334 = arith.constant 0 : index
    %294 = vector.load %arg27[%c30_333, %c0_334] : memref<50x64xbf16, #tpu.memory_space<vmem>>, vector<3x64xbf16>
    %c31_335 = arith.constant 31 : index
    %c0_336 = arith.constant 0 : index
    %295 = vector.load %arg27[%c31_335, %c0_336] : memref<50x64xbf16, #tpu.memory_space<vmem>>, vector<3x64xbf16>
    %c32 = arith.constant 32 : index
    %c0_337 = arith.constant 0 : index
    %296 = vector.load %arg27[%c32, %c0_337] : memref<50x64xbf16, #tpu.memory_space<vmem>>, vector<3x64xbf16>
    %c35_338 = arith.constant 35 : index
    %c0_339 = arith.constant 0 : index
    %297 = vector.load %arg27[%c35_338, %c0_339] : memref<50x64xbf16, #tpu.memory_space<vmem>>, vector<3x64xbf16>
    %c36_340 = arith.constant 36 : index
    %c0_341 = arith.constant 0 : index
    %298 = vector.load %arg27[%c36_340, %c0_341] : memref<50x64xbf16, #tpu.memory_space<vmem>>, vector<3x64xbf16>
    %c37_342 = arith.constant 37 : index
    %c0_343 = arith.constant 0 : index
    %299 = vector.load %arg27[%c37_342, %c0_343] : memref<50x64xbf16, #tpu.memory_space<vmem>>, vector<3x64xbf16>
    %300 = tpu.concatenate %291, %292, %293, %294, %295, %296, %297, %298, %299 in 1 : vector<3x64xbf16>, vector<3x64xbf16>, vector<3x64xbf16>, vector<3x64xbf16>, vector<3x64xbf16>, vector<3x64xbf16>, vector<3x64xbf16>, vector<3x64xbf16>, vector<3x64xbf16> -> vector<3x576xbf16>
    %c9 = arith.constant 9 : index
    %c0_344 = arith.constant 0 : index
    %301 = vector.load %arg28[%c9, %c0_344] : memref<18x576xbf16, #tpu.memory_space<vmem>>, vector<3x576xbf16>
    tpu.vector_store %arg28[%c9, %c0_344], %300 {strides = array<i32>} : memref<18x576xbf16, #tpu.memory_space<vmem>>, vector<3x576xbf16>,
    %c30_345 = arith.constant 30 : index
    %c0_346 = arith.constant 0 : index
    %302 = vector.load %arg27[%c30_345, %c0_346] : memref<50x64xbf16, #tpu.memory_space<vmem>>, vector<3x64xbf16>
    %c31_347 = arith.constant 31 : index
    %c0_348 = arith.constant 0 : index
    %303 = vector.load %arg27[%c31_347, %c0_348] : memref<50x64xbf16, #tpu.memory_space<vmem>>, vector<3x64xbf16>
    %c32_349 = arith.constant 32 : index
    %c0_350 = arith.constant 0 : index
    %304 = vector.load %arg27[%c32_349, %c0_350] : memref<50x64xbf16, #tpu.memory_space<vmem>>, vector<3x64xbf16>
    %c35_351 = arith.constant 35 : index
    %c0_352 = arith.constant 0 : index
    %305 = vector.load %arg27[%c35_351, %c0_352] : memref<50x64xbf16, #tpu.memory_space<vmem>>, vector<3x64xbf16>
    %c36_353 = arith.constant 36 : index
    %c0_354 = arith.constant 0 : index
    %306 = vector.load %arg27[%c36_353, %c0_354] : memref<50x64xbf16, #tpu.memory_space<vmem>>, vector<3x64xbf16>
    %c37_355 = arith.constant 37 : index
    %c0_356 = arith.constant 0 : index
    %307 = vector.load %arg27[%c37_355, %c0_356] : memref<50x64xbf16, #tpu.memory_space<vmem>>, vector<3x64xbf16>
    %c40_357 = arith.constant 40 : index
    %c0_358 = arith.constant 0 : index
    %308 = vector.load %arg27[%c40_357, %c0_358] : memref<50x64xbf16, #tpu.memory_space<vmem>>, vector<3x64xbf16>
    %c41 = arith.constant 41 : index
    %c0_359 = arith.constant 0 : index
    %309 = vector.load %arg27[%c41, %c0_359] : memref<50x64xbf16, #tpu.memory_space<vmem>>, vector<3x64xbf16>
    %c42_360 = arith.constant 42 : index
    %c0_361 = arith.constant 0 : index
    %310 = vector.load %arg27[%c42_360, %c0_361] : memref<50x64xbf16, #tpu.memory_space<vmem>>, vector<3x64xbf16>
    %311 = tpu.concatenate %302, %303, %304, %305, %306, %307, %308, %309, %310 in 1 : vector<3x64xbf16>, vector<3x64xbf16>, vector<3x64xbf16>, vector<3x64xbf16>, vector<3x64xbf16>, vector<3x64xbf16>, vector<3x64xbf16>, vector<3x64xbf16>, vector<3x64xbf16> -> vector<3x576xbf16>
    %c12_362 = arith.constant 12 : index
    %c0_363 = arith.constant 0 : index
    %312 = vector.load %arg28[%c12_362, %c0_363] : memref<18x576xbf16, #tpu.memory_space<vmem>>, vector<3x576xbf16>
    tpu.vector_store %arg28[%c12_362, %c0_363], %311 {strides = array<i32>} : memref<18x576xbf16, #tpu.memory_space<vmem>>, vector<3x576xbf16>,
    %c35_364 = arith.constant 35 : index
    %c0_365 = arith.constant 0 : index
    %313 = vector.load %arg27[%c35_364, %c0_365] : memref<50x64xbf16, #tpu.memory_space<vmem>>, vector<3x64xbf16>
    %c36_366 = arith.constant 36 : index
    %c0_367 = arith.constant 0 : index
    %314 = vector.load %arg27[%c36_366, %c0_367] : memref<50x64xbf16, #tpu.memory_space<vmem>>, vector<3x64xbf16>
    %c37_368 = arith.constant 37 : index
    %c0_369 = arith.constant 0 : index
    %315 = vector.load %arg27[%c37_368, %c0_369] : memref<50x64xbf16, #tpu.memory_space<vmem>>, vector<3x64xbf16>
    %c40_370 = arith.constant 40 : index
    %c0_371 = arith.constant 0 : index
    %316 = vector.load %arg27[%c40_370, %c0_371] : memref<50x64xbf16, #tpu.memory_space<vmem>>, vector<3x64xbf16>
    %c41_372 = arith.constant 41 : index
    %c0_373 = arith.constant 0 : index
    %317 = vector.load %arg27[%c41_372, %c0_373] : memref<50x64xbf16, #tpu.memory_space<vmem>>, vector<3x64xbf16>
    %c42_374 = arith.constant 42 : index
    %c0_375 = arith.constant 0 : index
    %318 = vector.load %arg27[%c42_374, %c0_375] : memref<50x64xbf16, #tpu.memory_space<vmem>>, vector<3x64xbf16>
    %c45_376 = arith.constant 45 : index
    %c0_377 = arith.constant 0 : index
    %319 = vector.load %arg27[%c45_376, %c0_377] : memref<50x64xbf16, #tpu.memory_space<vmem>>, vector<3x64xbf16>
    %c46 = arith.constant 46 : index
    %c0_378 = arith.constant 0 : index
    %320 = vector.load %arg27[%c46, %c0_378] : memref<50x64xbf16, #tpu.memory_space<vmem>>, vector<3x64xbf16>
    %c47 = arith.constant 47 : index
    %c0_379 = arith.constant 0 : index
    %321 = vector.load %arg27[%c47, %c0_379] : memref<50x64xbf16, #tpu.memory_space<vmem>>, vector<3x64xbf16>
    %322 = tpu.concatenate %313, %314, %315, %316, %317, %318, %319, %320, %321 in 1 : vector<3x64xbf16>, vector<3x64xbf16>, vector<3x64xbf16>, vector<3x64xbf16>, vector<3x64xbf16>, vector<3x64xbf16>, vector<3x64xbf16>, vector<3x64xbf16>, vector<3x64xbf16> -> vector<3x576xbf16>
    %c15_380 = arith.constant 15 : index
    %c0_381 = arith.constant 0 : index
    %323 = vector.load %arg28[%c15_380, %c0_381] : memref<18x576xbf16, #tpu.memory_space<vmem>>, vector<3x576xbf16>
    tpu.vector_store %arg28[%c15_380, %c0_381], %322 {strides = array<i32>} : memref<18x576xbf16, #tpu.memory_space<vmem>>, vector<3x576xbf16>,
    %c0_382 = arith.constant 0 : index
    %c0_383 = arith.constant 0 : index
    %324 = vector.load %arg28[%c0_382, %c0_383] : memref<18x576xbf16, #tpu.memory_space<vmem>>, vector<18x576xbf16>
    %c0_384 = arith.constant 0 : index
    %c0_385 = arith.constant 0 : index
    %325 = vector.load %arg10[%c0_384, %c0_385] : memref<576x64xbf16, #tpu.memory_space<vmem>>, vector<576x64xbf16>
    %cst_386 = arith.constant dense<0.000000e+00> : vector<18x64xf32>
    %326 = tpu.matmul %324, %325, %cst_386 {dimension_numbers = #tpu.dot_dimension_numbers<[1], [0], [0], [1], [0, 0, 1, 1], [], []>} : vector<18x576xbf16>, vector<576x64xbf16>, vector<18x64xf32> -> vector<18x64xf32>
    %c0_387 = arith.constant 0 : index
    %c0_388 = arith.constant 0 : index
    %327 = vector.load %arg11[%c0_387, %c0_388] : memref<1x64xf32, #tpu.memory_space<vmem>>, vector<1x64xf32>
    %328 = vector.broadcast %327 : vector<1x64xf32> to vector<18x64xf32>
    %329 = arith.addf %326, %328 : vector<18x64xf32>
    %cst_389 = arith.constant 0.000000e+00 : f32
    %330 = vector.broadcast %cst_389 : f32 to vector<18x64xf32>
    %331 = arith.maximumf %329, %330 : vector<18x64xf32>
    %c0_390 = arith.constant 0 : index
    %c0_391 = arith.constant 0 : index
    %332 = vector.load %arg12[%c0_390, %c0_391] : memref<1x64xf32, #tpu.memory_space<vmem>>, vector<1x64xf32>
    %c0_392 = arith.constant 0 : index
    %c0_393 = arith.constant 0 : index
    %333 = vector.load %arg13[%c0_392, %c0_393] : memref<1x64xf32, #tpu.memory_space<vmem>>, vector<1x64xf32>
    %cst_394 = arith.constant dense<0.000000e+00> : vector<64xf32>
    %334 = vector.multi_reduction <add>, %331, %cst_394 [0] : vector<18x64xf32> to vector<64xf32>
    %335 = vector.shape_cast %334 : vector<64xf32> to vector<1x64xf32>
    %cst_395 = arith.constant 0.055555556 : f32
    %336 = vector.broadcast %cst_395 : f32 to vector<1x64xf32>
    %337 = arith.mulf %335, %336 : vector<1x64xf32>
    %338 = arith.mulf %331, %331 : vector<18x64xf32>
    %cst_396 = arith.constant dense<0.000000e+00> : vector<64xf32>
    %339 = vector.multi_reduction <add>, %338, %cst_396 [0] : vector<18x64xf32> to vector<64xf32>
    %340 = vector.shape_cast %339 : vector<64xf32> to vector<1x64xf32>
    %cst_397 = arith.constant 0.055555556 : f32
    %341 = vector.broadcast %cst_397 : f32 to vector<1x64xf32>
    %342 = arith.mulf %340, %341 : vector<1x64xf32>
    %343 = arith.mulf %337, %337 : vector<1x64xf32>
    %344 = arith.subf %342, %343 : vector<1x64xf32>
    %cst_398 = arith.constant 0.000000e+00 : f32
    %345 = vector.broadcast %cst_398 : f32 to vector<1x64xf32>
    %346 = arith.maximumf %344, %345 : vector<1x64xf32>
    %347 = vector.broadcast %337 : vector<1x64xf32> to vector<18x64xf32>
    %348 = arith.subf %331, %347 : vector<18x64xf32>
    %349 = vector.broadcast %332 : vector<1x64xf32> to vector<18x64xf32>
    %350 = arith.mulf %349, %348 : vector<18x64xf32>
    %cst_399 = arith.constant 9.99999974E-6 : f32
    %351 = vector.broadcast %cst_399 : f32 to vector<1x64xf32>
    %352 = arith.addf %346, %351 : vector<1x64xf32>
    %353 = math.rsqrt %352 : vector<1x64xf32>
    %354 = vector.broadcast %353 : vector<1x64xf32> to vector<18x64xf32>
    %355 = arith.mulf %350, %354 : vector<18x64xf32>
    %356 = vector.broadcast %333 : vector<1x64xf32> to vector<18x64xf32>
    %357 = arith.addf %355, %356 : vector<18x64xf32>
    %358 = arith.truncf %357 : vector<18x64xf32> to vector<18x64xbf16>
    %c0_400 = arith.constant 0 : index
    %c0_401 = arith.constant 0 : index
    %359 = vector.load %arg29[%c0_400, %c0_401] : memref<18x64xbf16, #tpu.memory_space<vmem>>, vector<18x64xbf16>
    tpu.vector_store %arg29[%c0_400, %c0_401], %358 {strides = array<i32>} : memref<18x64xbf16, #tpu.memory_space<vmem>>, vector<18x64xbf16>,
    %c0_402 = arith.constant 0 : index
    %c0_403 = arith.constant 0 : index
    %360 = vector.load %arg29[%c0_402, %c0_403] : memref<18x64xbf16, #tpu.memory_space<vmem>>, vector<1x64xbf16>
    %c1_404 = arith.constant 1 : index
    %c0_405 = arith.constant 0 : index
    %361 = vector.load %arg29[%c1_404, %c0_405] : memref<18x64xbf16, #tpu.memory_space<vmem>>, vector<1x64xbf16>
    %c2_406 = arith.constant 2 : index
    %c0_407 = arith.constant 0 : index
    %362 = vector.load %arg29[%c2_406, %c0_407] : memref<18x64xbf16, #tpu.memory_space<vmem>>, vector<1x64xbf16>
    %c3_408 = arith.constant 3 : index
    %c0_409 = arith.constant 0 : index
    %363 = vector.load %arg29[%c3_408, %c0_409] : memref<18x64xbf16, #tpu.memory_space<vmem>>, vector<1x64xbf16>
    %c4 = arith.constant 4 : index
    %c0_410 = arith.constant 0 : index
    %364 = vector.load %arg29[%c4, %c0_410] : memref<18x64xbf16, #tpu.memory_space<vmem>>, vector<1x64xbf16>
    %c5_411 = arith.constant 5 : index
    %c0_412 = arith.constant 0 : index
    %365 = vector.load %arg29[%c5_411, %c0_412] : memref<18x64xbf16, #tpu.memory_space<vmem>>, vector<1x64xbf16>
    %c6_413 = arith.constant 6 : index
    %c0_414 = arith.constant 0 : index
    %366 = vector.load %arg29[%c6_413, %c0_414] : memref<18x64xbf16, #tpu.memory_space<vmem>>, vector<1x64xbf16>
    %c7_415 = arith.constant 7 : index
    %c0_416 = arith.constant 0 : index
    %367 = vector.load %arg29[%c7_415, %c0_416] : memref<18x64xbf16, #tpu.memory_space<vmem>>, vector<1x64xbf16>
    %c8 = arith.constant 8 : index
    %c0_417 = arith.constant 0 : index
    %368 = vector.load %arg29[%c8, %c0_417] : memref<18x64xbf16, #tpu.memory_space<vmem>>, vector<1x64xbf16>
    %369 = tpu.concatenate %360, %361, %362, %363, %364, %365, %366, %367, %368 in 1 : vector<1x64xbf16>, vector<1x64xbf16>, vector<1x64xbf16>, vector<1x64xbf16>, vector<1x64xbf16>, vector<1x64xbf16>, vector<1x64xbf16>, vector<1x64xbf16>, vector<1x64xbf16> -> vector<1x576xbf16>
    %c0_418 = arith.constant 0 : index
    %c0_419 = arith.constant 0 : index
    %370 = vector.load %arg30[%c0_418, %c0_419] : memref<2x576xbf16, #tpu.memory_space<vmem>>, vector<1x576xbf16>
    tpu.vector_store %arg30[%c0_418, %c0_419], %369 {strides = array<i32>} : memref<2x576xbf16, #tpu.memory_space<vmem>>, vector<1x576xbf16>,
    %c9_420 = arith.constant 9 : index
    %c0_421 = arith.constant 0 : index
    %371 = vector.load %arg29[%c9_420, %c0_421] : memref<18x64xbf16, #tpu.memory_space<vmem>>, vector<1x64xbf16>
    %c10_422 = arith.constant 10 : index
    %c0_423 = arith.constant 0 : index
    %372 = vector.load %arg29[%c10_422, %c0_423] : memref<18x64xbf16, #tpu.memory_space<vmem>>, vector<1x64xbf16>
    %c11_424 = arith.constant 11 : index
    %c0_425 = arith.constant 0 : index
    %373 = vector.load %arg29[%c11_424, %c0_425] : memref<18x64xbf16, #tpu.memory_space<vmem>>, vector<1x64xbf16>
    %c12_426 = arith.constant 12 : index
    %c0_427 = arith.constant 0 : index
    %374 = vector.load %arg29[%c12_426, %c0_427] : memref<18x64xbf16, #tpu.memory_space<vmem>>, vector<1x64xbf16>
    %c13_428 = arith.constant 13 : index
    %c0_429 = arith.constant 0 : index
    %375 = vector.load %arg29[%c13_428, %c0_429] : memref<18x64xbf16, #tpu.memory_space<vmem>>, vector<1x64xbf16>
    %c14 = arith.constant 14 : index
    %c0_430 = arith.constant 0 : index
    %376 = vector.load %arg29[%c14, %c0_430] : memref<18x64xbf16, #tpu.memory_space<vmem>>, vector<1x64xbf16>
    %c15_431 = arith.constant 15 : index
    %c0_432 = arith.constant 0 : index
    %377 = vector.load %arg29[%c15_431, %c0_432] : memref<18x64xbf16, #tpu.memory_space<vmem>>, vector<1x64xbf16>
    %c16_433 = arith.constant 16 : index
    %c0_434 = arith.constant 0 : index
    %378 = vector.load %arg29[%c16_433, %c0_434] : memref<18x64xbf16, #tpu.memory_space<vmem>>, vector<1x64xbf16>
    %c17_435 = arith.constant 17 : index
    %c0_436 = arith.constant 0 : index
    %379 = vector.load %arg29[%c17_435, %c0_436] : memref<18x64xbf16, #tpu.memory_space<vmem>>, vector<1x64xbf16>
    %380 = tpu.concatenate %371, %372, %373, %374, %375, %376, %377, %378, %379 in 1 : vector<1x64xbf16>, vector<1x64xbf16>, vector<1x64xbf16>, vector<1x64xbf16>, vector<1x64xbf16>, vector<1x64xbf16>, vector<1x64xbf16>, vector<1x64xbf16>, vector<1x64xbf16> -> vector<1x576xbf16>
    %c1_437 = arith.constant 1 : index
    %c0_438 = arith.constant 0 : index
    %381 = vector.load %arg30[%c1_437, %c0_438] : memref<2x576xbf16, #tpu.memory_space<vmem>>, vector<1x576xbf16>
    tpu.vector_store %arg30[%c1_437, %c0_438], %380 {strides = array<i32>} : memref<2x576xbf16, #tpu.memory_space<vmem>>, vector<1x576xbf16>,
    %c0_439 = arith.constant 0 : index
    %c0_440 = arith.constant 0 : index
    %382 = vector.load %arg30[%c0_439, %c0_440] : memref<2x576xbf16, #tpu.memory_space<vmem>>, vector<2x576xbf16>
    %c0_441 = arith.constant 0 : index
    %c0_442 = arith.constant 0 : index
    %383 = vector.load %arg14[%c0_441, %c0_442] : memref<576x128xbf16, #tpu.memory_space<vmem>>, vector<576x128xbf16>
    %cst_443 = arith.constant dense<0.000000e+00> : vector<2x128xf32>
    %384 = tpu.matmul %382, %383, %cst_443 {dimension_numbers = #tpu.dot_dimension_numbers<[1], [0], [0], [1], [0, 0, 1, 1], [], []>} : vector<2x576xbf16>, vector<576x128xbf16>, vector<2x128xf32> -> vector<2x128xf32>
    %c0_444 = arith.constant 0 : index
    %c0_445 = arith.constant 0 : index
    %385 = vector.load %arg15[%c0_444, %c0_445] : memref<1x128xf32, #tpu.memory_space<vmem>>, vector<1x128xf32>
    %386 = vector.broadcast %385 : vector<1x128xf32> to vector<2x128xf32>
    %387 = arith.addf %384, %386 : vector<2x128xf32>
    %cst_446 = arith.constant 0.000000e+00 : f32
    %388 = vector.broadcast %cst_446 : f32 to vector<2x128xf32>
    %389 = arith.maximumf %387, %388 : vector<2x128xf32>
    %c0_447 = arith.constant 0 : index
    %c0_448 = arith.constant 0 : index
    %390 = vector.load %arg16[%c0_447, %c0_448] : memref<1x128xf32, #tpu.memory_space<vmem>>, vector<1x128xf32>
    %c0_449 = arith.constant 0 : index
    %c0_450 = arith.constant 0 : index
    %391 = vector.load %arg17[%c0_449, %c0_450] : memref<1x128xf32, #tpu.memory_space<vmem>>, vector<1x128xf32>
    %cst_451 = arith.constant dense<0.000000e+00> : vector<128xf32>
    %392 = vector.multi_reduction <add>, %389, %cst_451 [0] : vector<2x128xf32> to vector<128xf32>
    %393 = vector.shape_cast %392 : vector<128xf32> to vector<1x128xf32>
    %cst_452 = arith.constant 5.000000e-01 : f32
    %394 = vector.broadcast %cst_452 : f32 to vector<1x128xf32>
    %395 = arith.mulf %393, %394 : vector<1x128xf32>
    %396 = arith.mulf %389, %389 : vector<2x128xf32>
    %cst_453 = arith.constant dense<0.000000e+00> : vector<128xf32>
    %397 = vector.multi_reduction <add>, %396, %cst_453 [0] : vector<2x128xf32> to vector<128xf32>
    %398 = vector.shape_cast %397 : vector<128xf32> to vector<1x128xf32>
    %cst_454 = arith.constant 5.000000e-01 : f32
    %399 = vector.broadcast %cst_454 : f32 to vector<1x128xf32>
    %400 = arith.mulf %398, %399 : vector<1x128xf32>
    %401 = arith.mulf %395, %395 : vector<1x128xf32>
    %402 = arith.subf %400, %401 : vector<1x128xf32>
    %cst_455 = arith.constant 0.000000e+00 : f32
    %403 = vector.broadcast %cst_455 : f32 to vector<1x128xf32>
    %404 = arith.maximumf %402, %403 : vector<1x128xf32>
    %405 = vector.broadcast %395 : vector<1x128xf32> to vector<2x128xf32>
    %406 = arith.subf %389, %405 : vector<2x128xf32>
    %407 = vector.broadcast %390 : vector<1x128xf32> to vector<2x128xf32>
    %408 = arith.mulf %407, %406 : vector<2x128xf32>
    %cst_456 = arith.constant 9.99999974E-6 : f32
    %409 = vector.broadcast %cst_456 : f32 to vector<1x128xf32>
    %410 = arith.addf %404, %409 : vector<1x128xf32>
    %411 = math.rsqrt %410 : vector<1x128xf32>
    %412 = vector.broadcast %411 : vector<1x128xf32> to vector<2x128xf32>
    %413 = arith.mulf %408, %412 : vector<2x128xf32>
    %414 = vector.broadcast %391 : vector<1x128xf32> to vector<2x128xf32>
    %415 = arith.addf %413, %414 : vector<2x128xf32>
    %c0_i32_457 = arith.constant 0 : i32
    %416 = tpu.memref_slice %arg34[%c0_i32_457] : memref<3x!tpu.dma_semaphore, #tpu.memory_space<semaphore_mem>> -> memref<1x!tpu.dma_semaphore, #tpu.memory_space<semaphore_mem>>
    %417 = tpu.memref_squeeze %416 : memref<1x!tpu.dma_semaphore, #tpu.memory_space<semaphore_mem>> -> memref<!tpu.dma_semaphore, #tpu.memory_space<semaphore_mem>>
    tpu.wait_dma2 semaphore(%417 : memref<!tpu.dma_semaphore, #tpu.memory_space<semaphore_mem>>) src(%arg21 : memref<128x1024xbf16, #tpu.memory_space<any>>) dst(%arg31 : memref<128x1024xbf16, #tpu.memory_space<vmem>>)
    %418 = arith.truncf %415 : vector<2x128xf32> to vector<2x128xbf16>
    %c0_458 = arith.constant 0 : index
    %c0_459 = arith.constant 0 : index
    %419 = vector.load %arg31[%c0_458, %c0_459] : memref<128x1024xbf16, #tpu.memory_space<vmem>>, vector<128x1024xbf16>
    %cst_460 = arith.constant dense<0.000000e+00> : vector<2x1024xf32>
    %420 = tpu.matmul %418, %419, %cst_460 {dimension_numbers = #tpu.dot_dimension_numbers<[1], [0], [0], [1], [0, 0, 1, 1], [], []>} : vector<2x128xbf16>, vector<128x1024xbf16>, vector<2x1024xf32> -> vector<2x1024xf32>
    %c0_461 = arith.constant 0 : index
    %c0_462 = arith.constant 0 : index
    %421 = vector.load %arg18[%c0_461, %c0_462] : memref<1x1024xf32, #tpu.memory_space<vmem>>, vector<1x1024xf32>
    %422 = vector.broadcast %421 : vector<1x1024xf32> to vector<2x1024xf32>
    %423 = arith.addf %420, %422 : vector<2x1024xf32>
    %cst_463 = arith.constant 0.000000e+00 : f32
    %424 = vector.broadcast %cst_463 : f32 to vector<2x1024xf32>
    %425 = arith.maximumf %423, %424 : vector<2x1024xf32>
    %c1_i32_464 = arith.constant 1 : i32
    %426 = tpu.memref_slice %arg34[%c1_i32_464] : memref<3x!tpu.dma_semaphore, #tpu.memory_space<semaphore_mem>> -> memref<1x!tpu.dma_semaphore, #tpu.memory_space<semaphore_mem>>
    %427 = tpu.memref_squeeze %426 : memref<1x!tpu.dma_semaphore, #tpu.memory_space<semaphore_mem>> -> memref<!tpu.dma_semaphore, #tpu.memory_space<semaphore_mem>>
    tpu.wait_dma2 semaphore(%427 : memref<!tpu.dma_semaphore, #tpu.memory_space<semaphore_mem>>) src(%arg22 : memref<1024x512xbf16, #tpu.memory_space<any>>) dst(%arg32 : memref<1024x512xbf16, #tpu.memory_space<vmem>>)
    %428 = arith.truncf %425 : vector<2x1024xf32> to vector<2x1024xbf16>
    %c0_465 = arith.constant 0 : index
    %c0_466 = arith.constant 0 : index
    %429 = vector.load %arg32[%c0_465, %c0_466] : memref<1024x512xbf16, #tpu.memory_space<vmem>>, vector<1024x512xbf16>
    %cst_467 = arith.constant dense<0.000000e+00> : vector<2x512xf32>
    %430 = tpu.matmul %428, %429, %cst_467 {dimension_numbers = #tpu.dot_dimension_numbers<[1], [0], [0], [1], [0, 0, 1, 1], [], []>} : vector<2x1024xbf16>, vector<1024x512xbf16>, vector<2x512xf32> -> vector<2x512xf32>
    %c0_468 = arith.constant 0 : index
    %c0_469 = arith.constant 0 : index
    %431 = vector.load %arg19[%c0_468, %c0_469] : memref<1x512xf32, #tpu.memory_space<vmem>>, vector<1x512xf32>
    %432 = vector.broadcast %431 : vector<1x512xf32> to vector<2x512xf32>
    %433 = arith.addf %430, %432 : vector<2x512xf32>
    %cst_470 = arith.constant 0.000000e+00 : f32
    %434 = vector.broadcast %cst_470 : f32 to vector<2x512xf32>
    %435 = arith.maximumf %433, %434 : vector<2x512xf32>
    %c2_i32_471 = arith.constant 2 : i32
    %436 = tpu.memref_slice %arg34[%c2_i32_471] : memref<3x!tpu.dma_semaphore, #tpu.memory_space<semaphore_mem>> -> memref<1x!tpu.dma_semaphore, #tpu.memory_space<semaphore_mem>>
    %437 = tpu.memref_squeeze %436 : memref<1x!tpu.dma_semaphore, #tpu.memory_space<semaphore_mem>> -> memref<!tpu.dma_semaphore, #tpu.memory_space<semaphore_mem>>
    tpu.wait_dma2 semaphore(%437 : memref<!tpu.dma_semaphore, #tpu.memory_space<semaphore_mem>>) src(%arg23 : memref<512x306xbf16, #tpu.memory_space<any>>) dst(%arg33 : memref<512x306xbf16, #tpu.memory_space<vmem>>)
    %438 = arith.truncf %435 : vector<2x512xf32> to vector<2x512xbf16>
    %c0_472 = arith.constant 0 : index
    %c0_473 = arith.constant 0 : index
    %439 = vector.load %arg33[%c0_472, %c0_473] : memref<512x306xbf16, #tpu.memory_space<vmem>>, vector<512x306xbf16>
    %cst_474 = arith.constant dense<0.000000e+00> : vector<2x306xf32>
    %440 = tpu.matmul %438, %439, %cst_474 {dimension_numbers = #tpu.dot_dimension_numbers<[1], [0], [0], [1], [0, 0, 1, 1], [], []>} : vector<2x512xbf16>, vector<512x306xbf16>, vector<2x306xf32> -> vector<2x306xf32>
    %c0_475 = arith.constant 0 : index
    %c0_476 = arith.constant 0 : index
    %441 = vector.load %arg20[%c0_475, %c0_476] : memref<1x306xf32, #tpu.memory_space<vmem>>, vector<1x306xf32>
    %442 = vector.broadcast %441 : vector<1x306xf32> to vector<2x306xf32>
    %443 = arith.addf %440, %442 : vector<2x306xf32>
    %444 = vector.extract_strided_slice %443 {offsets = [0, 0], sizes = [2, 51], strides = [1, 1]} : vector<2x306xf32> to vector<2x51xf32>
    %cst_477 = arith.constant dense<0xFF800000> : vector<2xf32>
    %445 = vector.multi_reduction <maximumf>, %444, %cst_477 [1] : vector<2x51xf32> to vector<2xf32>
    %446 = vector.shape_cast %445 : vector<2xf32> to vector<2x1xf32>
    %447 = vector.broadcast %446 : vector<2x1xf32> to vector<2x51xf32>
    %448 = arith.subf %444, %447 : vector<2x51xf32>
    %449 = math.exp %448 : vector<2x51xf32>
    %cst_478 = arith.constant dense<0.000000e+00> : vector<2xf32>
    %450 = vector.multi_reduction <add>, %449, %cst_478 [1] : vector<2x51xf32> to vector<2xf32>
    %451 = vector.shape_cast %450 : vector<2xf32> to vector<2x1xf32>
    %cst_479 = arith.constant 1.000000e+00 : f32
    %452 = vector.broadcast %cst_479 : f32 to vector<2x1xf32>
    %453 = arith.divf %452, %451 : vector<2x1xf32>
    %454 = vector.broadcast %453 : vector<2x1xf32> to vector<2x51xf32>
    %455 = arith.mulf %449, %454 : vector<2x51xf32>
    %456 = vector.extract_strided_slice %443 {offsets = [0, 51], sizes = [2, 51], strides = [1, 1]} : vector<2x306xf32> to vector<2x51xf32>
    %cst_480 = arith.constant dense<0xFF800000> : vector<2xf32>
    %457 = vector.multi_reduction <maximumf>, %456, %cst_480 [1] : vector<2x51xf32> to vector<2xf32>
    %458 = vector.shape_cast %457 : vector<2xf32> to vector<2x1xf32>
    %459 = vector.broadcast %458 : vector<2x1xf32> to vector<2x51xf32>
    %460 = arith.subf %456, %459 : vector<2x51xf32>
    %461 = math.exp %460 : vector<2x51xf32>
    %cst_481 = arith.constant dense<0.000000e+00> : vector<2xf32>
    %462 = vector.multi_reduction <add>, %461, %cst_481 [1] : vector<2x51xf32> to vector<2xf32>
    %463 = vector.shape_cast %462 : vector<2xf32> to vector<2x1xf32>
    %cst_482 = arith.constant 1.000000e+00 : f32
    %464 = vector.broadcast %cst_482 : f32 to vector<2x1xf32>
    %465 = arith.divf %464, %463 : vector<2x1xf32>
    %466 = vector.broadcast %465 : vector<2x1xf32> to vector<2x51xf32>
    %467 = arith.mulf %461, %466 : vector<2x51xf32>
    %468 = vector.extract_strided_slice %443 {offsets = [0, 102], sizes = [2, 51], strides = [1, 1]} : vector<2x306xf32> to vector<2x51xf32>
    %cst_483 = arith.constant dense<0xFF800000> : vector<2xf32>
    %469 = vector.multi_reduction <maximumf>, %468, %cst_483 [1] : vector<2x51xf32> to vector<2xf32>
    %470 = vector.shape_cast %469 : vector<2xf32> to vector<2x1xf32>
    %471 = vector.broadcast %470 : vector<2x1xf32> to vector<2x51xf32>
    %472 = arith.subf %468, %471 : vector<2x51xf32>
    %473 = math.exp %472 : vector<2x51xf32>
    %cst_484 = arith.constant dense<0.000000e+00> : vector<2xf32>
    %474 = vector.multi_reduction <add>, %473, %cst_484 [1] : vector<2x51xf32> to vector<2xf32>
    %475 = vector.shape_cast %474 : vector<2xf32> to vector<2x1xf32>
    %cst_485 = arith.constant 1.000000e+00 : f32
    %476 = vector.broadcast %cst_485 : f32 to vector<2x1xf32>
    %477 = arith.divf %476, %475 : vector<2x1xf32>
    %478 = vector.broadcast %477 : vector<2x1xf32> to vector<2x51xf32>
    %479 = arith.mulf %473, %478 : vector<2x51xf32>
    %480 = vector.extract_strided_slice %443 {offsets = [0, 153], sizes = [2, 51], strides = [1, 1]} : vector<2x306xf32> to vector<2x51xf32>
    %cst_486 = arith.constant dense<0xFF800000> : vector<2xf32>
    %481 = vector.multi_reduction <maximumf>, %480, %cst_486 [1] : vector<2x51xf32> to vector<2xf32>
    %482 = vector.shape_cast %481 : vector<2xf32> to vector<2x1xf32>
    %483 = vector.broadcast %482 : vector<2x1xf32> to vector<2x51xf32>
    %484 = arith.subf %480, %483 : vector<2x51xf32>
    %485 = math.exp %484 : vector<2x51xf32>
    %cst_487 = arith.constant dense<0.000000e+00> : vector<2xf32>
    %486 = vector.multi_reduction <add>, %485, %cst_487 [1] : vector<2x51xf32> to vector<2xf32>
    %487 = vector.shape_cast %486 : vector<2xf32> to vector<2x1xf32>
    %cst_488 = arith.constant 1.000000e+00 : f32
    %488 = vector.broadcast %cst_488 : f32 to vector<2x1xf32>
    %489 = arith.divf %488, %487 : vector<2x1xf32>
    %490 = vector.broadcast %489 : vector<2x1xf32> to vector<2x51xf32>
    %491 = arith.mulf %485, %490 : vector<2x51xf32>
    %492 = vector.extract_strided_slice %443 {offsets = [0, 204], sizes = [2, 51], strides = [1, 1]} : vector<2x306xf32> to vector<2x51xf32>
    %cst_489 = arith.constant dense<0xFF800000> : vector<2xf32>
    %493 = vector.multi_reduction <maximumf>, %492, %cst_489 [1] : vector<2x51xf32> to vector<2xf32>
    %494 = vector.shape_cast %493 : vector<2xf32> to vector<2x1xf32>
    %495 = vector.broadcast %494 : vector<2x1xf32> to vector<2x51xf32>
    %496 = arith.subf %492, %495 : vector<2x51xf32>
    %497 = math.exp %496 : vector<2x51xf32>
    %cst_490 = arith.constant dense<0.000000e+00> : vector<2xf32>
    %498 = vector.multi_reduction <add>, %497, %cst_490 [1] : vector<2x51xf32> to vector<2xf32>
    %499 = vector.shape_cast %498 : vector<2xf32> to vector<2x1xf32>
    %cst_491 = arith.constant 1.000000e+00 : f32
    %500 = vector.broadcast %cst_491 : f32 to vector<2x1xf32>
    %501 = arith.divf %500, %499 : vector<2x1xf32>
    %502 = vector.broadcast %501 : vector<2x1xf32> to vector<2x51xf32>
    %503 = arith.mulf %497, %502 : vector<2x51xf32>
    %504 = vector.extract_strided_slice %443 {offsets = [0, 255], sizes = [2, 51], strides = [1, 1]} : vector<2x306xf32> to vector<2x51xf32>
    %cst_492 = arith.constant dense<0xFF800000> : vector<2xf32>
    %505 = vector.multi_reduction <maximumf>, %504, %cst_492 [1] : vector<2x51xf32> to vector<2xf32>
    %506 = vector.shape_cast %505 : vector<2xf32> to vector<2x1xf32>
    %507 = vector.broadcast %506 : vector<2x1xf32> to vector<2x51xf32>
    %508 = arith.subf %504, %507 : vector<2x51xf32>
    %509 = math.exp %508 : vector<2x51xf32>
    %cst_493 = arith.constant dense<0.000000e+00> : vector<2xf32>
    %510 = vector.multi_reduction <add>, %509, %cst_493 [1] : vector<2x51xf32> to vector<2xf32>
    %511 = vector.shape_cast %510 : vector<2xf32> to vector<2x1xf32>
    %cst_494 = arith.constant 1.000000e+00 : f32
    %512 = vector.broadcast %cst_494 : f32 to vector<2x1xf32>
    %513 = arith.divf %512, %511 : vector<2x1xf32>
    %514 = vector.broadcast %513 : vector<2x1xf32> to vector<2x51xf32>
    %515 = arith.mulf %509, %514 : vector<2x51xf32>
    %516 = tpu.concatenate %455, %467, %479, %491, %503, %515 in 1 : vector<2x51xf32>, vector<2x51xf32>, vector<2x51xf32>, vector<2x51xf32>, vector<2x51xf32>, vector<2x51xf32> -> vector<2x306xf32>
    %c0_495 = arith.constant 0 : index
    %c0_496 = arith.constant 0 : index
    %517 = vector.load %arg24[%c0_495, %c0_496] : memref<2x306xf32, #tpu.memory_space<vmem>>, vector<2x306xf32>
    tpu.vector_store %arg24[%c0_495, %c0_496], %516 {strides = array<i32>} : memref<2x306xf32, #tpu.memory_space<vmem>>, vector<2x306xf32>,
    return
  }
  func.func @transform_0(%arg0: i32) -> (i32, i32) {
    %c0_i32 = arith.constant 0 : i32
    %c0_i32_0 = arith.constant 0 : i32
    %c0_i32_1 = arith.constant 0 : i32
    return %c0_i32, %c0_i32_0 : i32, i32
  }
  func.func @transform_1(%arg0: i32) -> (i32, i32) {
    %c0_i32 = arith.constant 0 : i32
    %c0_i32_0 = arith.constant 0 : i32
    %c0_i32_1 = arith.constant 0 : i32
    return %c0_i32, %c0_i32_0 : i32, i32
  }
  func.func @transform_2(%arg0: i32) -> (i32, i32) {
    %c0_i32 = arith.constant 0 : i32
    %c0_i32_0 = arith.constant 0 : i32
    %c0_i32_1 = arith.constant 0 : i32
    return %c0_i32, %c0_i32_0 : i32, i32
  }
  func.func @transform_3(%arg0: i32) -> (i32, i32) {
    %c0_i32 = arith.constant 0 : i32
    %c0_i32_0 = arith.constant 0 : i32
    %c0_i32_1 = arith.constant 0 : i32
    return %c0_i32, %c0_i32_0 : i32, i32
  }
  func.func @transform_4(%arg0: i32) -> (i32, i32) {
    %c0_i32 = arith.constant 0 : i32
    %c0_i32_0 = arith.constant 0 : i32
    %c0_i32_1 = arith.constant 0 : i32
    return %c0_i32, %c0_i32_0 : i32, i32
  }
  func.func @transform_5(%arg0: i32) -> (i32, i32) {
    %c0_i32 = arith.constant 0 : i32
    %c0_i32_0 = arith.constant 0 : i32
    %c0_i32_1 = arith.constant 0 : i32
    return %c0_i32, %c0_i32_0 : i32, i32
  }
  func.func @transform_6(%arg0: i32) -> (i32, i32) {
    %c0_i32 = arith.constant 0 : i32
    %c0_i32_0 = arith.constant 0 : i32
    %c0_i32_1 = arith.constant 0 : i32
    return %c0_i32, %c0_i32_0 : i32, i32
  }
  func.func @transform_7(%arg0: i32) -> (i32, i32) {
    %c0_i32 = arith.constant 0 : i32
    %c0_i32_0 = arith.constant 0 : i32
    %c0_i32_1 = arith.constant 0 : i32
    return %c0_i32, %c0_i32_0 : i32, i32
  }
  func.func @transform_8(%arg0: i32) -> (i32, i32) {
    %c0_i32 = arith.constant 0 : i32
    %c0_i32_0 = arith.constant 0 : i32
    %c0_i32_1 = arith.constant 0 : i32
    return %c0_i32, %c0_i32_0 : i32, i32
  }
  func.func @transform_9(%arg0: i32) -> (i32, i32) {
    %c0_i32 = arith.constant 0 : i32
    %c0_i32_0 = arith.constant 0 : i32
    %c0_i32_1 = arith.constant 0 : i32
    return %c0_i32, %c0_i32_0 : i32, i32
  }
  func.func @transform_10(%arg0: i32) -> (i32, i32) {
    %c0_i32 = arith.constant 0 : i32
    %c0_i32_0 = arith.constant 0 : i32
    %c0_i32_1 = arith.constant 0 : i32
    return %c0_i32, %c0_i32_0 : i32, i32
  }
  func.func @transform_11(%arg0: i32) -> (i32, i32) {
    %c0_i32 = arith.constant 0 : i32
    %c0_i32_0 = arith.constant 0 : i32
    %c0_i32_1 = arith.constant 0 : i32
    return %c0_i32, %c0_i32_0 : i32, i32
  }
  func.func @transform_12(%arg0: i32) -> (i32, i32) {
    %c0_i32 = arith.constant 0 : i32
    %c0_i32_0 = arith.constant 0 : i32
    %c0_i32_1 = arith.constant 0 : i32
    return %c0_i32, %c0_i32_0 : i32, i32
  }
  func.func @transform_13(%arg0: i32) -> (i32, i32) {
    %c0_i32 = arith.constant 0 : i32
    %c0_i32_0 = arith.constant 0 : i32
    %c0_i32_1 = arith.constant 0 : i32
    return %c0_i32, %c0_i32_0 : i32, i32
  }
  func.func @transform_14(%arg0: i32) -> (i32, i32) {
    %c0_i32 = arith.constant 0 : i32
    %c0_i32_0 = arith.constant 0 : i32
    %c0_i32_1 = arith.constant 0 : i32
    return %c0_i32, %c0_i32_0 : i32, i32
  }
  func.func @transform_15(%arg0: i32) -> (i32, i32) {
    %c0_i32 = arith.constant 0 : i32
    %c0_i32_0 = arith.constant 0 : i32
    %c0_i32_1 = arith.constant 0 : i32
    return %c0_i32, %c0_i32_0 : i32, i32
  }
  func.func @transform_16(%arg0: i32) -> (i32, i32) {
    %c0_i32 = arith.constant 0 : i32
    %c0_i32_0 = arith.constant 0 : i32
    %c0_i32_1 = arith.constant 0 : i32
    return %c0_i32, %c0_i32_0 : i32, i32
  }
  func.func @transform_17(%arg0: i32) -> (i32, i32) {
    %c0_i32 = arith.constant 0 : i32
    %c0_i32_0 = arith.constant 0 : i32
    %c0_i32_1 = arith.constant 0 : i32
    return %c0_i32, %c0_i32_0 : i32, i32
  }
  func.func @transform_18(%arg0: i32) -> (i32, i32) {
    %c0_i32 = arith.constant 0 : i32
    %c0_i32_0 = arith.constant 0 : i32
    %c0_i32_1 = arith.constant 0 : i32
    return %c0_i32, %c0_i32_0 : i32, i32
  }
  func.func @transform_19(%arg0: i32) -> (i32, i32) {
    %c0_i32 = arith.constant 0 : i32
    %c0_i32_0 = arith.constant 0 : i32
    %c0_i32_1 = arith.constant 0 : i32
    return %c0_i32, %c0_i32_0 : i32, i32
  }
  func.func @transform_23(%arg0: i32) -> (i32, i32) {
    %c0_i32 = arith.constant 0 : i32
    %c0_i32_0 = arith.constant 0 : i32
    %c0_i32_1 = arith.constant 0 : i32
    return %c0_i32, %c0_i32_0 : i32, i32
  }
}

</mosaic_0001>

<llo_original>
// kernel: categorical_dqn_forward.1
$region0: #{categorical_dqn_forward.1}
  #allocation0 [shape = 'u32[]', space=smem, size = 0x4, offset = 0x4, fixed_abs, tag = 'smem constant byte address 0x4 - core index']
  #allocation1 [shape = 'u32[72,128]{1,0:T(1,128)}', space=vmem, size = 0x9000, scoped, tag = 'internal scratch']
  #allocation2 [shape = 'bf16[288,32]{1,0:T(8,128)(2,1)}', space=vmem, size = 0x12000, scoped, tag = 'scratch operand']
  #allocation3 [shape = 'bf16[50,512]{1,0:T(8,128)(2,1)}', space=vmem, size = 0xe000, scoped, tag = 'scratch operand']
  #allocation4 [shape = 'bf16[50,64]{1,0:T(8,128)(2,1)}', space=vmem, size = 0x3800, scoped, tag = 'scratch operand']
  #allocation5 [shape = 'bf16[18,576]{1,0:T(8,128)(2,1)}', space=vmem, size = 0x7800, scoped, tag = 'scratch operand']
  #allocation6 [shape = 'bf16[18,64]{1,0:T(8,128)(2,1)}', space=vmem, size = 0x1800, scoped, tag = 'scratch operand']
  #allocation7 [shape = 'bf16[2,576]{1,0:T(2,128)(2,1)}', space=vmem, size = 0xa00, scoped, tag = 'scratch operand']
  #allocation8 [shape = 'bf16[128,1024]{1,0:T(8,128)(2,1)}', space=vmem, size = 0x40000, scoped, tag = 'scratch operand']
  #allocation9 [shape = 'bf16[1024,512]{1,0:T(8,128)(2,1)}', space=vmem, size = 0x100000, scoped, tag = 'scratch operand']
  #allocation10 [shape = 'bf16[512,306]{1,0:T(8,128)(2,1)}', space=vmem, size = 0x60000, scoped, tag = 'scratch operand']
  #allocation11 [shape = 's32[3]{0}', space=sflag, size = 0xc, scoped, tag = 'scratch operand']
  #allocation12 [shape = 's32[]', space=sflag, size = 0x4, offset = 0, fixed_abs, tag = 'sflag constant byte address 0x0 - dummy sync flag']
  #allocation13 [shape = 's32[]', space=sflag, size = 0x4, offset = 0, fixed_abs, tag = 'sflag constant byte address 0x0 - dummy sync flag']
  #allocation14 [shape = 's32[]', space=sflag, size = 0x4, offset = 0, fixed_abs, tag = 'sflag constant byte address 0x0 - dummy sync flag']
  %s0 = inlined_call_operand.vmem [shape: bf16[288,256], index: 0, kind: input, shape index: {}]
  %s1 = inlined_call_operand.vmem [shape: bf16[256,32], index: 1, kind: input, shape index: {}]
  %s2 = inlined_call_operand.vmem [shape: f32[1,32], index: 2, kind: input, shape index: {}]
  %s3 = inlined_call_operand.vmem [shape: f32[1,32], index: 3, kind: input, shape index: {}]
  %s4 = inlined_call_operand.vmem [shape: f32[1,32], index: 4, kind: input, shape index: {}]
  %s5 = inlined_call_operand.vmem [shape: bf16[512,64], index: 5, kind: input, shape index: {}]
  %s6 = inlined_call_operand.vmem [shape: f32[1,64], index: 6, kind: input, shape index: {}]
  %s7 = inlined_call_operand.vmem [shape: f32[1,64], index: 7, kind: input, shape index: {}]
  %s8 = inlined_call_operand.vmem [shape: f32[1,64], index: 8, kind: input, shape index: {}]
  %s9 = inlined_call_operand.vmem [shape: bf16[576,64], index: 9, kind: input, shape index: {}]
  %s10 = inlined_call_operand.vmem [shape: f32[1,64], index: 10, kind: input, shape index: {}]
  %s11 = inlined_call_operand.vmem [shape: f32[1,64], index: 11, kind: input, shape index: {}]
  %s12 = inlined_call_operand.vmem [shape: f32[1,64], index: 12, kind: input, shape index: {}]
  %s13 = inlined_call_operand.vmem [shape: bf16[576,128], index: 13, kind: input, shape index: {}]
  %s14 = inlined_call_operand.vmem [shape: f32[1,128], index: 14, kind: input, shape index: {}]
  %s15 = inlined_call_operand.vmem [shape: f32[1,128], index: 15, kind: input, shape index: {}]
  %s16 = inlined_call_operand.vmem [shape: f32[1,128], index: 16, kind: input, shape index: {}]
  %s17 = inlined_call_operand.vmem [shape: f32[1,1024], index: 17, kind: input, shape index: {}]
  %s18 = inlined_call_operand.vmem [shape: f32[1,512], index: 18, kind: input, shape index: {}]
  %s19 = inlined_call_operand.vmem [shape: f32[1,306], index: 19, kind: input, shape index: {}]
  %s20 = inlined_call_operand.vmem [shape: bf16[128,1024], index: 20, kind: input, shape index: {}]
  %s21 = inlined_call_operand.vmem [shape: bf16[1024,512], index: 21, kind: input, shape index: {}]
  %s22 = inlined_call_operand.vmem [shape: bf16[512,306], index: 22, kind: input, shape index: {}]
  %s23 = inlined_call_operand.vmem [shape: f32[2,306], index: 23, kind: output, shape index: {}]
  %s24 = sld [smem:[#allocation0]]
  $region147: #{categorical_dqn_forward.1} parent=0
    _
  %s26 = ssub.s32 1, %s24
  %s27 = scalar_select 0, %s26, %s24
  // Predicated region
  $region2: #{categorical_dqn_forward.1} parent=0 // pred_check
    _
  $region3: #{categorical_dqn_forward.1} parent=0 // pred_check_branch
    %29 = sbr.rel (0) target = $region5
  $region4: #{categorical_dqn_forward.1} parent=0 // pred_region
    _
  $region5: #{categorical_dqn_forward.1} parent=0 // pred_fallthru
    _
  // Predicated region
  $region6: #{categorical_dqn_forward.1} parent=0 // pred_check
    _
  $region7: #{categorical_dqn_forward.1} parent=0 // pred_check_branch
    %31 = sbr.rel (0) target = $region9
  $region8: #{categorical_dqn_forward.1} parent=0 // pred_region
    _
  $region9: #{categorical_dqn_forward.1} parent=0 // pred_fallthru
    _
  // Predicated region
  $region10: #{categorical_dqn_forward.1} parent=0 // pred_check
    _
  $region11: #{categorical_dqn_forward.1} parent=0 // pred_check_branch
    %33 = sbr.rel (0) target = $region13
  $region12: #{categorical_dqn_forward.1} parent=0 // pred_region
    _
  $region13: #{categorical_dqn_forward.1} parent=0 // pred_fallthru
    _
  // Predicated region
  $region14: #{categorical_dqn_forward.1} parent=0 // pred_check
    _
  $region15: #{categorical_dqn_forward.1} parent=0 // pred_check_branch
    %35 = sbr.rel (0) target = $region17
  $region16: #{categorical_dqn_forward.1} parent=0 // pred_region
    _
  $region17: #{categorical_dqn_forward.1} parent=0 // pred_fallthru
    _
  // Predicated region
  $region18: #{categorical_dqn_forward.1} parent=0 // pred_check
    _
  $region19: #{categorical_dqn_forward.1} parent=0 // pred_check_branch
    %37 = sbr.rel (0) target = $region21
  $region20: #{categorical_dqn_forward.1} parent=0 // pred_region
    _
  $region21: #{categorical_dqn_forward.1} parent=0 // pred_fallthru
    _
  // Predicated region
  $region22: #{categorical_dqn_forward.1} parent=0 // pred_check
    _
  $region23: #{categorical_dqn_forward.1} parent=0 // pred_check_branch
    %39 = sbr.rel (0) target = $region25
  $region24: #{categorical_dqn_forward.1} parent=0 // pred_region
    _
  $region25: #{categorical_dqn_forward.1} parent=0 // pred_fallthru
    _
  // Predicated region
  $region26: #{categorical_dqn_forward.1} parent=0 // pred_check
    _
  $region27: #{categorical_dqn_forward.1} parent=0 // pred_check_branch
    %41 = sbr.rel (0) target = $region29
  $region28: #{categorical_dqn_forward.1} parent=0 // pred_region
    _
  $region29: #{categorical_dqn_forward.1} parent=0 // pred_fallthru
    _
  // Predicated region
  $region30: #{categorical_dqn_forward.1} parent=0 // pred_check
    _
  $region31: #{categorical_dqn_forward.1} parent=0 // pred_check_branch
    %43 = sbr.rel (0) target = $region33
  $region32: #{categorical_dqn_forward.1} parent=0 // pred_region
    _
  $region33: #{categorical_dqn_forward.1} parent=0 // pred_fallthru
    _
  // Predicated region
  $region34: #{categorical_dqn_forward.1} parent=0 // pred_check
    _
  $region35: #{categorical_dqn_forward.1} parent=0 // pred_check_branch
    %45 = sbr.rel (0) target = $region37
  $region36: #{categorical_dqn_forward.1} parent=0 // pred_region
    _
  $region37: #{categorical_dqn_forward.1} parent=0 // pred_fallthru
    _
  // Predicated region
  $region38: #{categorical_dqn_forward.1} parent=0 // pred_check
    _
  $region39: #{categorical_dqn_forward.1} parent=0 // pred_check_branch
    %47 = sbr.rel (0) target = $region41
  $region40: #{categorical_dqn_forward.1} parent=0 // pred_region
    _
  $region41: #{categorical_dqn_forward.1} parent=0 // pred_fallthru
    _
  // Predicated region
  $region42: #{categorical_dqn_forward.1} parent=0 // pred_check
    _
  $region43: #{categorical_dqn_forward.1} parent=0 // pred_check_branch
    %49 = sbr.rel (0) target = $region45
  $region44: #{categorical_dqn_forward.1} parent=0 // pred_region
    _
  $region45: #{categorical_dqn_forward.1} parent=0 // pred_fallthru
    _
  // Predicated region
  $region46: #{categorical_dqn_forward.1} parent=0 // pred_check
    _
  $region47: #{categorical_dqn_forward.1} parent=0 // pred_check_branch
    %51 = sbr.rel (0) target = $region49
  $region48: #{categorical_dqn_forward.1} parent=0 // pred_region
    _
  $region49: #{categorical_dqn_forward.1} parent=0 // pred_fallthru
    _
  // Predicated region
  $region50: #{categorical_dqn_forward.1} parent=0 // pred_check
    _
  $region51: #{categorical_dqn_forward.1} parent=0 // pred_check_branch
    %53 = sbr.rel (0) target = $region53
  $region52: #{categorical_dqn_forward.1} parent=0 // pred_region
    _
  $region53: #{categorical_dqn_forward.1} parent=0 // pred_fallthru
    _
  // Predicated region
  $region54: #{categorical_dqn_forward.1} parent=0 // pred_check
    _
  $region55: #{categorical_dqn_forward.1} parent=0 // pred_check_branch
    %55 = sbr.rel (0) target = $region57
  $region56: #{categorical_dqn_forward.1} parent=0 // pred_region
    _
  $region57: #{categorical_dqn_forward.1} parent=0 // pred_fallthru
    _
  // Predicated region
  $region58: #{categorical_dqn_forward.1} parent=0 // pred_check
    _
  $region59: #{categorical_dqn_forward.1} parent=0 // pred_check_branch
    %57 = sbr.rel (0) target = $region61
  $region60: #{categorical_dqn_forward.1} parent=0 // pred_region
    _
  $region61: #{categorical_dqn_forward.1} parent=0 // pred_fallthru
    _
  // Predicated region
  $region62: #{categorical_dqn_forward.1} parent=0 // pred_check
    _
  $region63: #{categorical_dqn_forward.1} parent=0 // pred_check_branch
    %59 = sbr.rel (0) target = $region65
  $region64: #{categorical_dqn_forward.1} parent=0 // pred_region
    _
  $region65: #{categorical_dqn_forward.1} parent=0 // pred_fallthru
    _
  // Predicated region
  $region66: #{categorical_dqn_forward.1} parent=0 // pred_check
    _
  $region67: #{categorical_dqn_forward.1} parent=0 // pred_check_branch
    %61 = sbr.rel (0) target = $region69
  $region68: #{categorical_dqn_forward.1} parent=0 // pred_region
    _
  $region69: #{categorical_dqn_forward.1} parent=0 // pred_fallthru
    _
  // Predicated region
  $region70: #{categorical_dqn_forward.1} parent=0 // pred_check
    _
  $region71: #{categorical_dqn_forward.1} parent=0 // pred_check_branch
    %63 = sbr.rel (0) target = $region73
  $region72: #{categorical_dqn_forward.1} parent=0 // pred_region
    _
  $region73: #{categorical_dqn_forward.1} parent=0 // pred_fallthru
    _
  // Predicated region
  $region74: #{categorical_dqn_forward.1} parent=0 // pred_check
    _
  $region75: #{categorical_dqn_forward.1} parent=0 // pred_check_branch
    %65 = sbr.rel (0) target = $region77
  $region76: #{categorical_dqn_forward.1} parent=0 // pred_region
    _
  $region77: #{categorical_dqn_forward.1} parent=0 // pred_fallthru
    _
  // Predicated region
  $region78: #{categorical_dqn_forward.1} parent=0 // pred_check
    _
  $region79: #{categorical_dqn_forward.1} parent=0 // pred_check_branch
    %67 = sbr.rel (0) target = $region81
  $region80: #{categorical_dqn_forward.1} parent=0 // pred_region
    _
  $region81: #{categorical_dqn_forward.1} parent=0 // pred_fallthru
    _
  // Predicated region
  $region82: #{categorical_dqn_forward.1} parent=0 // pred_check
    _
  $region83: #{categorical_dqn_forward.1} parent=0 // pred_check_branch
    %70 = sbr.rel (0) target = $region85
  $region84: #{categorical_dqn_forward.1} parent=0 // pred_region
    loop: start=0, step=1, limit=1
    $region86: #{categorical_dqn_forward.1} parent=84 // loop_pre_header
      _
    $region87: #{categorical_dqn_forward.1} parent=84 // loop_header
      %s72 = sphi 0, %s76
      %p73 = scmp.ge.s32.totalorder %s72, 1
      %s77 = sphi %s20, %s20
      %s78 = sphi [#allocation8], [#allocation8]
    $region88: #{categorical_dqn_forward.1} parent=84 // loop_header_branch
      %75 = sbr.rel (%p73) target = $region92
    $region89: #{categorical_dqn_forward.1} parent=84 // loop_body
      %v79 = vld [vmem:[%s77] sm:$0xff]
      %80 = vst [vmem:[%s78] sm:$0xff] %v79
      %v81 = vld [vmem:[%s77 + $0x8] sm:$0xff]
      %82 = vst [vmem:[%s78 + $0x8] sm:$0xff] %v81
      %v83 = vld [vmem:[%s77 + $0x10] sm:$0xff]
      %84 = vst [vmem:[%s78 + $0x10] sm:$0xff] %v83
      %v85 = vld [vmem:[%s77 + $0x18] sm:$0xff]
      %86 = vst [vmem:[%s78 + $0x18] sm:$0xff] %v85
      %v87 = vld [vmem:[%s77 + $0x20] sm:$0xff]
      %88 = vst [vmem:[%s78 + $0x20] sm:$0xff] %v87
      %v89 = vld [vmem:[%s77 + $0x28] sm:$0xff]
      %90 = vst [vmem:[%s78 + $0x28] sm:$0xff] %v89
      %v91 = vld [vmem:[%s77 + $0x30] sm:$0xff]
      %92 = vst [vmem:[%s78 + $0x30] sm:$0xff] %v91
      %v93 = vld [vmem:[%s77 + $0x38] sm:$0xff]
      %94 = vst [vmem:[%s78 + $0x38] sm:$0xff] %v93
      %v95 = vld [vmem:[%s77 + $0x40] sm:$0xff]
      %96 = vst [vmem:[%s78 + $0x40] sm:$0xff] %v95
      %v97 = vld [vmem:[%s77 + $0x48] sm:$0xff]
      %98 = vst [vmem:[%s78 + $0x48] sm:$0xff] %v97
      %v99 = vld [vmem:[%s77 + $0x50] sm:$0xff]
      %100 = vst [vmem:[%s78 + $0x50] sm:$0xff] %v99
      %v101 = vld [vmem:[%s77 + $0x58] sm:$0xff]
      %102 = vst [vmem:[%s78 + $0x58] sm:$0xff] %v101
      %v103 = vld [vmem:[%s77 + $0x60] sm:$0xff]
      %104 = vst [vmem:[%s78 + $0x60] sm:$0xff] %v103
      %v105 = vld [vmem:[%s77 + $0x68] sm:$0xff]
      %106 = vst [vmem:[%s78 + $0x68] sm:$0xff] %v105
      %v107 = vld [vmem:[%s77 + $0x70] sm:$0xff]
      %108 = vst [vmem:[%s78 + $0x70] sm:$0xff] %v107
      %v109 = vld [vmem:[%s77 + $0x78] sm:$0xff]
      %110 = vst [vmem:[%s78 + $0x78] sm:$0xff] %v109
      %v111 = vld [vmem:[%s77 + $0x80] sm:$0xff]
      %112 = vst [vmem:[%s78 + $0x80] sm:$0xff] %v111
      %v113 = vld [vmem:[%s77 + $0x88] sm:$0xff]
      %114 = vst [vmem:[%s78 + $0x88] sm:$0xff] %v113
      %v115 = vld [vmem:[%s77 + $0x90] sm:$0xff]
      %116 = vst [vmem:[%s78 + $0x90] sm:$0xff] %v115
      %v117 = vld [vmem:[%s77 + $0x98] sm:$0xff]
      %118 = vst [vmem:[%s78 + $0x98] sm:$0xff] %v117
      %v119 = vld [vmem:[%s77 + $0xa0] sm:$0xff]
      %120 = vst [vmem:[%s78 + $0xa0] sm:$0xff] %v119
      %v121 = vld [vmem:[%s77 + $0xa8] sm:$0xff]
      %122 = vst [vmem:[%s78 + $0xa8] sm:$0xff] %v121
      %v123 = vld [vmem:[%s77 + $0xb0] sm:$0xff]
      %124 = vst [vmem:[%s78 + $0xb0] sm:$0xff] %v123
      %v125 = vld [vmem:[%s77 + $0xb8] sm:$0xff]
      %126 = vst [vmem:[%s78 + $0xb8] sm:$0xff] %v125
      %v127 = vld [vmem:[%s77 + $0xc0] sm:$0xff]
      %128 = vst [vmem:[%s78 + $0xc0] sm:$0xff] %v127
      %v129 = vld [vmem:[%s77 + $0xc8] sm:$0xff]
      %130 = vst [vmem:[%s78 + $0xc8] sm:$0xff] %v129
      %v131 = vld [vmem:[%s77 + $0xd0] sm:$0xff]
      %132 = vst [vmem:[%s78 + $0xd0] sm:$0xff] %v131
      %v133 = vld [vmem:[%s77 + $0xd8] sm:$0xff]
      %134 = vst [vmem:[%s78 + $0xd8] sm:$0xff] %v133
      %v135 = vld [vmem:[%s77 + $0xe0] sm:$0xff]
      %136 = vst [vmem:[%s78 + $0xe0] sm:$0xff] %v135
      %v137 = vld [vmem:[%s77 + $0xe8] sm:$0xff]
      %138 = vst [vmem:[%s78 + $0xe8] sm:$0xff] %v137
      %v139 = vld [vmem:[%s77 + $0xf0] sm:$0xff]
      %140 = vst [vmem:[%s78 + $0xf0] sm:$0xff] %v139
      %v141 = vld [vmem:[%s77 + $0xf8] sm:$0xff]
      %142 = vst [vmem:[%s78 + $0xf8] sm:$0xff] %v141
      %v143 = vld [vmem:[%s77 + $0x100] sm:$0xff]
      %144 = vst [vmem:[%s78 + $0x100] sm:$0xff] %v143
      %v145 = vld [vmem:[%s77 + $0x108] sm:$0xff]
      %146 = vst [vmem:[%s78 + $0x108] sm:$0xff] %v145
      %v147 = vld [vmem:[%s77 + $0x110] sm:$0xff]
      %148 = vst [vmem:[%s78 + $0x110] sm:$0xff] %v147
      %v149 = vld [vmem:[%s77 + $0x118] sm:$0xff]
      %150 = vst [vmem:[%s78 + $0x118] sm:$0xff] %v149
      %v151 = vld [vmem:[%s77 + $0x120] sm:$0xff]
      %152 = vst [vmem:[%s78 + $0x120] sm:$0xff] %v151
      %v153 = vld [vmem:[%s77 + $0x128] sm:$0xff]
      %154 = vst [vmem:[%s78 + $0x128] sm:$0xff] %v153
      %v155 = vld [vmem:[%s77 + $0x130] sm:$0xff]
      %156 = vst [vmem:[%s78 + $0x130] sm:$0xff] %v155
      %v157 = vld [vmem:[%s77 + $0x138] sm:$0xff]
      %158 = vst [vmem:[%s78 + $0x138] sm:$0xff] %v157
      %v159 = vld [vmem:[%s77 + $0x140] sm:$0xff]
      %160 = vst [vmem:[%s78 + $0x140] sm:$0xff] %v159
      %v161 = vld [vmem:[%s77 + $0x148] sm:$0xff]
      %162 = vst [vmem:[%s78 + $0x148] sm:$0xff] %v161
      %v163 = vld [vmem:[%s77 + $0x150] sm:$0xff]
      %164 = vst [vmem:[%s78 + $0x150] sm:$0xff] %v163
      %v165 = vld [vmem:[%s77 + $0x158] sm:$0xff]
      %166 = vst [vmem:[%s78 + $0x158] sm:$0xff] %v165
      %v167 = vld [vmem:[%s77 + $0x160] sm:$0xff]
      %168 = vst [vmem:[%s78 + $0x160] sm:$0xff] %v167
      %v169 = vld [vmem:[%s77 + $0x168] sm:$0xff]
      %170 = vst [vmem:[%s78 + $0x168] sm:$0xff] %v169
      %v171 = vld [vmem:[%s77 + $0x170] sm:$0xff]
      %172 = vst [vmem:[%s78 + $0x170] sm:$0xff] %v171
      %v173 = vld [vmem:[%s77 + $0x178] sm:$0xff]
      %174 = vst [vmem:[%s78 + $0x178] sm:$0xff] %v173
      %v175 = vld [vmem:[%s77 + $0x180] sm:$0xff]
      %176 = vst [vmem:[%s78 + $0x180] sm:$0xff] %v175
      %v177 = vld [vmem:[%s77 + $0x188] sm:$0xff]
      %178 = vst [vmem:[%s78 + $0x188] sm:$0xff] %v177
      %v179 = vld [vmem:[%s77 + $0x190] sm:$0xff]
      %180 = vst [vmem:[%s78 + $0x190] sm:$0xff] %v179
      %v181 = vld [vmem:[%s77 + $0x198] sm:$0xff]
      %182 = vst [vmem:[%s78 + $0x198] sm:$0xff] %v181
      %v183 = vld [vmem:[%s77 + $0x1a0] sm:$0xff]
      %184 = vst [vmem:[%s78 + $0x1a0] sm:$0xff] %v183
      %v185 = vld [vmem:[%s77 + $0x1a8] sm:$0xff]
      %186 = vst [vmem:[%s78 + $0x1a8] sm:$0xff] %v185
      %v187 = vld [vmem:[%s77 + $0x1b0] sm:$0xff]
      %188 = vst [vmem:[%s78 + $0x1b0] sm:$0xff] %v187
      %v189 = vld [vmem:[%s77 + $0x1b8] sm:$0xff]
      %190 = vst [vmem:[%s78 + $0x1b8] sm:$0xff] %v189
      %v191 = vld [vmem:[%s77 + $0x1c0] sm:$0xff]
      %192 = vst [vmem:[%s78 + $0x1c0] sm:$0xff] %v191
      %v193 = vld [vmem:[%s77 + $0x1c8] sm:$0xff]
      %194 = vst [vmem:[%s78 + $0x1c8] sm:$0xff] %v193
      %v195 = vld [vmem:[%s77 + $0x1d0] sm:$0xff]
      %196 = vst [vmem:[%s78 + $0x1d0] sm:$0xff] %v195
      %v197 = vld [vmem:[%s77 + $0x1d8] sm:$0xff]
      %198 = vst [vmem:[%s78 + $0x1d8] sm:$0xff] %v197
      %v199 = vld [vmem:[%s77 + $0x1e0] sm:$0xff]
      %200 = vst [vmem:[%s78 + $0x1e0] sm:$0xff] %v199
      %v201 = vld [vmem:[%s77 + $0x1e8] sm:$0xff]
      %202 = vst [vmem:[%s78 + $0x1e8] sm:$0xff] %v201
      %v203 = vld [vmem:[%s77 + $0x1f0] sm:$0xff]
      %204 = vst [vmem:[%s78 + $0x1f0] sm:$0xff] %v203
      %v205 = vld [vmem:[%s77 + $0x1f8] sm:$0xff]
      %206 = vst [vmem:[%s78 + $0x1f8] sm:$0xff] %v205
    $region90: #{categorical_dqn_forward.1} parent=84 // loop_footer
      %s76 = sadd.s32 1, %s72
    $region91: #{categorical_dqn_forward.1} parent=84 // loop_footer_branch
      %71 = sbr.rel target = $region87
    $region92: #{categorical_dqn_forward.1} parent=84 // loop_exit
      _
  $region85: #{categorical_dqn_forward.1} parent=0 // pred_fallthru
    _
  // Predicated region
  $region93: #{categorical_dqn_forward.1} parent=0 // pred_check
    _
  $region94: #{categorical_dqn_forward.1} parent=0 // pred_check_branch
    %208 = sbr.rel target = $region96
  $region95: #{categorical_dqn_forward.1} parent=0 // pred_region
    _
  $region96: #{categorical_dqn_forward.1} parent=0 // pred_fallthru
    _
  // Predicated region
  $region97: #{categorical_dqn_forward.1} parent=0 // pred_check
    _
  $region98: #{categorical_dqn_forward.1} parent=0 // pred_check_branch
    %211 = sbr.rel (0) target = $region100
  $region99: #{categorical_dqn_forward.1} parent=0 // pred_region
    %212 = vsyncadd [#allocation11], 8192
  $region100: #{categorical_dqn_forward.1} parent=0 // pred_fallthru
    _
  %s213 = scalar_lea.sflag [#allocation11], 1
  // Predicated region
  $region101: #{categorical_dqn_forward.1} parent=0 // pred_check
    _
  $region102: #{categorical_dqn_forward.1} parent=0 // pred_check_branch
    %215 = sbr.rel (0) target = $region104
  $region103: #{categorical_dqn_forward.1} parent=0 // pred_region
    loop: start=0, step=1, limit=1
    $region105: #{categorical_dqn_forward.1} parent=103 // loop_pre_header
      _
    $region106: #{categorical_dqn_forward.1} parent=103 // loop_header
      %s217 = sphi 0, %s221
      %p218 = scmp.ge.s32.totalorder %s217, 1
      %s222 = sphi %s21, %s21
      %s223 = sphi [#allocation9], [#allocation9]
    $region107: #{categorical_dqn_forward.1} parent=103 // loop_header_branch
      %220 = sbr.rel (%p218) target = $region111
    $region108: #{categorical_dqn_forward.1} parent=103 // loop_body
      %v224 = vld [vmem:[%s222] sm:$0xff]
      %225 = vst [vmem:[%s223] sm:$0xff] %v224
      %v226 = vld [vmem:[%s222 + $0x8] sm:$0xff]
      %227 = vst [vmem:[%s223 + $0x8] sm:$0xff] %v226
      %v228 = vld [vmem:[%s222 + $0x10] sm:$0xff]
      %229 = vst [vmem:[%s223 + $0x10] sm:$0xff] %v228
      %v230 = vld [vmem:[%s222 + $0x18] sm:$0xff]
      %231 = vst [vmem:[%s223 + $0x18] sm:$0xff] %v230
      %v232 = vld [vmem:[%s222 + $0x20] sm:$0xff]
      %233 = vst [vmem:[%s223 + $0x20] sm:$0xff] %v232
      %v234 = vld [vmem:[%s222 + $0x28] sm:$0xff]
      %235 = vst [vmem:[%s223 + $0x28] sm:$0xff] %v234
      %v236 = vld [vmem:[%s222 + $0x30] sm:$0xff]
      %237 = vst [vmem:[%s223 + $0x30] sm:$0xff] %v236
      %v238 = vld [vmem:[%s222 + $0x38] sm:$0xff]
      %239 = vst [vmem:[%s223 + $0x38] sm:$0xff] %v238
      %v240 = vld [vmem:[%s222 + $0x40] sm:$0xff]
      %241 = vst [vmem:[%s223 + $0x40] sm:$0xff] %v240
      %v242 = vld [vmem:[%s222 + $0x48] sm:$0xff]
      %243 = vst [vmem:[%s223 + $0x48] sm:$0xff] %v242
      %v244 = vld [vmem:[%s222 + $0x50] sm:$0xff]
      %245 = vst [vmem:[%s223 + $0x50] sm:$0xff] %v244
      %v246 = vld [vmem:[%s222 + $0x58] sm:$0xff]
      %247 = vst [vmem:[%s223 + $0x58] sm:$0xff] %v246
      %v248 = vld [vmem:[%s222 + $0x60] sm:$0xff]
      %249 = vst [vmem:[%s223 + $0x60] sm:$0xff] %v248
      %v250 = vld [vmem:[%s222 + $0x68] sm:$0xff]
      %251 = vst [vmem:[%s223 + $0x68] sm:$0xff] %v250
      %v252 = vld [vmem:[%s222 + $0x70] sm:$0xff]
      %253 = vst [vmem:[%s223 + $0x70] sm:$0xff] %v252
      %v254 = vld [vmem:[%s222 + $0x78] sm:$0xff]
      %255 = vst [vmem:[%s223 + $0x78] sm:$0xff] %v254
      %v256 = vld [vmem:[%s222 + $0x80] sm:$0xff]
      %257 = vst [vmem:[%s223 + $0x80] sm:$0xff] %v256
      %v258 = vld [vmem:[%s222 + $0x88] sm:$0xff]
      %259 = vst [vmem:[%s223 + $0x88] sm:$0xff] %v258
      %v260 = vld [vmem:[%s222 + $0x90] sm:$0xff]
      %261 = vst [vmem:[%s223 + $0x90] sm:$0xff] %v260
      %v262 = vld [vmem:[%s222 + $0x98] sm:$0xff]
      %263 = vst [vmem:[%s223 + $0x98] sm:$0xff] %v262
      %v264 = vld [vmem:[%s222 + $0xa0] sm:$0xff]
      %265 = vst [vmem:[%s223 + $0xa0] sm:$0xff] %v264
      %v266 = vld [vmem:[%s222 + $0xa8] sm:$0xff]
      %267 = vst [vmem:[%s223 + $0xa8] sm:$0xff] %v266
      %v268 = vld [vmem:[%s222 + $0xb0] sm:$0xff]
      %269 = vst [vmem:[%s223 + $0xb0] sm:$0xff] %v268
      %v270 = vld [vmem:[%s222 + $0xb8] sm:$0xff]
      %271 = vst [vmem:[%s223 + $0xb8] sm:$0xff] %v270
      %v272 = vld [vmem:[%s222 + $0xc0] sm:$0xff]
      %273 = vst [vmem:[%s223 + $0xc0] sm:$0xff] %v272
      %v274 = vld [vmem:[%s222 + $0xc8] sm:$0xff]
      %275 = vst [vmem:[%s223 + $0xc8] sm:$0xff] %v274
      %v276 = vld [vmem:[%s222 + $0xd0] sm:$0xff]
      %277 = vst [vmem:[%s223 + $0xd0] sm:$0xff] %v276
      %v278 = vld [vmem:[%s222 + $0xd8] sm:$0xff]
      %279 = vst [vmem:[%s223 + $0xd8] sm:$0xff] %v278
      %v280 = vld [vmem:[%s222 + $0xe0] sm:$0xff]
      %281 = vst [vmem:[%s223 + $0xe0] sm:$0xff] %v280
      %v282 = vld [vmem:[%s222 + $0xe8] sm:$0xff]
      %283 = vst [vmem:[%s223 + $0xe8] sm:$0xff] %v282
      %v284 = vld [vmem:[%s222 + $0xf0] sm:$0xff]
      %285 = vst [vmem:[%s223 + $0xf0] sm:$0xff] %v284
      %v286 = vld [vmem:[%s222 + $0xf8] sm:$0xff]
      %287 = vst [vmem:[%s223 + $0xf8] sm:$0xff] %v286
      %v288 = vld [vmem:[%s222 + $0x100] sm:$0xff]
      %289 = vst [vmem:[%s223 + $0x100] sm:$0xff] %v288
      %v290 = vld [vmem:[%s222 + $0x108] sm:$0xff]
      %291 = vst [vmem:[%s223 + $0x108] sm:$0xff] %v290
      %v292 = vld [vmem:[%s222 + $0x110] sm:$0xff]
      %293 = vst [vmem:[%s223 + $0x110] sm:$0xff] %v292
      %v294 = vld [vmem:[%s222 + $0x118] sm:$0xff]
      %295 = vst [vmem:[%s223 + $0x118] sm:$0xff] %v294
      %v296 = vld [vmem:[%s222 + $0x120] sm:$0xff]
      %297 = vst [vmem:[%s223 + $0x120] sm:$0xff] %v296
      %v298 = vld [vmem:[%s222 + $0x128] sm:$0xff]
      %299 = vst [vmem:[%s223 + $0x128] sm:$0xff] %v298
      %v300 = vld [vmem:[%s222 + $0x130] sm:$0xff]
      %301 = vst [vmem:[%s223 + $0x130] sm:$0xff] %v300
      %v302 = vld [vmem:[%s222 + $0x138] sm:$0xff]
      %303 = vst [vmem:[%s223 + $0x138] sm:$0xff] %v302
      %v304 = vld [vmem:[%s222 + $0x140] sm:$0xff]
      %305 = vst [vmem:[%s223 + $0x140] sm:$0xff] %v304
      %v306 = vld [vmem:[%s222 + $0x148] sm:$0xff]
      %307 = vst [vmem:[%s223 + $0x148] sm:$0xff] %v306
      %v308 = vld [vmem:[%s222 + $0x150] sm:$0xff]
      %309 = vst [vmem:[%s223 + $0x150] sm:$0xff] %v308
      %v310 = vld [vmem:[%s222 + $0x158] sm:$0xff]
      %311 = vst [vmem:[%s223 + $0x158] sm:$0xff] %v310
      %v312 = vld [vmem:[%s222 + $0x160] sm:$0xff]
      %313 = vst [vmem:[%s223 + $0x160] sm:$0xff] %v312
      %v314 = vld [vmem:[%s222 + $0x168] sm:$0xff]
      %315 = vst [vmem:[%s223 + $0x168] sm:$0xff] %v314
      %v316 = vld [vmem:[%s222 + $0x170] sm:$0xff]
      %317 = vst [vmem:[%s223 + $0x170] sm:$0xff] %v316
      %v318 = vld [vmem:[%s222 + $0x178] sm:$0xff]
      %319 = vst [vmem:[%s223 + $0x178] sm:$0xff] %v318
      %v320 = vld [vmem:[%s222 + $0x180] sm:$0xff]
      %321 = vst [vmem:[%s223 + $0x180] sm:$0xff] %v320
      %v322 = vld [vmem:[%s222 + $0x188] sm:$0xff]
      %323 = vst [vmem:[%s223 + $0x188] sm:$0xff] %v322
      %v324 = vld [vmem:[%s222 + $0x190] sm:$0xff]
      %325 = vst [vmem:[%s223 + $0x190] sm:$0xff] %v324
      %v326 = vld [vmem:[%s222 + $0x198] sm:$0xff]
      %327 = vst [vmem:[%s223 + $0x198] sm:$0xff] %v326
      %v328 = vld [vmem:[%s222 + $0x1a0] sm:$0xff]
      %329 = vst [vmem:[%s223 + $0x1a0] sm:$0xff] %v328
      %v330 = vld [vmem:[%s222 + $0x1a8] sm:$0xff]
      %331 = vst [vmem:[%s223 + $0x1a8] sm:$0xff] %v330
      %v332 = vld [vmem:[%s222 + $0x1b0] sm:$0xff]
      %333 = vst [vmem:[%s223 + $0x1b0] sm:$0xff] %v332
      %v334 = vld [vmem:[%s222 + $0x1b8] sm:$0xff]
      %335 = vst [vmem:[%s223 + $0x1b8] sm:$0xff] %v334
      %v336 = vld [vmem:[%s222 + $0x1c0] sm:$0xff]
      %337 = vst [vmem:[%s223 + $0x1c0] sm:$0xff] %v336
      %v338 = vld [vmem:[%s222 + $0x1c8] sm:$0xff]
      %339 = vst [vmem:[%s223 + $0x1c8] sm:$0xff] %v338
      %v340 = vld [vmem:[%s222 + $0x1d0] sm:$0xff]
      %341 = vst [vmem:[%s223 + $0x1d0] sm:$0xff] %v340
      %v342 = vld [vmem:[%s222 + $0x1d8] sm:$0xff]
      %343 = vst [vmem:[%s223 + $0x1d8] sm:$0xff] %v342
      %v344 = vld [vmem:[%s222 + $0x1e0] sm:$0xff]
      %345 = vst [vmem:[%s223 + $0x1e0] sm:$0xff] %v344
      %v346 = vld [vmem:[%s222 + $0x1e8] sm:$0xff]
      %347 = vst [vmem:[%s223 + $0x1e8] sm:$0xff] %v346
      %v348 = vld [vmem:[%s222 + $0x1f0] sm:$0xff]
      %349 = vst [vmem:[%s223 + $0x1f0] sm:$0xff] %v348
      %v350 = vld [vmem:[%s222 + $0x1f8] sm:$0xff]
      %351 = vst [vmem:[%s223 + $0x1f8] sm:$0xff] %v350
      %v352 = vld [vmem:[%s222 + $0x200] sm:$0xff]
      %353 = vst [vmem:[%s223 + $0x200] sm:$0xff] %v352
      %v354 = vld [vmem:[%s222 + $0x208] sm:$0xff]
      %355 = vst [vmem:[%s223 + $0x208] sm:$0xff] %v354
      %v356 = vld [vmem:[%s222 + $0x210] sm:$0xff]
      %357 = vst [vmem:[%s223 + $0x210] sm:$0xff] %v356
      %v358 = vld [vmem:[%s222 + $0x218] sm:$0xff]
      %359 = vst [vmem:[%s223 + $0x218] sm:$0xff] %v358
      %v360 = vld [vmem:[%s222 + $0x220] sm:$0xff]
      %361 = vst [vmem:[%s223 + $0x220] sm:$0xff] %v360
      %v362 = vld [vmem:[%s222 + $0x228] sm:$0xff]
      %363 = vst [vmem:[%s223 + $0x228] sm:$0xff] %v362
      %v364 = vld [vmem:[%s222 + $0x230] sm:$0xff]
      %365 = vst [vmem:[%s223 + $0x230] sm:$0xff] %v364
      %v366 = vld [vmem:[%s222 + $0x238] sm:$0xff]
      %367 = vst [vmem:[%s223 + $0x238] sm:$0xff] %v366
      %v368 = vld [vmem:[%s222 + $0x240] sm:$0xff]
      %369 = vst [vmem:[%s223 + $0x240] sm:$0xff] %v368
      %v370 = vld [vmem:[%s222 + $0x248] sm:$0xff]
      %371 = vst [vmem:[%s223 + $0x248] sm:$0xff] %v370
      %v372 = vld [vmem:[%s222 + $0x250] sm:$0xff]
      %373 = vst [vmem:[%s223 + $0x250] sm:$0xff] %v372
      %v374 = vld [vmem:[%s222 + $0x258] sm:$0xff]
      %375 = vst [vmem:[%s223 + $0x258] sm:$0xff] %v374
      %v376 = vld [vmem:[%s222 + $0x260] sm:$0xff]
      %377 = vst [vmem:[%s223 + $0x260] sm:$0xff] %v376
      %v378 = vld [vmem:[%s222 + $0x268] sm:$0xff]
      %379 = vst [vmem:[%s223 + $0x268] sm:$0xff] %v378
      %v380 = vld [vmem:[%s222 + $0x270] sm:$0xff]
      %381 = vst [vmem:[%s223 + $0x270] sm:$0xff] %v380
      %v382 = vld [vmem:[%s222 + $0x278] sm:$0xff]
      %383 = vst [vmem:[%s223 + $0x278] sm:$0xff] %v382
      %v384 = vld [vmem:[%s222 + $0x280] sm:$0xff]
      %385 = vst [vmem:[%s223 + $0x280] sm:$0xff] %v384
      %v386 = vld [vmem:[%s222 + $0x288] sm:$0xff]
      %387 = vst [vmem:[%s223 + $0x288] sm:$0xff] %v386
      %v388 = vld [vmem:[%s222 + $0x290] sm:$0xff]
      %389 = vst [vmem:[%s223 + $0x290] sm:$0xff] %v388
      %v390 = vld [vmem:[%s222 + $0x298] sm:$0xff]
      %391 = vst [vmem:[%s223 + $0x298] sm:$0xff] %v390
      %v392 = vld [vmem:[%s222 + $0x2a0] sm:$0xff]
      %393 = vst [vmem:[%s223 + $0x2a0] sm:$0xff] %v392
      %v394 = vld [vmem:[%s222 + $0x2a8] sm:$0xff]
      %395 = vst [vmem:[%s223 + $0x2a8] sm:$0xff] %v394
      %v396 = vld [vmem:[%s222 + $0x2b0] sm:$0xff]
      %397 = vst [vmem:[%s223 + $0x2b0] sm:$0xff] %v396
      %v398 = vld [vmem:[%s222 + $0x2b8] sm:$0xff]
      %399 = vst [vmem:[%s223 + $0x2b8] sm:$0xff] %v398
      %v400 = vld [vmem:[%s222 + $0x2c0] sm:$0xff]
      %401 = vst [vmem:[%s223 + $0x2c0] sm:$0xff] %v400
      %v402 = vld [vmem:[%s222 + $0x2c8] sm:$0xff]
      %403 = vst [vmem:[%s223 + $0x2c8] sm:$0xff] %v402
      %v404 = vld [vmem:[%s222 + $0x2d0] sm:$0xff]
      %405 = vst [vmem:[%s223 + $0x2d0] sm:$0xff] %v404
      %v406 = vld [vmem:[%s222 + $0x2d8] sm:$0xff]
      %407 = vst [vmem:[%s223 + $0x2d8] sm:$0xff] %v406
      %v408 = vld [vmem:[%s222 + $0x2e0] sm:$0xff]
      %409 = vst [vmem:[%s223 + $0x2e0] sm:$0xff] %v408
      %v410 = vld [vmem:[%s222 + $0x2e8] sm:$0xff]
      %411 = vst [vmem:[%s223 + $0x2e8] sm:$0xff] %v410
      %v412 = vld [vmem:[%s222 + $0x2f0] sm:$0xff]
      %413 = vst [vmem:[%s223 + $0x2f0] sm:$0xff] %v412
      %v414 = vld [vmem:[%s222 + $0x2f8] sm:$0xff]
      %415 = vst [vmem:[%s223 + $0x2f8] sm:$0xff] %v414
      %v416 = vld [vmem:[%s222 + $0x300] sm:$0xff]
      %417 = vst [vmem:[%s223 + $0x300] sm:$0xff] %v416
      %v418 = vld [vmem:[%s222 + $0x308] sm:$0xff]
      %419 = vst [vmem:[%s223 + $0x308] sm:$0xff] %v418
      %v420 = vld [vmem:[%s222 + $0x310] sm:$0xff]
      %421 = vst [vmem:[%s223 + $0x310] sm:$0xff] %v420
      %v422 = vld [vmem:[%s222 + $0x318] sm:$0xff]
      %423 = vst [vmem:[%s223 + $0x318] sm:$0xff] %v422
      %v424 = vld [vmem:[%s222 + $0x320] sm:$0xff]
      %425 = vst [vmem:[%s223 + $0x320] sm:$0xff] %v424
      %v426 = vld [vmem:[%s222 + $0x328] sm:$0xff]
      %427 = vst [vmem:[%s223 + $0x328] sm:$0xff] %v426
      %v428 = vld [vmem:[%s222 + $0x330] sm:$0xff]
      %429 = vst [vmem:[%s223 + $0x330] sm:$0xff] %v428
      %v430 = vld [vmem:[%s222 + $0x338] sm:$0xff]
      %431 = vst [vmem:[%s223 + $0x338] sm:$0xff] %v430
      %v432 = vld [vmem:[%s222 + $0x340] sm:$0xff]
      %433 = vst [vmem:[%s223 + $0x340] sm:$0xff] %v432
      %v434 = vld [vmem:[%s222 + $0x348] sm:$0xff]
      %435 = vst [vmem:[%s223 + $0x348] sm:$0xff] %v434
      %v436 = vld [vmem:[%s222 + $0x350] sm:$0xff]
      %437 = vst [vmem:[%s223 + $0x350] sm:$0xff] %v436
      %v438 = vld [vmem:[%s222 + $0x358] sm:$0xff]
      %439 = vst [vmem:[%s223 + $0x358] sm:$0xff] %v438
      %v440 = vld [vmem:[%s222 + $0x360] sm:$0xff]
      %441 = vst [vmem:[%s223 + $0x360] sm:$0xff] %v440
      %v442 = vld [vmem:[%s222 + $0x368] sm:$0xff]
      %443 = vst [vmem:[%s223 + $0x368] sm:$0xff] %v442
      %v444 = vld [vmem:[%s222 + $0x370] sm:$0xff]
      %445 = vst [vmem:[%s223 + $0x370] sm:$0xff] %v444
      %v446 = vld [vmem:[%s222 + $0x378] sm:$0xff]
      %447 = vst [vmem:[%s223 + $0x378] sm:$0xff] %v446
      %v448 = vld [vmem:[%s222 + $0x380] sm:$0xff]
      %449 = vst [vmem:[%s223 + $0x380] sm:$0xff] %v448
      %v450 = vld [vmem:[%s222 + $0x388] sm:$0xff]
      %451 = vst [vmem:[%s223 + $0x388] sm:$0xff] %v450
      %v452 = vld [vmem:[%s222 + $0x390] sm:$0xff]
      %453 = vst [vmem:[%s223 + $0x390] sm:$0xff] %v452
      %v454 = vld [vmem:[%s222 + $0x398] sm:$0xff]
      %455 = vst [vmem:[%s223 + $0x398] sm:$0xff] %v454
      %v456 = vld [vmem:[%s222 + $0x3a0] sm:$0xff]
      %457 = vst [vmem:[%s223 + $0x3a0] sm:$0xff] %v456
      %v458 = vld [vmem:[%s222 + $0x3a8] sm:$0xff]
      %459 = vst [vmem:[%s223 + $0x3a8] sm:$0xff] %v458
      %v460 = vld [vmem:[%s222 + $0x3b0] sm:$0xff]
      %461 = vst [vmem:[%s223 + $0x3b0] sm:$0xff] %v460
      %v462 = vld [vmem:[%s222 + $0x3b8] sm:$0xff]
      %463 = vst [vmem:[%s223 + $0x3b8] sm:$0xff] %v462
      %v464 = vld [vmem:[%s222 + $0x3c0] sm:$0xff]
      %465 = vst [vmem:[%s223 + $0x3c0] sm:$0xff] %v464
      %v466 = vld [vmem:[%s222 + $0x3c8] sm:$0xff]
      %467 = vst [vmem:[%s223 + $0x3c8] sm:$0xff] %v466
      %v468 = vld [vmem:[%s222 + $0x3d0] sm:$0xff]
      %469 = vst [vmem:[%s223 + $0x3d0] sm:$0xff] %v468
      %v470 = vld [vmem:[%s222 + $0x3d8] sm:$0xff]
      %471 = vst [vmem:[%s223 + $0x3d8] sm:$0xff] %v470
      %v472 = vld [vmem:[%s222 + $0x3e0] sm:$0xff]
      %473 = vst [vmem:[%s223 + $0x3e0] sm:$0xff] %v472
      %v474 = vld [vmem:[%s222 + $0x3e8] sm:$0xff]
      %475 = vst [vmem:[%s223 + $0x3e8] sm:$0xff] %v474
      %v476 = vld [vmem:[%s222 + $0x3f0] sm:$0xff]
      %477 = vst [vmem:[%s223 + $0x3f0] sm:$0xff] %v476
      %v478 = vld [vmem:[%s222 + $0x3f8] sm:$0xff]
      %479 = vst [vmem:[%s223 + $0x3f8] sm:$0xff] %v478
      %v480 = vld [vmem:[%s222 + $0x400] sm:$0xff]
      %481 = vst [vmem:[%s223 + $0x400] sm:$0xff] %v480
      %v482 = vld [vmem:[%s222 + $0x408] sm:$0xff]
      %483 = vst [vmem:[%s223 + $0x408] sm:$0xff] %v482
      %v484 = vld [vmem:[%s222 + $0x410] sm:$0xff]
      %485 = vst [vmem:[%s223 + $0x410] sm:$0xff] %v484
      %v486 = vld [vmem:[%s222 + $0x418] sm:$0xff]
      %487 = vst [vmem:[%s223 + $0x418] sm:$0xff] %v486
      %v488 = vld [vmem:[%s222 + $0x420] sm:$0xff]
      %489 = vst [vmem:[%s223 + $0x420] sm:$0xff] %v488
      %v490 = vld [vmem:[%s222 + $0x428] sm:$0xff]
      %491 = vst [vmem:[%s223 + $0x428] sm:$0xff] %v490
      %v492 = vld [vmem:[%s222 + $0x430] sm:$0xff]
      %493 = vst [vmem:[%s223 + $0x430] sm:$0xff] %v492
      %v494 = vld [vmem:[%s222 + $0x438] sm:$0xff]
      %495 = vst [vmem:[%s223 + $0x438] sm:$0xff] %v494
      %v496 = vld [vmem:[%s222 + $0x440] sm:$0xff]
      %497 = vst [vmem:[%s223 + $0x440] sm:$0xff] %v496
      %v498 = vld [vmem:[%s222 + $0x448] sm:$0xff]
      %499 = vst [vmem:[%s223 + $0x448] sm:$0xff] %v498
      %v500 = vld [vmem:[%s222 + $0x450] sm:$0xff]
      %501 = vst [vmem:[%s223 + $0x450] sm:$0xff] %v500
      %v502 = vld [vmem:[%s222 + $0x458] sm:$0xff]
      %503 = vst [vmem:[%s223 + $0x458] sm:$0xff] %v502
      %v504 = vld [vmem:[%s222 + $0x460] sm:$0xff]
      %505 = vst [vmem:[%s223 + $0x460] sm:$0xff] %v504
      %v506 = vld [vmem:[%s222 + $0x468] sm:$0xff]
      %507 = vst [vmem:[%s223 + $0x468] sm:$0xff] %v506
      %v508 = vld [vmem:[%s222 + $0x470] sm:$0xff]
      %509 = vst [vmem:[%s223 + $0x470] sm:$0xff] %v508
      %v510 = vld [vmem:[%s222 + $0x478] sm:$0xff]
      %511 = vst [vmem:[%s223 + $0x478] sm:$0xff] %v510
      %v512 = vld [vmem:[%s222 + $0x480] sm:$0xff]
      %513 = vst [vmem:[%s223 + $0x480] sm:$0xff] %v512
      %v514 = vld [vmem:[%s222 + $0x488] sm:$0xff]
      %515 = vst [vmem:[%s223 + $0x488] sm:$0xff] %v514
      %v516 = vld [vmem:[%s222 + $0x490] sm:$0xff]
      %517 = vst [vmem:[%s223 + $0x490] sm:$0xff] %v516
      %v518 = vld [vmem:[%s222 + $0x498] sm:$0xff]
      %519 = vst [vmem:[%s223 + $0x498] sm:$0xff] %v518
      %v520 = vld [vmem:[%s222 + $0x4a0] sm:$0xff]
      %521 = vst [vmem:[%s223 + $0x4a0] sm:$0xff] %v520
      %v522 = vld [vmem:[%s222 + $0x4a8] sm:$0xff]
      %523 = vst [vmem:[%s223 + $0x4a8] sm:$0xff] %v522
      %v524 = vld [vmem:[%s222 + $0x4b0] sm:$0xff]
      %525 = vst [vmem:[%s223 + $0x4b0] sm:$0xff] %v524
      %v526 = vld [vmem:[%s222 + $0x4b8] sm:$0xff]
      %527 = vst [vmem:[%s223 + $0x4b8] sm:$0xff] %v526
      %v528 = vld [vmem:[%s222 + $0x4c0] sm:$0xff]
      %529 = vst [vmem:[%s223 + $0x4c0] sm:$0xff] %v528
      %v530 = vld [vmem:[%s222 + $0x4c8] sm:$0xff]
      %531 = vst [vmem:[%s223 + $0x4c8] sm:$0xff] %v530
      %v532 = vld [vmem:[%s222 + $0x4d0] sm:$0xff]
      %533 = vst [vmem:[%s223 + $0x4d0] sm:$0xff] %v532
      %v534 = vld [vmem:[%s222 + $0x4d8] sm:$0xff]
      %535 = vst [vmem:[%s223 + $0x4d8] sm:$0xff] %v534
      %v536 = vld [vmem:[%s222 + $0x4e0] sm:$0xff]
      %537 = vst [vmem:[%s223 + $0x4e0] sm:$0xff] %v536
      %v538 = vld [vmem:[%s222 + $0x4e8] sm:$0xff]
      %539 = vst [vmem:[%s223 + $0x4e8] sm:$0xff] %v538
      %v540 = vld [vmem:[%s222 + $0x4f0] sm:$0xff]
      %541 = vst [vmem:[%s223 + $0x4f0] sm:$0xff] %v540
      %v542 = vld [vmem:[%s222 + $0x4f8] sm:$0xff]
      %543 = vst [vmem:[%s223 + $0x4f8] sm:$0xff] %v542
      %v544 = vld [vmem:[%s222 + $0x500] sm:$0xff]
      %545 = vst [vmem:[%s223 + $0x500] sm:$0xff] %v544
      %v546 = vld [vmem:[%s222 + $0x508] sm:$0xff]
      %547 = vst [vmem:[%s223 + $0x508] sm:$0xff] %v546
      %v548 = vld [vmem:[%s222 + $0x510] sm:$0xff]
      %549 = vst [vmem:[%s223 + $0x510] sm:$0xff] %v548
      %v550 = vld [vmem:[%s222 + $0x518] sm:$0xff]
      %551 = vst [vmem:[%s223 + $0x518] sm:$0xff] %v550
      %v552 = vld [vmem:[%s222 + $0x520] sm:$0xff]
      %553 = vst [vmem:[%s223 + $0x520] sm:$0xff] %v552
      %v554 = vld [vmem:[%s222 + $0x528] sm:$0xff]
      %555 = vst [vmem:[%s223 + $0x528] sm:$0xff] %v554
      %v556 = vld [vmem:[%s222 + $0x530] sm:$0xff]
      %557 = vst [vmem:[%s223 + $0x530] sm:$0xff] %v556
      %v558 = vld [vmem:[%s222 + $0x538] sm:$0xff]
      %559 = vst [vmem:[%s223 + $0x538] sm:$0xff] %v558
      %v560 = vld [vmem:[%s222 + $0x540] sm:$0xff]
      %561 = vst [vmem:[%s223 + $0x540] sm:$0xff] %v560
      %v562 = vld [vmem:[%s222 + $0x548] sm:$0xff]
      %563 = vst [vmem:[%s223 + $0x548] sm:$0xff] %v562
      %v564 = vld [vmem:[%s222 + $0x550] sm:$0xff]
      %565 = vst [vmem:[%s223 + $0x550] sm:$0xff] %v564
      %v566 = vld [vmem:[%s222 + $0x558] sm:$0xff]
      %567 = vst [vmem:[%s223 + $0x558] sm:$0xff] %v566
      %v568 = vld [vmem:[%s222 + $0x560] sm:$0xff]
      %569 = vst [vmem:[%s223 + $0x560] sm:$0xff] %v568
      %v570 = vld [vmem:[%s222 + $0x568] sm:$0xff]
      %571 = vst [vmem:[%s223 + $0x568] sm:$0xff] %v570
      %v572 = vld [vmem:[%s222 + $0x570] sm:$0xff]
      %573 = vst [vmem:[%s223 + $0x570] sm:$0xff] %v572
      %v574 = vld [vmem:[%s222 + $0x578] sm:$0xff]
      %575 = vst [vmem:[%s223 + $0x578] sm:$0xff] %v574
      %v576 = vld [vmem:[%s222 + $0x580] sm:$0xff]
      %577 = vst [vmem:[%s223 + $0x580] sm:$0xff] %v576
      %v578 = vld [vmem:[%s222 + $0x588] sm:$0xff]
      %579 = vst [vmem:[%s223 + $0x588] sm:$0xff] %v578
      %v580 = vld [vmem:[%s222 + $0x590] sm:$0xff]
      %581 = vst [vmem:[%s223 + $0x590] sm:$0xff] %v580
      %v582 = vld [vmem:[%s222 + $0x598] sm:$0xff]
      %583 = vst [vmem:[%s223 + $0x598] sm:$0xff] %v582
      %v584 = vld [vmem:[%s222 + $0x5a0] sm:$0xff]
      %585 = vst [vmem:[%s223 + $0x5a0] sm:$0xff] %v584
      %v586 = vld [vmem:[%s222 + $0x5a8] sm:$0xff]
      %587 = vst [vmem:[%s223 + $0x5a8] sm:$0xff] %v586
      %v588 = vld [vmem:[%s222 + $0x5b0] sm:$0xff]
      %589 = vst [vmem:[%s223 + $0x5b0] sm:$0xff] %v588
      %v590 = vld [vmem:[%s222 + $0x5b8] sm:$0xff]
      %591 = vst [vmem:[%s223 + $0x5b8] sm:$0xff] %v590
      %v592 = vld [vmem:[%s222 + $0x5c0] sm:$0xff]
      %593 = vst [vmem:[%s223 + $0x5c0] sm:$0xff] %v592
      %v594 = vld [vmem:[%s222 + $0x5c8] sm:$0xff]
      %595 = vst [vmem:[%s223 + $0x5c8] sm:$0xff] %v594
      %v596 = vld [vmem:[%s222 + $0x5d0] sm:$0xff]
      %597 = vst [vmem:[%s223 + $0x5d0] sm:$0xff] %v596
      %v598 = vld [vmem:[%s222 + $0x5d8] sm:$0xff]
      %599 = vst [vmem:[%s223 + $0x5d8] sm:$0xff] %v598
      %v600 = vld [vmem:[%s222 + $0x5e0] sm:$0xff]
      %601 = vst [vmem:[%s223 + $0x5e0] sm:$0xff] %v600
      %v602 = vld [vmem:[%s222 + $0x5e8] sm:$0xff]
      %603 = vst [vmem:[%s223 + $0x5e8] sm:$0xff] %v602
      %v604 = vld [vmem:[%s222 + $0x5f0] sm:$0xff]
      %605 = vst [vmem:[%s223 + $0x5f0] sm:$0xff] %v604
      %v606 = vld [vmem:[%s222 + $0x5f8] sm:$0xff]
      %607 = vst [vmem:[%s223 + $0x5f8] sm:$0xff] %v606
      %v608 = vld [vmem:[%s222 + $0x600] sm:$0xff]
      %609 = vst [vmem:[%s223 + $0x600] sm:$0xff] %v608
      %v610 = vld [vmem:[%s222 + $0x608] sm:$0xff]
      %611 = vst [vmem:[%s223 + $0x608] sm:$0xff] %v610
      %v612 = vld [vmem:[%s222 + $0x610] sm:$0xff]
      %613 = vst [vmem:[%s223 + $0x610] sm:$0xff] %v612
      %v614 = vld [vmem:[%s222 + $0x618] sm:$0xff]
      %615 = vst [vmem:[%s223 + $0x618] sm:$0xff] %v614
      %v616 = vld [vmem:[%s222 + $0x620] sm:$0xff]
      %617 = vst [vmem:[%s223 + $0x620] sm:$0xff] %v616
      %v618 = vld [vmem:[%s222 + $0x628] sm:$0xff]
      %619 = vst [vmem:[%s223 + $0x628] sm:$0xff] %v618
      %v620 = vld [vmem:[%s222 + $0x630] sm:$0xff]
      %621 = vst [vmem:[%s223 + $0x630] sm:$0xff] %v620
      %v622 = vld [vmem:[%s222 + $0x638] sm:$0xff]
      %623 = vst [vmem:[%s223 + $0x638] sm:$0xff] %v622
      %v624 = vld [vmem:[%s222 + $0x640] sm:$0xff]
      %625 = vst [vmem:[%s223 + $0x640] sm:$0xff] %v624
      %v626 = vld [vmem:[%s222 + $0x648] sm:$0xff]
      %627 = vst [vmem:[%s223 + $0x648] sm:$0xff] %v626
      %v628 = vld [vmem:[%s222 + $0x650] sm:$0xff]
      %629 = vst [vmem:[%s223 + $0x650] sm:$0xff] %v628
      %v630 = vld [vmem:[%s222 + $0x658] sm:$0xff]
      %631 = vst [vmem:[%s223 + $0x658] sm:$0xff] %v630
      %v632 = vld [vmem:[%s222 + $0x660] sm:$0xff]
      %633 = vst [vmem:[%s223 + $0x660] sm:$0xff] %v632
      %v634 = vld [vmem:[%s222 + $0x668] sm:$0xff]
      %635 = vst [vmem:[%s223 + $0x668] sm:$0xff] %v634
      %v636 = vld [vmem:[%s222 + $0x670] sm:$0xff]
      %637 = vst [vmem:[%s223 + $0x670] sm:$0xff] %v636
      %v638 = vld [vmem:[%s222 + $0x678] sm:$0xff]
      %639 = vst [vmem:[%s223 + $0x678] sm:$0xff] %v638
      %v640 = vld [vmem:[%s222 + $0x680] sm:$0xff]
      %641 = vst [vmem:[%s223 + $0x680] sm:$0xff] %v640
      %v642 = vld [vmem:[%s222 + $0x688] sm:$0xff]
      %643 = vst [vmem:[%s223 + $0x688] sm:$0xff] %v642
      %v644 = vld [vmem:[%s222 + $0x690] sm:$0xff]
      %645 = vst [vmem:[%s223 + $0x690] sm:$0xff] %v644
      %v646 = vld [vmem:[%s222 + $0x698] sm:$0xff]
      %647 = vst [vmem:[%s223 + $0x698] sm:$0xff] %v646
      %v648 = vld [vmem:[%s222 + $0x6a0] sm:$0xff]
      %649 = vst [vmem:[%s223 + $0x6a0] sm:$0xff] %v648
      %v650 = vld [vmem:[%s222 + $0x6a8] sm:$0xff]
      %651 = vst [vmem:[%s223 + $0x6a8] sm:$0xff] %v650
      %v652 = vld [vmem:[%s222 + $0x6b0] sm:$0xff]
      %653 = vst [vmem:[%s223 + $0x6b0] sm:$0xff] %v652
      %v654 = vld [vmem:[%s222 + $0x6b8] sm:$0xff]
      %655 = vst [vmem:[%s223 + $0x6b8] sm:$0xff] %v654
      %v656 = vld [vmem:[%s222 + $0x6c0] sm:$0xff]
      %657 = vst [vmem:[%s223 + $0x6c0] sm:$0xff] %v656
      %v658 = vld [vmem:[%s222 + $0x6c8] sm:$0xff]
      %659 = vst [vmem:[%s223 + $0x6c8] sm:$0xff] %v658
      %v660 = vld [vmem:[%s222 + $0x6d0] sm:$0xff]
      %661 = vst [vmem:[%s223 + $0x6d0] sm:$0xff] %v660
      %v662 = vld [vmem:[%s222 + $0x6d8] sm:$0xff]
      %663 = vst [vmem:[%s223 + $0x6d8] sm:$0xff] %v662
      %v664 = vld [vmem:[%s222 + $0x6e0] sm:$0xff]
      %665 = vst [vmem:[%s223 + $0x6e0] sm:$0xff] %v664
      %v666 = vld [vmem:[%s222 + $0x6e8] sm:$0xff]
      %667 = vst [vmem:[%s223 + $0x6e8] sm:$0xff] %v666
      %v668 = vld [vmem:[%s222 + $0x6f0] sm:$0xff]
      %669 = vst [vmem:[%s223 + $0x6f0] sm:$0xff] %v668
      %v670 = vld [vmem:[%s222 + $0x6f8] sm:$0xff]
      %671 = vst [vmem:[%s223 + $0x6f8] sm:$0xff] %v670
      %v672 = vld [vmem:[%s222 + $0x700] sm:$0xff]
      %673 = vst [vmem:[%s223 + $0x700] sm:$0xff] %v672
      %v674 = vld [vmem:[%s222 + $0x708] sm:$0xff]
      %675 = vst [vmem:[%s223 + $0x708] sm:$0xff] %v674
      %v676 = vld [vmem:[%s222 + $0x710] sm:$0xff]
      %677 = vst [vmem:[%s223 + $0x710] sm:$0xff] %v676
      %v678 = vld [vmem:[%s222 + $0x718] sm:$0xff]
      %679 = vst [vmem:[%s223 + $0x718] sm:$0xff] %v678
      %v680 = vld [vmem:[%s222 + $0x720] sm:$0xff]
      %681 = vst [vmem:[%s223 + $0x720] sm:$0xff] %v680
      %v682 = vld [vmem:[%s222 + $0x728] sm:$0xff]
      %683 = vst [vmem:[%s223 + $0x728] sm:$0xff] %v682
      %v684 = vld [vmem:[%s222 + $0x730] sm:$0xff]
      %685 = vst [vmem:[%s223 + $0x730] sm:$0xff] %v684
      %v686 = vld [vmem:[%s222 + $0x738] sm:$0xff]
      %687 = vst [vmem:[%s223 + $0x738] sm:$0xff] %v686
      %v688 = vld [vmem:[%s222 + $0x740] sm:$0xff]
      %689 = vst [vmem:[%s223 + $0x740] sm:$0xff] %v688
      %v690 = vld [vmem:[%s222 + $0x748] sm:$0xff]
      %691 = vst [vmem:[%s223 + $0x748] sm:$0xff] %v690
      %v692 = vld [vmem:[%s222 + $0x750] sm:$0xff]
      %693 = vst [vmem:[%s223 + $0x750] sm:$0xff] %v692
      %v694 = vld [vmem:[%s222 + $0x758] sm:$0xff]
      %695 = vst [vmem:[%s223 + $0x758] sm:$0xff] %v694
      %v696 = vld [vmem:[%s222 + $0x760] sm:$0xff]
      %697 = vst [vmem:[%s223 + $0x760] sm:$0xff] %v696
      %v698 = vld [vmem:[%s222 + $0x768] sm:$0xff]
      %699 = vst [vmem:[%s223 + $0x768] sm:$0xff] %v698
      %v700 = vld [vmem:[%s222 + $0x770] sm:$0xff]
      %701 = vst [vmem:[%s223 + $0x770] sm:$0xff] %v700
      %v702 = vld [vmem:[%s222 + $0x778] sm:$0xff]
      %703 = vst [vmem:[%s223 + $0x778] sm:$0xff] %v702
      %v704 = vld [vmem:[%s222 + $0x780] sm:$0xff]
      %705 = vst [vmem:[%s223 + $0x780] sm:$0xff] %v704
      %v706 = vld [vmem:[%s222 + $0x788] sm:$0xff]
      %707 = vst [vmem:[%s223 + $0x788] sm:$0xff] %v706
      %v708 = vld [vmem:[%s222 + $0x790] sm:$0xff]
      %709 = vst [vmem:[%s223 + $0x790] sm:$0xff] %v708
      %v710 = vld [vmem:[%s222 + $0x798] sm:$0xff]
      %711 = vst [vmem:[%s223 + $0x798] sm:$0xff] %v710
      %v712 = vld [vmem:[%s222 + $0x7a0] sm:$0xff]
      %713 = vst [vmem:[%s223 + $0x7a0] sm:$0xff] %v712
      %v714 = vld [vmem:[%s222 + $0x7a8] sm:$0xff]
      %715 = vst [vmem:[%s223 + $0x7a8] sm:$0xff] %v714
      %v716 = vld [vmem:[%s222 + $0x7b0] sm:$0xff]
      %717 = vst [vmem:[%s223 + $0x7b0] sm:$0xff] %v716
      %v718 = vld [vmem:[%s222 + $0x7b8] sm:$0xff]
      %719 = vst [vmem:[%s223 + $0x7b8] sm:$0xff] %v718
      %v720 = vld [vmem:[%s222 + $0x7c0] sm:$0xff]
      %721 = vst [vmem:[%s223 + $0x7c0] sm:$0xff] %v720
      %v722 = vld [vmem:[%s222 + $0x7c8] sm:$0xff]
      %723 = vst [vmem:[%s223 + $0x7c8] sm:$0xff] %v722
      %v724 = vld [vmem:[%s222 + $0x7d0] sm:$0xff]
      %725 = vst [vmem:[%s223 + $0x7d0] sm:$0xff] %v724
      %v726 = vld [vmem:[%s222 + $0x7d8] sm:$0xff]
      %727 = vst [vmem:[%s223 + $0x7d8] sm:$0xff] %v726
      %v728 = vld [vmem:[%s222 + $0x7e0] sm:$0xff]
      %729 = vst [vmem:[%s223 + $0x7e0] sm:$0xff] %v728
      %v730 = vld [vmem:[%s222 + $0x7e8] sm:$0xff]
      %731 = vst [vmem:[%s223 + $0x7e8] sm:$0xff] %v730
      %v732 = vld [vmem:[%s222 + $0x7f0] sm:$0xff]
      %733 = vst [vmem:[%s223 + $0x7f0] sm:$0xff] %v732
      %v734 = vld [vmem:[%s222 + $0x7f8] sm:$0xff]
      %735 = vst [vmem:[%s223 + $0x7f8] sm:$0xff] %v734
    $region109: #{categorical_dqn_forward.1} parent=103 // loop_footer
      %s221 = sadd.s32 1, %s217
    $region110: #{categorical_dqn_forward.1} parent=103 // loop_footer_branch
      %216 = sbr.rel target = $region106
    $region111: #{categorical_dqn_forward.1} parent=103 // loop_exit
      _
  $region104: #{categorical_dqn_forward.1} parent=0 // pred_fallthru
    _
  // Predicated region
  $region112: #{categorical_dqn_forward.1} parent=0 // pred_check
    _
  $region113: #{categorical_dqn_forward.1} parent=0 // pred_check_branch
    %737 = sbr.rel target = $region115
  $region114: #{categorical_dqn_forward.1} parent=0 // pred_region
    _
  $region115: #{categorical_dqn_forward.1} parent=0 // pred_fallthru
    _
  // Predicated region
  $region116: #{categorical_dqn_forward.1} parent=0 // pred_check
    _
  $region117: #{categorical_dqn_forward.1} parent=0 // pred_check_branch
    %740 = sbr.rel (0) target = $region119
  $region118: #{categorical_dqn_forward.1} parent=0 // pred_region
    %741 = vsyncadd %s213, 32768
  $region119: #{categorical_dqn_forward.1} parent=0 // pred_fallthru
    _
  %s742 = scalar_lea.sflag [#allocation11], 2
  // Predicated region
  $region120: #{categorical_dqn_forward.1} parent=0 // pred_check
    _
  $region121: #{categorical_dqn_forward.1} parent=0 // pred_check_branch
    %744 = sbr.rel (0) target = $region123
  $region122: #{categorical_dqn_forward.1} parent=0 // pred_region
    loop: start=0, step=1, limit=1
    $region124: #{categorical_dqn_forward.1} parent=122 // loop_pre_header
      _
    $region125: #{categorical_dqn_forward.1} parent=122 // loop_header
      %s746 = sphi 0, %s750
      %p747 = scmp.ge.s32.totalorder %s746, 1
      %s751 = sphi %s22, %s22
      %s752 = sphi [#allocation10], [#allocation10]
    $region126: #{categorical_dqn_forward.1} parent=122 // loop_header_branch
      %749 = sbr.rel (%p747) target = $region130
    $region127: #{categorical_dqn_forward.1} parent=122 // loop_body
      %v753 = vld [vmem:[%s751] sm:$0xff]
      %754 = vst [vmem:[%s752] sm:$0xff] %v753
      %v755 = vld [vmem:[%s751 + $0x8] sm:$0xff]
      %756 = vst [vmem:[%s752 + $0x8] sm:$0xff] %v755
      %v757 = vld [vmem:[%s751 + $0x10] sm:$0xff]
      %758 = vst [vmem:[%s752 + $0x10] sm:$0xff] %v757
      %v759 = vld [vmem:[%s751 + $0x18] sm:$0xff]
      %760 = vst [vmem:[%s752 + $0x18] sm:$0xff] %v759
      %v761 = vld [vmem:[%s751 + $0x20] sm:$0xff]
      %762 = vst [vmem:[%s752 + $0x20] sm:$0xff] %v761
      %v763 = vld [vmem:[%s751 + $0x28] sm:$0xff]
      %764 = vst [vmem:[%s752 + $0x28] sm:$0xff] %v763
      %v765 = vld [vmem:[%s751 + $0x30] sm:$0xff]
      %766 = vst [vmem:[%s752 + $0x30] sm:$0xff] %v765
      %v767 = vld [vmem:[%s751 + $0x38] sm:$0xff]
      %768 = vst [vmem:[%s752 + $0x38] sm:$0xff] %v767
      %v769 = vld [vmem:[%s751 + $0x40] sm:$0xff]
      %770 = vst [vmem:[%s752 + $0x40] sm:$0xff] %v769
      %v771 = vld [vmem:[%s751 + $0x48] sm:$0xff]
      %772 = vst [vmem:[%s752 + $0x48] sm:$0xff] %v771
      %v773 = vld [vmem:[%s751 + $0x50] sm:$0xff]
      %774 = vst [vmem:[%s752 + $0x50] sm:$0xff] %v773
      %v775 = vld [vmem:[%s751 + $0x58] sm:$0xff]
      %776 = vst [vmem:[%s752 + $0x58] sm:$0xff] %v775
      %v777 = vld [vmem:[%s751 + $0x60] sm:$0xff]
      %778 = vst [vmem:[%s752 + $0x60] sm:$0xff] %v777
      %v779 = vld [vmem:[%s751 + $0x68] sm:$0xff]
      %780 = vst [vmem:[%s752 + $0x68] sm:$0xff] %v779
      %v781 = vld [vmem:[%s751 + $0x70] sm:$0xff]
      %782 = vst [vmem:[%s752 + $0x70] sm:$0xff] %v781
      %v783 = vld [vmem:[%s751 + $0x78] sm:$0xff]
      %784 = vst [vmem:[%s752 + $0x78] sm:$0xff] %v783
      %v785 = vld [vmem:[%s751 + $0x80] sm:$0xff]
      %786 = vst [vmem:[%s752 + $0x80] sm:$0xff] %v785
      %v787 = vld [vmem:[%s751 + $0x88] sm:$0xff]
      %788 = vst [vmem:[%s752 + $0x88] sm:$0xff] %v787
      %v789 = vld [vmem:[%s751 + $0x90] sm:$0xff]
      %790 = vst [vmem:[%s752 + $0x90] sm:$0xff] %v789
      %v791 = vld [vmem:[%s751 + $0x98] sm:$0xff]
      %792 = vst [vmem:[%s752 + $0x98] sm:$0xff] %v791
      %v793 = vld [vmem:[%s751 + $0xa0] sm:$0xff]
      %794 = vst [vmem:[%s752 + $0xa0] sm:$0xff] %v793
      %v795 = vld [vmem:[%s751 + $0xa8] sm:$0xff]
      %796 = vst [vmem:[%s752 + $0xa8] sm:$0xff] %v795
      %v797 = vld [vmem:[%s751 + $0xb0] sm:$0xff]
      %798 = vst [vmem:[%s752 + $0xb0] sm:$0xff] %v797
      %v799 = vld [vmem:[%s751 + $0xb8] sm:$0xff]
      %800 = vst [vmem:[%s752 + $0xb8] sm:$0xff] %v799
      %v801 = vld [vmem:[%s751 + $0xc0] sm:$0xff]
      %802 = vst [vmem:[%s752 + $0xc0] sm:$0xff] %v801
      %v803 = vld [vmem:[%s751 + $0xc8] sm:$0xff]
      %804 = vst [vmem:[%s752 + $0xc8] sm:$0xff] %v803
      %v805 = vld [vmem:[%s751 + $0xd0] sm:$0xff]
      %806 = vst [vmem:[%s752 + $0xd0] sm:$0xff] %v805
      %v807 = vld [vmem:[%s751 + $0xd8] sm:$0xff]
      %808 = vst [vmem:[%s752 + $0xd8] sm:$0xff] %v807
      %v809 = vld [vmem:[%s751 + $0xe0] sm:$0xff]
      %810 = vst [vmem:[%s752 + $0xe0] sm:$0xff] %v809
      %v811 = vld [vmem:[%s751 + $0xe8] sm:$0xff]
      %812 = vst [vmem:[%s752 + $0xe8] sm:$0xff] %v811
      %v813 = vld [vmem:[%s751 + $0xf0] sm:$0xff]
      %814 = vst [vmem:[%s752 + $0xf0] sm:$0xff] %v813
      %v815 = vld [vmem:[%s751 + $0xf8] sm:$0xff]
      %816 = vst [vmem:[%s752 + $0xf8] sm:$0xff] %v815
      %v817 = vld [vmem:[%s751 + $0x100] sm:$0xff]
      %818 = vst [vmem:[%s752 + $0x100] sm:$0xff] %v817
      %v819 = vld [vmem:[%s751 + $0x108] sm:$0xff]
      %820 = vst [vmem:[%s752 + $0x108] sm:$0xff] %v819
      %v821 = vld [vmem:[%s751 + $0x110] sm:$0xff]
      %822 = vst [vmem:[%s752 + $0x110] sm:$0xff] %v821
      %v823 = vld [vmem:[%s751 + $0x118] sm:$0xff]
      %824 = vst [vmem:[%s752 + $0x118] sm:$0xff] %v823
      %v825 = vld [vmem:[%s751 + $0x120] sm:$0xff]
      %826 = vst [vmem:[%s752 + $0x120] sm:$0xff] %v825
      %v827 = vld [vmem:[%s751 + $0x128] sm:$0xff]
      %828 = vst [vmem:[%s752 + $0x128] sm:$0xff] %v827
      %v829 = vld [vmem:[%s751 + $0x130] sm:$0xff]
      %830 = vst [vmem:[%s752 + $0x130] sm:$0xff] %v829
      %v831 = vld [vmem:[%s751 + $0x138] sm:$0xff]
      %832 = vst [vmem:[%s752 + $0x138] sm:$0xff] %v831
      %v833 = vld [vmem:[%s751 + $0x140] sm:$0xff]
      %834 = vst [vmem:[%s752 + $0x140] sm:$0xff] %v833
      %v835 = vld [vmem:[%s751 + $0x148] sm:$0xff]
      %836 = vst [vmem:[%s752 + $0x148] sm:$0xff] %v835
      %v837 = vld [vmem:[%s751 + $0x150] sm:$0xff]
      %838 = vst [vmem:[%s752 + $0x150] sm:$0xff] %v837
      %v839 = vld [vmem:[%s751 + $0x158] sm:$0xff]
      %840 = vst [vmem:[%s752 + $0x158] sm:$0xff] %v839
      %v841 = vld [vmem:[%s751 + $0x160] sm:$0xff]
      %842 = vst [vmem:[%s752 + $0x160] sm:$0xff] %v841
      %v843 = vld [vmem:[%s751 + $0x168] sm:$0xff]
      %844 = vst [vmem:[%s752 + $0x168] sm:$0xff] %v843
      %v845 = vld [vmem:[%s751 + $0x170] sm:$0xff]
      %846 = vst [vmem:[%s752 + $0x170] sm:$0xff] %v845
      %v847 = vld [vmem:[%s751 + $0x178] sm:$0xff]
      %848 = vst [vmem:[%s752 + $0x178] sm:$0xff] %v847
      %v849 = vld [vmem:[%s751 + $0x180] sm:$0xff]
      %850 = vst [vmem:[%s752 + $0x180] sm:$0xff] %v849
      %v851 = vld [vmem:[%s751 + $0x188] sm:$0xff]
      %852 = vst [vmem:[%s752 + $0x188] sm:$0xff] %v851
      %v853 = vld [vmem:[%s751 + $0x190] sm:$0xff]
      %854 = vst [vmem:[%s752 + $0x190] sm:$0xff] %v853
      %v855 = vld [vmem:[%s751 + $0x198] sm:$0xff]
      %856 = vst [vmem:[%s752 + $0x198] sm:$0xff] %v855
      %v857 = vld [vmem:[%s751 + $0x1a0] sm:$0xff]
      %858 = vst [vmem:[%s752 + $0x1a0] sm:$0xff] %v857
      %v859 = vld [vmem:[%s751 + $0x1a8] sm:$0xff]
      %860 = vst [vmem:[%s752 + $0x1a8] sm:$0xff] %v859
      %v861 = vld [vmem:[%s751 + $0x1b0] sm:$0xff]
      %862 = vst [vmem:[%s752 + $0x1b0] sm:$0xff] %v861
      %v863 = vld [vmem:[%s751 + $0x1b8] sm:$0xff]
      %864 = vst [vmem:[%s752 + $0x1b8] sm:$0xff] %v863
      %v865 = vld [vmem:[%s751 + $0x1c0] sm:$0xff]
      %866 = vst [vmem:[%s752 + $0x1c0] sm:$0xff] %v865
      %v867 = vld [vmem:[%s751 + $0x1c8] sm:$0xff]
      %868 = vst [vmem:[%s752 + $0x1c8] sm:$0xff] %v867
      %v869 = vld [vmem:[%s751 + $0x1d0] sm:$0xff]
      %870 = vst [vmem:[%s752 + $0x1d0] sm:$0xff] %v869
      %v871 = vld [vmem:[%s751 + $0x1d8] sm:$0xff]
      %872 = vst [vmem:[%s752 + $0x1d8] sm:$0xff] %v871
      %v873 = vld [vmem:[%s751 + $0x1e0] sm:$0xff]
      %874 = vst [vmem:[%s752 + $0x1e0] sm:$0xff] %v873
      %v875 = vld [vmem:[%s751 + $0x1e8] sm:$0xff]
      %876 = vst [vmem:[%s752 + $0x1e8] sm:$0xff] %v875
      %v877 = vld [vmem:[%s751 + $0x1f0] sm:$0xff]
      %878 = vst [vmem:[%s752 + $0x1f0] sm:$0xff] %v877
      %v879 = vld [vmem:[%s751 + $0x1f8] sm:$0xff]
      %880 = vst [vmem:[%s752 + $0x1f8] sm:$0xff] %v879
      %v881 = vld [vmem:[%s751 + $0x200] sm:$0xff]
      %882 = vst [vmem:[%s752 + $0x200] sm:$0xff] %v881
      %v883 = vld [vmem:[%s751 + $0x208] sm:$0xff]
      %884 = vst [vmem:[%s752 + $0x208] sm:$0xff] %v883
      %v885 = vld [vmem:[%s751 + $0x210] sm:$0xff]
      %886 = vst [vmem:[%s752 + $0x210] sm:$0xff] %v885
      %v887 = vld [vmem:[%s751 + $0x218] sm:$0xff]
      %888 = vst [vmem:[%s752 + $0x218] sm:$0xff] %v887
      %v889 = vld [vmem:[%s751 + $0x220] sm:$0xff]
      %890 = vst [vmem:[%s752 + $0x220] sm:$0xff] %v889
      %v891 = vld [vmem:[%s751 + $0x228] sm:$0xff]
      %892 = vst [vmem:[%s752 + $0x228] sm:$0xff] %v891
      %v893 = vld [vmem:[%s751 + $0x230] sm:$0xff]
      %894 = vst [vmem:[%s752 + $0x230] sm:$0xff] %v893
      %v895 = vld [vmem:[%s751 + $0x238] sm:$0xff]
      %896 = vst [vmem:[%s752 + $0x238] sm:$0xff] %v895
      %v897 = vld [vmem:[%s751 + $0x240] sm:$0xff]
      %898 = vst [vmem:[%s752 + $0x240] sm:$0xff] %v897
      %v899 = vld [vmem:[%s751 + $0x248] sm:$0xff]
      %900 = vst [vmem:[%s752 + $0x248] sm:$0xff] %v899
      %v901 = vld [vmem:[%s751 + $0x250] sm:$0xff]
      %902 = vst [vmem:[%s752 + $0x250] sm:$0xff] %v901
      %v903 = vld [vmem:[%s751 + $0x258] sm:$0xff]
      %904 = vst [vmem:[%s752 + $0x258] sm:$0xff] %v903
      %v905 = vld [vmem:[%s751 + $0x260] sm:$0xff]
      %906 = vst [vmem:[%s752 + $0x260] sm:$0xff] %v905
      %v907 = vld [vmem:[%s751 + $0x268] sm:$0xff]
      %908 = vst [vmem:[%s752 + $0x268] sm:$0xff] %v907
      %v909 = vld [vmem:[%s751 + $0x270] sm:$0xff]
      %910 = vst [vmem:[%s752 + $0x270] sm:$0xff] %v909
      %v911 = vld [vmem:[%s751 + $0x278] sm:$0xff]
      %912 = vst [vmem:[%s752 + $0x278] sm:$0xff] %v911
      %v913 = vld [vmem:[%s751 + $0x280] sm:$0xff]
      %914 = vst [vmem:[%s752 + $0x280] sm:$0xff] %v913
      %v915 = vld [vmem:[%s751 + $0x288] sm:$0xff]
      %916 = vst [vmem:[%s752 + $0x288] sm:$0xff] %v915
      %v917 = vld [vmem:[%s751 + $0x290] sm:$0xff]
      %918 = vst [vmem:[%s752 + $0x290] sm:$0xff] %v917
      %v919 = vld [vmem:[%s751 + $0x298] sm:$0xff]
      %920 = vst [vmem:[%s752 + $0x298] sm:$0xff] %v919
      %v921 = vld [vmem:[%s751 + $0x2a0] sm:$0xff]
      %922 = vst [vmem:[%s752 + $0x2a0] sm:$0xff] %v921
      %v923 = vld [vmem:[%s751 + $0x2a8] sm:$0xff]
      %924 = vst [vmem:[%s752 + $0x2a8] sm:$0xff] %v923
      %v925 = vld [vmem:[%s751 + $0x2b0] sm:$0xff]
      %926 = vst [vmem:[%s752 + $0x2b0] sm:$0xff] %v925
      %v927 = vld [vmem:[%s751 + $0x2b8] sm:$0xff]
      %928 = vst [vmem:[%s752 + $0x2b8] sm:$0xff] %v927
      %v929 = vld [vmem:[%s751 + $0x2c0] sm:$0xff]
      %930 = vst [vmem:[%s752 + $0x2c0] sm:$0xff] %v929
      %v931 = vld [vmem:[%s751 + $0x2c8] sm:$0xff]
      %932 = vst [vmem:[%s752 + $0x2c8] sm:$0xff] %v931
      %v933 = vld [vmem:[%s751 + $0x2d0] sm:$0xff]
      %934 = vst [vmem:[%s752 + $0x2d0] sm:$0xff] %v933
      %v935 = vld [vmem:[%s751 + $0x2d8] sm:$0xff]
      %936 = vst [vmem:[%s752 + $0x2d8] sm:$0xff] %v935
      %v937 = vld [vmem:[%s751 + $0x2e0] sm:$0xff]
      %938 = vst [vmem:[%s752 + $0x2e0] sm:$0xff] %v937
      %v939 = vld [vmem:[%s751 + $0x2e8] sm:$0xff]
      %940 = vst [vmem:[%s752 + $0x2e8] sm:$0xff] %v939
      %v941 = vld [vmem:[%s751 + $0x2f0] sm:$0xff]
      %942 = vst [vmem:[%s752 + $0x2f0] sm:$0xff] %v941
      %v943 = vld [vmem:[%s751 + $0x2f8] sm:$0xff]
      %944 = vst [vmem:[%s752 + $0x2f8] sm:$0xff] %v943
    $region128: #{categorical_dqn_forward.1} parent=122 // loop_footer
      %s750 = sadd.s32 1, %s746
    $region129: #{categorical_dqn_forward.1} parent=122 // loop_footer_branch
      %745 = sbr.rel target = $region125
    $region130: #{categorical_dqn_forward.1} parent=122 // loop_exit
      _
  $region123: #{categorical_dqn_forward.1} parent=0 // pred_fallthru
    _
  // Predicated region
  $region131: #{categorical_dqn_forward.1} parent=0 // pred_check
    _
  $region132: #{categorical_dqn_forward.1} parent=0 // pred_check_branch
    %946 = sbr.rel target = $region134
  $region133: #{categorical_dqn_forward.1} parent=0 // pred_region
    _
  $region134: #{categorical_dqn_forward.1} parent=0 // pred_fallthru
    _
  // Predicated region
  $region135: #{categorical_dqn_forward.1} parent=0 // pred_check
    _
  $region136: #{categorical_dqn_forward.1} parent=0 // pred_check_branch
    %949 = sbr.rel (0) target = $region138
  $region137: #{categorical_dqn_forward.1} parent=0 // pred_region
    %950 = vsyncadd %s742, 12288
  $region138: #{categorical_dqn_forward.1} parent=0 // pred_fallthru
    _
  %v951 = vld [vmem:[%s0] sm:$0xff]
  %v952 = vld [vmem:[%s0 + $0x8] sm:$0xff]
  %v953 = vld [vmem:[%s0 + $0x10] sm:$0xff]
  %v954 = vld [vmem:[%s0 + $0x18] sm:$0xff]
  %v955 = vld [vmem:[%s0 + $0x20] sm:$0xff]
  %v956 = vld [vmem:[%s0 + $0x28] sm:$0xff]
  %v957 = vld [vmem:[%s0 + $0x30] sm:$0xff]
  %v958 = vld [vmem:[%s0 + $0x38] sm:$0xff]
  %v959 = vld [vmem:[%s0 + $0x40] sm:$0xff]
  %v960 = vld [vmem:[%s0 + $0x48] sm:$0xff]
  %v961 = vld [vmem:[%s0 + $0x50] sm:$0xff]
  %v962 = vld [vmem:[%s0 + $0x58] sm:$0xff]
  %v963 = vld [vmem:[%s0 + $0x60] sm:$0xff]
  %v964 = vld [vmem:[%s0 + $0x68] sm:$0xff]
  %v965 = vld [vmem:[%s0 + $0x70] sm:$0xff]
  %v966 = vld [vmem:[%s0 + $0x78] sm:$0xff]
  %v967 = vld [vmem:[%s0 + $0x80] sm:$0xff]
  %v968 = vld [vmem:[%s0 + $0x88] sm:$0xff]
  %v969 = vld [vmem:[%s0 + $0x90] sm:$0xff]
  %v970 = vld [vmem:[%s0 + $0x98] sm:$0xff]
  %v971 = vld [vmem:[%s0 + $0xa0] sm:$0xff]
  %v972 = vld [vmem:[%s0 + $0xa8] sm:$0xff]
  %v973 = vld [vmem:[%s0 + $0xb0] sm:$0xff]
  %v974 = vld [vmem:[%s0 + $0xb8] sm:$0xff]
  %v975 = vld [vmem:[%s0 + $0xc0] sm:$0xff]
  %v976 = vld [vmem:[%s0 + $0xc8] sm:$0xff]
  %v977 = vld [vmem:[%s0 + $0xd0] sm:$0xff]
  %v978 = vld [vmem:[%s0 + $0xd8] sm:$0xff]
  %v979 = vld [vmem:[%s0 + $0xe0] sm:$0xff]
  %v980 = vld [vmem:[%s0 + $0xe8] sm:$0xff]
  %v981 = vld [vmem:[%s0 + $0xf0] sm:$0xff]
  %v982 = vld [vmem:[%s0 + $0xf8] sm:$0xff]
  %v983 = vld [vmem:[%s0 + $0x100] sm:$0xff]
  %v984 = vld [vmem:[%s0 + $0x108] sm:$0xff]
  %v985 = vld [vmem:[%s0 + $0x110] sm:$0xff]
  %v986 = vld [vmem:[%s0 + $0x118] sm:$0xff]
  %v987 = vld [vmem:[%s1] sm:$0xf]
  %v988 = vld [vmem:[%s1 + $0x4] sm:$0xf]
  %v989 = vld [vmem:[%s1 + $0x8] sm:$0xf]
  %v990 = vld [vmem:[%s1 + $0xc] sm:$0xf]
  %v991 = vld [vmem:[%s1 + $0x10] sm:$0xf]
  %v992 = vld [vmem:[%s1 + $0x14] sm:$0xf]
  %v993 = vld [vmem:[%s1 + $0x18] sm:$0xf]
  %v994 = vld [vmem:[%s1 + $0x1c] sm:$0xf]
  %v995 = vld [vmem:[%s1 + $0x20] sm:$0xf]
  %v996 = vld [vmem:[%s1 + $0x24] sm:$0xf]
  %v997 = vld [vmem:[%s1 + $0x28] sm:$0xf]
  %v998 = vld [vmem:[%s1 + $0x2c] sm:$0xf]
  %v999 = vld [vmem:[%s1 + $0x30] sm:$0xf]
  %v1000 = vld [vmem:[%s1 + $0x34] sm:$0xf]
  %v1001 = vld [vmem:[%s1 + $0x38] sm:$0xf]
  %v1002 = vld [vmem:[%s1 + $0x3c] sm:$0xf]
  %v1003 = vld [vmem:[%s1 + $0x40] sm:$0xf]
  %v1004 = vld [vmem:[%s1 + $0x44] sm:$0xf]
  %v1005 = vld [vmem:[%s1 + $0x48] sm:$0xf]
  %v1006 = vld [vmem:[%s1 + $0x4c] sm:$0xf]
  %v1007 = vld [vmem:[%s1 + $0x50] sm:$0xf]
  %v1008 = vld [vmem:[%s1 + $0x54] sm:$0xf]
  %v1009 = vld [vmem:[%s1 + $0x58] sm:$0xf]
  %v1010 = vld [vmem:[%s1 + $0x5c] sm:$0xf]
  %v1011 = vld [vmem:[%s1 + $0x60] sm:$0xf]
  %v1012 = vld [vmem:[%s1 + $0x64] sm:$0xf]
  %v1013 = vld [vmem:[%s1 + $0x68] sm:$0xf]
  %v1014 = vld [vmem:[%s1 + $0x6c] sm:$0xf]
  %v1015 = vld [vmem:[%s1 + $0x70] sm:$0xf]
  %v1016 = vld [vmem:[%s1 + $0x74] sm:$0xf]
  %v1017 = vld [vmem:[%s1 + $0x78] sm:$0xf]
  %v1018 = vld [vmem:[%s1 + $0x7c] sm:$0xf]
  %v1019 = vld [vmem:[%s2] sm:$0x1]
  %v1021 = vperm.slane %v1019, 0
  %v1059 = vunpack.c.l.b16 %v951
  %v1060 = vunpack.c.h.b16 %v951
  %v1061 = vunpack.c.l.b16 %v952
  %v1062 = vunpack.c.h.b16 %v952
  %v1063 = vunpack.c.l.b16 %v953
  %v1064 = vunpack.c.h.b16 %v953
  %v1065 = vunpack.c.l.b16 %v954
  %v1066 = vunpack.c.h.b16 %v954
  %v1067 = vunpack.c.l.b16 %v955
  %v1068 = vunpack.c.h.b16 %v955
  %v1069 = vunpack.c.l.b16 %v956
  %v1070 = vunpack.c.h.b16 %v956
  %v1071 = vunpack.c.l.b16 %v957
  %v1072 = vunpack.c.h.b16 %v957
  %v1073 = vunpack.c.l.b16 %v958
  %v1074 = vunpack.c.h.b16 %v958
  %v1075 = vunpack.c.l.b16 %v959
  %v1076 = vunpack.c.h.b16 %v959
  %v1077 = vunpack.c.l.b16 %v960
  %v1078 = vunpack.c.h.b16 %v960
  %v1079 = vunpack.c.l.b16 %v961
  %v1080 = vunpack.c.h.b16 %v961
  %v1081 = vunpack.c.l.b16 %v962
  %v1082 = vunpack.c.h.b16 %v962
  %v1083 = vunpack.c.l.b16 %v963
  %v1084 = vunpack.c.h.b16 %v963
  %v1085 = vunpack.c.l.b16 %v964
  %v1086 = vunpack.c.h.b16 %v964
  %v1087 = vunpack.c.l.b16 %v965
  %v1088 = vunpack.c.h.b16 %v965
  %v1089 = vunpack.c.l.b16 %v966
  %v1090 = vunpack.c.h.b16 %v966
  %v1091 = vunpack.c.l.b16 %v967
  %v1092 = vunpack.c.h.b16 %v967
  %v1093 = vunpack.c.l.b16 %v968
  %v1094 = vunpack.c.h.b16 %v968
  %v1095 = vunpack.c.l.b16 %v969
  %v1096 = vunpack.c.h.b16 %v969
  %v1097 = vunpack.c.l.b16 %v970
  %v1098 = vunpack.c.h.b16 %v970
  %v1099 = vunpack.c.l.b16 %v971
  %v1100 = vunpack.c.h.b16 %v971
  %v1101 = vunpack.c.l.b16 %v972
  %v1102 = vunpack.c.h.b16 %v972
  %v1103 = vunpack.c.l.b16 %v973
  %v1104 = vunpack.c.h.b16 %v973
  %v1105 = vunpack.c.l.b16 %v974
  %v1106 = vunpack.c.h.b16 %v974
  %v1107 = vunpack.c.l.b16 %v975
  %v1108 = vunpack.c.h.b16 %v975
  %v1109 = vunpack.c.l.b16 %v976
  %v1110 = vunpack.c.h.b16 %v976
  %v1111 = vunpack.c.l.b16 %v977
  %v1112 = vunpack.c.h.b16 %v977
  %v1113 = vunpack.c.l.b16 %v978
  %v1114 = vunpack.c.h.b16 %v978
  %v1115 = vunpack.c.l.b16 %v979
  %v1116 = vunpack.c.h.b16 %v979
  %v1117 = vunpack.c.l.b16 %v980
  %v1118 = vunpack.c.h.b16 %v980
  %v1119 = vunpack.c.l.b16 %v981
  %v1120 = vunpack.c.h.b16 %v981
  %v1121 = vunpack.c.l.b16 %v982
  %v1122 = vunpack.c.h.b16 %v982
  %v1123 = vunpack.c.l.b16 %v983
  %v1124 = vunpack.c.h.b16 %v983
  %v1125 = vunpack.c.l.b16 %v984
  %v1126 = vunpack.c.h.b16 %v984
  %v1127 = vunpack.c.l.b16 %v985
  %v1128 = vunpack.c.h.b16 %v985
  %v1129 = vunpack.c.l.b16 %v986
  %v1130 = vunpack.c.h.b16 %v986
  %v1131 = vpack.c.b16 %v1061, %v1059
  %v1132 = vpack.c.b16 %v1062, %v1060
  %v1133 = vpack.c.b16 %v1065, %v1063
  %v1134 = vpack.c.b16 %v1066, %v1064
  %v1135 = vpack.c.b16 %v1069, %v1067
  %v1136 = vpack.c.b16 %v1070, %v1068
  %v1137 = vpack.c.b16 %v1073, %v1071
  %v1138 = vpack.c.b16 %v1074, %v1072
  %v1139 = vpack.c.b16 %v1077, %v1075
  %v1140 = vpack.c.b16 %v1078, %v1076
  %v1141 = vpack.c.b16 %v1081, %v1079
  %v1142 = vpack.c.b16 %v1082, %v1080
  %v1143 = vpack.c.b16 %v1085, %v1083
  %v1144 = vpack.c.b16 %v1086, %v1084
  %v1145 = vpack.c.b16 %v1089, %v1087
  %v1146 = vpack.c.b16 %v1090, %v1088
  %v1147 = vpack.c.b16 %v1093, %v1091
  %v1148 = vpack.c.b16 %v1094, %v1092
  %v1149 = vpack.c.b16 %v1097, %v1095
  %v1150 = vpack.c.b16 %v1098, %v1096
  %v1151 = vpack.c.b16 %v1101, %v1099
  %v1152 = vpack.c.b16 %v1102, %v1100
  %v1153 = vpack.c.b16 %v1105, %v1103
  %v1154 = vpack.c.b16 %v1106, %v1104
  %v1155 = vpack.c.b16 %v1109, %v1107
  %v1156 = vpack.c.b16 %v1110, %v1108
  %v1157 = vpack.c.b16 %v1113, %v1111
  %v1158 = vpack.c.b16 %v1114, %v1112
  %v1159 = vpack.c.b16 %v1117, %v1115
  %v1160 = vpack.c.b16 %v1118, %v1116
  %v1161 = vpack.c.b16 %v1121, %v1119
  %v1162 = vpack.c.b16 %v1122, %v1120
  %v1163 = vpack.c.b16 %v1125, %v1123
  %v1164 = vpack.c.b16 %v1126, %v1124
  %v1165 = vpack.c.b16 %v1129, %v1127
  %v1166 = vpack.c.b16 %v1130, %v1128
  %v1235 = vunpack.c.l.b16 %v987
  %v1236 = vunpack.c.l.b16 %v988
  %v1237 = vunpack.c.l.b16 %v989
  %v1238 = vunpack.c.l.b16 %v990
  %v1239 = vunpack.c.l.b16 %v991
  %v1240 = vunpack.c.l.b16 %v992
  %v1241 = vunpack.c.l.b16 %v993
  %v1242 = vunpack.c.l.b16 %v994
  %v1243 = vunpack.c.l.b16 %v995
  %v1244 = vunpack.c.l.b16 %v996
  %v1245 = vunpack.c.l.b16 %v997
  %v1246 = vunpack.c.l.b16 %v998
  %v1247 = vunpack.c.l.b16 %v999
  %v1248 = vunpack.c.l.b16 %v1000
  %v1249 = vunpack.c.l.b16 %v1001
  %v1250 = vunpack.c.l.b16 %v1002
  %v1251 = vunpack.c.l.b16 %v1003
  %v1252 = vunpack.c.l.b16 %v1004
  %v1253 = vunpack.c.l.b16 %v1005
  %v1254 = vunpack.c.l.b16 %v1006
  %v1255 = vunpack.c.l.b16 %v1007
  %v1256 = vunpack.c.l.b16 %v1008
  %v1257 = vunpack.c.l.b16 %v1009
  %v1258 = vunpack.c.l.b16 %v1010
  %v1259 = vunpack.c.l.b16 %v1011
  %v1260 = vunpack.c.l.b16 %v1012
  %v1261 = vunpack.c.l.b16 %v1013
  %v1262 = vunpack.c.l.b16 %v1014
  %v1263 = vunpack.c.l.b16 %v1015
  %v1264 = vunpack.c.l.b16 %v1016
  %v1265 = vunpack.c.l.b16 %v1017
  %v1266 = vunpack.c.l.b16 %v1018
  %v1267 = vpack.c.b16 %v1236, %v1235
  %v1268 = vpack.c.b16 %v1238, %v1237
  %v1269 = vpack.c.b16 %v1240, %v1239
  %v1270 = vpack.c.b16 %v1242, %v1241
  %v1271 = vpack.c.b16 %v1244, %v1243
  %v1272 = vpack.c.b16 %v1246, %v1245
  %v1273 = vpack.c.b16 %v1248, %v1247
  %v1274 = vpack.c.b16 %v1250, %v1249
  %v1275 = vpack.c.b16 %v1252, %v1251
  %v1276 = vpack.c.b16 %v1254, %v1253
  %v1277 = vpack.c.b16 %v1256, %v1255
  %v1278 = vpack.c.b16 %v1258, %v1257
  %v1279 = vpack.c.b16 %v1260, %v1259
  %v1280 = vpack.c.b16 %v1262, %v1261
  %v1281 = vpack.c.b16 %v1264, %v1263
  %v1282 = vpack.c.b16 %v1266, %v1265
  %1299 = vmatpush.bf16.msra.mxu0 %v1274
  %1300 = vmatpush.bf16.msra.mxu0 %v1273
  %1301 = vmatpush.bf16.msra.mxu0 %v1272
  %1302 = vmatpush.bf16.msra.mxu0 %v1271
  %1303 = vmatpush.bf16.msra.mxu0 %v1270
  %1304 = vmatpush.bf16.msra.mxu0 %v1269
  %1305 = vmatpush.bf16.msra.mxu0 %v1268
  %1306 = vmatpush.bf16.msra.mxu0 %v1267
  %1307 = vmatmul.bf16.gmra.mxu0 %v1131
  %v1308 = vpop.f32.mrf.mxu0
  %v1309 = vadd.f32 %v1021, %v1308
  %v1310 = vpop.f32.mrf.mxu0
  %v1311 = vadd.f32 %v1021, %v1310
  %1312 = vmatmul.bf16.gmra.mxu0 %v1133
  %v1313 = vpop.f32.mrf.mxu0
  %v1314 = vadd.f32 %v1021, %v1313
  %v1315 = vpop.f32.mrf.mxu0
  %v1316 = vadd.f32 %v1021, %v1315
  %1317 = vmatmul.bf16.gmra.mxu0 %v1135
  %v1318 = vpop.f32.mrf.mxu0
  %v1319 = vadd.f32 %v1021, %v1318
  %v1320 = vpop.f32.mrf.mxu0
  %v1321 = vadd.f32 %v1021, %v1320
  %1322 = vmatmul.bf16.gmra.mxu0 %v1137
  %v1323 = vpop.f32.mrf.mxu0
  %v1324 = vadd.f32 %v1021, %v1323
  %v1325 = vpop.f32.mrf.mxu0
  %v1326 = vadd.f32 %v1021, %v1325
  %1327 = vmatmul.bf16.gmra.mxu0 %v1139
  %v1328 = vpop.f32.mrf.mxu0
  %v1329 = vadd.f32 %v1021, %v1328
  %v1330 = vpop.f32.mrf.mxu0
  %v1331 = vadd.f32 %v1021, %v1330
  %1332 = vmatmul.bf16.gmra.mxu0 %v1141
  %v1333 = vpop.f32.mrf.mxu0
  %v1334 = vadd.f32 %v1021, %v1333
  %v1335 = vpop.f32.mrf.mxu0
  %v1336 = vadd.f32 %v1021, %v1335
  %1337 = vmatmul.bf16.gmra.mxu0 %v1143
  %v1338 = vpop.f32.mrf.mxu0
  %v1339 = vadd.f32 %v1021, %v1338
  %v1340 = vpop.f32.mrf.mxu0
  %v1341 = vadd.f32 %v1021, %v1340
  %1342 = vmatmul.bf16.gmra.mxu0 %v1145
  %v1343 = vpop.f32.mrf.mxu0
  %v1344 = vadd.f32 %v1021, %v1343
  %v1345 = vpop.f32.mrf.mxu0
  %v1346 = vadd.f32 %v1021, %v1345
  %1347 = vmatmul.bf16.gmra.mxu0 %v1147
  %v1348 = vpop.f32.mrf.mxu0
  %v1349 = vadd.f32 %v1021, %v1348
  %v1350 = vpop.f32.mrf.mxu0
  %v1351 = vadd.f32 %v1021, %v1350
  %1352 = vmatmul.bf16.gmra.mxu0 %v1149
  %v1353 = vpop.f32.mrf.mxu0
  %v1354 = vadd.f32 %v1021, %v1353
  %v1355 = vpop.f32.mrf.mxu0
  %v1356 = vadd.f32 %v1021, %v1355
  %1357 = vmatmul.bf16.gmra.mxu0 %v1151
  %v1358 = vpop.f32.mrf.mxu0
  %v1359 = vadd.f32 %v1021, %v1358
  %v1360 = vpop.f32.mrf.mxu0
  %v1361 = vadd.f32 %v1021, %v1360
  %1362 = vmatmul.bf16.gmra.mxu0 %v1153
  %v1363 = vpop.f32.mrf.mxu0
  %v1364 = vadd.f32 %v1021, %v1363
  %v1365 = vpop.f32.mrf.mxu0
  %v1366 = vadd.f32 %v1021, %v1365
  %1367 = vmatmul.bf16.gmra.mxu0 %v1155
  %v1368 = vpop.f32.mrf.mxu0
  %v1369 = vadd.f32 %v1021, %v1368
  %v1370 = vpop.f32.mrf.mxu0
  %v1371 = vadd.f32 %v1021, %v1370
  %1372 = vmatmul.bf16.gmra.mxu0 %v1157
  %v1373 = vpop.f32.mrf.mxu0
  %v1374 = vadd.f32 %v1021, %v1373
  %v1375 = vpop.f32.mrf.mxu0
  %v1376 = vadd.f32 %v1021, %v1375
  %1377 = vmatmul.bf16.gmra.mxu0 %v1159
  %v1378 = vpop.f32.mrf.mxu0
  %v1379 = vadd.f32 %v1021, %v1378
  %v1380 = vpop.f32.mrf.mxu0
  %v1381 = vadd.f32 %v1021, %v1380
  %1382 = vmatmul.bf16.gmra.mxu0 %v1161
  %v1383 = vpop.f32.mrf.mxu0
  %v1384 = vadd.f32 %v1021, %v1383
  %v1385 = vpop.f32.mrf.mxu0
  %v1386 = vadd.f32 %v1021, %v1385
  %1387 = vmatmul.bf16.gmra.mxu0 %v1163
  %v1388 = vpop.f32.mrf.mxu0
  %v1389 = vadd.f32 %v1021, %v1388
  %v1390 = vpop.f32.mrf.mxu0
  %v1391 = vadd.f32 %v1021, %v1390
  %1392 = vmatmul.bf16.gmra.mxu0 %v1165
  %v1393 = vpop.f32.mrf.mxu0
  %v1394 = vadd.f32 %v1021, %v1393
  %v1395 = vpop.f32.mrf.mxu0
  %v1396 = vadd.f32 %v1021, %v1395
  %1397 = vdwg.mxu0
  %1398 = vmatpush.bf16.msra.mxu0 %v1282
  %1399 = vmatpush.bf16.msra.mxu0 %v1281
  %1400 = vmatpush.bf16.msra.mxu0 %v1280
  %1401 = vmatpush.bf16.msra.mxu0 %v1279
  %1402 = vmatpush.bf16.msra.mxu0 %v1278
  %1403 = vmatpush.bf16.msra.mxu0 %v1277
  %1404 = vmatpush.bf16.msra.mxu0 %v1276
  %1405 = vmatpush.bf16.msra.mxu0 %v1275
  %1406 = vmatmul.bf16.gmra.mxu0 %v1132
  %v1407 = vpop.f32.mrf.mxu0
  %v1408 = vadd.f32 %v1309, %v1407
  %v1409 = vpop.f32.mrf.mxu0
  %v1410 = vadd.f32 %v1311, %v1409
  %1411 = vmatmul.bf16.gmra.mxu0 %v1134
  %v1412 = vpop.f32.mrf.mxu0
  %v1413 = vadd.f32 %v1314, %v1412
  %v1414 = vpop.f32.mrf.mxu0
  %v1415 = vadd.f32 %v1316, %v1414
  %1416 = vmatmul.bf16.gmra.mxu0 %v1136
  %v1417 = vpop.f32.mrf.mxu0
  %v1418 = vadd.f32 %v1319, %v1417
  %v1419 = vpop.f32.mrf.mxu0
  %v1420 = vadd.f32 %v1321, %v1419
  %1421 = vmatmul.bf16.gmra.mxu0 %v1138
  %v1422 = vpop.f32.mrf.mxu0
  %v1423 = vadd.f32 %v1324, %v1422
  %v1424 = vpop.f32.mrf.mxu0
  %v1425 = vadd.f32 %v1326, %v1424
  %1426 = vmatmul.bf16.gmra.mxu0 %v1140
  %v1427 = vpop.f32.mrf.mxu0
  %v1428 = vadd.f32 %v1329, %v1427
  %v1429 = vpop.f32.mrf.mxu0
  %v1430 = vadd.f32 %v1331, %v1429
  %1431 = vmatmul.bf16.gmra.mxu0 %v1142
  %v1432 = vpop.f32.mrf.mxu0
  %v1433 = vadd.f32 %v1334, %v1432
  %v1434 = vpop.f32.mrf.mxu0
  %v1435 = vadd.f32 %v1336, %v1434
  %1436 = vmatmul.bf16.gmra.mxu0 %v1144
  %v1437 = vpop.f32.mrf.mxu0
  %v1438 = vadd.f32 %v1339, %v1437
  %v1439 = vpop.f32.mrf.mxu0
  %v1440 = vadd.f32 %v1341, %v1439
  %1441 = vmatmul.bf16.gmra.mxu0 %v1146
  %v1442 = vpop.f32.mrf.mxu0
  %v1443 = vadd.f32 %v1344, %v1442
  %v1444 = vpop.f32.mrf.mxu0
  %v1445 = vadd.f32 %v1346, %v1444
  %1446 = vmatmul.bf16.gmra.mxu0 %v1148
  %v1447 = vpop.f32.mrf.mxu0
  %v1448 = vadd.f32 %v1349, %v1447
  %v1449 = vpop.f32.mrf.mxu0
  %v1450 = vadd.f32 %v1351, %v1449
  %1451 = vmatmul.bf16.gmra.mxu0 %v1150
  %v1452 = vpop.f32.mrf.mxu0
  %v1453 = vadd.f32 %v1354, %v1452
  %v1454 = vpop.f32.mrf.mxu0
  %v1455 = vadd.f32 %v1356, %v1454
  %1456 = vmatmul.bf16.gmra.mxu0 %v1152
  %v1457 = vpop.f32.mrf.mxu0
  %v1458 = vadd.f32 %v1359, %v1457
  %v1459 = vpop.f32.mrf.mxu0
  %v1460 = vadd.f32 %v1361, %v1459
  %1461 = vmatmul.bf16.gmra.mxu0 %v1154
  %v1462 = vpop.f32.mrf.mxu0
  %v1463 = vadd.f32 %v1364, %v1462
  %v1464 = vpop.f32.mrf.mxu0
  %v1465 = vadd.f32 %v1366, %v1464
  %1466 = vmatmul.bf16.gmra.mxu0 %v1156
  %v1467 = vpop.f32.mrf.mxu0
  %v1468 = vadd.f32 %v1369, %v1467
  %v1469 = vpop.f32.mrf.mxu0
  %v1470 = vadd.f32 %v1371, %v1469
  %1471 = vmatmul.bf16.gmra.mxu0 %v1158
  %v1472 = vpop.f32.mrf.mxu0
  %v1473 = vadd.f32 %v1374, %v1472
  %v1474 = vpop.f32.mrf.mxu0
  %v1475 = vadd.f32 %v1376, %v1474
  %1476 = vmatmul.bf16.gmra.mxu0 %v1160
  %v1477 = vpop.f32.mrf.mxu0
  %v1478 = vadd.f32 %v1379, %v1477
  %v1479 = vpop.f32.mrf.mxu0
  %v1480 = vadd.f32 %v1381, %v1479
  %1481 = vmatmul.bf16.gmra.mxu0 %v1162
  %v1482 = vpop.f32.mrf.mxu0
  %v1483 = vadd.f32 %v1384, %v1482
  %v1484 = vpop.f32.mrf.mxu0
  %v1485 = vadd.f32 %v1386, %v1484
  %1486 = vmatmul.bf16.gmra.mxu0 %v1164
  %v1487 = vpop.f32.mrf.mxu0
  %v1488 = vadd.f32 %v1389, %v1487
  %v1489 = vpop.f32.mrf.mxu0
  %v1490 = vadd.f32 %v1391, %v1489
  %1491 = vmatmul.bf16.gmra.mxu0 %v1166
  %v1492 = vpop.f32.mrf.mxu0
  %v1493 = vadd.f32 %v1394, %v1492
  %v1494 = vpop.f32.mrf.mxu0
  %v1495 = vadd.f32 %v1396, %v1494
  %1496 = vdwg.mxu0
  %v1497 = vmax.f32 %v1408, 0.0
  %v1498 = vmax.f32 %v1410, 0.0
  %v1499 = vmax.f32 %v1413, 0.0
  %v1500 = vmax.f32 %v1415, 0.0
  %v1501 = vmax.f32 %v1418, 0.0
  %v1502 = vmax.f32 %v1420, 0.0
  %v1503 = vmax.f32 %v1423, 0.0
  %v1504 = vmax.f32 %v1425, 0.0
  %v1505 = vmax.f32 %v1428, 0.0
  %v1506 = vmax.f32 %v1430, 0.0
  %v1507 = vmax.f32 %v1433, 0.0
  %v1508 = vmax.f32 %v1435, 0.0
  %v1509 = vmax.f32 %v1438, 0.0
  %v1510 = vmax.f32 %v1440, 0.0
  %v1511 = vmax.f32 %v1443, 0.0
  %v1512 = vmax.f32 %v1445, 0.0
  %v1513 = vmax.f32 %v1448, 0.0
  %v1514 = vmax.f32 %v1450, 0.0
  %v1515 = vmax.f32 %v1453, 0.0
  %v1516 = vmax.f32 %v1455, 0.0
  %v1517 = vmax.f32 %v1458, 0.0
  %v1518 = vmax.f32 %v1460, 0.0
  %v1519 = vmax.f32 %v1463, 0.0
  %v1520 = vmax.f32 %v1465, 0.0
  %v1521 = vmax.f32 %v1468, 0.0
  %v1522 = vmax.f32 %v1470, 0.0
  %v1523 = vmax.f32 %v1473, 0.0
  %v1524 = vmax.f32 %v1475, 0.0
  %v1525 = vmax.f32 %v1478, 0.0
  %v1526 = vmax.f32 %v1480, 0.0
  %v1527 = vmax.f32 %v1483, 0.0
  %v1528 = vmax.f32 %v1485, 0.0
  %v1529 = vmax.f32 %v1488, 0.0
  %v1530 = vmax.f32 %v1490, 0.0
  %v1531 = vmax.f32 %v1493, 0.0
  %v1532 = vmax.f32 %v1495, 0.0
  %v1533 = vld [vmem:[%s3] sm:$0x1]
  %v1534 = vld [vmem:[%s4] sm:$0x1]
  %vm1535 = vcmask 261120
  %v1536 = vsel %vm1535, %v1497, 0.0
  %v1537 = vsel %vm1535, %v1498, 0.0
  %v1538 = vadd.f32 %v1536, %v1537
  %v1539 = vsel %vm1535, %v1499, 0.0
  %v1540 = vadd.f32 %v1538, %v1539
  %v1541 = vsel %vm1535, %v1500, 0.0
  %v1542 = vadd.f32 %v1540, %v1541
  %v1543 = vsel %vm1535, %v1501, 0.0
  %v1544 = vadd.f32 %v1542, %v1543
  %v1545 = vsel %vm1535, %v1502, 0.0
  %v1546 = vadd.f32 %v1544, %v1545
  %v1547 = vsel %vm1535, %v1503, 0.0
  %v1548 = vadd.f32 %v1546, %v1547
  %v1549 = vsel %vm1535, %v1504, 0.0
  %v1550 = vadd.f32 %v1548, %v1549
  %v1551 = vsel %vm1535, %v1505, 0.0
  %v1552 = vadd.f32 %v1550, %v1551
  %v1553 = vsel %vm1535, %v1506, 0.0
  %v1554 = vadd.f32 %v1552, %v1553
  %v1555 = vsel %vm1535, %v1507, 0.0
  %v1556 = vadd.f32 %v1554, %v1555
  %v1557 = vsel %vm1535, %v1508, 0.0
  %v1558 = vadd.f32 %v1556, %v1557
  %v1559 = vsel %vm1535, %v1509, 0.0
  %v1560 = vadd.f32 %v1558, %v1559
  %v1561 = vsel %vm1535, %v1510, 0.0
  %v1562 = vadd.f32 %v1560, %v1561
  %v1563 = vsel %vm1535, %v1511, 0.0
  %v1564 = vadd.f32 %v1562, %v1563
  %v1565 = vsel %vm1535, %v1512, 0.0
  %v1566 = vadd.f32 %v1564, %v1565
  %v1567 = vsel %vm1535, %v1513, 0.0
  %v1568 = vadd.f32 %v1566, %v1567
  %v1569 = vsel %vm1535, %v1514, 0.0
  %v1570 = vadd.f32 %v1568, %v1569
  %v1571 = vsel %vm1535, %v1515, 0.0
  %v1572 = vadd.f32 %v1570, %v1571
  %v1573 = vsel %vm1535, %v1516, 0.0
  %v1574 = vadd.f32 %v1572, %v1573
  %v1575 = vsel %vm1535, %v1517, 0.0
  %v1576 = vadd.f32 %v1574, %v1575
  %v1577 = vsel %vm1535, %v1518, 0.0
  %v1578 = vadd.f32 %v1576, %v1577
  %v1579 = vsel %vm1535, %v1519, 0.0
  %v1580 = vadd.f32 %v1578, %v1579
  %v1581 = vsel %vm1535, %v1520, 0.0
  %v1582 = vadd.f32 %v1580, %v1581
  %v1583 = vsel %vm1535, %v1521, 0.0
  %v1584 = vadd.f32 %v1582, %v1583
  %v1585 = vsel %vm1535, %v1522, 0.0
  %v1586 = vadd.f32 %v1584, %v1585
  %v1587 = vsel %vm1535, %v1523, 0.0
  %v1588 = vadd.f32 %v1586, %v1587
  %v1589 = vsel %vm1535, %v1524, 0.0
  %v1590 = vadd.f32 %v1588, %v1589
  %v1591 = vsel %vm1535, %v1525, 0.0
  %v1592 = vadd.f32 %v1590, %v1591
  %v1593 = vsel %vm1535, %v1526, 0.0
  %v1594 = vadd.f32 %v1592, %v1593
  %v1595 = vsel %vm1535, %v1527, 0.0
  %v1596 = vadd.f32 %v1594, %v1595
  %v1597 = vsel %vm1535, %v1528, 0.0
  %v1598 = vadd.f32 %v1596, %v1597
  %v1599 = vsel %vm1535, %v1529, 0.0
  %v1600 = vadd.f32 %v1598, %v1599
  %v1601 = vsel %vm1535, %v1530, 0.0
  %v1602 = vadd.f32 %v1600, %v1601
  %v1603 = vsel %vm1535, %v1531, 0.0
  %v1604 = vadd.f32 %v1602, %v1603
  %v1605 = vsel %vm1535, %v1532, 0.0
  %v1606 = vadd.f32 %v1604, %v1605
  %v1607 = vrot.slane %v1606, 4
  %v1608 = vadd.f32 %v1606, %v1607
  %v1609 = vrot.slane %v1608, 2
  %v1610 = vadd.f32 %v1608, %v1609
  %v1611 = vrot.slane %v1610, 1
  %v1612 = vadd.f32 %v1610, %v1611
  %v1613 = vmul.f32 %v1612, 0.0034722222
  %v1614 = vmul.f32 %v1497, %v1497
  %v1615 = vmul.f32 %v1498, %v1498
  %v1616 = vmul.f32 %v1499, %v1499
  %v1617 = vmul.f32 %v1500, %v1500
  %v1618 = vmul.f32 %v1501, %v1501
  %v1619 = vmul.f32 %v1502, %v1502
  %v1620 = vmul.f32 %v1503, %v1503
  %v1621 = vmul.f32 %v1504, %v1504
  %v1622 = vmul.f32 %v1505, %v1505
  %v1623 = vmul.f32 %v1506, %v1506
  %v1624 = vmul.f32 %v1507, %v1507
  %v1625 = vmul.f32 %v1508, %v1508
  %v1626 = vmul.f32 %v1509, %v1509
  %v1627 = vmul.f32 %v1510, %v1510
  %v1628 = vmul.f32 %v1511, %v1511
  %v1629 = vmul.f32 %v1512, %v1512
  %v1630 = vmul.f32 %v1513, %v1513
  %v1631 = vmul.f32 %v1514, %v1514
  %v1632 = vmul.f32 %v1515, %v1515
  %v1633 = vmul.f32 %v1516, %v1516
  %v1634 = vmul.f32 %v1517, %v1517
  %v1635 = vmul.f32 %v1518, %v1518
  %v1636 = vmul.f32 %v1519, %v1519
  %v1637 = vmul.f32 %v1520, %v1520
  %v1638 = vmul.f32 %v1521, %v1521
  %v1639 = vmul.f32 %v1522, %v1522
  %v1640 = vmul.f32 %v1523, %v1523
  %v1641 = vmul.f32 %v1524, %v1524
  %v1642 = vmul.f32 %v1525, %v1525
  %v1643 = vmul.f32 %v1526, %v1526
  %v1644 = vmul.f32 %v1527, %v1527
  %v1645 = vmul.f32 %v1528, %v1528
  %v1646 = vmul.f32 %v1529, %v1529
  %v1647 = vmul.f32 %v1530, %v1530
  %v1648 = vmul.f32 %v1531, %v1531
  %v1649 = vmul.f32 %v1532, %v1532
  %v1650 = vsel %vm1535, %v1614, 0.0
  %v1651 = vsel %vm1535, %v1615, 0.0
  %v1652 = vadd.f32 %v1650, %v1651
  %v1653 = vsel %vm1535, %v1616, 0.0
  %v1654 = vadd.f32 %v1652, %v1653
  %v1655 = vsel %vm1535, %v1617, 0.0
  %v1656 = vadd.f32 %v1654, %v1655
  %v1657 = vsel %vm1535, %v1618, 0.0
  %v1658 = vadd.f32 %v1656, %v1657
  %v1659 = vsel %vm1535, %v1619, 0.0
  %v1660 = vadd.f32 %v1658, %v1659
  %v1661 = vsel %vm1535, %v1620, 0.0
  %v1662 = vadd.f32 %v1660, %v1661
  %v1663 = vsel %vm1535, %v1621, 0.0
  %v1664 = vadd.f32 %v1662, %v1663
  %v1665 = vsel %vm1535, %v1622, 0.0
  %v1666 = vadd.f32 %v1664, %v1665
  %v1667 = vsel %vm1535, %v1623, 0.0
  %v1668 = vadd.f32 %v1666, %v1667
  %v1669 = vsel %vm1535, %v1624, 0.0
  %v1670 = vadd.f32 %v1668, %v1669
  %v1671 = vsel %vm1535, %v1625, 0.0
  %v1672 = vadd.f32 %v1670, %v1671
  %v1673 = vsel %vm1535, %v1626, 0.0
  %v1674 = vadd.f32 %v1672, %v1673
  %v1675 = vsel %vm1535, %v1627, 0.0
  %v1676 = vadd.f32 %v1674, %v1675
  %v1677 = vsel %vm1535, %v1628, 0.0
  %v1678 = vadd.f32 %v1676, %v1677
  %v1679 = vsel %vm1535, %v1629, 0.0
  %v1680 = vadd.f32 %v1678, %v1679
  %v1681 = vsel %vm1535, %v1630, 0.0
  %v1682 = vadd.f32 %v1680, %v1681
  %v1683 = vsel %vm1535, %v1631, 0.0
  %v1684 = vadd.f32 %v1682, %v1683
  %v1685 = vsel %vm1535, %v1632, 0.0
  %v1686 = vadd.f32 %v1684, %v1685
  %v1687 = vsel %vm1535, %v1633, 0.0
  %v1688 = vadd.f32 %v1686, %v1687
  %v1689 = vsel %vm1535, %v1634, 0.0
  %v1690 = vadd.f32 %v1688, %v1689
  %v1691 = vsel %vm1535, %v1635, 0.0
  %v1692 = vadd.f32 %v1690, %v1691
  %v1693 = vsel %vm1535, %v1636, 0.0
  %v1694 = vadd.f32 %v1692, %v1693
  %v1695 = vsel %vm1535, %v1637, 0.0
  %v1696 = vadd.f32 %v1694, %v1695
  %v1697 = vsel %vm1535, %v1638, 0.0
  %v1698 = vadd.f32 %v1696, %v1697
  %v1699 = vsel %vm1535, %v1639, 0.0
  %v1700 = vadd.f32 %v1698, %v1699
  %v1701 = vsel %vm1535, %v1640, 0.0
  %v1702 = vadd.f32 %v1700, %v1701
  %v1703 = vsel %vm1535, %v1641, 0.0
  %v1704 = vadd.f32 %v1702, %v1703
  %v1705 = vsel %vm1535, %v1642, 0.0
  %v1706 = vadd.f32 %v1704, %v1705
  %v1707 = vsel %vm1535, %v1643, 0.0
  %v1708 = vadd.f32 %v1706, %v1707
  %v1709 = vsel %vm1535, %v1644, 0.0
  %v1710 = vadd.f32 %v1708, %v1709
  %v1711 = vsel %vm1535, %v1645, 0.0
  %v1712 = vadd.f32 %v1710, %v1711
  %v1713 = vsel %vm1535, %v1646, 0.0
  %v1714 = vadd.f32 %v1712, %v1713
  %v1715 = vsel %vm1535, %v1647, 0.0
  %v1716 = vadd.f32 %v1714, %v1715
  %v1717 = vsel %vm1535, %v1648, 0.0
  %v1718 = vadd.f32 %v1716, %v1717
  %v1719 = vsel %vm1535, %v1649, 0.0
  %v1720 = vadd.f32 %v1718, %v1719
  %v1721 = vrot.slane %v1720, 4
  %v1722 = vadd.f32 %v1720, %v1721
  %v1723 = vrot.slane %v1722, 2
  %v1724 = vadd.f32 %v1722, %v1723
  %v1725 = vrot.slane %v1724, 1
  %v1726 = vadd.f32 %v1724, %v1725
  %v1727 = vmul.f32 %v1726, 0.0034722222
  %v1728 = vmul.f32 %v1613, %v1613
  %v1729 = vsub.f32 %v1727, %v1728
  %v1730 = vmax.f32 %v1729, 0.0
  %v1731 = vsub.f32 %v1497, %v1613
  %v1732 = vsub.f32 %v1498, %v1613
  %v1733 = vsub.f32 %v1499, %v1613
  %v1734 = vsub.f32 %v1500, %v1613
  %v1735 = vsub.f32 %v1501, %v1613
  %v1736 = vsub.f32 %v1502, %v1613
  %v1737 = vsub.f32 %v1503, %v1613
  %v1738 = vsub.f32 %v1504, %v1613
  %v1739 = vsub.f32 %v1505, %v1613
  %v1740 = vsub.f32 %v1506, %v1613
  %v1741 = vsub.f32 %v1507, %v1613
  %v1742 = vsub.f32 %v1508, %v1613
  %v1743 = vsub.f32 %v1509, %v1613
  %v1744 = vsub.f32 %v1510, %v1613
  %v1745 = vsub.f32 %v1511, %v1613
  %v1746 = vsub.f32 %v1512, %v1613
  %v1747 = vsub.f32 %v1513, %v1613
  %v1748 = vsub.f32 %v1514, %v1613
  %v1749 = vsub.f32 %v1515, %v1613
  %v1750 = vsub.f32 %v1516, %v1613
  %v1751 = vsub.f32 %v1517, %v1613
  %v1752 = vsub.f32 %v1518, %v1613
  %v1753 = vsub.f32 %v1519, %v1613
  %v1754 = vsub.f32 %v1520, %v1613
  %v1755 = vsub.f32 %v1521, %v1613
  %v1756 = vsub.f32 %v1522, %v1613
  %v1757 = vsub.f32 %v1523, %v1613
  %v1758 = vsub.f32 %v1524, %v1613
  %v1759 = vsub.f32 %v1525, %v1613
  %v1760 = vsub.f32 %v1526, %v1613
  %v1761 = vsub.f32 %v1527, %v1613
  %v1762 = vsub.f32 %v1528, %v1613
  %v1763 = vsub.f32 %v1529, %v1613
  %v1764 = vsub.f32 %v1530, %v1613
  %v1765 = vsub.f32 %v1531, %v1613
  %v1766 = vsub.f32 %v1532, %v1613
  %v1768 = vperm.slane %v1533, 0
  %v1770 = vmul.f32 %v1768, %v1731
  %v1771 = vmul.f32 %v1768, %v1732
  %v1772 = vmul.f32 %v1768, %v1733
  %v1773 = vmul.f32 %v1768, %v1734
  %v1774 = vmul.f32 %v1768, %v1735
  %v1775 = vmul.f32 %v1768, %v1736
  %v1776 = vmul.f32 %v1768, %v1737
  %v1777 = vmul.f32 %v1768, %v1738
  %v1778 = vmul.f32 %v1768, %v1739
  %v1779 = vmul.f32 %v1768, %v1740
  %v1780 = vmul.f32 %v1768, %v1741
  %v1781 = vmul.f32 %v1768, %v1742
  %v1782 = vmul.f32 %v1768, %v1743
  %v1783 = vmul.f32 %v1768, %v1744
  %v1784 = vmul.f32 %v1768, %v1745
  %v1785 = vmul.f32 %v1768, %v1746
  %v1786 = vmul.f32 %v1768, %v1747
  %v1787 = vmul.f32 %v1768, %v1748
  %v1788 = vmul.f32 %v1768, %v1749
  %v1789 = vmul.f32 %v1768, %v1750
  %v1790 = vmul.f32 %v1768, %v1751
  %v1791 = vmul.f32 %v1768, %v1752
  %v1792 = vmul.f32 %v1768, %v1753
  %v1793 = vmul.f32 %v1768, %v1754
  %v1794 = vmul.f32 %v1768, %v1755
  %v1795 = vmul.f32 %v1768, %v1756
  %v1796 = vmul.f32 %v1768, %v1757
  %v1797 = vmul.f32 %v1768, %v1758
  %v1798 = vmul.f32 %v1768, %v1759
  %v1799 = vmul.f32 %v1768, %v1760
  %v1800 = vmul.f32 %v1768, %v1761
  %v1801 = vmul.f32 %v1768, %v1762
  %v1802 = vmul.f32 %v1768, %v1763
  %v1803 = vmul.f32 %v1768, %v1764
  %v1804 = vmul.f32 %v1768, %v1765
  %v1805 = vmul.f32 %v1768, %v1766
  %v1806 = vadd.f32 %v1730, 1e-05
  %v1807 = vrsqrt.pop %v1806
  %v1808 = vmul.f32 %v1807, %v1806
  %v1809 = vmul.f32 %v1808, %v1807
  %v1810 = vmul.f32 0.5, %v1809
  %v1811 = vsub.f32 1.5, %v1810
  %v1812 = vmul.f32 %v1807, %v1811
  %vm1813 = vweird.f32 %v1806
  %vm1814 = vweird.f32 %v1807
  %vm1815 = vmor %vm1813, %vm1814
  %v1816 = vsel %vm1815, %v1807, %v1812
  %v1817 = vmul.f32 %v1770, %v1816
  %v1818 = vmul.f32 %v1771, %v1816
  %v1819 = vmul.f32 %v1772, %v1816
  %v1820 = vmul.f32 %v1773, %v1816
  %v1821 = vmul.f32 %v1774, %v1816
  %v1822 = vmul.f32 %v1775, %v1816
  %v1823 = vmul.f32 %v1776, %v1816
  %v1824 = vmul.f32 %v1777, %v1816
  %v1825 = vmul.f32 %v1778, %v1816
  %v1826 = vmul.f32 %v1779, %v1816
  %v1827 = vmul.f32 %v1780, %v1816
  %v1828 = vmul.f32 %v1781, %v1816
  %v1829 = vmul.f32 %v1782, %v1816
  %v1830 = vmul.f32 %v1783, %v1816
  %v1831 = vmul.f32 %v1784, %v1816
  %v1832 = vmul.f32 %v1785, %v1816
  %v1833 = vmul.f32 %v1786, %v1816
  %v1834 = vmul.f32 %v1787, %v1816
  %v1835 = vmul.f32 %v1788, %v1816
  %v1836 = vmul.f32 %v1789, %v1816
  %v1837 = vmul.f32 %v1790, %v1816
  %v1838 = vmul.f32 %v1791, %v1816
  %v1839 = vmul.f32 %v1792, %v1816
  %v1840 = vmul.f32 %v1793, %v1816
  %v1841 = vmul.f32 %v1794, %v1816
  %v1842 = vmul.f32 %v1795, %v1816
  %v1843 = vmul.f32 %v1796, %v1816
  %v1844 = vmul.f32 %v1797, %v1816
  %v1845 = vmul.f32 %v1798, %v1816
  %v1846 = vmul.f32 %v1799, %v1816
  %v1847 = vmul.f32 %v1800, %v1816
  %v1848 = vmul.f32 %v1801, %v1816
  %v1849 = vmul.f32 %v1802, %v1816
  %v1850 = vmul.f32 %v1803, %v1816
  %v1851 = vmul.f32 %v1804, %v1816
  %v1852 = vmul.f32 %v1805, %v1816
  %v1854 = vperm.slane %v1534, 0
  %v1856 = vadd.f32 %v1817, %v1854
  %v1857 = vadd.f32 %v1818, %v1854
  %v1858 = vadd.f32 %v1819, %v1854
  %v1859 = vadd.f32 %v1820, %v1854
  %v1860 = vadd.f32 %v1821, %v1854
  %v1861 = vadd.f32 %v1822, %v1854
  %v1862 = vadd.f32 %v1823, %v1854
  %v1863 = vadd.f32 %v1824, %v1854
  %v1864 = vadd.f32 %v1825, %v1854
  %v1865 = vadd.f32 %v1826, %v1854
  %v1866 = vadd.f32 %v1827, %v1854
  %v1867 = vadd.f32 %v1828, %v1854
  %v1868 = vadd.f32 %v1829, %v1854
  %v1869 = vadd.f32 %v1830, %v1854
  %v1870 = vadd.f32 %v1831, %v1854
  %v1871 = vadd.f32 %v1832, %v1854
  %v1872 = vadd.f32 %v1833, %v1854
  %v1873 = vadd.f32 %v1834, %v1854
  %v1874 = vadd.f32 %v1835, %v1854
  %v1875 = vadd.f32 %v1836, %v1854
  %v1876 = vadd.f32 %v1837, %v1854
  %v1877 = vadd.f32 %v1838, %v1854
  %v1878 = vadd.f32 %v1839, %v1854
  %v1879 = vadd.f32 %v1840, %v1854
  %v1880 = vadd.f32 %v1841, %v1854
  %v1881 = vadd.f32 %v1842, %v1854
  %v1882 = vadd.f32 %v1843, %v1854
  %v1883 = vadd.f32 %v1844, %v1854
  %v1884 = vadd.f32 %v1845, %v1854
  %v1885 = vadd.f32 %v1846, %v1854
  %v1886 = vadd.f32 %v1847, %v1854
  %v1887 = vadd.f32 %v1848, %v1854
  %v1888 = vadd.f32 %v1849, %v1854
  %v1889 = vadd.f32 %v1850, %v1854
  %v1890 = vadd.f32 %v1851, %v1854
  %v1891 = vadd.f32 %v1852, %v1854
  %v1892 = vpack.c.bf16 %v1856, %v1856
  %v1893 = vpack.c.bf16 %v1857, %v1857
  %v1894 = vpack.c.bf16 %v1858, %v1858
  %v1895 = vpack.c.bf16 %v1859, %v1859
  %v1896 = vpack.c.bf16 %v1860, %v1860
  %v1897 = vpack.c.bf16 %v1861, %v1861
  %v1898 = vpack.c.bf16 %v1862, %v1862
  %v1899 = vpack.c.bf16 %v1863, %v1863
  %v1900 = vpack.c.bf16 %v1864, %v1864
  %v1901 = vpack.c.bf16 %v1865, %v1865
  %v1902 = vpack.c.bf16 %v1866, %v1866
  %v1903 = vpack.c.bf16 %v1867, %v1867
  %v1904 = vpack.c.bf16 %v1868, %v1868
  %v1905 = vpack.c.bf16 %v1869, %v1869
  %v1906 = vpack.c.bf16 %v1870, %v1870
  %v1907 = vpack.c.bf16 %v1871, %v1871
  %v1908 = vpack.c.bf16 %v1872, %v1872
  %v1909 = vpack.c.bf16 %v1873, %v1873
  %v1910 = vpack.c.bf16 %v1874, %v1874
  %v1911 = vpack.c.bf16 %v1875, %v1875
  %v1912 = vpack.c.bf16 %v1876, %v1876
  %v1913 = vpack.c.bf16 %v1877, %v1877
  %v1914 = vpack.c.bf16 %v1878, %v1878
  %v1915 = vpack.c.bf16 %v1879, %v1879
  %v1916 = vpack.c.bf16 %v1880, %v1880
  %v1917 = vpack.c.bf16 %v1881, %v1881
  %v1918 = vpack.c.bf16 %v1882, %v1882
  %v1919 = vpack.c.bf16 %v1883, %v1883
  %v1920 = vpack.c.bf16 %v1884, %v1884
  %v1921 = vpack.c.bf16 %v1885, %v1885
  %v1922 = vpack.c.bf16 %v1886, %v1886
  %v1923 = vpack.c.bf16 %v1887, %v1887
  %v1924 = vpack.c.bf16 %v1888, %v1888
  %v1925 = vpack.c.bf16 %v1889, %v1889
  %v1926 = vpack.c.bf16 %v1890, %v1890
  %v1927 = vpack.c.bf16 %v1891, %v1891
  %vm1928 = vcmask 257024
  %1929 = vst.msk [vmem:[#allocation2] sm:$0xf] %vm1928, %v1892
  %1930 = vst.msk [vmem:[#allocation2 + $0x4] sm:$0xf] %vm1928, %v1893
  %1931 = vst.msk [vmem:[#allocation2 + $0x8] sm:$0xf] %vm1928, %v1894
  %1932 = vst.msk [vmem:[#allocation2 + $0xc] sm:$0xf] %vm1928, %v1895
  %1933 = vst.msk [vmem:[#allocation2 + $0x10] sm:$0xf] %vm1928, %v1896
  %1934 = vst.msk [vmem:[#allocation2 + $0x14] sm:$0xf] %vm1928, %v1897
  %1935 = vst.msk [vmem:[#allocation2 + $0x18] sm:$0xf] %vm1928, %v1898
  %1936 = vst.msk [vmem:[#allocation2 + $0x1c] sm:$0xf] %vm1928, %v1899
  %1937 = vst.msk [vmem:[#allocation2 + $0x20] sm:$0xf] %vm1928, %v1900
  %1938 = vst.msk [vmem:[#allocation2 + $0x24] sm:$0xf] %vm1928, %v1901
  %1939 = vst.msk [vmem:[#allocation2 + $0x28] sm:$0xf] %vm1928, %v1902
  %1940 = vst.msk [vmem:[#allocation2 + $0x2c] sm:$0xf] %vm1928, %v1903
  %1941 = vst.msk [vmem:[#allocation2 + $0x30] sm:$0xf] %vm1928, %v1904
  %1942 = vst.msk [vmem:[#allocation2 + $0x34] sm:$0xf] %vm1928, %v1905
  %1943 = vst.msk [vmem:[#allocation2 + $0x38] sm:$0xf] %vm1928, %v1906
  %1944 = vst.msk [vmem:[#allocation2 + $0x3c] sm:$0xf] %vm1928, %v1907
  %1945 = vst.msk [vmem:[#allocation2 + $0x40] sm:$0xf] %vm1928, %v1908
  %1946 = vst.msk [vmem:[#allocation2 + $0x44] sm:$0xf] %vm1928, %v1909
  %1947 = vst.msk [vmem:[#allocation2 + $0x48] sm:$0xf] %vm1928, %v1910
  %1948 = vst.msk [vmem:[#allocation2 + $0x4c] sm:$0xf] %vm1928, %v1911
  %1949 = vst.msk [vmem:[#allocation2 + $0x50] sm:$0xf] %vm1928, %v1912
  %1950 = vst.msk [vmem:[#allocation2 + $0x54] sm:$0xf] %vm1928, %v1913
  %1951 = vst.msk [vmem:[#allocation2 + $0x58] sm:$0xf] %vm1928, %v1914
  %1952 = vst.msk [vmem:[#allocation2 + $0x5c] sm:$0xf] %vm1928, %v1915
  %1953 = vst.msk [vmem:[#allocation2 + $0x60] sm:$0xf] %vm1928, %v1916
  %1954 = vst.msk [vmem:[#allocation2 + $0x64] sm:$0xf] %vm1928, %v1917
  %1955 = vst.msk [vmem:[#allocation2 + $0x68] sm:$0xf] %vm1928, %v1918
  %1956 = vst.msk [vmem:[#allocation2 + $0x6c] sm:$0xf] %vm1928, %v1919
  %1957 = vst.msk [vmem:[#allocation2 + $0x70] sm:$0xf] %vm1928, %v1920
  %1958 = vst.msk [vmem:[#allocation2 + $0x74] sm:$0xf] %vm1928, %v1921
  %1959 = vst.msk [vmem:[#allocation2 + $0x78] sm:$0xf] %vm1928, %v1922
  %1960 = vst.msk [vmem:[#allocation2 + $0x7c] sm:$0xf] %vm1928, %v1923
  %1961 = vst.msk [vmem:[#allocation2 + $0x80] sm:$0xf] %vm1928, %v1924
  %1962 = vst.msk [vmem:[#allocation2 + $0x84] sm:$0xf] %vm1928, %v1925
  %1963 = vst.msk [vmem:[#allocation2 + $0x88] sm:$0xf] %vm1928, %v1926
  %1964 = vst.msk [vmem:[#allocation2 + $0x8c] sm:$0xf] %vm1928, %v1927
  %v1965 = vld [vmem:[#allocation2] sm:$0x7]
  %v1966 = vld [vmem:[#allocation2 + $0x24] sm:$0x7]
  %v1967 = vld [vmem:[#allocation2 + $0x48] sm:$0x7]
  %v1968 = vld [vmem:[#allocation2 + $0x6c] sm:$0x7]
  %v1969 = vld [vmem:[#allocation2] sm:$0x8]
  %v1970 = vld [vmem:[#allocation2 + $0x4] sm:$0x3]
  %v1971 = vld [vmem:[#allocation2 + $0x24] sm:$0x8]
  %v1972 = vld [vmem:[#allocation2 + $0x28] sm:$0x3]
  %v1973 = vld [vmem:[#allocation2 + $0x48] sm:$0x8]
  %v1974 = vld [vmem:[#allocation2 + $0x4c] sm:$0x3]
  %v1975 = vld [vmem:[#allocation2 + $0x6c] sm:$0x8]
  %v1976 = vld [vmem:[#allocation2 + $0x70] sm:$0x3]
  %v1978 = vunpack.c.l.b16 %v1966
  %v1979 = vpack.c.b16 %v1978, %v1978
  %1980 = vrot.lane.b32.xlu0 %v1979, 32
  %v1981 = vpop.permute.xlu0 %1980
  %v1983 = vunpack.c.l.b16 %v1965
  %v1984 = vpack.c.b16 %v1983, %v1983
  %v1986 = vshrl.u32 %v1984, 16
  %v1988 = vshll.u32 %v1984, 16
  %v1990 = vrot.slane %v1988, 1
  %v1991 = vor.u32 %v1986, %v1990
  %1992 = vrot.lane.b32.xlu0 %v1991, 64
  %v1993 = vpop.permute.xlu0 %1992
  %v1995 = vshrl.u32 %v1979, 16
  %v1997 = vshll.u32 %v1979, 16
  %v1999 = vrot.slane %v1997, 1
  %v2000 = vor.u32 %v1995, %v1999
  %2001 = vrot.lane.b32.xlu0 %v2000, 96
  %v2002 = vpop.permute.xlu0 %2001
  %v2004 = vunpack.c.l.b16 %v1968
  %v2005 = vpack.c.b16 %v2004, %v2004
  %2006 = vrot.lane.b32.xlu0 %v2005, 32
  %v2007 = vpop.permute.xlu0 %2006
  %v2009 = vunpack.c.l.b16 %v1967
  %v2010 = vpack.c.b16 %v2009, %v2009
  %v2012 = vshrl.u32 %v2010, 16
  %v2014 = vshll.u32 %v2010, 16
  %v2016 = vrot.slane %v2014, 1
  %v2017 = vor.u32 %v2012, %v2016
  %2018 = vrot.lane.b32.xlu0 %v2017, 64
  %v2019 = vpop.permute.xlu0 %2018
  %v2021 = vshrl.u32 %v2005, 16
  %v2023 = vshll.u32 %v2005, 16
  %v2025 = vrot.slane %v2023, 1
  %v2026 = vor.u32 %v2021, %v2025
  %2027 = vrot.lane.b32.xlu0 %v2026, 96
  %v2028 = vpop.permute.xlu0 %2027
  %v2031 = vunpack.c.l.b16 %v1969
  %v2032 = vunpack.c.l.b16 %v1970
  %v2033 = vpack.c.b16 %v2032, %v2031
  %v2034 = vrot.slane %v2033, 3
  %v2037 = vunpack.c.l.b16 %v1971
  %v2038 = vunpack.c.l.b16 %v1972
  %v2039 = vpack.c.b16 %v2038, %v2037
  %v2040 = vrot.slane %v2039, 3
  %2041 = vrot.lane.b32.xlu0 %v2040, 32
  %v2042 = vpop.permute.xlu0 %2041
  %v2044 = vshrl.u32 %v2033, 16
  %v2046 = vrot.slane %v2044, 3
  %v2047 = vshll.u32 %v2033, 16
  %v2049 = vrot.slane %v2047, 4
  %v2050 = vor.u32 %v2046, %v2049
  %2051 = vrot.lane.b32.xlu0 %v2050, 64
  %v2052 = vpop.permute.xlu0 %2051
  %v2054 = vshrl.u32 %v2039, 16
  %v2056 = vrot.slane %v2054, 3
  %v2057 = vshll.u32 %v2039, 16
  %v2059 = vrot.slane %v2057, 4
  %v2060 = vor.u32 %v2056, %v2059
  %2061 = vrot.lane.b32.xlu0 %v2060, 96
  %v2062 = vpop.permute.xlu0 %2061
  %v2065 = vunpack.c.l.b16 %v1973
  %v2066 = vunpack.c.l.b16 %v1974
  %v2067 = vpack.c.b16 %v2066, %v2065
  %v2068 = vrot.slane %v2067, 3
  %v2071 = vunpack.c.l.b16 %v1975
  %v2072 = vunpack.c.l.b16 %v1976
  %v2073 = vpack.c.b16 %v2072, %v2071
  %v2074 = vrot.slane %v2073, 3
  %2075 = vrot.lane.b32.xlu0 %v2074, 32
  %v2076 = vpop.permute.xlu0 %2075
  %v2078 = vshrl.u32 %v2067, 16
  %v2080 = vrot.slane %v2078, 3
  %v2081 = vshll.u32 %v2067, 16
  %v2083 = vrot.slane %v2081, 4
  %v2084 = vor.u32 %v2080, %v2083
  %2085 = vrot.lane.b32.xlu0 %v2084, 64
  %v2086 = vpop.permute.xlu0 %2085
  %v2088 = vshrl.u32 %v2073, 16
  %v2090 = vrot.slane %v2088, 3
  %v2091 = vshll.u32 %v2073, 16
  %v2093 = vrot.slane %v2091, 4
  %v2094 = vor.u32 %v2090, %v2093
  %2095 = vrot.lane.b32.xlu0 %v2094, 96
  %v2096 = vpop.permute.xlu0 %2095
  %v2099 = vsel %vm1535, %v1965, %v1981
  %vm2100 = vcmask 523264
  %v2102 = vsel %vm2100, %v2099, %v1993
  %vm2103 = vcmask 785408
  %v2105 = vsel %vm2103, %v2102, %v2002
  %v2108 = vsel %vm1535, %v1967, %v2007
  %v2110 = vsel %vm2100, %v2108, %v2019
  %v2112 = vsel %vm2103, %v2110, %v2028
  %v2115 = vsel %vm1535, %v2034, %v2042
  %v2117 = vsel %vm2100, %v2115, %v2052
  %v2119 = vsel %vm2103, %v2117, %v2062
  %v2122 = vsel %vm1535, %v2068, %v2076
  %v2124 = vsel %vm2100, %v2122, %v2086
  %v2126 = vsel %vm2103, %v2124, %v2096
  %v2131 = vunpack.c.l.b16 %v2105
  %v2132 = vunpack.c.l.b16 %v2112
  %v2133 = vunpack.c.l.b16 %v2119
  %v2134 = vunpack.c.l.b16 %v2126
  %v2135 = vpack.c.b16 %v2132, %v2131
  %v2136 = vpack.c.b16 %v2134, %v2133
  %vm2139 = vcmask 1042432
  %vm2140 = vsmask.f32 2304
  %vm2141 = vmand %vm2139, %vm2140
  %vm2142 = vcmask 1046532
  %vm2143 = vsmask.f32 6400
  %vm2144 = vmand %vm2142, %vm2143
  %vm2145 = vmor %vm2144, %vm2141
  %v2146 = vld [vmem:[#allocation3] sm:$0x77]
  %v2147 = vsel %vm2145, %v2135, %v2146
  %2148 = vst [vmem:[#allocation3] sm:$0x77] %v2147
  %v2149 = vld [vmem:[#allocation3 + $0x8] sm:$0x77]
  %v2150 = vsel %vm2145, %v2136, %v2149
  %2151 = vst [vmem:[#allocation3 + $0x8] sm:$0x77] %v2150
  %v2152 = vld [vmem:[#allocation2] sm:$0x8]
  %v2153 = vld [vmem:[#allocation2 + $0x4] sm:$0x3]
  %v2154 = vld [vmem:[#allocation2 + $0x24] sm:$0x8]
  %v2155 = vld [vmem:[#allocation2 + $0x28] sm:$0x3]
  %v2156 = vld [vmem:[#allocation2 + $0x48] sm:$0x8]
  %v2157 = vld [vmem:[#allocation2 + $0x4c] sm:$0x3]
  %v2158 = vld [vmem:[#allocation2 + $0x6c] sm:$0x8]
  %v2159 = vld [vmem:[#allocation2 + $0x70] sm:$0x3]
  %v2160 = vld [vmem:[#allocation2 + $0x4] sm:$0xc]
  %v2161 = vld [vmem:[#allocation2 + $0x8] sm:$0x1]
  %v2162 = vld [vmem:[#allocation2 + $0x28] sm:$0xc]
  %v2163 = vld [vmem:[#allocation2 + $0x2c] sm:$0x1]
  %v2164 = vld [vmem:[#allocation2 + $0x4c] sm:$0xc]
  %v2165 = vld [vmem:[#allocation2 + $0x50] sm:$0x1]
  %v2166 = vld [vmem:[#allocation2 + $0x70] sm:$0xc]
  %v2167 = vld [vmem:[#allocation2 + $0x74] sm:$0x1]
  %v2170 = vunpack.c.l.b16 %v2152
  %v2171 = vunpack.c.l.b16 %v2153
  %v2172 = vpack.c.b16 %v2171, %v2170
  %v2175 = vunpack.c.l.b16 %v2154
  %v2176 = vunpack.c.l.b16 %v2155
  %v2177 = vpack.c.b16 %v2176, %v2175
  %2178 = vrot.lane.b32.xlu0 %v2177, 32
  %v2179 = vpop.permute.xlu0 %2178
  %v2181 = vshrl.u32 %v2172, 16
  %v2183 = vshll.u32 %v2172, 16
  %v2185 = vrot.slane %v2183, 1
  %v2186 = vor.u32 %v2181, %v2185
  %2187 = vrot.lane.b32.xlu0 %v2186, 64
  %v2188 = vpop.permute.xlu0 %2187
  %v2190 = vshrl.u32 %v2177, 16
  %v2192 = vshll.u32 %v2177, 16
  %v2194 = vrot.slane %v2192, 1
  %v2195 = vor.u32 %v2190, %v2194
  %2196 = vrot.lane.b32.xlu0 %v2195, 96
  %v2197 = vpop.permute.xlu0 %2196
  %v2200 = vunpack.c.l.b16 %v2156
  %v2201 = vunpack.c.l.b16 %v2157
  %v2202 = vpack.c.b16 %v2201, %v2200
  %v2205 = vunpack.c.l.b16 %v2158
  %v2206 = vunpack.c.l.b16 %v2159
  %v2207 = vpack.c.b16 %v2206, %v2205
  %2208 = vrot.lane.b32.xlu0 %v2207, 32
  %v2209 = vpop.permute.xlu0 %2208
  %v2211 = vshrl.u32 %v2202, 16
  %v2213 = vshll.u32 %v2202, 16
  %v2215 = vrot.slane %v2213, 1
  %v2216 = vor.u32 %v2211, %v2215
  %2217 = vrot.lane.b32.xlu0 %v2216, 64
  %v2218 = vpop.permute.xlu0 %2217
  %v2220 = vshrl.u32 %v2207, 16
  %v2222 = vshll.u32 %v2207, 16
  %v2224 = vrot.slane %v2222, 1
  %v2225 = vor.u32 %v2220, %v2224
  %2226 = vrot.lane.b32.xlu0 %v2225, 96
  %v2227 = vpop.permute.xlu0 %2226
  %v2230 = vunpack.c.l.b16 %v2160
  %v2231 = vunpack.c.l.b16 %v2161
  %v2232 = vpack.c.b16 %v2231, %v2230
  %v2233 = vrot.slane %v2232, 7
  %v2236 = vunpack.c.l.b16 %v2162
  %v2237 = vunpack.c.l.b16 %v2163
  %v2238 = vpack.c.b16 %v2237, %v2236
  %v2239 = vrot.slane %v2238, 7
  %2240 = vrot.lane.b32.xlu0 %v2239, 32
  %v2241 = vpop.permute.xlu0 %2240
  %v2243 = vshrl.u32 %v2232, 16
  %v2245 = vrot.slane %v2243, 7
  %v2246 = vshll.u32 %v2232, 16
  %v2248 = vor.u32 %v2245, %v2246
  %2249 = vrot.lane.b32.xlu0 %v2248, 64
  %v2250 = vpop.permute.xlu0 %2249
  %v2252 = vshrl.u32 %v2238, 16
  %v2254 = vrot.slane %v2252, 7
  %v2255 = vshll.u32 %v2238, 16
  %v2257 = vor.u32 %v2254, %v2255
  %2258 = vrot.lane.b32.xlu0 %v2257, 96
  %v2259 = vpop.permute.xlu0 %2258
  %v2262 = vunpack.c.l.b16 %v2164
  %v2263 = vunpack.c.l.b16 %v2165
  %v2264 = vpack.c.b16 %v2263, %v2262
  %v2265 = vrot.slane %v2264, 7
  %v2268 = vunpack.c.l.b16 %v2166
  %v2269 = vunpack.c.l.b16 %v2167
  %v2270 = vpack.c.b16 %v2269, %v2268
  %v2271 = vrot.slane %v2270, 7
  %2272 = vrot.lane.b32.xlu0 %v2271, 32
  %v2273 = vpop.permute.xlu0 %2272
  %v2275 = vshrl.u32 %v2264, 16
  %v2277 = vrot.slane %v2275, 7
  %v2278 = vshll.u32 %v2264, 16
  %v2280 = vor.u32 %v2277, %v2278
  %2281 = vrot.lane.b32.xlu0 %v2280, 64
  %v2282 = vpop.permute.xlu0 %2281
  %v2284 = vshrl.u32 %v2270, 16
  %v2286 = vrot.slane %v2284, 7
  %v2287 = vshll.u32 %v2270, 16
  %v2289 = vor.u32 %v2286, %v2287
  %2290 = vrot.lane.b32.xlu0 %v2289, 96
  %v2291 = vpop.permute.xlu0 %2290
  %v2293 = vsel %vm1535, %v2172, %v2179
  %v2295 = vsel %vm2100, %v2293, %v2188
  %v2297 = vsel %vm2103, %v2295, %v2197
  %v2299 = vsel %vm1535, %v2202, %v2209
  %v2301 = vsel %vm2100, %v2299, %v2218
  %v2303 = vsel %vm2103, %v2301, %v2227
  %v2306 = vsel %vm1535, %v2233, %v2241
  %v2308 = vsel %vm2100, %v2306, %v2250
  %v2310 = vsel %vm2103, %v2308, %v2259
  %v2313 = vsel %vm1535, %v2265, %v2273
  %v2315 = vsel %vm2100, %v2313, %v2282
  %v2317 = vsel %vm2103, %v2315, %v2291
  %v2322 = vunpack.c.l.b16 %v2297
  %v2323 = vunpack.c.l.b16 %v2303
  %v2324 = vunpack.c.l.b16 %v2310
  %v2325 = vunpack.c.l.b16 %v2317
  %v2326 = vunpack.c.h.b16 %v2297
  %v2327 = vunpack.c.h.b16 %v2303
  %v2328 = vunpack.c.h.b16 %v2310
  %v2329 = vunpack.c.h.b16 %v2317
  %v2330 = vpack.c.b16 %v2323, %v2322
  %v2331 = vpack.c.b16 %v2325, %v2324
  %v2332 = vpack.c.b16 %v2327, %v2326
  %v2333 = vpack.c.b16 %v2329, %v2328
  %vm2334 = vsmask.f32 3328
  %vm2335 = vsmask.f32 7440
  %vm2336 = vmor %vm2334, %vm2335
  %v2338 = vshrl.u32 %v2330, 16
  %v2340 = vrot.slane %v2338, 4
  %v2341 = vshll.u32 %v2330, 16
  %v2343 = vrot.slane %v2341, 5
  %v2344 = vor.u32 %v2340, %v2343
  %v2345 = vrot.slane %v2344, 4
  %v2347 = vshll.u32 %v2332, 16
  %v2349 = vrot.slane %v2347, 5
  %v2350 = vsel %vm2336, %v2345, %v2349
  %v2352 = vshrl.u32 %v2331, 16
  %v2354 = vrot.slane %v2352, 4
  %v2355 = vshll.u32 %v2331, 16
  %v2357 = vrot.slane %v2355, 5
  %v2358 = vor.u32 %v2354, %v2357
  %v2359 = vrot.slane %v2358, 4
  %v2361 = vshll.u32 %v2333, 16
  %v2363 = vrot.slane %v2361, 5
  %v2364 = vsel %vm2336, %v2359, %v2363
  %v2365 = vshrl.u32 %v2332, 16
  %v2367 = vrot.slane %v2365, 4
  %v2368 = vor.u32 %v2367, %v2349
  %v2369 = vrot.slane %v2368, 4
  %v2370 = vshrl.u32 %v2333, 16
  %v2372 = vrot.slane %v2370, 4
  %v2373 = vor.u32 %v2372, %v2363
  %v2374 = vrot.slane %v2373, 4
  %vm2379 = vcmask 1043458
  %vm2380 = vsmask.f32 7946
  %vm2381 = vmand %vm2379, %vm2380
  %vm2382 = vcmask 1047558
  %vm2383 = vsmask.f32 7962
  %vm2384 = vmand %vm2382, %vm2383
  %vm2385 = vmor %vm2384, %vm2381
  %v2386 = vld [vmem:[#allocation3] sm:$0xcc]
  %v2387 = vsel %vm2385, %v2350, %v2386
  %2388 = vst [vmem:[#allocation3] sm:$0xcc] %v2387
  %v2389 = vld [vmem:[#allocation3 + $0x8] sm:$0xcc]
  %v2390 = vsel %vm2385, %v2364, %v2389
  %2391 = vst [vmem:[#allocation3 + $0x8] sm:$0xcc] %v2390
  %2392 = vst [vmem:[#allocation3 + $0x10] sm:$0x11] %v2369
  %2393 = vst [vmem:[#allocation3 + $0x18] sm:$0x11] %v2374
  %v2394 = vld [vmem:[#allocation2 + $0x4] sm:$0xc]
  %v2395 = vld [vmem:[#allocation2 + $0x8] sm:$0x1]
  %v2396 = vld [vmem:[#allocation2 + $0x28] sm:$0xc]
  %v2397 = vld [vmem:[#allocation2 + $0x2c] sm:$0x1]
  %v2398 = vld [vmem:[#allocation2 + $0x4c] sm:$0xc]
  %v2399 = vld [vmem:[#allocation2 + $0x50] sm:$0x1]
  %v2400 = vld [vmem:[#allocation2 + $0x70] sm:$0xc]
  %v2401 = vld [vmem:[#allocation2 + $0x74] sm:$0x1]
  %v2402 = vld [vmem:[#allocation2 + $0x8] sm:$0xe]
  %v2403 = vld [vmem:[#allocation2 + $0x2c] sm:$0xe]
  %v2404 = vld [vmem:[#allocation2 + $0x50] sm:$0xe]
  %v2405 = vld [vmem:[#allocation2 + $0x74] sm:$0xe]
  %v2408 = vunpack.c.l.b16 %v2394
  %v2409 = vunpack.c.l.b16 %v2395
  %v2410 = vpack.c.b16 %v2409, %v2408
  %v2413 = vunpack.c.l.b16 %v2396
  %v2414 = vunpack.c.l.b16 %v2397
  %v2415 = vpack.c.b16 %v2414, %v2413
  %2416 = vrot.lane.b32.xlu0 %v2415, 32
  %v2417 = vpop.permute.xlu0 %2416
  %v2419 = vshrl.u32 %v2410, 16
  %v2421 = vshll.u32 %v2410, 16
  %v2423 = vrot.slane %v2421, 1
  %v2424 = vor.u32 %v2419, %v2423
  %2425 = vrot.lane.b32.xlu0 %v2424, 64
  %v2426 = vpop.permute.xlu0 %2425
  %v2428 = vshrl.u32 %v2415, 16
  %v2430 = vshll.u32 %v2415, 16
  %v2432 = vrot.slane %v2430, 1
  %v2433 = vor.u32 %v2428, %v2432
  %2434 = vrot.lane.b32.xlu0 %v2433, 96
  %v2435 = vpop.permute.xlu0 %2434
  %v2438 = vunpack.c.l.b16 %v2398
  %v2439 = vunpack.c.l.b16 %v2399
  %v2440 = vpack.c.b16 %v2439, %v2438
  %v2443 = vunpack.c.l.b16 %v2400
  %v2444 = vunpack.c.l.b16 %v2401
  %v2445 = vpack.c.b16 %v2444, %v2443
  %2446 = vrot.lane.b32.xlu0 %v2445, 32
  %v2447 = vpop.permute.xlu0 %2446
  %v2449 = vshrl.u32 %v2440, 16
  %v2451 = vshll.u32 %v2440, 16
  %v2453 = vrot.slane %v2451, 1
  %v2454 = vor.u32 %v2449, %v2453
  %2455 = vrot.lane.b32.xlu0 %v2454, 64
  %v2456 = vpop.permute.xlu0 %2455
  %v2458 = vshrl.u32 %v2445, 16
  %v2460 = vshll.u32 %v2445, 16
  %v2462 = vrot.slane %v2460, 1
  %v2463 = vor.u32 %v2458, %v2462
  %2464 = vrot.lane.b32.xlu0 %v2463, 96
  %v2465 = vpop.permute.xlu0 %2464
  %v2467 = vunpack.c.l.b16 %v2402
  %v2468 = vpack.c.b16 %v2467, %v2467
  %v2469 = vrot.slane %v2468, 7
  %v2471 = vunpack.c.l.b16 %v2403
  %v2472 = vpack.c.b16 %v2471, %v2471
  %v2473 = vrot.slane %v2472, 7
  %2474 = vrot.lane.b32.xlu0 %v2473, 32
  %v2475 = vpop.permute.xlu0 %2474
  %v2477 = vshrl.u32 %v2468, 16
  %v2479 = vrot.slane %v2477, 7
  %v2480 = vshll.u32 %v2468, 16
  %v2482 = vor.u32 %v2479, %v2480
  %2483 = vrot.lane.b32.xlu0 %v2482, 64
  %v2484 = vpop.permute.xlu0 %2483
  %v2486 = vshrl.u32 %v2472, 16
  %v2488 = vrot.slane %v2486, 7
  %v2489 = vshll.u32 %v2472, 16
  %v2491 = vor.u32 %v2488, %v2489
  %2492 = vrot.lane.b32.xlu0 %v2491, 96
  %v2493 = vpop.permute.xlu0 %2492
  %v2495 = vunpack.c.l.b16 %v2404
  %v2496 = vpack.c.b16 %v2495, %v2495
  %v2497 = vrot.slane %v2496, 7
  %v2499 = vunpack.c.l.b16 %v2405
  %v2500 = vpack.c.b16 %v2499, %v2499
  %v2501 = vrot.slane %v2500, 7
  %2502 = vrot.lane.b32.xlu0 %v2501, 32
  %v2503 = vpop.permute.xlu0 %2502
  %v2505 = vshrl.u32 %v2496, 16
  %v2507 = vrot.slane %v2505, 7
  %v2508 = vshll.u32 %v2496, 16
  %v2510 = vor.u32 %v2507, %v2508
  %2511 = vrot.lane.b32.xlu0 %v2510, 64
  %v2512 = vpop.permute.xlu0 %2511
  %v2514 = vshrl.u32 %v2500, 16
  %v2516 = vrot.slane %v2514, 7
  %v2517 = vshll.u32 %v2500, 16
  %v2519 = vor.u32 %v2516, %v2517
  %2520 = vrot.lane.b32.xlu0 %v2519, 96
  %v2521 = vpop.permute.xlu0 %2520
  %v2523 = vsel %vm1535, %v2410, %v2417
  %v2525 = vsel %vm2100, %v2523, %v2426
  %v2527 = vsel %vm2103, %v2525, %v2435
  %v2529 = vsel %vm1535, %v2440, %v2447
  %v2531 = vsel %vm2100, %v2529, %v2456
  %v2533 = vsel %vm2103, %v2531, %v2465
  %v2536 = vsel %vm1535, %v2469, %v2475
  %v2538 = vsel %vm2100, %v2536, %v2484
  %v2540 = vsel %vm2103, %v2538, %v2493
  %v2543 = vsel %vm1535, %v2497, %v2503
  %v2545 = vsel %vm2100, %v2543, %v2512
  %v2547 = vsel %vm2103, %v2545, %v2521
  %v2552 = vunpack.c.l.b16 %v2527
  %v2553 = vunpack.c.l.b16 %v2533
  %v2554 = vunpack.c.l.b16 %v2540
  %v2555 = vunpack.c.l.b16 %v2547
  %v2556 = vunpack.c.h.b16 %v2527
  %v2557 = vunpack.c.h.b16 %v2533
  %v2558 = vunpack.c.h.b16 %v2540
  %v2559 = vunpack.c.h.b16 %v2547
  %v2560 = vpack.c.b16 %v2553, %v2552
  %v2561 = vpack.c.b16 %v2555, %v2554
  %v2562 = vpack.c.b16 %v2557, %v2556
  %v2563 = vpack.c.b16 %v2559, %v2558
  %vm2564 = vmor %vm2139, %vm2142
  %v2565 = vrot.slane %v2560, 5
  %v2566 = vrot.slane %v2565, 4
  %v2567 = vrot.slane %v2562, 5
  %v2568 = vsel %vm2564, %v2566, %v2567
  %v2569 = vrot.slane %v2561, 5
  %v2570 = vrot.slane %v2569, 4
  %v2571 = vrot.slane %v2563, 5
  %v2572 = vsel %vm2564, %v2570, %v2571
  %vm2575 = vcmask 1043457
  %vm2576 = vmand %vm2575, %vm2334
  %vm2577 = vcmask 1047557
  %vm2578 = vsmask.f32 7424
  %vm2579 = vmand %vm2577, %vm2578
  %vm2580 = vmor %vm2579, %vm2576
  %v2581 = vld [vmem:[#allocation3 + $0x10] sm:$0xee]
  %v2582 = vsel %vm2580, %v2568, %v2581
  %2583 = vst [vmem:[#allocation3 + $0x10] sm:$0xee] %v2582
  %v2584 = vld [vmem:[#allocation3 + $0x18] sm:$0xee]
  %v2585 = vsel %vm2580, %v2572, %v2584
  %2586 = vst [vmem:[#allocation3 + $0x18] sm:$0xee] %v2585
  %v2587 = vld [vmem:[#allocation2 + $0x8] sm:$0xe]
  %v2588 = vld [vmem:[#allocation2 + $0x2c] sm:$0xe]
  %v2589 = vld [vmem:[#allocation2 + $0x50] sm:$0xe]
  %v2590 = vld [vmem:[#allocation2 + $0x74] sm:$0xe]
  %v2591 = vld [vmem:[#allocation2 + $0xc] sm:$0x7]
  %v2592 = vld [vmem:[#allocation2 + $0x30] sm:$0x7]
  %v2593 = vld [vmem:[#allocation2 + $0x54] sm:$0x7]
  %v2594 = vld [vmem:[#allocation2 + $0x78] sm:$0x7]
  %v2596 = vunpack.c.l.b16 %v2588
  %v2597 = vpack.c.b16 %v2596, %v2596
  %2598 = vrot.lane.b32.xlu0 %v2597, 32
  %v2599 = vpop.permute.xlu0 %2598
  %v2601 = vunpack.c.l.b16 %v2587
  %v2602 = vpack.c.b16 %v2601, %v2601
  %v2604 = vshrl.u32 %v2602, 16
  %v2606 = vshll.u32 %v2602, 16
  %v2608 = vrot.slane %v2606, 1
  %v2609 = vor.u32 %v2604, %v2608
  %2610 = vrot.lane.b32.xlu0 %v2609, 64
  %v2611 = vpop.permute.xlu0 %2610
  %v2613 = vshrl.u32 %v2597, 16
  %v2615 = vshll.u32 %v2597, 16
  %v2617 = vrot.slane %v2615, 1
  %v2618 = vor.u32 %v2613, %v2617
  %2619 = vrot.lane.b32.xlu0 %v2618, 96
  %v2620 = vpop.permute.xlu0 %2619
  %v2622 = vunpack.c.l.b16 %v2590
  %v2623 = vpack.c.b16 %v2622, %v2622
  %2624 = vrot.lane.b32.xlu0 %v2623, 32
  %v2625 = vpop.permute.xlu0 %2624
  %v2627 = vunpack.c.l.b16 %v2589
  %v2628 = vpack.c.b16 %v2627, %v2627
  %v2630 = vshrl.u32 %v2628, 16
  %v2632 = vshll.u32 %v2628, 16
  %v2634 = vrot.slane %v2632, 1
  %v2635 = vor.u32 %v2630, %v2634
  %2636 = vrot.lane.b32.xlu0 %v2635, 64
  %v2637 = vpop.permute.xlu0 %2636
  %v2639 = vshrl.u32 %v2623, 16
  %v2641 = vshll.u32 %v2623, 16
  %v2643 = vrot.slane %v2641, 1
  %v2644 = vor.u32 %v2639, %v2643
  %2645 = vrot.lane.b32.xlu0 %v2644, 96
  %v2646 = vpop.permute.xlu0 %2645
  %v2648 = vunpack.c.l.b16 %v2591
  %v2649 = vpack.c.b16 %v2648, %v2648
  %v2650 = vrot.slane %v2649, 7
  %v2652 = vunpack.c.l.b16 %v2592
  %v2653 = vpack.c.b16 %v2652, %v2652
  %v2654 = vrot.slane %v2653, 7
  %2655 = vrot.lane.b32.xlu0 %v2654, 32
  %v2656 = vpop.permute.xlu0 %2655
  %v2658 = vshrl.u32 %v2649, 16
  %v2660 = vrot.slane %v2658, 7
  %v2661 = vshll.u32 %v2649, 16
  %v2663 = vor.u32 %v2660, %v2661
  %2664 = vrot.lane.b32.xlu0 %v2663, 64
  %v2665 = vpop.permute.xlu0 %2664
  %v2667 = vshrl.u32 %v2653, 16
  %v2669 = vrot.slane %v2667, 7
  %v2670 = vshll.u32 %v2653, 16
  %v2672 = vor.u32 %v2669, %v2670
  %2673 = vrot.lane.b32.xlu0 %v2672, 96
  %v2674 = vpop.permute.xlu0 %2673
  %v2676 = vunpack.c.l.b16 %v2593
  %v2677 = vpack.c.b16 %v2676, %v2676
  %v2678 = vrot.slane %v2677, 7
  %v2680 = vunpack.c.l.b16 %v2594
  %v2681 = vpack.c.b16 %v2680, %v2680
  %v2682 = vrot.slane %v2681, 7
  %2683 = vrot.lane.b32.xlu0 %v2682, 32
  %v2684 = vpop.permute.xlu0 %2683
  %v2686 = vshrl.u32 %v2677, 16
  %v2688 = vrot.slane %v2686, 7
  %v2689 = vshll.u32 %v2677, 16
  %v2691 = vor.u32 %v2688, %v2689
  %2692 = vrot.lane.b32.xlu0 %v2691, 64
  %v2693 = vpop.permute.xlu0 %2692
  %v2695 = vshrl.u32 %v2681, 16
  %v2697 = vrot.slane %v2695, 7
  %v2698 = vshll.u32 %v2681, 16
  %v2700 = vor.u32 %v2697, %v2698
  %2701 = vrot.lane.b32.xlu0 %v2700, 96
  %v2702 = vpop.permute.xlu0 %2701
  %v2705 = vsel %vm1535, %v2587, %v2599
  %v2707 = vsel %vm2100, %v2705, %v2611
  %v2709 = vsel %vm2103, %v2707, %v2620
  %v2712 = vsel %vm1535, %v2589, %v2625
  %v2714 = vsel %vm2100, %v2712, %v2637
  %v2716 = vsel %vm2103, %v2714, %v2646
  %v2719 = vsel %vm1535, %v2650, %v2656
  %v2721 = vsel %vm2100, %v2719, %v2665
  %v2723 = vsel %vm2103, %v2721, %v2674
  %v2726 = vsel %vm1535, %v2678, %v2684
  %v2728 = vsel %vm2100, %v2726, %v2693
  %v2730 = vsel %vm2103, %v2728, %v2702
  %v2735 = vunpack.c.l.b16 %v2709
  %v2736 = vunpack.c.l.b16 %v2716
  %v2737 = vunpack.c.l.b16 %v2723
  %v2738 = vunpack.c.l.b16 %v2730
  %v2739 = vpack.c.b16 %v2736, %v2735
  %v2740 = vpack.c.b16 %v2738, %v2737
  %v2742 = vshll.u32 %v2739, 16
  %v2744 = vrot.slane %v2742, 6
  %v2746 = vshll.u32 %v2740, 16
  %v2748 = vrot.slane %v2746, 6
  %v2749 = vshrl.u32 %v2739, 16
  %v2751 = vrot.slane %v2749, 5
  %v2752 = vor.u32 %v2751, %v2744
  %v2753 = vrot.slane %v2752, 4
  %v2754 = vshrl.u32 %v2740, 16
  %v2756 = vrot.slane %v2754, 5
  %v2757 = vor.u32 %v2756, %v2748
  %v2758 = vrot.slane %v2757, 4
  %vm2763 = vcmask 1043459
  %vm2764 = vsmask.f32 7950
  %vm2765 = vmand %vm2763, %vm2764
  %vm2766 = vcmask 1047559
  %vm2767 = vsmask.f32 7966
  %vm2768 = vmand %vm2766, %vm2767
  %vm2769 = vmor %vm2768, %vm2765
  %v2770 = vld [vmem:[#allocation3 + $0x10] sm:$0x88]
  %v2771 = vsel %vm2769, %v2744, %v2770
  %2772 = vst [vmem:[#allocation3 + $0x10] sm:$0x88] %v2771
  %v2773 = vld [vmem:[#allocation3 + $0x18] sm:$0x88]
  %v2774 = vsel %vm2769, %v2748, %v2773
  %2775 = vst [vmem:[#allocation3 + $0x18] sm:$0x88] %v2774
  %2776 = vst [vmem:[#allocation3 + $0x20] sm:$0x33] %v2753
  %2777 = vst [vmem:[#allocation3 + $0x28] sm:$0x33] %v2758
  %v2778 = vld [vmem:[#allocation2 + $0xc] sm:$0x7]
  %v2779 = vld [vmem:[#allocation2 + $0x30] sm:$0x7]
  %v2780 = vld [vmem:[#allocation2 + $0x54] sm:$0x7]
  %v2781 = vld [vmem:[#allocation2 + $0x78] sm:$0x7]
  %v2782 = vld [vmem:[#allocation2 + $0xc] sm:$0x8]
  %v2783 = vld [vmem:[#allocation2 + $0x10] sm:$0x3]
  %v2784 = vld [vmem:[#allocation2 + $0x30] sm:$0x8]
  %v2785 = vld [vmem:[#allocation2 + $0x34] sm:$0x3]
  %v2786 = vld [vmem:[#allocation2 + $0x54] sm:$0x8]
  %v2787 = vld [vmem:[#allocation2 + $0x58] sm:$0x3]
  %v2788 = vld [vmem:[#allocation2 + $0x78] sm:$0x8]
  %v2789 = vld [vmem:[#allocation2 + $0x7c] sm:$0x3]
  %v2791 = vunpack.c.l.b16 %v2779
  %v2792 = vpack.c.b16 %v2791, %v2791
  %2793 = vrot.lane.b32.xlu0 %v2792, 32
  %v2794 = vpop.permute.xlu0 %2793
  %v2796 = vunpack.c.l.b16 %v2778
  %v2797 = vpack.c.b16 %v2796, %v2796
  %v2799 = vshrl.u32 %v2797, 16
  %v2801 = vshll.u32 %v2797, 16
  %v2803 = vrot.slane %v2801, 1
  %v2804 = vor.u32 %v2799, %v2803
  %2805 = vrot.lane.b32.xlu0 %v2804, 64
  %v2806 = vpop.permute.xlu0 %2805
  %v2808 = vshrl.u32 %v2792, 16
  %v2810 = vshll.u32 %v2792, 16
  %v2812 = vrot.slane %v2810, 1
  %v2813 = vor.u32 %v2808, %v2812
  %2814 = vrot.lane.b32.xlu0 %v2813, 96
  %v2815 = vpop.permute.xlu0 %2814
  %v2817 = vunpack.c.l.b16 %v2781
  %v2818 = vpack.c.b16 %v2817, %v2817
  %2819 = vrot.lane.b32.xlu0 %v2818, 32
  %v2820 = vpop.permute.xlu0 %2819
  %v2822 = vunpack.c.l.b16 %v2780
  %v2823 = vpack.c.b16 %v2822, %v2822
  %v2825 = vshrl.u32 %v2823, 16
  %v2827 = vshll.u32 %v2823, 16
  %v2829 = vrot.slane %v2827, 1
  %v2830 = vor.u32 %v2825, %v2829
  %2831 = vrot.lane.b32.xlu0 %v2830, 64
  %v2832 = vpop.permute.xlu0 %2831
  %v2834 = vshrl.u32 %v2818, 16
  %v2836 = vshll.u32 %v2818, 16
  %v2838 = vrot.slane %v2836, 1
  %v2839 = vor.u32 %v2834, %v2838
  %2840 = vrot.lane.b32.xlu0 %v2839, 96
  %v2841 = vpop.permute.xlu0 %2840
  %v2844 = vunpack.c.l.b16 %v2782
  %v2845 = vunpack.c.l.b16 %v2783
  %v2846 = vpack.c.b16 %v2845, %v2844
  %v2847 = vrot.slane %v2846, 3
  %v2850 = vunpack.c.l.b16 %v2784
  %v2851 = vunpack.c.l.b16 %v2785
  %v2852 = vpack.c.b16 %v2851, %v2850
  %v2853 = vrot.slane %v2852, 3
  %2854 = vrot.lane.b32.xlu0 %v2853, 32
  %v2855 = vpop.permute.xlu0 %2854
  %v2857 = vshrl.u32 %v2846, 16
  %v2859 = vrot.slane %v2857, 3
  %v2860 = vshll.u32 %v2846, 16
  %v2862 = vrot.slane %v2860, 4
  %v2863 = vor.u32 %v2859, %v2862
  %2864 = vrot.lane.b32.xlu0 %v2863, 64
  %v2865 = vpop.permute.xlu0 %2864
  %v2867 = vshrl.u32 %v2852, 16
  %v2869 = vrot.slane %v2867, 3
  %v2870 = vshll.u32 %v2852, 16
  %v2872 = vrot.slane %v2870, 4
  %v2873 = vor.u32 %v2869, %v2872
  %2874 = vrot.lane.b32.xlu0 %v2873, 96
  %v2875 = vpop.permute.xlu0 %2874
  %v2878 = vunpack.c.l.b16 %v2786
  %v2879 = vunpack.c.l.b16 %v2787
  %v2880 = vpack.c.b16 %v2879, %v2878
  %v2881 = vrot.slane %v2880, 3
  %v2884 = vunpack.c.l.b16 %v2788
  %v2885 = vunpack.c.l.b16 %v2789
  %v2886 = vpack.c.b16 %v2885, %v2884
  %v2887 = vrot.slane %v2886, 3
  %2888 = vrot.lane.b32.xlu0 %v2887, 32
  %v2889 = vpop.permute.xlu0 %2888
  %v2891 = vshrl.u32 %v2880, 16
  %v2893 = vrot.slane %v2891, 3
  %v2894 = vshll.u32 %v2880, 16
  %v2896 = vrot.slane %v2894, 4
  %v2897 = vor.u32 %v2893, %v2896
  %2898 = vrot.lane.b32.xlu0 %v2897, 64
  %v2899 = vpop.permute.xlu0 %2898
  %v2901 = vshrl.u32 %v2886, 16
  %v2903 = vrot.slane %v2901, 3
  %v2904 = vshll.u32 %v2886, 16
  %v2906 = vrot.slane %v2904, 4
  %v2907 = vor.u32 %v2903, %v2906
  %2908 = vrot.lane.b32.xlu0 %v2907, 96
  %v2909 = vpop.permute.xlu0 %2908
  %v2912 = vsel %vm1535, %v2778, %v2794
  %v2914 = vsel %vm2100, %v2912, %v2806
  %v2916 = vsel %vm2103, %v2914, %v2815
  %v2919 = vsel %vm1535, %v2780, %v2820
  %v2921 = vsel %vm2100, %v2919, %v2832
  %v2923 = vsel %vm2103, %v2921, %v2841
  %v2926 = vsel %vm1535, %v2847, %v2855
  %v2928 = vsel %vm2100, %v2926, %v2865
  %v2930 = vsel %vm2103, %v2928, %v2875
  %v2933 = vsel %vm1535, %v2881, %v2889
  %v2935 = vsel %vm2100, %v2933, %v2899
  %v2937 = vsel %vm2103, %v2935, %v2909
  %v2942 = vunpack.c.l.b16 %v2916
  %v2943 = vunpack.c.l.b16 %v2923
  %v2944 = vunpack.c.l.b16 %v2930
  %v2945 = vunpack.c.l.b16 %v2937
  %v2946 = vpack.c.b16 %v2943, %v2942
  %v2947 = vpack.c.b16 %v2945, %v2944
  %v2948 = vrot.slane %v2946, 6
  %v2949 = vrot.slane %v2947, 6
  %v2950 = vrot.slane %v2948, 4
  %v2951 = vrot.slane %v2949, 4
  %2956 = vst [vmem:[#allocation3 + $0x20] sm:$0xcc] %v2948
  %2957 = vst [vmem:[#allocation3 + $0x28] sm:$0xcc] %v2949
  %vm2958 = vcmask 1040384
  %vm2959 = vsmask.f32 256
  %vm2960 = vmand %vm2958, %vm2959
  %vm2961 = vcmask 1044484
  %vm2962 = vsmask.f32 4352
  %vm2963 = vmand %vm2961, %vm2962
  %vm2964 = vmor %vm2963, %vm2960
  %v2965 = vld [vmem:[#allocation3 + $0x30] sm:$0x11]
  %v2966 = vsel %vm2964, %v2950, %v2965
  %2967 = vst [vmem:[#allocation3 + $0x30] sm:$0x11] %v2966
  %v2968 = vld [vmem:[#allocation3 + $0x38] sm:$0x11]
  %v2969 = vsel %vm2964, %v2951, %v2968
  %2970 = vst [vmem:[#allocation3 + $0x38] sm:$0x11] %v2969
  %v2971 = vld [vmem:[#allocation2 + $0x10] sm:$0xc]
  %v2972 = vld [vmem:[#allocation2 + $0x14] sm:$0x1]
  %v2973 = vld [vmem:[#allocation2 + $0x34] sm:$0xc]
  %v2974 = vld [vmem:[#allocation2 + $0x38] sm:$0x1]
  %v2975 = vld [vmem:[#allocation2 + $0x58] sm:$0xc]
  %v2976 = vld [vmem:[#allocation2 + $0x5c] sm:$0x1]
  %v2977 = vld [vmem:[#allocation2 + $0x7c] sm:$0xc]
  %v2978 = vld [vmem:[#allocation2 + $0x80] sm:$0x1]
  %v2979 = vld [vmem:[#allocation2 + $0x14] sm:$0xe]
  %v2980 = vld [vmem:[#allocation2 + $0x38] sm:$0xe]
  %v2981 = vld [vmem:[#allocation2 + $0x5c] sm:$0xe]
  %v2982 = vld [vmem:[#allocation2 + $0x80] sm:$0xe]
  %v2985 = vunpack.c.l.b16 %v2971
  %v2986 = vunpack.c.l.b16 %v2972
  %v2987 = vpack.c.b16 %v2986, %v2985
  %v2990 = vunpack.c.l.b16 %v2973
  %v2991 = vunpack.c.l.b16 %v2974
  %v2992 = vpack.c.b16 %v2991, %v2990
  %2993 = vrot.lane.b32.xlu0 %v2992, 32
  %v2994 = vpop.permute.xlu0 %2993
  %v2996 = vshrl.u32 %v2987, 16
  %v2998 = vshll.u32 %v2987, 16
  %v3000 = vrot.slane %v2998, 1
  %v3001 = vor.u32 %v2996, %v3000
  %3002 = vrot.lane.b32.xlu0 %v3001, 64
  %v3003 = vpop.permute.xlu0 %3002
  %v3005 = vshrl.u32 %v2992, 16
  %v3007 = vshll.u32 %v2992, 16
  %v3009 = vrot.slane %v3007, 1
  %v3010 = vor.u32 %v3005, %v3009
  %3011 = vrot.lane.b32.xlu0 %v3010, 96
  %v3012 = vpop.permute.xlu0 %3011
  %v3015 = vunpack.c.l.b16 %v2975
  %v3016 = vunpack.c.l.b16 %v2976
  %v3017 = vpack.c.b16 %v3016, %v3015
  %v3020 = vunpack.c.l.b16 %v2977
  %v3021 = vunpack.c.l.b16 %v2978
  %v3022 = vpack.c.b16 %v3021, %v3020
  %3023 = vrot.lane.b32.xlu0 %v3022, 32
  %v3024 = vpop.permute.xlu0 %3023
  %v3026 = vshrl.u32 %v3017, 16
  %v3028 = vshll.u32 %v3017, 16
  %v3030 = vrot.slane %v3028, 1
  %v3031 = vor.u32 %v3026, %v3030
  %3032 = vrot.lane.b32.xlu0 %v3031, 64
  %v3033 = vpop.permute.xlu0 %3032
  %v3035 = vshrl.u32 %v3022, 16
  %v3037 = vshll.u32 %v3022, 16
  %v3039 = vrot.slane %v3037, 1
  %v3040 = vor.u32 %v3035, %v3039
  %3041 = vrot.lane.b32.xlu0 %v3040, 96
  %v3042 = vpop.permute.xlu0 %3041
  %v3044 = vunpack.c.l.b16 %v2979
  %v3045 = vpack.c.b16 %v3044, %v3044
  %v3046 = vrot.slane %v3045, 7
  %v3048 = vunpack.c.l.b16 %v2980
  %v3049 = vpack.c.b16 %v3048, %v3048
  %v3050 = vrot.slane %v3049, 7
  %3051 = vrot.lane.b32.xlu0 %v3050, 32
  %v3052 = vpop.permute.xlu0 %3051
  %v3054 = vshrl.u32 %v3045, 16
  %v3056 = vrot.slane %v3054, 7
  %v3057 = vshll.u32 %v3045, 16
  %v3059 = vor.u32 %v3056, %v3057
  %3060 = vrot.lane.b32.xlu0 %v3059, 64
  %v3061 = vpop.permute.xlu0 %3060
  %v3063 = vshrl.u32 %v3049, 16
  %v3065 = vrot.slane %v3063, 7
  %v3066 = vshll.u32 %v3049, 16
  %v3068 = vor.u32 %v3065, %v3066
  %3069 = vrot.lane.b32.xlu0 %v3068, 96
  %v3070 = vpop.permute.xlu0 %3069
  %v3072 = vunpack.c.l.b16 %v2981
  %v3073 = vpack.c.b16 %v3072, %v3072
  %v3074 = vrot.slane %v3073, 7
  %v3076 = vunpack.c.l.b16 %v2982
  %v3077 = vpack.c.b16 %v3076, %v3076
  %v3078 = vrot.slane %v3077, 7
  %3079 = vrot.lane.b32.xlu0 %v3078, 32
  %v3080 = vpop.permute.xlu0 %3079
  %v3082 = vshrl.u32 %v3073, 16
  %v3084 = vrot.slane %v3082, 7
  %v3085 = vshll.u32 %v3073, 16
  %v3087 = vor.u32 %v3084, %v3085
  %3088 = vrot.lane.b32.xlu0 %v3087, 64
  %v3089 = vpop.permute.xlu0 %3088
  %v3091 = vshrl.u32 %v3077, 16
  %v3093 = vrot.slane %v3091, 7
  %v3094 = vshll.u32 %v3077, 16
  %v3096 = vor.u32 %v3093, %v3094
  %3097 = vrot.lane.b32.xlu0 %v3096, 96
  %v3098 = vpop.permute.xlu0 %3097
  %v3100 = vsel %vm1535, %v2987, %v2994
  %v3102 = vsel %vm2100, %v3100, %v3003
  %v3104 = vsel %vm2103, %v3102, %v3012
  %v3106 = vsel %vm1535, %v3017, %v3024
  %v3108 = vsel %vm2100, %v3106, %v3033
  %v3110 = vsel %vm2103, %v3108, %v3042
  %v3113 = vsel %vm1535, %v3046, %v3052
  %v3115 = vsel %vm2100, %v3113, %v3061
  %v3117 = vsel %vm2103, %v3115, %v3070
  %v3120 = vsel %vm1535, %v3074, %v3080
  %v3122 = vsel %vm2100, %v3120, %v3089
  %v3124 = vsel %vm2103, %v3122, %v3098
  %v3129 = vunpack.c.l.b16 %v3104
  %v3130 = vunpack.c.l.b16 %v3110
  %v3131 = vunpack.c.l.b16 %v3117
  %v3132 = vunpack.c.l.b16 %v3124
  %v3133 = vunpack.c.h.b16 %v3104
  %v3134 = vunpack.c.h.b16 %v3110
  %v3135 = vunpack.c.h.b16 %v3117
  %v3136 = vunpack.c.h.b16 %v3124
  %v3137 = vpack.c.b16 %v3130, %v3129
  %v3138 = vpack.c.b16 %v3132, %v3131
  %v3139 = vpack.c.b16 %v3134, %v3133
  %v3140 = vpack.c.b16 %v3136, %v3135
  %vm3141 = vsmask.f32 6416
  %vm3142 = vmor %vm2140, %vm3141
  %v3144 = vshrl.u32 %v3137, 16
  %v3146 = vrot.slane %v3144, 5
  %v3147 = vshll.u32 %v3137, 16
  %v3149 = vrot.slane %v3147, 6
  %v3150 = vor.u32 %v3146, %v3149
  %v3151 = vrot.slane %v3150, 4
  %v3153 = vshll.u32 %v3139, 16
  %v3155 = vrot.slane %v3153, 6
  %v3156 = vsel %vm3142, %v3151, %v3155
  %v3158 = vshrl.u32 %v3138, 16
  %v3160 = vrot.slane %v3158, 5
  %v3161 = vshll.u32 %v3138, 16
  %v3163 = vrot.slane %v3161, 6
  %v3164 = vor.u32 %v3160, %v3163
  %v3165 = vrot.slane %v3164, 4
  %v3167 = vshll.u32 %v3140, 16
  %v3169 = vrot.slane %v3167, 6
  %v3170 = vsel %vm3142, %v3165, %v3169
  %vm3173 = vsmask.f32 7938
  %vm3174 = vmand %vm2139, %vm3173
  %vm3175 = vsmask.f32 7954
  %vm3176 = vmand %vm2142, %vm3175
  %vm3177 = vmor %vm3176, %vm3174
  %v3178 = vld [vmem:[#allocation3 + $0x30] sm:$0x77]
  %v3179 = vsel %vm3177, %v3156, %v3178
  %3180 = vst [vmem:[#allocation3 + $0x30] sm:$0x77] %v3179
  %v3181 = vld [vmem:[#allocation3 + $0x38] sm:$0x77]
  %v3182 = vsel %vm3177, %v3170, %v3181
  %3183 = vst [vmem:[#allocation3 + $0x38] sm:$0x77] %v3182
  %v3184 = vld [vmem:[#allocation2 + $0x14] sm:$0xe]
  %v3185 = vld [vmem:[#allocation2 + $0x38] sm:$0xe]
  %v3186 = vld [vmem:[#allocation2 + $0x5c] sm:$0xe]
  %v3187 = vld [vmem:[#allocation2 + $0x80] sm:$0xe]
  %v3188 = vld [vmem:[#allocation2 + $0x18] sm:$0x7]
  %v3189 = vld [vmem:[#allocation2 + $0x3c] sm:$0x7]
  %v3190 = vld [vmem:[#allocation2 + $0x60] sm:$0x7]
  %v3191 = vld [vmem:[#allocation2 + $0x84] sm:$0x7]
  %v3193 = vunpack.c.l.b16 %v3185
  %v3194 = vpack.c.b16 %v3193, %v3193
  %3195 = vrot.lane.b32.xlu0 %v3194, 32
  %v3196 = vpop.permute.xlu0 %3195
  %v3198 = vunpack.c.l.b16 %v3184
  %v3199 = vpack.c.b16 %v3198, %v3198
  %v3201 = vshrl.u32 %v3199, 16
  %v3203 = vshll.u32 %v3199, 16
  %v3205 = vrot.slane %v3203, 1
  %v3206 = vor.u32 %v3201, %v3205
  %3207 = vrot.lane.b32.xlu0 %v3206, 64
  %v3208 = vpop.permute.xlu0 %3207
  %v3210 = vshrl.u32 %v3194, 16
  %v3212 = vshll.u32 %v3194, 16
  %v3214 = vrot.slane %v3212, 1
  %v3215 = vor.u32 %v3210, %v3214
  %3216 = vrot.lane.b32.xlu0 %v3215, 96
  %v3217 = vpop.permute.xlu0 %3216
  %v3219 = vunpack.c.l.b16 %v3187
  %v3220 = vpack.c.b16 %v3219, %v3219
  %3221 = vrot.lane.b32.xlu0 %v3220, 32
  %v3222 = vpop.permute.xlu0 %3221
  %v3224 = vunpack.c.l.b16 %v3186
  %v3225 = vpack.c.b16 %v3224, %v3224
  %v3227 = vshrl.u32 %v3225, 16
  %v3229 = vshll.u32 %v3225, 16
  %v3231 = vrot.slane %v3229, 1
  %v3232 = vor.u32 %v3227, %v3231
  %3233 = vrot.lane.b32.xlu0 %v3232, 64
  %v3234 = vpop.permute.xlu0 %3233
  %v3236 = vshrl.u32 %v3220, 16
  %v3238 = vshll.u32 %v3220, 16
  %v3240 = vrot.slane %v3238, 1
  %v3241 = vor.u32 %v3236, %v3240
  %3242 = vrot.lane.b32.xlu0 %v3241, 96
  %v3243 = vpop.permute.xlu0 %3242
  %v3245 = vunpack.c.l.b16 %v3188
  %v3246 = vpack.c.b16 %v3245, %v3245
  %v3247 = vrot.slane %v3246, 7
  %v3249 = vunpack.c.l.b16 %v3189
  %v3250 = vpack.c.b16 %v3249, %v3249
  %v3251 = vrot.slane %v3250, 7
  %3252 = vrot.lane.b32.xlu0 %v3251, 32
  %v3253 = vpop.permute.xlu0 %3252
  %v3255 = vshrl.u32 %v3246, 16
  %v3257 = vrot.slane %v3255, 7
  %v3258 = vshll.u32 %v3246, 16
  %v3260 = vor.u32 %v3257, %v3258
  %3261 = vrot.lane.b32.xlu0 %v3260, 64
  %v3262 = vpop.permute.xlu0 %3261
  %v3264 = vshrl.u32 %v3250, 16
  %v3266 = vrot.slane %v3264, 7
  %v3267 = vshll.u32 %v3250, 16
  %v3269 = vor.u32 %v3266, %v3267
  %3270 = vrot.lane.b32.xlu0 %v3269, 96
  %v3271 = vpop.permute.xlu0 %3270
  %v3273 = vunpack.c.l.b16 %v3190
  %v3274 = vpack.c.b16 %v3273, %v3273
  %v3275 = vrot.slane %v3274, 7
  %v3277 = vunpack.c.l.b16 %v3191
  %v3278 = vpack.c.b16 %v3277, %v3277
  %v3279 = vrot.slane %v3278, 7
  %3280 = vrot.lane.b32.xlu0 %v3279, 32
  %v3281 = vpop.permute.xlu0 %3280
  %v3283 = vshrl.u32 %v3274, 16
  %v3285 = vrot.slane %v3283, 7
  %v3286 = vshll.u32 %v3274, 16
  %v3288 = vor.u32 %v3285, %v3286
  %3289 = vrot.lane.b32.xlu0 %v3288, 64
  %v3290 = vpop.permute.xlu0 %3289
  %v3292 = vshrl.u32 %v3278, 16
  %v3294 = vrot.slane %v3292, 7
  %v3295 = vshll.u32 %v3278, 16
  %v3297 = vor.u32 %v3294, %v3295
  %3298 = vrot.lane.b32.xlu0 %v3297, 96
  %v3299 = vpop.permute.xlu0 %3298
  %v3302 = vsel %vm1535, %v3184, %v3196
  %v3304 = vsel %vm2100, %v3302, %v3208
  %v3306 = vsel %vm2103, %v3304, %v3217
  %v3309 = vsel %vm1535, %v3186, %v3222
  %v3311 = vsel %vm2100, %v3309, %v3234
  %v3313 = vsel %vm2103, %v3311, %v3243
  %v3316 = vsel %vm1535, %v3247, %v3253
  %v3318 = vsel %vm2100, %v3316, %v3262
  %v3320 = vsel %vm2103, %v3318, %v3271
  %v3323 = vsel %vm1535, %v3275, %v3281
  %v3325 = vsel %vm2100, %v3323, %v3290
  %v3327 = vsel %vm2103, %v3325, %v3299
  %v3332 = vunpack.c.l.b16 %v3306
  %v3333 = vunpack.c.l.b16 %v3313
  %v3334 = vunpack.c.l.b16 %v3320
  %v3335 = vunpack.c.l.b16 %v3327
  %v3336 = vpack.c.b16 %v3333, %v3332
  %v3337 = vpack.c.b16 %v3335, %v3334
  %v3338 = vrot.slane %v3336, 6
  %v3339 = vrot.slane %v3337, 6
  %v3340 = vrot.slane %v3338, 4
  %v3341 = vrot.slane %v3339, 4
  %3346 = vst [vmem:[#allocation3 + $0x30] sm:$0x88] %v3338
  %3347 = vst [vmem:[#allocation3 + $0x38] sm:$0x88] %v3339
  %vm3348 = vcmask 1041408
  %vm3349 = vsmask.f32 1280
  %vm3350 = vmand %vm3348, %vm3349
  %vm3351 = vcmask 1045508
  %vm3352 = vsmask.f32 5376
  %vm3353 = vmand %vm3351, %vm3352
  %vm3354 = vmor %vm3353, %vm3350
  %v3355 = vld [vmem:[#allocation3 + $0x40] sm:$0x33]
  %v3356 = vsel %vm3354, %v3340, %v3355
  %3357 = vst [vmem:[#allocation3 + $0x40] sm:$0x33] %v3356
  %v3358 = vld [vmem:[#allocation3 + $0x48] sm:$0x33]
  %v3359 = vsel %vm3354, %v3341, %v3358
  %3360 = vst [vmem:[#allocation3 + $0x48] sm:$0x33] %v3359
  %v3361 = vld [vmem:[#allocation2 + $0x18] sm:$0x7]
  %v3362 = vld [vmem:[#allocation2 + $0x3c] sm:$0x7]
  %v3363 = vld [vmem:[#allocation2 + $0x60] sm:$0x7]
  %v3364 = vld [vmem:[#allocation2 + $0x84] sm:$0x7]
  %v3365 = vld [vmem:[#allocation2 + $0x18] sm:$0x8]
  %v3366 = vld [vmem:[#allocation2 + $0x1c] sm:$0x3]
  %v3367 = vld [vmem:[#allocation2 + $0x3c] sm:$0x8]
  %v3368 = vld [vmem:[#allocation2 + $0x40] sm:$0x3]
  %v3369 = vld [vmem:[#allocation2 + $0x60] sm:$0x8]
  %v3370 = vld [vmem:[#allocation2 + $0x64] sm:$0x3]
  %v3371 = vld [vmem:[#allocation2 + $0x84] sm:$0x8]
  %v3372 = vld [vmem:[#allocation2 + $0x88] sm:$0x3]
  %v3374 = vunpack.c.l.b16 %v3362
  %v3375 = vpack.c.b16 %v3374, %v3374
  %3376 = vrot.lane.b32.xlu0 %v3375, 32
  %v3377 = vpop.permute.xlu0 %3376
  %v3379 = vunpack.c.l.b16 %v3361
  %v3380 = vpack.c.b16 %v3379, %v3379
  %v3382 = vshrl.u32 %v3380, 16
  %v3384 = vshll.u32 %v3380, 16
  %v3386 = vrot.slane %v3384, 1
  %v3387 = vor.u32 %v3382, %v3386
  %3388 = vrot.lane.b32.xlu0 %v3387, 64
  %v3389 = vpop.permute.xlu0 %3388
  %v3391 = vshrl.u32 %v3375, 16
  %v3393 = vshll.u32 %v3375, 16
  %v3395 = vrot.slane %v3393, 1
  %v3396 = vor.u32 %v3391, %v3395
  %3397 = vrot.lane.b32.xlu0 %v3396, 96
  %v3398 = vpop.permute.xlu0 %3397
  %v3400 = vunpack.c.l.b16 %v3364
  %v3401 = vpack.c.b16 %v3400, %v3400
  %3402 = vrot.lane.b32.xlu0 %v3401, 32
  %v3403 = vpop.permute.xlu0 %3402
  %v3405 = vunpack.c.l.b16 %v3363
  %v3406 = vpack.c.b16 %v3405, %v3405
  %v3408 = vshrl.u32 %v3406, 16
  %v3410 = vshll.u32 %v3406, 16
  %v3412 = vrot.slane %v3410, 1
  %v3413 = vor.u32 %v3408, %v3412
  %3414 = vrot.lane.b32.xlu0 %v3413, 64
  %v3415 = vpop.permute.xlu0 %3414
  %v3417 = vshrl.u32 %v3401, 16
  %v3419 = vshll.u32 %v3401, 16
  %v3421 = vrot.slane %v3419, 1
  %v3422 = vor.u32 %v3417, %v3421
  %3423 = vrot.lane.b32.xlu0 %v3422, 96
  %v3424 = vpop.permute.xlu0 %3423
  %v3427 = vunpack.c.l.b16 %v3365
  %v3428 = vunpack.c.l.b16 %v3366
  %v3429 = vpack.c.b16 %v3428, %v3427
  %v3430 = vrot.slane %v3429, 3
  %v3433 = vunpack.c.l.b16 %v3367
  %v3434 = vunpack.c.l.b16 %v3368
  %v3435 = vpack.c.b16 %v3434, %v3433
  %v3436 = vrot.slane %v3435, 3
  %3437 = vrot.lane.b32.xlu0 %v3436, 32
  %v3438 = vpop.permute.xlu0 %3437
  %v3440 = vshrl.u32 %v3429, 16
  %v3442 = vrot.slane %v3440, 3
  %v3443 = vshll.u32 %v3429, 16
  %v3445 = vrot.slane %v3443, 4
  %v3446 = vor.u32 %v3442, %v3445
  %3447 = vrot.lane.b32.xlu0 %v3446, 64
  %v3448 = vpop.permute.xlu0 %3447
  %v3450 = vshrl.u32 %v3435, 16
  %v3452 = vrot.slane %v3450, 3
  %v3453 = vshll.u32 %v3435, 16
  %v3455 = vrot.slane %v3453, 4
  %v3456 = vor.u32 %v3452, %v3455
  %3457 = vrot.lane.b32.xlu0 %v3456, 96
  %v3458 = vpop.permute.xlu0 %3457
  %v3461 = vunpack.c.l.b16 %v3369
  %v3462 = vunpack.c.l.b16 %v3370
  %v3463 = vpack.c.b16 %v3462, %v3461
  %v3464 = vrot.slane %v3463, 3
  %v3467 = vunpack.c.l.b16 %v3371
  %v3468 = vunpack.c.l.b16 %v3372
  %v3469 = vpack.c.b16 %v3468, %v3467
  %v3470 = vrot.slane %v3469, 3
  %3471 = vrot.lane.b32.xlu0 %v3470, 32
  %v3472 = vpop.permute.xlu0 %3471
  %v3474 = vshrl.u32 %v3463, 16
  %v3476 = vrot.slane %v3474, 3
  %v3477 = vshll.u32 %v3463, 16
  %v3479 = vrot.slane %v3477, 4
  %v3480 = vor.u32 %v3476, %v3479
  %3481 = vrot.lane.b32.xlu0 %v3480, 64
  %v3482 = vpop.permute.xlu0 %3481
  %v3484 = vshrl.u32 %v3469, 16
  %v3486 = vrot.slane %v3484, 3
  %v3487 = vshll.u32 %v3469, 16
  %v3489 = vrot.slane %v3487, 4
  %v3490 = vor.u32 %v3486, %v3489
  %3491 = vrot.lane.b32.xlu0 %v3490, 96
  %v3492 = vpop.permute.xlu0 %3491
  %v3495 = vsel %vm1535, %v3361, %v3377
  %v3497 = vsel %vm2100, %v3495, %v3389
  %v3499 = vsel %vm2103, %v3497, %v3398
  %v3502 = vsel %vm1535, %v3363, %v3403
  %v3504 = vsel %vm2100, %v3502, %v3415
  %v3506 = vsel %vm2103, %v3504, %v3424
  %v3509 = vsel %vm1535, %v3430, %v3438
  %v3511 = vsel %vm2100, %v3509, %v3448
  %v3513 = vsel %vm2103, %v3511, %v3458
  %v3516 = vsel %vm1535, %v3464, %v3472
  %v3518 = vsel %vm2100, %v3516, %v3482
  %v3520 = vsel %vm2103, %v3518, %v3492
  %v3525 = vunpack.c.l.b16 %v3499
  %v3526 = vunpack.c.l.b16 %v3506
  %v3527 = vunpack.c.l.b16 %v3513
  %v3528 = vunpack.c.l.b16 %v3520
  %v3529 = vpack.c.b16 %v3526, %v3525
  %v3530 = vpack.c.b16 %v3528, %v3527
  %v3532 = vshrl.u32 %v3529, 16
  %v3534 = vrot.slane %v3532, 6
  %v3535 = vshll.u32 %v3529, 16
  %v3537 = vrot.slane %v3535, 7
  %v3538 = vor.u32 %v3534, %v3537
  %v3540 = vshrl.u32 %v3530, 16
  %v3542 = vrot.slane %v3540, 6
  %v3543 = vshll.u32 %v3530, 16
  %v3545 = vrot.slane %v3543, 7
  %v3546 = vor.u32 %v3542, %v3545
  %vm3549 = vsmask.f32 7942
  %vm3550 = vmand %vm2575, %vm3549
  %vm3551 = vsmask.f32 7958
  %vm3552 = vmand %vm2577, %vm3551
  %vm3553 = vmor %vm3552, %vm3550
  %v3554 = vld [vmem:[#allocation3 + $0x40] sm:$0xee]
  %v3555 = vsel %vm3553, %v3538, %v3554
  %3556 = vst [vmem:[#allocation3 + $0x40] sm:$0xee] %v3555
  %v3557 = vld [vmem:[#allocation3 + $0x48] sm:$0xee]
  %v3558 = vsel %vm3553, %v3546, %v3557
  %3559 = vst [vmem:[#allocation3 + $0x48] sm:$0xee] %v3558
  %v3560 = vld [vmem:[#allocation2 + $0x18] sm:$0x8]
  %v3561 = vld [vmem:[#allocation2 + $0x1c] sm:$0x3]
  %v3562 = vld [vmem:[#allocation2 + $0x3c] sm:$0x8]
  %v3563 = vld [vmem:[#allocation2 + $0x40] sm:$0x3]
  %v3564 = vld [vmem:[#allocation2 + $0x60] sm:$0x8]
  %v3565 = vld [vmem:[#allocation2 + $0x64] sm:$0x3]
  %v3566 = vld [vmem:[#allocation2 + $0x84] sm:$0x8]
  %v3567 = vld [vmem:[#allocation2 + $0x88] sm:$0x3]
  %v3568 = vld [vmem:[#allocation2 + $0x1c] sm:$0xc]
  %v3569 = vld [vmem:[#allocation2 + $0x20] sm:$0x1]
  %v3570 = vld [vmem:[#allocation2 + $0x40] sm:$0xc]
  %v3571 = vld [vmem:[#allocation2 + $0x44] sm:$0x1]
  %v3572 = vld [vmem:[#allocation2 + $0x64] sm:$0xc]
  %v3573 = vld [vmem:[#allocation2 + $0x68] sm:$0x1]
  %v3574 = vld [vmem:[#allocation2 + $0x88] sm:$0xc]
  %v3575 = vld [vmem:[#allocation2 + $0x8c] sm:$0x1]
  %v3578 = vunpack.c.l.b16 %v3560
  %v3579 = vunpack.c.l.b16 %v3561
  %v3580 = vpack.c.b16 %v3579, %v3578
  %v3583 = vunpack.c.l.b16 %v3562
  %v3584 = vunpack.c.l.b16 %v3563
  %v3585 = vpack.c.b16 %v3584, %v3583
  %3586 = vrot.lane.b32.xlu0 %v3585, 32
  %v3587 = vpop.permute.xlu0 %3586
  %v3589 = vshrl.u32 %v3580, 16
  %v3591 = vshll.u32 %v3580, 16
  %v3593 = vrot.slane %v3591, 1
  %v3594 = vor.u32 %v3589, %v3593
  %3595 = vrot.lane.b32.xlu0 %v3594, 64
  %v3596 = vpop.permute.xlu0 %3595
  %v3598 = vshrl.u32 %v3585, 16
  %v3600 = vshll.u32 %v3585, 16
  %v3602 = vrot.slane %v3600, 1
  %v3603 = vor.u32 %v3598, %v3602
  %3604 = vrot.lane.b32.xlu0 %v3603, 96
  %v3605 = vpop.permute.xlu0 %3604
  %v3608 = vunpack.c.l.b16 %v3564
  %v3609 = vunpack.c.l.b16 %v3565
  %v3610 = vpack.c.b16 %v3609, %v3608
  %v3613 = vunpack.c.l.b16 %v3566
  %v3614 = vunpack.c.l.b16 %v3567
  %v3615 = vpack.c.b16 %v3614, %v3613
  %3616 = vrot.lane.b32.xlu0 %v3615, 32
  %v3617 = vpop.permute.xlu0 %3616
  %v3619 = vshrl.u32 %v3610, 16
  %v3621 = vshll.u32 %v3610, 16
  %v3623 = vrot.slane %v3621, 1
  %v3624 = vor.u32 %v3619, %v3623
  %3625 = vrot.lane.b32.xlu0 %v3624, 64
  %v3626 = vpop.permute.xlu0 %3625
  %v3628 = vshrl.u32 %v3615, 16
  %v3630 = vshll.u32 %v3615, 16
  %v3632 = vrot.slane %v3630, 1
  %v3633 = vor.u32 %v3628, %v3632
  %3634 = vrot.lane.b32.xlu0 %v3633, 96
  %v3635 = vpop.permute.xlu0 %3634
  %v3638 = vunpack.c.l.b16 %v3568
  %v3639 = vunpack.c.l.b16 %v3569
  %v3640 = vpack.c.b16 %v3639, %v3638
  %v3641 = vrot.slane %v3640, 7
  %v3644 = vunpack.c.l.b16 %v3570
  %v3645 = vunpack.c.l.b16 %v3571
  %v3646 = vpack.c.b16 %v3645, %v3644
  %v3647 = vrot.slane %v3646, 7
  %3648 = vrot.lane.b32.xlu0 %v3647, 32
  %v3649 = vpop.permute.xlu0 %3648
  %v3651 = vshrl.u32 %v3640, 16
  %v3653 = vrot.slane %v3651, 7
  %v3654 = vshll.u32 %v3640, 16
  %v3656 = vor.u32 %v3653, %v3654
  %3657 = vrot.lane.b32.xlu0 %v3656, 64
  %v3658 = vpop.permute.xlu0 %3657
  %v3660 = vshrl.u32 %v3646, 16
  %v3662 = vrot.slane %v3660, 7
  %v3663 = vshll.u32 %v3646, 16
  %v3665 = vor.u32 %v3662, %v3663
  %3666 = vrot.lane.b32.xlu0 %v3665, 96
  %v3667 = vpop.permute.xlu0 %3666
  %v3670 = vunpack.c.l.b16 %v3572
  %v3671 = vunpack.c.l.b16 %v3573
  %v3672 = vpack.c.b16 %v3671, %v3670
  %v3673 = vrot.slane %v3672, 7
  %v3676 = vunpack.c.l.b16 %v3574
  %v3677 = vunpack.c.l.b16 %v3575
  %v3678 = vpack.c.b16 %v3677, %v3676
  %v3679 = vrot.slane %v3678, 7
  %3680 = vrot.lane.b32.xlu0 %v3679, 32
  %v3681 = vpop.permute.xlu0 %3680
  %v3683 = vshrl.u32 %v3672, 16
  %v3685 = vrot.slane %v3683, 7
  %v3686 = vshll.u32 %v3672, 16
  %v3688 = vor.u32 %v3685, %v3686
  %3689 = vrot.lane.b32.xlu0 %v3688, 64
  %v3690 = vpop.permute.xlu0 %3689
  %v3692 = vshrl.u32 %v3678, 16
  %v3694 = vrot.slane %v3692, 7
  %v3695 = vshll.u32 %v3678, 16
  %v3697 = vor.u32 %v3694, %v3695
  %3698 = vrot.lane.b32.xlu0 %v3697, 96
  %v3699 = vpop.permute.xlu0 %3698
  %v3701 = vsel %vm1535, %v3580, %v3587
  %v3703 = vsel %vm2100, %v3701, %v3596
  %v3705 = vsel %vm2103, %v3703, %v3605
  %v3707 = vsel %vm1535, %v3610, %v3617
  %v3709 = vsel %vm2100, %v3707, %v3626
  %v3711 = vsel %vm2103, %v3709, %v3635
  %v3714 = vsel %vm1535, %v3641, %v3649
  %v3716 = vsel %vm2100, %v3714, %v3658
  %v3718 = vsel %vm2103, %v3716, %v3667
  %v3721 = vsel %vm1535, %v3673, %v3681
  %v3723 = vsel %vm2100, %v3721, %v3690
  %v3725 = vsel %vm2103, %v3723, %v3699
  %v3730 = vunpack.c.l.b16 %v3705
  %v3731 = vunpack.c.l.b16 %v3711
  %v3732 = vunpack.c.l.b16 %v3718
  %v3733 = vunpack.c.l.b16 %v3725
  %v3734 = vunpack.c.h.b16 %v3705
  %v3735 = vunpack.c.h.b16 %v3711
  %v3736 = vunpack.c.h.b16 %v3718
  %v3737 = vunpack.c.h.b16 %v3725
  %v3738 = vpack.c.b16 %v3731, %v3730
  %v3739 = vpack.c.b16 %v3733, %v3732
  %v3740 = vpack.c.b16 %v3735, %v3734
  %v3741 = vpack.c.b16 %v3737, %v3736
  %vm3742 = vmor %vm2958, %vm2961
  %v3743 = vrot.slane %v3738, 7
  %v3744 = vrot.slane %v3743, 4
  %v3745 = vrot.slane %v3740, 7
  %v3746 = vsel %vm3742, %v3744, %v3745
  %v3747 = vrot.slane %v3739, 7
  %v3748 = vrot.slane %v3747, 4
  %v3749 = vrot.slane %v3741, 7
  %v3750 = vsel %vm3742, %v3748, %v3749
  %v3753 = vld [vmem:[#allocation3 + $0x50] sm:$0x77]
  %v3754 = vsel %vm2145, %v3746, %v3753
  %3755 = vst [vmem:[#allocation3 + $0x50] sm:$0x77] %v3754
  %v3756 = vld [vmem:[#allocation3 + $0x58] sm:$0x77]
  %v3757 = vsel %vm2145, %v3750, %v3756
  %3758 = vst [vmem:[#allocation3 + $0x58] sm:$0x77] %v3757
  %v3759 = vld [vmem:[#allocation2 + $0x1c] sm:$0xc]
  %v3760 = vld [vmem:[#allocation2 + $0x20] sm:$0x1]
  %v3761 = vld [vmem:[#allocation2 + $0x40] sm:$0xc]
  %v3762 = vld [vmem:[#allocation2 + $0x44] sm:$0x1]
  %v3763 = vld [vmem:[#allocation2 + $0x64] sm:$0xc]
  %v3764 = vld [vmem:[#allocation2 + $0x68] sm:$0x1]
  %v3765 = vld [vmem:[#allocation2 + $0x88] sm:$0xc]
  %v3766 = vld [vmem:[#allocation2 + $0x8c] sm:$0x1]
  %v3767 = vld [vmem:[#allocation2 + $0x20] sm:$0xe]
  %v3768 = vld [vmem:[#allocation2 + $0x44] sm:$0xe]
  %v3769 = vld [vmem:[#allocation2 + $0x68] sm:$0xe]
  %v3770 = vld [vmem:[#allocation2 + $0x8c] sm:$0xe]
  %v3773 = vunpack.c.l.b16 %v3759
  %v3774 = vunpack.c.l.b16 %v3760
  %v3775 = vpack.c.b16 %v3774, %v3773
  %v3778 = vunpack.c.l.b16 %v3761
  %v3779 = vunpack.c.l.b16 %v3762
  %v3780 = vpack.c.b16 %v3779, %v3778
  %3781 = vrot.lane.b32.xlu0 %v3780, 32
  %v3782 = vpop.permute.xlu0 %3781
  %v3784 = vshrl.u32 %v3775, 16
  %v3786 = vshll.u32 %v3775, 16
  %v3788 = vrot.slane %v3786, 1
  %v3789 = vor.u32 %v3784, %v3788
  %3790 = vrot.lane.b32.xlu0 %v3789, 64
  %v3791 = vpop.permute.xlu0 %3790
  %v3793 = vshrl.u32 %v3780, 16
  %v3795 = vshll.u32 %v3780, 16
  %v3797 = vrot.slane %v3795, 1
  %v3798 = vor.u32 %v3793, %v3797
  %3799 = vrot.lane.b32.xlu0 %v3798, 96
  %v3800 = vpop.permute.xlu0 %3799
  %v3803 = vunpack.c.l.b16 %v3763
  %v3804 = vunpack.c.l.b16 %v3764
  %v3805 = vpack.c.b16 %v3804, %v3803
  %v3808 = vunpack.c.l.b16 %v3765
  %v3809 = vunpack.c.l.b16 %v3766
  %v3810 = vpack.c.b16 %v3809, %v3808
  %3811 = vrot.lane.b32.xlu0 %v3810, 32
  %v3812 = vpop.permute.xlu0 %3811
  %v3814 = vshrl.u32 %v3805, 16
  %v3816 = vshll.u32 %v3805, 16
  %v3818 = vrot.slane %v3816, 1
  %v3819 = vor.u32 %v3814, %v3818
  %3820 = vrot.lane.b32.xlu0 %v3819, 64
  %v3821 = vpop.permute.xlu0 %3820
  %v3823 = vshrl.u32 %v3810, 16
  %v3825 = vshll.u32 %v3810, 16
  %v3827 = vrot.slane %v3825, 1
  %v3828 = vor.u32 %v3823, %v3827
  %3829 = vrot.lane.b32.xlu0 %v3828, 96
  %v3830 = vpop.permute.xlu0 %3829
  %v3832 = vunpack.c.l.b16 %v3767
  %v3833 = vpack.c.b16 %v3832, %v3832
  %v3834 = vrot.slane %v3833, 7
  %v3836 = vunpack.c.l.b16 %v3768
  %v3837 = vpack.c.b16 %v3836, %v3836
  %v3838 = vrot.slane %v3837, 7
  %3839 = vrot.lane.b32.xlu0 %v3838, 32
  %v3840 = vpop.permute.xlu0 %3839
  %v3842 = vshrl.u32 %v3833, 16
  %v3844 = vrot.slane %v3842, 7
  %v3845 = vshll.u32 %v3833, 16
  %v3847 = vor.u32 %v3844, %v3845
  %3848 = vrot.lane.b32.xlu0 %v3847, 64
  %v3849 = vpop.permute.xlu0 %3848
  %v3851 = vshrl.u32 %v3837, 16
  %v3853 = vrot.slane %v3851, 7
  %v3854 = vshll.u32 %v3837, 16
  %v3856 = vor.u32 %v3853, %v3854
  %3857 = vrot.lane.b32.xlu0 %v3856, 96
  %v3858 = vpop.permute.xlu0 %3857
  %v3860 = vunpack.c.l.b16 %v3769
  %v3861 = vpack.c.b16 %v3860, %v3860
  %v3862 = vrot.slane %v3861, 7
  %v3864 = vunpack.c.l.b16 %v3770
  %v3865 = vpack.c.b16 %v3864, %v3864
  %v3866 = vrot.slane %v3865, 7
  %3867 = vrot.lane.b32.xlu0 %v3866, 32
  %v3868 = vpop.permute.xlu0 %3867
  %v3870 = vshrl.u32 %v3861, 16
  %v3872 = vrot.slane %v3870, 7
  %v3873 = vshll.u32 %v3861, 16
  %v3875 = vor.u32 %v3872, %v3873
  %3876 = vrot.lane.b32.xlu0 %v3875, 64
  %v3877 = vpop.permute.xlu0 %3876
  %v3879 = vshrl.u32 %v3865, 16
  %v3881 = vrot.slane %v3879, 7
  %v3882 = vshll.u32 %v3865, 16
  %v3884 = vor.u32 %v3881, %v3882
  %3885 = vrot.lane.b32.xlu0 %v3884, 96
  %v3886 = vpop.permute.xlu0 %3885
  %v3888 = vsel %vm1535, %v3775, %v3782
  %v3890 = vsel %vm2100, %v3888, %v3791
  %v3892 = vsel %vm2103, %v3890, %v3800
  %v3894 = vsel %vm1535, %v3805, %v3812
  %v3896 = vsel %vm2100, %v3894, %v3821
  %v3898 = vsel %vm2103, %v3896, %v3830
  %v3901 = vsel %vm1535, %v3834, %v3840
  %v3903 = vsel %vm2100, %v3901, %v3849
  %v3905 = vsel %vm2103, %v3903, %v3858
  %v3908 = vsel %vm1535, %v3862, %v3868
  %v3910 = vsel %vm2100, %v3908, %v3877
  %v3912 = vsel %vm2103, %v3910, %v3886
  %v3917 = vunpack.c.l.b16 %v3892
  %v3918 = vunpack.c.l.b16 %v3898
  %v3919 = vunpack.c.l.b16 %v3905
  %v3920 = vunpack.c.l.b16 %v3912
  %v3921 = vunpack.c.h.b16 %v3892
  %v3922 = vunpack.c.h.b16 %v3898
  %v3923 = vunpack.c.h.b16 %v3905
  %v3924 = vunpack.c.h.b16 %v3912
  %v3925 = vpack.c.b16 %v3918, %v3917
  %v3926 = vpack.c.b16 %v3920, %v3919
  %v3927 = vpack.c.b16 %v3922, %v3921
  %v3928 = vpack.c.b16 %v3924, %v3923
  %vm3929 = vsmask.f32 4368
  %vm3930 = vmor %vm2959, %vm3929
  %v3932 = vshrl.u32 %v3925, 16
  %v3934 = vrot.slane %v3932, 7
  %v3935 = vshll.u32 %v3925, 16
  %v3937 = vor.u32 %v3934, %v3935
  %v3939 = vshrl.u32 %v3926, 16
  %v3941 = vrot.slane %v3939, 7
  %v3942 = vshll.u32 %v3926, 16
  %v3944 = vor.u32 %v3941, %v3942
  %v3945 = vrot.slane %v3934, 4
  %v3947 = vshll.u32 %v3927, 16
  %v3949 = vsel %vm3930, %v3945, %v3947
  %v3950 = vrot.slane %v3941, 4
  %v3952 = vshll.u32 %v3928, 16
  %v3954 = vsel %vm3930, %v3950, %v3952
  %v3959 = vld [vmem:[#allocation3 + $0x50] sm:$0xcc]
  %v3960 = vsel %vm2385, %v3937, %v3959
  %3961 = vst [vmem:[#allocation3 + $0x50] sm:$0xcc] %v3960
  %v3962 = vld [vmem:[#allocation3 + $0x58] sm:$0xcc]
  %v3963 = vsel %vm2385, %v3944, %v3962
  %3964 = vst [vmem:[#allocation3 + $0x58] sm:$0xcc] %v3963
  %3965 = vst [vmem:[#allocation3 + $0x60] sm:$0x11] %v3949
  %3966 = vst [vmem:[#allocation3 + $0x68] sm:$0x11] %v3954
  %v3967 = vld [vmem:[#allocation3] sm:$0xff]
  %v3968 = vld [vmem:[#allocation3 + $0x8] sm:$0xff]
  %v3969 = vld [vmem:[#allocation3 + $0x10] sm:$0xff]
  %v3970 = vld [vmem:[#allocation3 + $0x18] sm:$0xff]
  %v3971 = vld [vmem:[#allocation3 + $0x20] sm:$0xff]
  %v3972 = vld [vmem:[#allocation3 + $0x28] sm:$0xff]
  %v3973 = vld [vmem:[#allocation3 + $0x30] sm:$0xff]
  %v3974 = vld [vmem:[#allocation3 + $0x38] sm:$0xff]
  %v3975 = vld [vmem:[#allocation3 + $0x40] sm:$0xff]
  %v3976 = vld [vmem:[#allocation3 + $0x48] sm:$0xff]
  %v3977 = vld [vmem:[#allocation3 + $0x50] sm:$0xff]
  %v3978 = vld [vmem:[#allocation3 + $0x58] sm:$0xff]
  %v3979 = vld [vmem:[#allocation3 + $0x60] sm:$0x11]
  %v3980 = vld [vmem:[#allocation3 + $0x68] sm:$0x11]
  %v3981 = vld [vmem:[%s5] sm:$0xf]
  %v3982 = vld [vmem:[%s5 + $0x4] sm:$0xf]
  %v3983 = vld [vmem:[%s5 + $0x8] sm:$0xf]
  %v3984 = vld [vmem:[%s5 + $0xc] sm:$0xf]
  %v3985 = vld [vmem:[%s5 + $0x10] sm:$0xf]
  %v3986 = vld [vmem:[%s5 + $0x14] sm:$0xf]
  %v3987 = vld [vmem:[%s5 + $0x18] sm:$0xf]
  %v3988 = vld [vmem:[%s5 + $0x1c] sm:$0xf]
  %v3989 = vld [vmem:[%s5 + $0x20] sm:$0xf]
  %v3990 = vld [vmem:[%s5 + $0x24] sm:$0xf]
  %v3991 = vld [vmem:[%s5 + $0x28] sm:$0xf]
  %v3992 = vld [vmem:[%s5 + $0x2c] sm:$0xf]
  %v3993 = vld [vmem:[%s5 + $0x30] sm:$0xf]
  %v3994 = vld [vmem:[%s5 + $0x34] sm:$0xf]
  %v3995 = vld [vmem:[%s5 + $0x38] sm:$0xf]
  %v3996 = vld [vmem:[%s5 + $0x3c] sm:$0xf]
  %v3997 = vld [vmem:[%s5 + $0x40] sm:$0xf]
  %v3998 = vld [vmem:[%s5 + $0x44] sm:$0xf]
  %v3999 = vld [vmem:[%s5 + $0x48] sm:$0xf]
  %v4000 = vld [vmem:[%s5 + $0x4c] sm:$0xf]
  %v4001 = vld [vmem:[%s5 + $0x50] sm:$0xf]
  %v4002 = vld [vmem:[%s5 + $0x54] sm:$0xf]
  %v4003 = vld [vmem:[%s5 + $0x58] sm:$0xf]
  %v4004 = vld [vmem:[%s5 + $0x5c] sm:$0xf]
  %v4005 = vld [vmem:[%s5 + $0x60] sm:$0xf]
  %v4006 = vld [vmem:[%s5 + $0x64] sm:$0xf]
  %v4007 = vld [vmem:[%s5 + $0x68] sm:$0xf]
  %v4008 = vld [vmem:[%s5 + $0x6c] sm:$0xf]
  %v4009 = vld [vmem:[%s5 + $0x70] sm:$0xf]
  %v4010 = vld [vmem:[%s5 + $0x74] sm:$0xf]
  %v4011 = vld [vmem:[%s5 + $0x78] sm:$0xf]
  %v4012 = vld [vmem:[%s5 + $0x7c] sm:$0xf]
  %v4013 = vld [vmem:[%s5 + $0x80] sm:$0xf]
  %v4014 = vld [vmem:[%s5 + $0x84] sm:$0xf]
  %v4015 = vld [vmem:[%s5 + $0x88] sm:$0xf]
  %v4016 = vld [vmem:[%s5 + $0x8c] sm:$0xf]
  %v4017 = vld [vmem:[%s5 + $0x90] sm:$0xf]
  %v4018 = vld [vmem:[%s5 + $0x94] sm:$0xf]
  %v4019 = vld [vmem:[%s5 + $0x98] sm:$0xf]
  %v4020 = vld [vmem:[%s5 + $0x9c] sm:$0xf]
  %v4021 = vld [vmem:[%s5 + $0xa0] sm:$0xf]
  %v4022 = vld [vmem:[%s5 + $0xa4] sm:$0xf]
  %v4023 = vld [vmem:[%s5 + $0xa8] sm:$0xf]
  %v4024 = vld [vmem:[%s5 + $0xac] sm:$0xf]
  %v4025 = vld [vmem:[%s5 + $0xb0] sm:$0xf]
  %v4026 = vld [vmem:[%s5 + $0xb4] sm:$0xf]
  %v4027 = vld [vmem:[%s5 + $0xb8] sm:$0xf]
  %v4028 = vld [vmem:[%s5 + $0xbc] sm:$0xf]
  %v4029 = vld [vmem:[%s5 + $0xc0] sm:$0xf]
  %v4030 = vld [vmem:[%s5 + $0xc4] sm:$0xf]
  %v4031 = vld [vmem:[%s5 + $0xc8] sm:$0xf]
  %v4032 = vld [vmem:[%s5 + $0xcc] sm:$0xf]
  %v4033 = vld [vmem:[%s5 + $0xd0] sm:$0xf]
  %v4034 = vld [vmem:[%s5 + $0xd4] sm:$0xf]
  %v4035 = vld [vmem:[%s5 + $0xd8] sm:$0xf]
  %v4036 = vld [vmem:[%s5 + $0xdc] sm:$0xf]
  %v4037 = vld [vmem:[%s5 + $0xe0] sm:$0xf]
  %v4038 = vld [vmem:[%s5 + $0xe4] sm:$0xf]
  %v4039 = vld [vmem:[%s5 + $0xe8] sm:$0xf]
  %v4040 = vld [vmem:[%s5 + $0xec] sm:$0xf]
  %v4041 = vld [vmem:[%s5 + $0xf0] sm:$0xf]
  %v4042 = vld [vmem:[%s5 + $0xf4] sm:$0xf]
  %v4043 = vld [vmem:[%s5 + $0xf8] sm:$0xf]
  %v4044 = vld [vmem:[%s5 + $0xfc] sm:$0xf]
  %v4045 = vld [vmem:[%s6] sm:$0x1]
  %v4047 = vperm.slane %v4045, 0
  %v4063 = vunpack.c.l.b16 %v3967
  %v4064 = vunpack.c.h.b16 %v3967
  %v4065 = vunpack.c.l.b16 %v3968
  %v4066 = vunpack.c.h.b16 %v3968
  %v4067 = vunpack.c.l.b16 %v3969
  %v4068 = vunpack.c.h.b16 %v3969
  %v4069 = vunpack.c.l.b16 %v3970
  %v4070 = vunpack.c.h.b16 %v3970
  %v4071 = vunpack.c.l.b16 %v3971
  %v4072 = vunpack.c.h.b16 %v3971
  %v4073 = vunpack.c.l.b16 %v3972
  %v4074 = vunpack.c.h.b16 %v3972
  %v4075 = vunpack.c.l.b16 %v3973
  %v4076 = vunpack.c.h.b16 %v3973
  %v4077 = vunpack.c.l.b16 %v3974
  %v4078 = vunpack.c.h.b16 %v3974
  %v4079 = vunpack.c.l.b16 %v3975
  %v4080 = vunpack.c.h.b16 %v3975
  %v4081 = vunpack.c.l.b16 %v3976
  %v4082 = vunpack.c.h.b16 %v3976
  %v4083 = vunpack.c.l.b16 %v3977
  %v4084 = vunpack.c.h.b16 %v3977
  %v4085 = vunpack.c.l.b16 %v3978
  %v4086 = vunpack.c.h.b16 %v3978
  %v4087 = vunpack.c.l.b16 %v3979
  %v4088 = vunpack.c.h.b16 %v3979
  %v4089 = vunpack.c.l.b16 %v3980
  %v4090 = vunpack.c.h.b16 %v3980
  %v4091 = vpack.c.b16 %v4067, %v4063
  %v4092 = vpack.c.b16 %v4068, %v4064
  %v4093 = vpack.c.b16 %v4069, %v4065
  %v4094 = vpack.c.b16 %v4070, %v4066
  %v4095 = vpack.c.b16 %v4075, %v4071
  %v4096 = vpack.c.b16 %v4076, %v4072
  %v4097 = vpack.c.b16 %v4077, %v4073
  %v4098 = vpack.c.b16 %v4078, %v4074
  %v4099 = vpack.c.b16 %v4083, %v4079
  %v4100 = vpack.c.b16 %v4084, %v4080
  %v4101 = vpack.c.b16 %v4085, %v4081
  %v4102 = vpack.c.b16 %v4086, %v4082
  %v4103 = vpack.c.b16 %v4087, %v4087
  %v4104 = vpack.c.b16 %v4088, %v4088
  %v4105 = vpack.c.b16 %v4089, %v4089
  %v4106 = vpack.c.b16 %v4090, %v4090
  %v4187 = vunpack.c.l.b16 %v3981
  %v4188 = vunpack.c.l.b16 %v3982
  %v4189 = vunpack.c.l.b16 %v3983
  %v4190 = vunpack.c.l.b16 %v3984
  %v4191 = vunpack.c.l.b16 %v3985
  %v4192 = vunpack.c.l.b16 %v3986
  %v4193 = vunpack.c.l.b16 %v3987
  %v4194 = vunpack.c.l.b16 %v3988
  %v4195 = vunpack.c.l.b16 %v3989
  %v4196 = vunpack.c.l.b16 %v3990
  %v4197 = vunpack.c.l.b16 %v3991
  %v4198 = vunpack.c.l.b16 %v3992
  %v4199 = vunpack.c.l.b16 %v3993
  %v4200 = vunpack.c.l.b16 %v3994
  %v4201 = vunpack.c.l.b16 %v3995
  %v4202 = vunpack.c.l.b16 %v3996
  %v4203 = vunpack.c.l.b16 %v3997
  %v4204 = vunpack.c.l.b16 %v3998
  %v4205 = vunpack.c.l.b16 %v3999
  %v4206 = vunpack.c.l.b16 %v4000
  %v4207 = vunpack.c.l.b16 %v4001
  %v4208 = vunpack.c.l.b16 %v4002
  %v4209 = vunpack.c.l.b16 %v4003
  %v4210 = vunpack.c.l.b16 %v4004
  %v4211 = vunpack.c.l.b16 %v4005
  %v4212 = vunpack.c.l.b16 %v4006
  %v4213 = vunpack.c.l.b16 %v4007
  %v4214 = vunpack.c.l.b16 %v4008
  %v4215 = vunpack.c.l.b16 %v4009
  %v4216 = vunpack.c.l.b16 %v4010
  %v4217 = vunpack.c.l.b16 %v4011
  %v4218 = vunpack.c.l.b16 %v4012
  %v4219 = vunpack.c.l.b16 %v4013
  %v4220 = vunpack.c.l.b16 %v4014
  %v4221 = vunpack.c.l.b16 %v4015
  %v4222 = vunpack.c.l.b16 %v4016
  %v4223 = vunpack.c.l.b16 %v4017
  %v4224 = vunpack.c.l.b16 %v4018
  %v4225 = vunpack.c.l.b16 %v4019
  %v4226 = vunpack.c.l.b16 %v4020
  %v4227 = vunpack.c.l.b16 %v4021
  %v4228 = vunpack.c.l.b16 %v4022
  %v4229 = vunpack.c.l.b16 %v4023
  %v4230 = vunpack.c.l.b16 %v4024
  %v4231 = vunpack.c.l.b16 %v4025
  %v4232 = vunpack.c.l.b16 %v4026
  %v4233 = vunpack.c.l.b16 %v4027
  %v4234 = vunpack.c.l.b16 %v4028
  %v4235 = vunpack.c.l.b16 %v4029
  %v4236 = vunpack.c.l.b16 %v4030
  %v4237 = vunpack.c.l.b16 %v4031
  %v4238 = vunpack.c.l.b16 %v4032
  %v4239 = vunpack.c.l.b16 %v4033
  %v4240 = vunpack.c.l.b16 %v4034
  %v4241 = vunpack.c.l.b16 %v4035
  %v4242 = vunpack.c.l.b16 %v4036
  %v4243 = vunpack.c.l.b16 %v4037
  %v4244 = vunpack.c.l.b16 %v4038
  %v4245 = vunpack.c.l.b16 %v4039
  %v4246 = vunpack.c.l.b16 %v4040
  %v4247 = vunpack.c.l.b16 %v4041
  %v4248 = vunpack.c.l.b16 %v4042
  %v4249 = vunpack.c.l.b16 %v4043
  %v4250 = vunpack.c.l.b16 %v4044
  %v4251 = vpack.c.b16 %v4188, %v4187
  %v4252 = vpack.c.b16 %v4190, %v4189
  %v4253 = vpack.c.b16 %v4192, %v4191
  %v4254 = vpack.c.b16 %v4194, %v4193
  %v4255 = vpack.c.b16 %v4196, %v4195
  %v4256 = vpack.c.b16 %v4198, %v4197
  %v4257 = vpack.c.b16 %v4200, %v4199
  %v4258 = vpack.c.b16 %v4202, %v4201
  %v4259 = vpack.c.b16 %v4204, %v4203
  %v4260 = vpack.c.b16 %v4206, %v4205
  %v4261 = vpack.c.b16 %v4208, %v4207
  %v4262 = vpack.c.b16 %v4210, %v4209
  %v4263 = vpack.c.b16 %v4212, %v4211
  %v4264 = vpack.c.b16 %v4214, %v4213
  %v4265 = vpack.c.b16 %v4216, %v4215
  %v4266 = vpack.c.b16 %v4218, %v4217
  %v4267 = vpack.c.b16 %v4220, %v4219
  %v4268 = vpack.c.b16 %v4222, %v4221
  %v4269 = vpack.c.b16 %v4224, %v4223
  %v4270 = vpack.c.b16 %v4226, %v4225
  %v4271 = vpack.c.b16 %v4228, %v4227
  %v4272 = vpack.c.b16 %v4230, %v4229
  %v4273 = vpack.c.b16 %v4232, %v4231
  %v4274 = vpack.c.b16 %v4234, %v4233
  %v4275 = vpack.c.b16 %v4236, %v4235
  %v4276 = vpack.c.b16 %v4238, %v4237
  %v4277 = vpack.c.b16 %v4240, %v4239
  %v4278 = vpack.c.b16 %v4242, %v4241
  %v4279 = vpack.c.b16 %v4244, %v4243
  %v4280 = vpack.c.b16 %v4246, %v4245
  %v4281 = vpack.c.b16 %v4248, %v4247
  %v4282 = vpack.c.b16 %v4250, %v4249
  %4315 = vmatpush.bf16.msra.mxu0 %v4258
  %4316 = vmatpush.bf16.msra.mxu0 %v4257
  %4317 = vmatpush.bf16.msra.mxu0 %v4256
  %4318 = vmatpush.bf16.msra.mxu0 %v4255
  %4319 = vmatpush.bf16.msra.mxu0 %v4254
  %4320 = vmatpush.bf16.msra.mxu0 %v4253
  %4321 = vmatpush.bf16.msra.mxu0 %v4252
  %4322 = vmatpush.bf16.msra.mxu0 %v4251
  %4323 = vmatmul.bf16.gmra.mxu0 %v4091
  %v4324 = vpop.f32.mrf.mxu0
  %v4325 = vadd.f32 %v4047, %v4324
  %v4326 = vpop.f32.mrf.mxu0
  %v4327 = vadd.f32 %v4047, %v4326
  %4328 = vmatmul.bf16.gmra.mxu0 %v4095
  %v4329 = vpop.f32.mrf.mxu0
  %v4330 = vadd.f32 %v4047, %v4329
  %v4331 = vpop.f32.mrf.mxu0
  %v4332 = vadd.f32 %v4047, %v4331
  %4333 = vmatmul.bf16.gmra.mxu0 %v4099
  %v4334 = vpop.f32.mrf.mxu0
  %v4335 = vadd.f32 %v4047, %v4334
  %v4336 = vpop.f32.mrf.mxu0
  %v4337 = vadd.f32 %v4047, %v4336
  %4338 = vmatmul.bf16.gmra.mxu0 %v4103
  %v4339 = vpop.f32.mrf.mxu0
  %v4340 = vadd.f32 %v4047, %v4339
  %v4341 = vpop.f32.mrf.mxu0
  %4342 = vdwg.mxu0
  %4343 = vmatpush.bf16.msra.mxu0 %v4266
  %4344 = vmatpush.bf16.msra.mxu0 %v4265
  %4345 = vmatpush.bf16.msra.mxu0 %v4264
  %4346 = vmatpush.bf16.msra.mxu0 %v4263
  %4347 = vmatpush.bf16.msra.mxu0 %v4262
  %4348 = vmatpush.bf16.msra.mxu0 %v4261
  %4349 = vmatpush.bf16.msra.mxu0 %v4260
  %4350 = vmatpush.bf16.msra.mxu0 %v4259
  %4351 = vmatmul.bf16.gmra.mxu0 %v4092
  %v4352 = vpop.f32.mrf.mxu0
  %v4353 = vadd.f32 %v4325, %v4352
  %v4354 = vpop.f32.mrf.mxu0
  %v4355 = vadd.f32 %v4327, %v4354
  %4356 = vmatmul.bf16.gmra.mxu0 %v4096
  %v4357 = vpop.f32.mrf.mxu0
  %v4358 = vadd.f32 %v4330, %v4357
  %v4359 = vpop.f32.mrf.mxu0
  %v4360 = vadd.f32 %v4332, %v4359
  %4361 = vmatmul.bf16.gmra.mxu0 %v4100
  %v4362 = vpop.f32.mrf.mxu0
  %v4363 = vadd.f32 %v4335, %v4362
  %v4364 = vpop.f32.mrf.mxu0
  %v4365 = vadd.f32 %v4337, %v4364
  %4366 = vmatmul.bf16.gmra.mxu0 %v4104
  %v4367 = vpop.f32.mrf.mxu0
  %v4368 = vadd.f32 %v4340, %v4367
  %v4369 = vpop.f32.mrf.mxu0
  %4370 = vdwg.mxu0
  %4371 = vmatpush.bf16.msra.mxu0 %v4274
  %4372 = vmatpush.bf16.msra.mxu0 %v4273
  %4373 = vmatpush.bf16.msra.mxu0 %v4272
  %4374 = vmatpush.bf16.msra.mxu0 %v4271
  %4375 = vmatpush.bf16.msra.mxu0 %v4270
  %4376 = vmatpush.bf16.msra.mxu0 %v4269
  %4377 = vmatpush.bf16.msra.mxu0 %v4268
  %4378 = vmatpush.bf16.msra.mxu0 %v4267
  %4379 = vmatmul.bf16.gmra.mxu0 %v4093
  %v4380 = vpop.f32.mrf.mxu0
  %v4381 = vadd.f32 %v4353, %v4380
  %v4382 = vpop.f32.mrf.mxu0
  %v4383 = vadd.f32 %v4355, %v4382
  %4384 = vmatmul.bf16.gmra.mxu0 %v4097
  %v4385 = vpop.f32.mrf.mxu0
  %v4386 = vadd.f32 %v4358, %v4385
  %v4387 = vpop.f32.mrf.mxu0
  %v4388 = vadd.f32 %v4360, %v4387
  %4389 = vmatmul.bf16.gmra.mxu0 %v4101
  %v4390 = vpop.f32.mrf.mxu0
  %v4391 = vadd.f32 %v4363, %v4390
  %v4392 = vpop.f32.mrf.mxu0
  %v4393 = vadd.f32 %v4365, %v4392
  %4394 = vmatmul.bf16.gmra.mxu0 %v4105
  %v4395 = vpop.f32.mrf.mxu0
  %v4396 = vadd.f32 %v4368, %v4395
  %v4397 = vpop.f32.mrf.mxu0
  %4398 = vdwg.mxu0
  %4399 = vmatpush.bf16.msra.mxu0 %v4282
  %4400 = vmatpush.bf16.msra.mxu0 %v4281
  %4401 = vmatpush.bf16.msra.mxu0 %v4280
  %4402 = vmatpush.bf16.msra.mxu0 %v4279
  %4403 = vmatpush.bf16.msra.mxu0 %v4278
  %4404 = vmatpush.bf16.msra.mxu0 %v4277
  %4405 = vmatpush.bf16.msra.mxu0 %v4276
  %4406 = vmatpush.bf16.msra.mxu0 %v4275
  %4407 = vmatmul.bf16.gmra.mxu0 %v4094
  %v4408 = vpop.f32.mrf.mxu0
  %v4409 = vadd.f32 %v4381, %v4408
  %v4410 = vpop.f32.mrf.mxu0
  %v4411 = vadd.f32 %v4383, %v4410
  %4412 = vmatmul.bf16.gmra.mxu0 %v4098
  %v4413 = vpop.f32.mrf.mxu0
  %v4414 = vadd.f32 %v4386, %v4413
  %v4415 = vpop.f32.mrf.mxu0
  %v4416 = vadd.f32 %v4388, %v4415
  %4417 = vmatmul.bf16.gmra.mxu0 %v4102
  %v4418 = vpop.f32.mrf.mxu0
  %v4419 = vadd.f32 %v4391, %v4418
  %v4420 = vpop.f32.mrf.mxu0
  %v4421 = vadd.f32 %v4393, %v4420
  %4422 = vmatmul.bf16.gmra.mxu0 %v4106
  %v4423 = vpop.f32.mrf.mxu0
  %v4424 = vadd.f32 %v4396, %v4423
  %v4425 = vpop.f32.mrf.mxu0
  %4426 = vdwg.mxu0
  %v4427 = vmax.f32 %v4409, 0.0
  %v4428 = vmax.f32 %v4411, 0.0
  %v4429 = vmax.f32 %v4414, 0.0
  %v4430 = vmax.f32 %v4416, 0.0
  %v4431 = vmax.f32 %v4419, 0.0
  %v4432 = vmax.f32 %v4421, 0.0
  %v4433 = vmax.f32 %v4424, 0.0
  %v4434 = vld [vmem:[%s7] sm:$0x1]
  %v4435 = vld [vmem:[%s8] sm:$0x1]
  %v4436 = vsel %vm2100, %v4427, 0.0
  %v4437 = vsel %vm2100, %v4428, 0.0
  %v4438 = vadd.f32 %v4436, %v4437
  %v4439 = vsel %vm2100, %v4429, 0.0
  %v4440 = vadd.f32 %v4438, %v4439
  %v4441 = vsel %vm2100, %v4430, 0.0
  %v4442 = vadd.f32 %v4440, %v4441
  %v4443 = vsel %vm2100, %v4431, 0.0
  %v4444 = vadd.f32 %v4442, %v4443
  %v4445 = vsel %vm2100, %v4432, 0.0
  %v4446 = vadd.f32 %v4444, %v4445
  %vm4447 = vcmask 517120
  %v4448 = vsel %vm4447, %v4433, 0.0
  %v4449 = vadd.f32 %v4446, %v4448
  %v4450 = vrot.slane %v4449, 4
  %v4451 = vadd.f32 %v4449, %v4450
  %v4452 = vrot.slane %v4451, 2
  %v4453 = vadd.f32 %v4451, %v4452
  %v4454 = vrot.slane %v4453, 1
  %v4455 = vadd.f32 %v4453, %v4454
  %v4456 = vmul.f32 %v4455, 0.02
  %v4457 = vmul.f32 %v4427, %v4427
  %v4458 = vmul.f32 %v4428, %v4428
  %v4459 = vmul.f32 %v4429, %v4429
  %v4460 = vmul.f32 %v4430, %v4430
  %v4461 = vmul.f32 %v4431, %v4431
  %v4462 = vmul.f32 %v4432, %v4432
  %v4463 = vmul.f32 %v4433, %v4433
  %v4464 = vsel %vm2100, %v4457, 0.0
  %v4465 = vsel %vm2100, %v4458, 0.0
  %v4466 = vadd.f32 %v4464, %v4465
  %v4467 = vsel %vm2100, %v4459, 0.0
  %v4468 = vadd.f32 %v4466, %v4467
  %v4469 = vsel %vm2100, %v4460, 0.0
  %v4470 = vadd.f32 %v4468, %v4469
  %v4471 = vsel %vm2100, %v4461, 0.0
  %v4472 = vadd.f32 %v4470, %v4471
  %v4473 = vsel %vm2100, %v4462, 0.0
  %v4474 = vadd.f32 %v4472, %v4473
  %v4475 = vsel %vm4447, %v4463, 0.0
  %v4476 = vadd.f32 %v4474, %v4475
  %v4477 = vrot.slane %v4476, 4
  %v4478 = vadd.f32 %v4476, %v4477
  %v4479 = vrot.slane %v4478, 2
  %v4480 = vadd.f32 %v4478, %v4479
  %v4481 = vrot.slane %v4480, 1
  %v4482 = vadd.f32 %v4480, %v4481
  %v4483 = vmul.f32 %v4482, 0.02
  %v4484 = vmul.f32 %v4456, %v4456
  %v4485 = vsub.f32 %v4483, %v4484
  %v4486 = vmax.f32 %v4485, 0.0
  %v4487 = vsub.f32 %v4427, %v4456
  %v4488 = vsub.f32 %v4428, %v4456
  %v4489 = vsub.f32 %v4429, %v4456
  %v4490 = vsub.f32 %v4430, %v4456
  %v4491 = vsub.f32 %v4431, %v4456
  %v4492 = vsub.f32 %v4432, %v4456
  %v4493 = vsub.f32 %v4433, %v4456
  %v4495 = vperm.slane %v4434, 0
  %v4497 = vmul.f32 %v4495, %v4487
  %v4498 = vmul.f32 %v4495, %v4488
  %v4499 = vmul.f32 %v4495, %v4489
  %v4500 = vmul.f32 %v4495, %v4490
  %v4501 = vmul.f32 %v4495, %v4491
  %v4502 = vmul.f32 %v4495, %v4492
  %v4503 = vmul.f32 %v4495, %v4493
  %v4504 = vadd.f32 %v4486, 1e-05
  %v4505 = vrsqrt.pop %v4504
  %v4506 = vmul.f32 %v4505, %v4504
  %v4507 = vmul.f32 %v4506, %v4505
  %v4508 = vmul.f32 0.5, %v4507
  %v4509 = vsub.f32 1.5, %v4508
  %v4510 = vmul.f32 %v4505, %v4509
  %vm4511 = vweird.f32 %v4504
  %vm4512 = vweird.f32 %v4505
  %vm4513 = vmor %vm4511, %vm4512
  %v4514 = vsel %vm4513, %v4505, %v4510
  %v4515 = vmul.f32 %v4497, %v4514
  %v4516 = vmul.f32 %v4498, %v4514
  %v4517 = vmul.f32 %v4499, %v4514
  %v4518 = vmul.f32 %v4500, %v4514
  %v4519 = vmul.f32 %v4501, %v4514
  %v4520 = vmul.f32 %v4502, %v4514
  %v4521 = vmul.f32 %v4503, %v4514
  %v4523 = vperm.slane %v4435, 0
  %v4525 = vadd.f32 %v4515, %v4523
  %v4526 = vadd.f32 %v4516, %v4523
  %v4527 = vadd.f32 %v4517, %v4523
  %v4528 = vadd.f32 %v4518, %v4523
  %v4529 = vadd.f32 %v4519, %v4523
  %v4530 = vadd.f32 %v4520, %v4523
  %v4531 = vadd.f32 %v4521, %v4523
  %v4532 = vpack.c.bf16 %v4525, %v4525
  %v4533 = vpack.c.bf16 %v4526, %v4526
  %v4534 = vpack.c.bf16 %v4527, %v4527
  %v4535 = vpack.c.bf16 %v4528, %v4528
  %v4536 = vpack.c.bf16 %v4529, %v4529
  %v4537 = vpack.c.bf16 %v4530, %v4530
  %v4538 = vpack.c.bf16 %v4531, %v4531
  %vm4539 = vcmask 519168
  %4540 = vst.msk [vmem:[#allocation4] sm:$0xf] %vm4539, %v4532
  %4541 = vst.msk [vmem:[#allocation4 + $0x4] sm:$0xf] %vm4539, %v4533
  %4542 = vst.msk [vmem:[#allocation4 + $0x8] sm:$0xf] %vm4539, %v4534
  %4543 = vst.msk [vmem:[#allocation4 + $0xc] sm:$0xf] %vm4539, %v4535
  %4544 = vst.msk [vmem:[#allocation4 + $0x10] sm:$0xf] %vm4539, %v4536
  %4545 = vst.msk [vmem:[#allocation4 + $0x14] sm:$0xf] %vm4539, %v4537
  %vm4546 = vcmask 516096
  %4547 = vst.msk [vmem:[#allocation4 + $0x18] sm:$0x1] %vm4546, %v4538
  %v4548 = vld [vmem:[#allocation4] sm:$0x3]
  %v4549 = vld [vmem:[#allocation4] sm:$0x6]
  %v4550 = vld [vmem:[#allocation4] sm:$0xc]
  %v4551 = vld [vmem:[#allocation4] sm:$0x8]
  %v4552 = vld [vmem:[#allocation4 + $0x4] sm:$0x1]
  %v4553 = vld [vmem:[#allocation4 + $0x4] sm:$0x6]
  %v4554 = vld [vmem:[#allocation4 + $0x4] sm:$0xc]
  %v4556 = vunpack.c.l.b16 %v4548
  %v4557 = vpack.c.b16 %v4556, %v4556
  %v4559 = vshrl.u32 %v4557, 16
  %v4561 = vshll.u32 %v4557, 16
  %v4563 = vrot.slane %v4561, 1
  %v4564 = vor.u32 %v4559, %v4563
  %4565 = vrot.lane.b32.xlu0 %v4564, 64
  %v4566 = vpop.permute.xlu0 %4565
  %v4568 = vunpack.c.l.b16 %v4549
  %v4569 = vpack.c.b16 %v4568, %v4568
  %v4570 = vrot.slane %v4569, 1
  %v4572 = vunpack.c.l.b16 %v4550
  %v4573 = vpack.c.b16 %v4572, %v4572
  %v4575 = vshrl.u32 %v4573, 16
  %v4577 = vrot.slane %v4575, 2
  %v4578 = vshll.u32 %v4573, 16
  %v4580 = vrot.slane %v4578, 3
  %v4581 = vor.u32 %v4577, %v4580
  %4582 = vrot.lane.b32.xlu0 %v4581, 64
  %v4583 = vpop.permute.xlu0 %4582
  %v4586 = vunpack.c.l.b16 %v4551
  %v4587 = vunpack.c.l.b16 %v4552
  %v4588 = vpack.c.b16 %v4587, %v4586
  %v4589 = vrot.slane %v4588, 3
  %v4591 = vshrl.u32 %v4588, 16
  %v4593 = vrot.slane %v4591, 3
  %v4594 = vshll.u32 %v4588, 16
  %v4596 = vrot.slane %v4594, 4
  %v4597 = vor.u32 %v4593, %v4596
  %4598 = vrot.lane.b32.xlu0 %v4597, 64
  %v4599 = vpop.permute.xlu0 %4598
  %v4601 = vunpack.c.l.b16 %v4553
  %v4602 = vpack.c.b16 %v4601, %v4601
  %v4603 = vrot.slane %v4602, 1
  %v4605 = vshrl.u32 %v4602, 16
  %v4607 = vrot.slane %v4605, 1
  %v4608 = vshll.u32 %v4602, 16
  %v4610 = vrot.slane %v4608, 2
  %v4611 = vor.u32 %v4607, %v4610
  %4612 = vrot.lane.b32.xlu0 %v4611, 64
  %v4613 = vpop.permute.xlu0 %4612
  %v4615 = vunpack.c.l.b16 %v4554
  %v4616 = vpack.c.b16 %v4615, %v4615
  %v4617 = vrot.slane %v4616, 2
  %v4620 = vsel %vm2100, %v4548, %v4566
  %v4623 = vsel %vm2100, %v4570, %v4583
  %v4626 = vsel %vm2100, %v4589, %v4599
  %v4629 = vsel %vm2100, %v4603, %v4613
  %v4634 = vunpack.c.l.b16 %v4620
  %v4635 = vunpack.c.l.b16 %v4623
  %v4636 = vunpack.c.l.b16 %v4626
  %v4637 = vunpack.c.l.b16 %v4629
  %v4638 = vunpack.c.l.b16 %v4617
  %v4639 = vpack.c.b16 %v4635, %v4634
  %v4640 = vpack.c.b16 %v4637, %v4636
  %v4641 = vpack.c.b16 %v4638, %v4638
  %v4645 = vld [vmem:[#allocation5] sm:$0x33]
  %v4646 = vsel %vm3354, %v4639, %v4645
  %4647 = vst [vmem:[#allocation5] sm:$0x33] %v4646
  %v4648 = vld [vmem:[#allocation5 + $0x8] sm:$0x33]
  %v4649 = vsel %vm3354, %v4640, %v4648
  %4650 = vst [vmem:[#allocation5 + $0x8] sm:$0x33] %v4649
  %vm4651 = vcmask 517120
  %vm4652 = vmand %vm4651, %vm3349
  %v4653 = vld [vmem:[#allocation5 + $0x10] sm:$0x3]
  %v4654 = vsel %vm4652, %v4641, %v4653
  %4655 = vst [vmem:[#allocation5 + $0x10] sm:$0x3] %v4654
  %v4656 = vld [vmem:[#allocation4] sm:$0xc]
  %v4657 = vld [vmem:[#allocation4] sm:$0x8]
  %v4658 = vld [vmem:[#allocation4 + $0x4] sm:$0x1]
  %v4659 = vld [vmem:[#allocation4 + $0x4] sm:$0x6]
  %v4660 = vld [vmem:[#allocation4 + $0x4] sm:$0xc]
  %v4661 = vld [vmem:[#allocation4 + $0x4] sm:$0x8]
  %v4662 = vld [vmem:[#allocation4 + $0x8] sm:$0x1]
  %v4663 = vld [vmem:[#allocation4 + $0x8] sm:$0x3]
  %v4666 = vunpack.c.l.b16 %v4657
  %v4667 = vunpack.c.l.b16 %v4658
  %v4668 = vpack.c.b16 %v4667, %v4666
  %v4670 = vshrl.u32 %v4668, 16
  %v4672 = vshll.u32 %v4668, 16
  %v4674 = vrot.slane %v4672, 1
  %v4675 = vor.u32 %v4670, %v4674
  %4676 = vrot.lane.b32.xlu0 %v4675, 64
  %v4677 = vpop.permute.xlu0 %4676
  %v4678 = vrot.slane %v4668, 1
  %v4680 = vunpack.c.l.b16 %v4659
  %v4681 = vpack.c.b16 %v4680, %v4680
  %v4683 = vshrl.u32 %v4681, 16
  %v4685 = vrot.slane %v4683, 6
  %v4686 = vshll.u32 %v4681, 16
  %v4688 = vrot.slane %v4686, 7
  %v4689 = vor.u32 %v4685, %v4688
  %4690 = vrot.lane.b32.xlu0 %v4689, 64
  %v4691 = vpop.permute.xlu0 %4690
  %v4692 = vrot.slane %v4681, 7
  %v4694 = vunpack.c.l.b16 %v4660
  %v4695 = vpack.c.b16 %v4694, %v4694
  %v4697 = vshrl.u32 %v4695, 16
  %v4699 = vrot.slane %v4697, 7
  %v4700 = vshll.u32 %v4695, 16
  %v4702 = vor.u32 %v4699, %v4700
  %4703 = vrot.lane.b32.xlu0 %v4702, 64
  %v4704 = vpop.permute.xlu0 %4703
  %v4707 = vunpack.c.l.b16 %v4661
  %v4708 = vunpack.c.l.b16 %v4662
  %v4709 = vpack.c.b16 %v4708, %v4707
  %v4710 = vrot.slane %v4709, 1
  %v4712 = vunpack.c.l.b16 %v4663
  %v4713 = vpack.c.b16 %v4712, %v4712
  %v4715 = vshrl.u32 %v4713, 16
  %v4717 = vrot.slane %v4715, 5
  %v4718 = vshll.u32 %v4713, 16
  %v4720 = vrot.slane %v4718, 6
  %v4721 = vor.u32 %v4717, %v4720
  %4722 = vrot.lane.b32.xlu0 %v4721, 64
  %v4723 = vpop.permute.xlu0 %4722
  %v4724 = vrot.slane %v4713, 6
  %v4727 = vsel %vm2100, %v4656, %v4677
  %v4730 = vsel %vm2100, %v4678, %v4691
  %v4733 = vsel %vm2100, %v4692, %v4704
  %v4736 = vsel %vm2100, %v4710, %v4723
  %v4741 = vunpack.c.l.b16 %v4727
  %v4742 = vunpack.c.l.b16 %v4730
  %v4743 = vunpack.c.l.b16 %v4733
  %v4744 = vunpack.c.l.b16 %v4736
  %v4745 = vunpack.c.l.b16 %v4724
  %v4746 = vpack.c.b16 %v4742, %v4741
  %v4747 = vpack.c.b16 %v4744, %v4743
  %v4748 = vpack.c.b16 %v4745, %v4745
  %v4749 = vrot.slane %v4746, 5
  %v4750 = vrot.slane %v4749, 4
  %v4751 = vrot.slane %v4747, 5
  %v4752 = vrot.slane %v4751, 4
  %v4753 = vrot.slane %v4748, 5
  %v4754 = vrot.slane %v4753, 4
  %vm4758 = vcmask 1042433
  %vm4759 = vmand %vm4758, %vm3549
  %vm4760 = vcmask 1046533
  %vm4761 = vmand %vm4760, %vm3551
  %vm4762 = vmor %vm4761, %vm4759
  %v4763 = vld [vmem:[#allocation5] sm:$0x66]
  %v4764 = vsel %vm4762, %v4750, %v4763
  %4765 = vst [vmem:[#allocation5] sm:$0x66] %v4764
  %v4766 = vld [vmem:[#allocation5 + $0x8] sm:$0x66]
  %v4767 = vsel %vm4762, %v4752, %v4766
  %4768 = vst [vmem:[#allocation5 + $0x8] sm:$0x66] %v4767
  %vm4769 = vcmask 518145
  %vm4770 = vmand %vm4769, %vm3549
  %v4771 = vld [vmem:[#allocation5 + $0x10] sm:$0x6]
  %v4772 = vsel %vm4770, %v4754, %v4771
  %4773 = vst [vmem:[#allocation5 + $0x10] sm:$0x6] %v4772
  %v4774 = vld [vmem:[#allocation4 + $0x4] sm:$0x6]
  %v4775 = vld [vmem:[#allocation4 + $0x4] sm:$0xc]
  %v4776 = vld [vmem:[#allocation4 + $0x4] sm:$0x8]
  %v4777 = vld [vmem:[#allocation4 + $0x8] sm:$0x1]
  %v4778 = vld [vmem:[#allocation4 + $0x8] sm:$0x3]
  %v4779 = vld [vmem:[#allocation4 + $0x8] sm:$0xc]
  %v4780 = vld [vmem:[#allocation4 + $0x8] sm:$0x8]
  %v4781 = vld [vmem:[#allocation4 + $0xc] sm:$0x1]
  %v4783 = vunpack.c.l.b16 %v4774
  %v4784 = vpack.c.b16 %v4783, %v4783
  %v4786 = vshrl.u32 %v4784, 16
  %v4788 = vshll.u32 %v4784, 16
  %v4790 = vrot.slane %v4788, 1
  %v4791 = vor.u32 %v4786, %v4790
  %4792 = vrot.lane.b32.xlu0 %v4791, 64
  %v4793 = vpop.permute.xlu0 %4792
  %v4795 = vunpack.c.l.b16 %v4775
  %v4796 = vpack.c.b16 %v4795, %v4795
  %v4797 = vrot.slane %v4796, 1
  %v4800 = vunpack.c.l.b16 %v4776
  %v4801 = vunpack.c.l.b16 %v4777
  %v4802 = vpack.c.b16 %v4801, %v4800
  %v4804 = vshrl.u32 %v4802, 16
  %v4806 = vrot.slane %v4804, 2
  %v4807 = vshll.u32 %v4802, 16
  %v4809 = vrot.slane %v4807, 3
  %v4810 = vor.u32 %v4806, %v4809
  %4811 = vrot.lane.b32.xlu0 %v4810, 64
  %v4812 = vpop.permute.xlu0 %4811
  %v4814 = vunpack.c.l.b16 %v4778
  %v4815 = vpack.c.b16 %v4814, %v4814
  %v4816 = vrot.slane %v4815, 7
  %v4818 = vshrl.u32 %v4815, 16
  %v4820 = vrot.slane %v4818, 7
  %v4821 = vshll.u32 %v4815, 16
  %v4823 = vor.u32 %v4820, %v4821
  %4824 = vrot.lane.b32.xlu0 %v4823, 64
  %v4825 = vpop.permute.xlu0 %4824
  %v4827 = vunpack.c.l.b16 %v4779
  %v4828 = vpack.c.b16 %v4827, %v4827
  %v4829 = vrot.slane %v4828, 1
  %v4831 = vshrl.u32 %v4828, 16
  %v4833 = vrot.slane %v4831, 1
  %v4834 = vshll.u32 %v4828, 16
  %v4836 = vrot.slane %v4834, 2
  %v4837 = vor.u32 %v4833, %v4836
  %4838 = vrot.lane.b32.xlu0 %v4837, 64
  %v4839 = vpop.permute.xlu0 %4838
  %v4842 = vunpack.c.l.b16 %v4780
  %v4843 = vunpack.c.l.b16 %v4781
  %v4844 = vpack.c.b16 %v4843, %v4842
  %v4845 = vrot.slane %v4844, 2
  %v4848 = vsel %vm2100, %v4774, %v4793
  %v4851 = vsel %vm2100, %v4797, %v4812
  %v4854 = vsel %vm2100, %v4816, %v4825
  %v4857 = vsel %vm2100, %v4829, %v4839
  %v4862 = vunpack.c.l.b16 %v4848
  %v4863 = vunpack.c.l.b16 %v4851
  %v4864 = vunpack.c.l.b16 %v4854
  %v4865 = vunpack.c.l.b16 %v4857
  %v4866 = vunpack.c.l.b16 %v4845
  %v4867 = vpack.c.b16 %v4863, %v4862
  %v4868 = vpack.c.b16 %v4865, %v4864
  %v4869 = vpack.c.b16 %v4866, %v4866
  %v4870 = vrot.slane %v4867, 6
  %v4871 = vrot.slane %v4868, 6
  %v4872 = vrot.slane %v4869, 6
  %v4873 = vrot.slane %v4870, 4
  %v4874 = vrot.slane %v4871, 4
  %v4875 = vrot.slane %v4872, 4
  %4882 = vst [vmem:[#allocation5] sm:$0x88] %v4870
  %4883 = vst [vmem:[#allocation5 + $0x8] sm:$0x88] %v4871
  %vm4884 = vcmask 519171
  %4885 = vst.msk [vmem:[#allocation5 + $0x10] sm:$0x8] %vm4884, %v4872
  %v4886 = vld [vmem:[#allocation5 + $0x14] sm:$0x11]
  %v4887 = vsel %vm2964, %v4873, %v4886
  %4888 = vst [vmem:[#allocation5 + $0x14] sm:$0x11] %v4887
  %v4889 = vld [vmem:[#allocation5 + $0x1c] sm:$0x11]
  %v4890 = vsel %vm2964, %v4874, %v4889
  %4891 = vst [vmem:[#allocation5 + $0x1c] sm:$0x11] %v4890
  %vm4892 = vcmask 516096
  %vm4893 = vmand %vm4892, %vm2959
  %v4894 = vld [vmem:[#allocation5 + $0x24] sm:$0x1]
  %v4895 = vsel %vm4893, %v4875, %v4894
  %4896 = vst [vmem:[#allocation5 + $0x24] sm:$0x1] %v4895
  %v4897 = vld [vmem:[#allocation4 + $0xc] sm:$0x3]
  %v4898 = vld [vmem:[#allocation4 + $0xc] sm:$0x6]
  %v4899 = vld [vmem:[#allocation4 + $0xc] sm:$0x8]
  %v4900 = vld [vmem:[#allocation4 + $0x10] sm:$0x1]
  %v4901 = vld [vmem:[#allocation4 + $0x10] sm:$0x3]
  %v4902 = vld [vmem:[#allocation4 + $0x10] sm:$0x6]
  %v4903 = vld [vmem:[#allocation4 + $0x10] sm:$0xc]
  %v4905 = vunpack.c.l.b16 %v4898
  %v4906 = vpack.c.b16 %v4905, %v4905
  %v4908 = vshrl.u32 %v4906, 16
  %v4910 = vshll.u32 %v4906, 16
  %v4912 = vrot.slane %v4910, 1
  %v4913 = vor.u32 %v4908, %v4912
  %4914 = vrot.lane.b32.xlu0 %v4913, 64
  %v4915 = vpop.permute.xlu0 %4914
  %v4916 = vrot.slane %v4906, 1
  %v4919 = vunpack.c.l.b16 %v4899
  %v4920 = vunpack.c.l.b16 %v4900
  %v4921 = vpack.c.b16 %v4920, %v4919
  %v4923 = vshrl.u32 %v4921, 16
  %v4925 = vrot.slane %v4923, 2
  %v4926 = vshll.u32 %v4921, 16
  %v4928 = vrot.slane %v4926, 3
  %v4929 = vor.u32 %v4925, %v4928
  %4930 = vrot.lane.b32.xlu0 %v4929, 64
  %v4931 = vpop.permute.xlu0 %4930
  %v4932 = vrot.slane %v4921, 3
  %v4934 = vunpack.c.l.b16 %v4901
  %v4935 = vpack.c.b16 %v4934, %v4934
  %v4937 = vshrl.u32 %v4935, 16
  %v4939 = vrot.slane %v4937, 7
  %v4940 = vshll.u32 %v4935, 16
  %v4942 = vor.u32 %v4939, %v4940
  %4943 = vrot.lane.b32.xlu0 %v4942, 64
  %v4944 = vpop.permute.xlu0 %4943
  %v4946 = vunpack.c.l.b16 %v4902
  %v4947 = vpack.c.b16 %v4946, %v4946
  %v4948 = vrot.slane %v4947, 1
  %v4950 = vunpack.c.l.b16 %v4903
  %v4951 = vpack.c.b16 %v4950, %v4950
  %v4953 = vshrl.u32 %v4951, 16
  %v4955 = vrot.slane %v4953, 1
  %v4956 = vshll.u32 %v4951, 16
  %v4958 = vrot.slane %v4956, 2
  %v4959 = vor.u32 %v4955, %v4958
  %4960 = vrot.lane.b32.xlu0 %v4959, 64
  %v4961 = vpop.permute.xlu0 %4960
  %v4962 = vrot.slane %v4951, 2
  %v4965 = vsel %vm2100, %v4897, %v4915
  %v4968 = vsel %vm2100, %v4916, %v4931
  %v4971 = vsel %vm2100, %v4932, %v4944
  %v4974 = vsel %vm2100, %v4948, %v4961
  %v4979 = vunpack.c.l.b16 %v4965
  %v4980 = vunpack.c.l.b16 %v4968
  %v4981 = vunpack.c.l.b16 %v4971
  %v4982 = vunpack.c.l.b16 %v4974
  %v4983 = vunpack.c.l.b16 %v4962
  %v4984 = vpack.c.b16 %v4980, %v4979
  %v4985 = vpack.c.b16 %v4982, %v4981
  %v4986 = vpack.c.b16 %v4983, %v4983
  %vm4990 = vmand %vm3348, %vm3173
  %vm4991 = vmand %vm3351, %vm3175
  %vm4992 = vmor %vm4991, %vm4990
  %v4993 = vld [vmem:[#allocation5 + $0x14] sm:$0x33]
  %v4994 = vsel %vm4992, %v4984, %v4993
  %4995 = vst [vmem:[#allocation5 + $0x14] sm:$0x33] %v4994
  %v4996 = vld [vmem:[#allocation5 + $0x1c] sm:$0x33]
  %v4997 = vsel %vm4992, %v4985, %v4996
  %4998 = vst [vmem:[#allocation5 + $0x1c] sm:$0x33] %v4997
  %vm4999 = vmand %vm4651, %vm3173
  %v5000 = vld [vmem:[#allocation5 + $0x24] sm:$0x3]
  %v5001 = vsel %vm4999, %v4986, %v5000
  %5002 = vst [vmem:[#allocation5 + $0x24] sm:$0x3] %v5001
  %v5003 = vld [vmem:[#allocation4 + $0xc] sm:$0x8]
  %v5004 = vld [vmem:[#allocation4 + $0x10] sm:$0x1]
  %v5005 = vld [vmem:[#allocation4 + $0x10] sm:$0x3]
  %v5006 = vld [vmem:[#allocation4 + $0x10] sm:$0x6]
  %v5007 = vld [vmem:[#allocation4 + $0x10] sm:$0xc]
  %v5008 = vld [vmem:[#allocation4 + $0x14] sm:$0x3]
  %v5009 = vld [vmem:[#allocation4 + $0x14] sm:$0x6]
  %v5012 = vunpack.c.l.b16 %v5003
  %v5013 = vunpack.c.l.b16 %v5004
  %v5014 = vpack.c.b16 %v5013, %v5012
  %v5016 = vshrl.u32 %v5014, 16
  %v5018 = vshll.u32 %v5014, 16
  %v5020 = vrot.slane %v5018, 1
  %v5021 = vor.u32 %v5016, %v5020
  %5022 = vrot.lane.b32.xlu0 %v5021, 64
  %v5023 = vpop.permute.xlu0 %5022
  %v5025 = vunpack.c.l.b16 %v5005
  %v5026 = vpack.c.b16 %v5025, %v5025
  %v5027 = vrot.slane %v5026, 5
  %v5029 = vunpack.c.l.b16 %v5006
  %v5030 = vpack.c.b16 %v5029, %v5029
  %v5032 = vshrl.u32 %v5030, 16
  %v5034 = vrot.slane %v5032, 6
  %v5035 = vshll.u32 %v5030, 16
  %v5037 = vrot.slane %v5035, 7
  %v5038 = vor.u32 %v5034, %v5037
  %5039 = vrot.lane.b32.xlu0 %v5038, 64
  %v5040 = vpop.permute.xlu0 %5039
  %v5042 = vunpack.c.l.b16 %v5007
  %v5043 = vpack.c.b16 %v5042, %v5042
  %v5044 = vrot.slane %v5043, 7
  %v5046 = vshrl.u32 %v5043, 16
  %v5048 = vrot.slane %v5046, 7
  %v5049 = vshll.u32 %v5043, 16
  %v5051 = vor.u32 %v5048, %v5049
  %5052 = vrot.lane.b32.xlu0 %v5051, 64
  %v5053 = vpop.permute.xlu0 %5052
  %v5055 = vunpack.c.l.b16 %v5008
  %v5056 = vpack.c.b16 %v5055, %v5055
  %v5057 = vrot.slane %v5056, 5
  %v5059 = vshrl.u32 %v5056, 16
  %v5061 = vrot.slane %v5059, 5
  %v5062 = vshll.u32 %v5056, 16
  %v5064 = vrot.slane %v5062, 6
  %v5065 = vor.u32 %v5061, %v5064
  %5066 = vrot.lane.b32.xlu0 %v5065, 64
  %v5067 = vpop.permute.xlu0 %5066
  %v5069 = vunpack.c.l.b16 %v5009
  %v5070 = vpack.c.b16 %v5069, %v5069
  %v5071 = vrot.slane %v5070, 6
  %v5073 = vsel %vm2100, %v5014, %v5023
  %v5076 = vsel %vm2100, %v5027, %v5040
  %v5079 = vsel %vm2100, %v5044, %v5053
  %v5082 = vsel %vm2100, %v5057, %v5067
  %v5087 = vunpack.c.l.b16 %v5073
  %v5088 = vunpack.c.l.b16 %v5076
  %v5089 = vunpack.c.l.b16 %v5079
  %v5090 = vunpack.c.l.b16 %v5082
  %v5091 = vunpack.c.l.b16 %v5071
  %v5092 = vunpack.c.h.b16 %v5073
  %v5093 = vunpack.c.h.b16 %v5076
  %v5094 = vunpack.c.h.b16 %v5079
  %v5095 = vunpack.c.h.b16 %v5082
  %v5096 = vunpack.c.h.b16 %v5071
  %v5097 = vpack.c.b16 %v5088, %v5087
  %v5098 = vpack.c.b16 %v5090, %v5089
  %v5099 = vpack.c.b16 %v5091, %v5091
  %v5100 = vpack.c.b16 %v5093, %v5092
  %v5101 = vpack.c.b16 %v5095, %v5094
  %v5102 = vpack.c.b16 %v5096, %v5096
  %v5103 = vrot.slane %v5097, 5
  %v5104 = vrot.slane %v5103, 4
  %v5105 = vrot.slane %v5100, 5
  %v5106 = vsel %vm2564, %v5104, %v5105
  %v5107 = vrot.slane %v5098, 5
  %v5108 = vrot.slane %v5107, 4
  %v5109 = vrot.slane %v5101, 5
  %v5110 = vsel %vm2564, %v5108, %v5109
  %v5111 = vrot.slane %v5099, 5
  %v5112 = vrot.slane %v5111, 4
  %v5113 = vrot.slane %v5102, 5
  %v5114 = vsel %vm2564, %v5112, %v5113
  %vm5118 = vmand %vm2379, %vm2334
  %vm5119 = vmand %vm2382, %vm2578
  %vm5120 = vmor %vm5119, %vm5118
  %v5121 = vld [vmem:[#allocation5 + $0x14] sm:$0xcc]
  %v5122 = vsel %vm5120, %v5106, %v5121
  %5123 = vst [vmem:[#allocation5 + $0x14] sm:$0xcc] %v5122
  %v5124 = vld [vmem:[#allocation5 + $0x1c] sm:$0xcc]
  %v5125 = vsel %vm5120, %v5110, %v5124
  %5126 = vst [vmem:[#allocation5 + $0x1c] sm:$0xcc] %v5125
  %vm5127 = vcmask 519170
  %vm5128 = vmand %vm5127, %vm2334
  %v5129 = vld [vmem:[#allocation5 + $0x24] sm:$0xc]
  %v5130 = vsel %vm5128, %v5114, %v5129
  %5131 = vst [vmem:[#allocation5 + $0x24] sm:$0xc] %v5130
  %v5132 = vld [vmem:[#allocation4 + $0x10] sm:$0x6]
  %v5133 = vld [vmem:[#allocation4 + $0x10] sm:$0xc]
  %v5134 = vld [vmem:[#allocation4 + $0x14] sm:$0x3]
  %v5135 = vld [vmem:[#allocation4 + $0x14] sm:$0x6]
  %v5136 = vld [vmem:[#allocation4 + $0x14] sm:$0xc]
  %v5137 = vld [vmem:[#allocation4 + $0x14] sm:$0x8]
  %v5138 = vld [vmem:[#allocation4 + $0x18] sm:$0x1]
  %v5140 = vunpack.c.l.b16 %v5133
  %v5141 = vpack.c.b16 %v5140, %v5140
  %v5143 = vshrl.u32 %v5141, 16
  %v5145 = vshll.u32 %v5141, 16
  %v5147 = vrot.slane %v5145, 1
  %v5148 = vor.u32 %v5143, %v5147
  %5149 = vrot.lane.b32.xlu0 %v5148, 64
  %v5150 = vpop.permute.xlu0 %5149
  %v5151 = vrot.slane %v5141, 1
  %v5153 = vunpack.c.l.b16 %v5134
  %v5154 = vpack.c.b16 %v5153, %v5153
  %v5156 = vshrl.u32 %v5154, 16
  %v5158 = vrot.slane %v5156, 6
  %v5159 = vshll.u32 %v5154, 16
  %v5161 = vrot.slane %v5159, 7
  %v5162 = vor.u32 %v5158, %v5161
  %5163 = vrot.lane.b32.xlu0 %v5162, 64
  %v5164 = vpop.permute.xlu0 %5163
  %v5165 = vrot.slane %v5154, 7
  %v5167 = vunpack.c.l.b16 %v5135
  %v5168 = vpack.c.b16 %v5167, %v5167
  %v5170 = vshrl.u32 %v5168, 16
  %v5172 = vrot.slane %v5170, 7
  %v5173 = vshll.u32 %v5168, 16
  %v5175 = vor.u32 %v5172, %v5173
  %5176 = vrot.lane.b32.xlu0 %v5175, 64
  %v5177 = vpop.permute.xlu0 %5176
  %v5179 = vunpack.c.l.b16 %v5136
  %v5180 = vpack.c.b16 %v5179, %v5179
  %v5181 = vrot.slane %v5180, 1
  %v5184 = vunpack.c.l.b16 %v5137
  %v5185 = vunpack.c.l.b16 %v5138
  %v5186 = vpack.c.b16 %v5185, %v5184
  %v5188 = vshrl.u32 %v5186, 16
  %v5190 = vrot.slane %v5188, 1
  %v5191 = vshll.u32 %v5186, 16
  %v5193 = vrot.slane %v5191, 2
  %v5194 = vor.u32 %v5190, %v5193
  %5195 = vrot.lane.b32.xlu0 %v5194, 64
  %v5196 = vpop.permute.xlu0 %5195
  %v5197 = vrot.slane %v5186, 2
  %v5200 = vsel %vm2100, %v5132, %v5150
  %v5203 = vsel %vm2100, %v5151, %v5164
  %v5206 = vsel %vm2100, %v5165, %v5177
  %v5209 = vsel %vm2100, %v5181, %v5196
  %v5214 = vunpack.c.l.b16 %v5200
  %v5215 = vunpack.c.l.b16 %v5203
  %v5216 = vunpack.c.l.b16 %v5206
  %v5217 = vunpack.c.l.b16 %v5209
  %v5218 = vunpack.c.l.b16 %v5197
  %v5219 = vpack.c.b16 %v5215, %v5214
  %v5220 = vpack.c.b16 %v5217, %v5216
  %v5221 = vpack.c.b16 %v5218, %v5218
  %v5222 = vrot.slane %v5219, 6
  %v5223 = vrot.slane %v5220, 6
  %v5224 = vrot.slane %v5221, 6
  %v5225 = vrot.slane %v5222, 4
  %v5226 = vrot.slane %v5223, 4
  %v5227 = vrot.slane %v5224, 4
  %v5234 = vld [vmem:[#allocation5 + $0x14] sm:$0x88]
  %v5235 = vsel %vm2769, %v5222, %v5234
  %5236 = vst [vmem:[#allocation5 + $0x14] sm:$0x88] %v5235
  %v5237 = vld [vmem:[#allocation5 + $0x1c] sm:$0x88]
  %v5238 = vsel %vm2769, %v5223, %v5237
  %5239 = vst [vmem:[#allocation5 + $0x1c] sm:$0x88] %v5238
  %vm5240 = vcmask 519171
  %vm5241 = vmand %vm5240, %vm2764
  %v5242 = vld [vmem:[#allocation5 + $0x24] sm:$0x8]
  %v5243 = vsel %vm5241, %v5224, %v5242
  %5244 = vst [vmem:[#allocation5 + $0x24] sm:$0x8] %v5243
  %5245 = vst [vmem:[#allocation5 + $0x28] sm:$0x11] %v5225
  %5246 = vst [vmem:[#allocation5 + $0x30] sm:$0x11] %v5226
  %5247 = vst.msk [vmem:[#allocation5 + $0x38] sm:$0x1] %vm4546, %v5227
  %v5248 = vld [vmem:[#allocation5] sm:$0xff]
  %v5249 = vld [vmem:[#allocation5 + $0x8] sm:$0xff]
  %v5250 = vld [vmem:[#allocation5 + $0x10] sm:$0xf]
  %v5251 = vld [vmem:[#allocation5 + $0x14] sm:$0xff]
  %v5252 = vld [vmem:[#allocation5 + $0x1c] sm:$0xff]
  %v5253 = vld [vmem:[#allocation5 + $0x24] sm:$0xf]
  %v5254 = vld [vmem:[#allocation5 + $0x28] sm:$0x11]
  %v5255 = vld [vmem:[#allocation5 + $0x30] sm:$0x11]
  %v5256 = vld [vmem:[#allocation5 + $0x38] sm:$0x1]
  %v5257 = vld [vmem:[%s9] sm:$0xf]
  %v5258 = vld [vmem:[%s9 + $0x4] sm:$0xf]
  %v5259 = vld [vmem:[%s9 + $0x8] sm:$0xf]
  %v5260 = vld [vmem:[%s9 + $0xc] sm:$0xf]
  %v5261 = vld [vmem:[%s9 + $0x10] sm:$0xf]
  %v5262 = vld [vmem:[%s9 + $0x14] sm:$0xf]
  %v5263 = vld [vmem:[%s9 + $0x18] sm:$0xf]
  %v5264 = vld [vmem:[%s9 + $0x1c] sm:$0xf]
  %v5265 = vld [vmem:[%s9 + $0x20] sm:$0xf]
  %v5266 = vld [vmem:[%s9 + $0x24] sm:$0xf]
  %v5267 = vld [vmem:[%s9 + $0x28] sm:$0xf]
  %v5268 = vld [vmem:[%s9 + $0x2c] sm:$0xf]
  %v5269 = vld [vmem:[%s9 + $0x30] sm:$0xf]
  %v5270 = vld [vmem:[%s9 + $0x34] sm:$0xf]
  %v5271 = vld [vmem:[%s9 + $0x38] sm:$0xf]
  %v5272 = vld [vmem:[%s9 + $0x3c] sm:$0xf]
  %v5273 = vld [vmem:[%s9 + $0x40] sm:$0xf]
  %v5274 = vld [vmem:[%s9 + $0x44] sm:$0xf]
  %v5275 = vld [vmem:[%s9 + $0x48] sm:$0xf]
  %v5276 = vld [vmem:[%s9 + $0x4c] sm:$0xf]
  %v5277 = vld [vmem:[%s9 + $0x50] sm:$0xf]
  %v5278 = vld [vmem:[%s9 + $0x54] sm:$0xf]
  %v5279 = vld [vmem:[%s9 + $0x58] sm:$0xf]
  %v5280 = vld [vmem:[%s9 + $0x5c] sm:$0xf]
  %v5281 = vld [vmem:[%s9 + $0x60] sm:$0xf]
  %v5282 = vld [vmem:[%s9 + $0x64] sm:$0xf]
  %v5283 = vld [vmem:[%s9 + $0x68] sm:$0xf]
  %v5284 = vld [vmem:[%s9 + $0x6c] sm:$0xf]
  %v5285 = vld [vmem:[%s9 + $0x70] sm:$0xf]
  %v5286 = vld [vmem:[%s9 + $0x74] sm:$0xf]
  %v5287 = vld [vmem:[%s9 + $0x78] sm:$0xf]
  %v5288 = vld [vmem:[%s9 + $0x7c] sm:$0xf]
  %v5289 = vld [vmem:[%s9 + $0x80] sm:$0xf]
  %v5290 = vld [vmem:[%s9 + $0x84] sm:$0xf]
  %v5291 = vld [vmem:[%s9 + $0x88] sm:$0xf]
  %v5292 = vld [vmem:[%s9 + $0x8c] sm:$0xf]
  %v5293 = vld [vmem:[%s9 + $0x90] sm:$0xf]
  %v5294 = vld [vmem:[%s9 + $0x94] sm:$0xf]
  %v5295 = vld [vmem:[%s9 + $0x98] sm:$0xf]
  %v5296 = vld [vmem:[%s9 + $0x9c] sm:$0xf]
  %v5297 = vld [vmem:[%s9 + $0xa0] sm:$0xf]
  %v5298 = vld [vmem:[%s9 + $0xa4] sm:$0xf]
  %v5299 = vld [vmem:[%s9 + $0xa8] sm:$0xf]
  %v5300 = vld [vmem:[%s9 + $0xac] sm:$0xf]
  %v5301 = vld [vmem:[%s9 + $0xb0] sm:$0xf]
  %v5302 = vld [vmem:[%s9 + $0xb4] sm:$0xf]
  %v5303 = vld [vmem:[%s9 + $0xb8] sm:$0xf]
  %v5304 = vld [vmem:[%s9 + $0xbc] sm:$0xf]
  %v5305 = vld [vmem:[%s9 + $0xc0] sm:$0xf]
  %v5306 = vld [vmem:[%s9 + $0xc4] sm:$0xf]
  %v5307 = vld [vmem:[%s9 + $0xc8] sm:$0xf]
  %v5308 = vld [vmem:[%s9 + $0xcc] sm:$0xf]
  %v5309 = vld [vmem:[%s9 + $0xd0] sm:$0xf]
  %v5310 = vld [vmem:[%s9 + $0xd4] sm:$0xf]
  %v5311 = vld [vmem:[%s9 + $0xd8] sm:$0xf]
  %v5312 = vld [vmem:[%s9 + $0xdc] sm:$0xf]
  %v5313 = vld [vmem:[%s9 + $0xe0] sm:$0xf]
  %v5314 = vld [vmem:[%s9 + $0xe4] sm:$0xf]
  %v5315 = vld [vmem:[%s9 + $0xe8] sm:$0xf]
  %v5316 = vld [vmem:[%s9 + $0xec] sm:$0xf]
  %v5317 = vld [vmem:[%s9 + $0xf0] sm:$0xf]
  %v5318 = vld [vmem:[%s9 + $0xf4] sm:$0xf]
  %v5319 = vld [vmem:[%s9 + $0xf8] sm:$0xf]
  %v5320 = vld [vmem:[%s9 + $0xfc] sm:$0xf]
  %v5321 = vld [vmem:[%s9 + $0x100] sm:$0xf]
  %v5322 = vld [vmem:[%s9 + $0x104] sm:$0xf]
  %v5323 = vld [vmem:[%s9 + $0x108] sm:$0xf]
  %v5324 = vld [vmem:[%s9 + $0x10c] sm:$0xf]
  %v5325 = vld [vmem:[%s9 + $0x110] sm:$0xf]
  %v5326 = vld [vmem:[%s9 + $0x114] sm:$0xf]
  %v5327 = vld [vmem:[%s9 + $0x118] sm:$0xf]
  %v5328 = vld [vmem:[%s9 + $0x11c] sm:$0xf]
  %v5329 = vld [vmem:[%s10] sm:$0x1]
  %v5331 = vperm.slane %v5329, 0
  %v5342 = vunpack.c.l.b16 %v5248
  %v5343 = vunpack.c.h.b16 %v5248
  %v5344 = vunpack.c.l.b16 %v5249
  %v5345 = vunpack.c.h.b16 %v5249
  %v5346 = vunpack.c.l.b16 %v5250
  %v5347 = vunpack.c.l.b16 %v5251
  %v5348 = vunpack.c.h.b16 %v5251
  %v5349 = vunpack.c.l.b16 %v5252
  %v5350 = vunpack.c.h.b16 %v5252
  %v5351 = vunpack.c.l.b16 %v5253
  %v5352 = vunpack.c.l.b16 %v5254
  %v5353 = vunpack.c.h.b16 %v5254
  %v5354 = vunpack.c.l.b16 %v5255
  %v5355 = vunpack.c.h.b16 %v5255
  %v5356 = vunpack.c.l.b16 %v5256
  %v5357 = vpack.c.b16 %v5347, %v5342
  %v5358 = vpack.c.b16 %v5348, %v5343
  %v5359 = vpack.c.b16 %v5349, %v5344
  %v5360 = vpack.c.b16 %v5350, %v5345
  %v5361 = vpack.c.b16 %v5351, %v5346
  %v5362 = vpack.c.b16 %v5352, %v5352
  %v5363 = vpack.c.b16 %v5353, %v5353
  %v5364 = vpack.c.b16 %v5354, %v5354
  %v5365 = vpack.c.b16 %v5355, %v5355
  %v5366 = vpack.c.b16 %v5356, %v5356
  %v5447 = vunpack.c.l.b16 %v5257
  %v5448 = vunpack.c.l.b16 %v5258
  %v5449 = vunpack.c.l.b16 %v5259
  %v5450 = vunpack.c.l.b16 %v5260
  %v5451 = vunpack.c.l.b16 %v5261
  %v5452 = vunpack.c.l.b16 %v5262
  %v5453 = vunpack.c.l.b16 %v5263
  %v5454 = vunpack.c.l.b16 %v5264
  %v5455 = vunpack.c.l.b16 %v5265
  %v5456 = vunpack.c.l.b16 %v5266
  %v5457 = vunpack.c.l.b16 %v5267
  %v5458 = vunpack.c.l.b16 %v5268
  %v5459 = vunpack.c.l.b16 %v5269
  %v5460 = vunpack.c.l.b16 %v5270
  %v5461 = vunpack.c.l.b16 %v5271
  %v5462 = vunpack.c.l.b16 %v5272
  %v5463 = vunpack.c.l.b16 %v5273
  %v5464 = vunpack.c.l.b16 %v5274
  %v5465 = vunpack.c.l.b16 %v5275
  %v5466 = vunpack.c.l.b16 %v5276
  %v5467 = vunpack.c.l.b16 %v5277
  %v5468 = vunpack.c.l.b16 %v5278
  %v5469 = vunpack.c.l.b16 %v5279
  %v5470 = vunpack.c.l.b16 %v5280
  %v5471 = vunpack.c.l.b16 %v5281
  %v5472 = vunpack.c.l.b16 %v5282
  %v5473 = vunpack.c.l.b16 %v5283
  %v5474 = vunpack.c.l.b16 %v5284
  %v5475 = vunpack.c.l.b16 %v5285
  %v5476 = vunpack.c.l.b16 %v5286
  %v5477 = vunpack.c.l.b16 %v5287
  %v5478 = vunpack.c.l.b16 %v5288
  %v5479 = vunpack.c.l.b16 %v5289
  %v5480 = vunpack.c.l.b16 %v5290
  %v5481 = vunpack.c.l.b16 %v5291
  %v5482 = vunpack.c.l.b16 %v5292
  %v5483 = vunpack.c.l.b16 %v5293
  %v5484 = vunpack.c.l.b16 %v5294
  %v5485 = vunpack.c.l.b16 %v5295
  %v5486 = vunpack.c.l.b16 %v5296
  %v5487 = vunpack.c.l.b16 %v5297
  %v5488 = vunpack.c.l.b16 %v5298
  %v5489 = vunpack.c.l.b16 %v5299
  %v5490 = vunpack.c.l.b16 %v5300
  %v5491 = vunpack.c.l.b16 %v5301
  %v5492 = vunpack.c.l.b16 %v5302
  %v5493 = vunpack.c.l.b16 %v5303
  %v5494 = vunpack.c.l.b16 %v5304
  %v5495 = vunpack.c.l.b16 %v5305
  %v5496 = vunpack.c.l.b16 %v5306
  %v5497 = vunpack.c.l.b16 %v5307
  %v5498 = vunpack.c.l.b16 %v5308
  %v5499 = vunpack.c.l.b16 %v5309
  %v5500 = vunpack.c.l.b16 %v5310
  %v5501 = vunpack.c.l.b16 %v5311
  %v5502 = vunpack.c.l.b16 %v5312
  %v5503 = vunpack.c.l.b16 %v5313
  %v5504 = vunpack.c.l.b16 %v5314
  %v5505 = vunpack.c.l.b16 %v5315
  %v5506 = vunpack.c.l.b16 %v5316
  %v5507 = vunpack.c.l.b16 %v5317
  %v5508 = vunpack.c.l.b16 %v5318
  %v5509 = vunpack.c.l.b16 %v5319
  %v5510 = vunpack.c.l.b16 %v5320
  %v5511 = vunpack.c.l.b16 %v5321
  %v5512 = vunpack.c.l.b16 %v5322
  %v5513 = vunpack.c.l.b16 %v5323
  %v5514 = vunpack.c.l.b16 %v5324
  %v5515 = vunpack.c.l.b16 %v5325
  %v5516 = vunpack.c.l.b16 %v5326
  %v5517 = vunpack.c.l.b16 %v5327
  %v5518 = vunpack.c.l.b16 %v5328
  %v5519 = vpack.c.b16 %v5448, %v5447
  %v5520 = vpack.c.b16 %v5450, %v5449
  %v5521 = vpack.c.b16 %v5452, %v5451
  %v5522 = vpack.c.b16 %v5454, %v5453
  %v5523 = vpack.c.b16 %v5456, %v5455
  %v5524 = vpack.c.b16 %v5458, %v5457
  %v5525 = vpack.c.b16 %v5460, %v5459
  %v5526 = vpack.c.b16 %v5462, %v5461
  %v5527 = vpack.c.b16 %v5464, %v5463
  %v5528 = vpack.c.b16 %v5466, %v5465
  %v5529 = vpack.c.b16 %v5468, %v5467
  %v5530 = vpack.c.b16 %v5470, %v5469
  %v5531 = vpack.c.b16 %v5472, %v5471
  %v5532 = vpack.c.b16 %v5474, %v5473
  %v5533 = vpack.c.b16 %v5476, %v5475
  %v5534 = vpack.c.b16 %v5478, %v5477
  %v5535 = vpack.c.b16 %v5480, %v5479
  %v5536 = vpack.c.b16 %v5482, %v5481
  %v5537 = vpack.c.b16 %v5484, %v5483
  %v5538 = vpack.c.b16 %v5486, %v5485
  %v5539 = vpack.c.b16 %v5488, %v5487
  %v5540 = vpack.c.b16 %v5490, %v5489
  %v5541 = vpack.c.b16 %v5492, %v5491
  %v5542 = vpack.c.b16 %v5494, %v5493
  %v5543 = vpack.c.b16 %v5496, %v5495
  %v5544 = vpack.c.b16 %v5498, %v5497
  %v5545 = vpack.c.b16 %v5500, %v5499
  %v5546 = vpack.c.b16 %v5502, %v5501
  %v5547 = vpack.c.b16 %v5504, %v5503
  %v5548 = vpack.c.b16 %v5506, %v5505
  %v5549 = vpack.c.b16 %v5508, %v5507
  %v5550 = vpack.c.b16 %v5510, %v5509
  %v5551 = vpack.c.b16 %v5512, %v5511
  %v5552 = vpack.c.b16 %v5514, %v5513
  %v5553 = vpack.c.b16 %v5516, %v5515
  %v5554 = vpack.c.b16 %v5518, %v5517
  %v5592 = vsel %vm2100, %v5361, 0
  %v5595 = vsel %vm2100, %v5366, 0
  %5597 = vmatpush.bf16.msra.mxu0 %v5526
  %5598 = vmatpush.bf16.msra.mxu0 %v5525
  %5599 = vmatpush.bf16.msra.mxu0 %v5524
  %5600 = vmatpush.bf16.msra.mxu0 %v5523
  %5601 = vmatpush.bf16.msra.mxu0 %v5522
  %5602 = vmatpush.bf16.msra.mxu0 %v5521
  %5603 = vmatpush.bf16.msra.mxu0 %v5520
  %5604 = vmatpush.bf16.msra.mxu0 %v5519
  %5605 = vmatmul.bf16.gmra.mxu0 %v5357
  %v5606 = vpop.f32.mrf.mxu0
  %v5607 = vadd.f32 %v5331, %v5606
  %v5608 = vpop.f32.mrf.mxu0
  %v5609 = vadd.f32 %v5331, %v5608
  %5610 = vmatmul.bf16.gmra.mxu0 %v5362
  %v5611 = vpop.f32.mrf.mxu0
  %v5612 = vadd.f32 %v5331, %v5611
  %v5613 = vpop.f32.mrf.mxu0
  %5614 = vdwg.mxu0
  %5615 = vmatpush.bf16.msra.mxu0 %v5534
  %5616 = vmatpush.bf16.msra.mxu0 %v5533
  %5617 = vmatpush.bf16.msra.mxu0 %v5532
  %5618 = vmatpush.bf16.msra.mxu0 %v5531
  %5619 = vmatpush.bf16.msra.mxu0 %v5530
  %5620 = vmatpush.bf16.msra.mxu0 %v5529
  %5621 = vmatpush.bf16.msra.mxu0 %v5528
  %5622 = vmatpush.bf16.msra.mxu0 %v5527
  %5623 = vmatmul.bf16.gmra.mxu0 %v5358
  %v5624 = vpop.f32.mrf.mxu0
  %v5625 = vadd.f32 %v5607, %v5624
  %v5626 = vpop.f32.mrf.mxu0
  %v5627 = vadd.f32 %v5609, %v5626
  %5628 = vmatmul.bf16.gmra.mxu0 %v5363
  %v5629 = vpop.f32.mrf.mxu0
  %v5630 = vadd.f32 %v5612, %v5629
  %v5631 = vpop.f32.mrf.mxu0
  %5632 = vdwg.mxu0
  %5633 = vmatpush.bf16.msra.mxu0 %v5542
  %5634 = vmatpush.bf16.msra.mxu0 %v5541
  %5635 = vmatpush.bf16.msra.mxu0 %v5540
  %5636 = vmatpush.bf16.msra.mxu0 %v5539
  %5637 = vmatpush.bf16.msra.mxu0 %v5538
  %5638 = vmatpush.bf16.msra.mxu0 %v5537
  %5639 = vmatpush.bf16.msra.mxu0 %v5536
  %5640 = vmatpush.bf16.msra.mxu0 %v5535
  %5641 = vmatmul.bf16.gmra.mxu0 %v5359
  %v5642 = vpop.f32.mrf.mxu0
  %v5643 = vadd.f32 %v5625, %v5642
  %v5644 = vpop.f32.mrf.mxu0
  %v5645 = vadd.f32 %v5627, %v5644
  %5646 = vmatmul.bf16.gmra.mxu0 %v5364
  %v5647 = vpop.f32.mrf.mxu0
  %v5648 = vadd.f32 %v5630, %v5647
  %v5649 = vpop.f32.mrf.mxu0
  %5650 = vdwg.mxu0
  %5651 = vmatpush.bf16.msra.mxu0 %v5550
  %5652 = vmatpush.bf16.msra.mxu0 %v5549
  %5653 = vmatpush.bf16.msra.mxu0 %v5548
  %5654 = vmatpush.bf16.msra.mxu0 %v5547
  %5655 = vmatpush.bf16.msra.mxu0 %v5546
  %5656 = vmatpush.bf16.msra.mxu0 %v5545
  %5657 = vmatpush.bf16.msra.mxu0 %v5544
  %5658 = vmatpush.bf16.msra.mxu0 %v5543
  %5659 = vmatmul.bf16.gmra.mxu0 %v5360
  %v5660 = vpop.f32.mrf.mxu0
  %v5661 = vadd.f32 %v5643, %v5660
  %v5662 = vpop.f32.mrf.mxu0
  %v5663 = vadd.f32 %v5645, %v5662
  %5664 = vmatmul.bf16.gmra.mxu0 %v5365
  %v5665 = vpop.f32.mrf.mxu0
  %v5666 = vadd.f32 %v5648, %v5665
  %v5667 = vpop.f32.mrf.mxu0
  %5668 = vdwg.mxu0
  %5669 = vmatpush.bf16.msra.mxu0 0
  %5670 = vmatpush.bf16.msra.mxu0 0
  %5671 = vmatpush.bf16.msra.mxu0 0
  %5672 = vmatpush.bf16.msra.mxu0 0
  %5673 = vmatpush.bf16.msra.mxu0 %v5554
  %5674 = vmatpush.bf16.msra.mxu0 %v5553
  %5675 = vmatpush.bf16.msra.mxu0 %v5552
  %5676 = vmatpush.bf16.msra.mxu0 %v5551
  %5677 = vmatmul.bf16.gmra.mxu0 %v5592
  %v5678 = vpop.f32.mrf.mxu0
  %v5679 = vadd.f32 %v5661, %v5678
  %v5680 = vpop.f32.mrf.mxu0
  %v5681 = vadd.f32 %v5663, %v5680
  %5682 = vmatmul.bf16.gmra.mxu0 %v5595
  %v5683 = vpop.f32.mrf.mxu0
  %v5684 = vadd.f32 %v5666, %v5683
  %v5685 = vpop.f32.mrf.mxu0
  %5686 = vdwg.mxu0
  %v5687 = vmax.f32 %v5679, 0.0
  %v5688 = vmax.f32 %v5681, 0.0
  %v5689 = vmax.f32 %v5684, 0.0
  %v5690 = vld [vmem:[%s11] sm:$0x1]
  %v5691 = vld [vmem:[%s12] sm:$0x1]
  %v5692 = vsel %vm2100, %v5687, 0.0
  %v5693 = vsel %vm2100, %v5688, 0.0
  %v5694 = vadd.f32 %v5692, %v5693
  %v5695 = vsel %vm4447, %v5689, 0.0
  %v5696 = vadd.f32 %v5694, %v5695
  %v5697 = vrot.slane %v5696, 4
  %v5698 = vadd.f32 %v5696, %v5697
  %v5699 = vrot.slane %v5698, 2
  %v5700 = vadd.f32 %v5698, %v5699
  %v5701 = vrot.slane %v5700, 1
  %v5702 = vadd.f32 %v5700, %v5701
  %v5703 = vmul.f32 %v5702, 0.055555556
  %v5704 = vmul.f32 %v5687, %v5687
  %v5705 = vmul.f32 %v5688, %v5688
  %v5706 = vmul.f32 %v5689, %v5689
  %v5707 = vsel %vm2100, %v5704, 0.0
  %v5708 = vsel %vm2100, %v5705, 0.0
  %v5709 = vadd.f32 %v5707, %v5708
  %v5710 = vsel %vm4447, %v5706, 0.0
  %v5711 = vadd.f32 %v5709, %v5710
  %v5712 = vrot.slane %v5711, 4
  %v5713 = vadd.f32 %v5711, %v5712
  %v5714 = vrot.slane %v5713, 2
  %v5715 = vadd.f32 %v5713, %v5714
  %v5716 = vrot.slane %v5715, 1
  %v5717 = vadd.f32 %v5715, %v5716
  %v5718 = vmul.f32 %v5717, 0.055555556
  %v5719 = vmul.f32 %v5703, %v5703
  %v5720 = vsub.f32 %v5718, %v5719
  %v5721 = vmax.f32 %v5720, 0.0
  %v5722 = vsub.f32 %v5687, %v5703
  %v5723 = vsub.f32 %v5688, %v5703
  %v5724 = vsub.f32 %v5689, %v5703
  %v5726 = vperm.slane %v5690, 0
  %v5728 = vmul.f32 %v5726, %v5722
  %v5729 = vmul.f32 %v5726, %v5723
  %v5730 = vmul.f32 %v5726, %v5724
  %v5731 = vadd.f32 %v5721, 1e-05
  %v5732 = vrsqrt.pop %v5731
  %v5733 = vmul.f32 %v5732, %v5731
  %v5734 = vmul.f32 %v5733, %v5732
  %v5735 = vmul.f32 0.5, %v5734
  %v5736 = vsub.f32 1.5, %v5735
  %v5737 = vmul.f32 %v5732, %v5736
  %vm5738 = vweird.f32 %v5731
  %vm5739 = vweird.f32 %v5732
  %vm5740 = vmor %vm5738, %vm5739
  %v5741 = vsel %vm5740, %v5732, %v5737
  %v5742 = vmul.f32 %v5728, %v5741
  %v5743 = vmul.f32 %v5729, %v5741
  %v5744 = vmul.f32 %v5730, %v5741
  %v5746 = vperm.slane %v5691, 0
  %v5748 = vadd.f32 %v5742, %v5746
  %v5749 = vadd.f32 %v5743, %v5746
  %v5750 = vadd.f32 %v5744, %v5746
  %v5751 = vpack.c.bf16 %v5748, %v5748
  %v5752 = vpack.c.bf16 %v5749, %v5749
  %v5753 = vpack.c.bf16 %v5750, %v5750
  %5754 = vst.msk [vmem:[#allocation6] sm:$0xf] %vm4539, %v5751
  %5755 = vst.msk [vmem:[#allocation6 + $0x4] sm:$0xf] %vm4539, %v5752
  %5756 = vst.msk [vmem:[#allocation6 + $0x8] sm:$0x1] %vm4546, %v5753
  %v5757 = vld [vmem:[#allocation6] sm:$0x1]
  %v5758 = vld [vmem:[#allocation6] sm:$0x2]
  %v5759 = vld [vmem:[#allocation6] sm:$0x4]
  %v5760 = vld [vmem:[#allocation6] sm:$0x8]
  %v5761 = vld [vmem:[#allocation6 + $0x4] sm:$0x1]
  %v5763 = vunpack.c.l.b16 %v5757
  %v5764 = vpack.c.b16 %v5763, %v5763
  %v5766 = vshrl.u32 %v5764, 16
  %5768 = vrot.lane.b32.xlu0 %v5766, 64
  %v5769 = vpop.permute.xlu0 %5768
  %v5771 = vunpack.c.l.b16 %v5758
  %v5772 = vpack.c.b16 %v5771, %v5771
  %v5773 = vrot.slane %v5772, 1
  %v5775 = vshrl.u32 %v5772, 16
  %v5777 = vrot.slane %v5775, 1
  %5778 = vrot.lane.b32.xlu0 %v5777, 64
  %v5779 = vpop.permute.xlu0 %5778
  %v5781 = vunpack.c.l.b16 %v5759
  %v5782 = vpack.c.b16 %v5781, %v5781
  %v5783 = vrot.slane %v5782, 2
  %v5785 = vshrl.u32 %v5782, 16
  %v5787 = vrot.slane %v5785, 2
  %5788 = vrot.lane.b32.xlu0 %v5787, 64
  %v5789 = vpop.permute.xlu0 %5788
  %v5791 = vunpack.c.l.b16 %v5760
  %v5792 = vpack.c.b16 %v5791, %v5791
  %v5793 = vrot.slane %v5792, 3
  %v5795 = vshrl.u32 %v5792, 16
  %v5797 = vrot.slane %v5795, 3
  %5798 = vrot.lane.b32.xlu0 %v5797, 64
  %v5799 = vpop.permute.xlu0 %5798
  %v5802 = vsel %vm2100, %v5757, %v5769
  %v5805 = vsel %vm2100, %v5773, %v5779
  %v5808 = vsel %vm2100, %v5783, %v5789
  %v5811 = vsel %vm2100, %v5793, %v5799
  %v5816 = vrot.slane %v5805, 7
  %v5817 = vrot.slane %v5808, 6
  %v5818 = vrot.slane %v5811, 5
  %v5819 = vrot.slane %v5761, 4
  %vm5820 = vcmask 1040384
  %v5822 = vsel %vm5820, %v5802, %v5816
  %vm5823 = vcmask 1041408
  %v5825 = vsel %vm5823, %v5822, %v5817
  %vm5826 = vcmask 1043459
  %v5829 = vsel %vm5826, %v5818, %v5819
  %vm5830 = vcmask 1042432
  %v5831 = vsel %vm5830, %v5825, %v5829
  %vm5833 = vcmask 1041409
  %vm5834 = vmand %vm5833, %vm3349
  %vm5835 = vmor %vm5834, %vm2960
  %vm5836 = vcmask 1042434
  %vm5837 = vmand %vm5836, %vm2140
  %vm5838 = vmor %vm5837, %vm5835
  %vm5839 = vmand %vm2763, %vm2334
  %vm5840 = vmor %vm5839, %vm5838
  %vm5841 = vcmask 520196
  %vm5842 = vmand %vm5841, %vm2962
  %vm5843 = vmor %vm5842, %vm5840
  %v5844 = vld [vmem:[#allocation7] sm:$0x1f]
  %v5845 = vsel %vm5843, %v5831, %v5844
  %5846 = vst [vmem:[#allocation7] sm:$0x1f] %v5845
  %v5847 = vld [vmem:[#allocation6 + $0x4] sm:$0x1]
  %v5848 = vld [vmem:[#allocation6 + $0x4] sm:$0x2]
  %v5849 = vld [vmem:[#allocation6 + $0x4] sm:$0x4]
  %v5850 = vld [vmem:[#allocation6 + $0x4] sm:$0x8]
  %v5851 = vld [vmem:[#allocation6 + $0x8] sm:$0x1]
  %v5853 = vunpack.c.l.b16 %v5848
  %v5854 = vpack.c.b16 %v5853, %v5853
  %v5856 = vshll.u32 %v5854, 16
  %v5858 = vrot.slane %v5856, 1
  %5859 = vrot.lane.b32.xlu0 %v5858, 64
  %v5860 = vpop.permute.xlu0 %5859
  %v5861 = vrot.slane %v5854, 1
  %v5863 = vunpack.c.l.b16 %v5849
  %v5864 = vpack.c.b16 %v5863, %v5863
  %v5866 = vshll.u32 %v5864, 16
  %v5868 = vrot.slane %v5866, 2
  %5869 = vrot.lane.b32.xlu0 %v5868, 64
  %v5870 = vpop.permute.xlu0 %5869
  %v5871 = vrot.slane %v5864, 2
  %v5873 = vunpack.c.l.b16 %v5850
  %v5874 = vpack.c.b16 %v5873, %v5873
  %v5876 = vshll.u32 %v5874, 16
  %v5878 = vrot.slane %v5876, 3
  %5879 = vrot.lane.b32.xlu0 %v5878, 64
  %v5880 = vpop.permute.xlu0 %5879
  %v5881 = vrot.slane %v5874, 3
  %v5883 = vunpack.c.l.b16 %v5851
  %v5884 = vpack.c.b16 %v5883, %v5883
  %v5886 = vshll.u32 %v5884, 16
  %5888 = vrot.lane.b32.xlu0 %v5886, 64
  %v5889 = vpop.permute.xlu0 %5888
  %v5892 = vsel %vm2100, %v5847, %v5860
  %v5895 = vsel %vm2100, %v5861, %v5870
  %v5898 = vsel %vm2100, %v5871, %v5880
  %v5901 = vsel %vm2100, %v5881, %v5889
  %v5905 = vrot.slane %v5895, 7
  %v5906 = vrot.slane %v5898, 6
  %v5907 = vrot.slane %v5901, 5
  %v5908 = vrot.slane %v5851, 4
  %v5910 = vsel %vm5820, %v5892, %v5905
  %v5912 = vsel %vm5823, %v5910, %v5906
  %v5915 = vsel %vm5826, %v5907, %v5908
  %v5916 = vsel %vm5830, %v5912, %v5915
  %vm5918 = vmand %vm2958, %vm3173
  %vm5919 = vmand %vm5833, %vm3549
  %vm5920 = vmor %vm5919, %vm5918
  %vm5921 = vmand %vm5836, %vm2380
  %vm5922 = vmor %vm5921, %vm5920
  %vm5923 = vmor %vm2765, %vm5922
  %vm5924 = vmand %vm5841, %vm3175
  %vm5925 = vmor %vm5924, %vm5923
  %v5926 = vld [vmem:[#allocation7] sm:$0x1f]
  %v5927 = vsel %vm5925, %v5916, %v5926
  %5928 = vst [vmem:[#allocation7] sm:$0x1f] %v5927
  %v5929 = vld [vmem:[#allocation7] sm:$0x1f]
  %v5930 = vld [vmem:[%s13] sm:$0xf]
  %v5931 = vld [vmem:[%s13 + $0x4] sm:$0xf]
  %v5932 = vld [vmem:[%s13 + $0x8] sm:$0xf]
  %v5933 = vld [vmem:[%s13 + $0xc] sm:$0xf]
  %v5934 = vld [vmem:[%s13 + $0x10] sm:$0xf]
  %v5935 = vld [vmem:[%s13 + $0x14] sm:$0xf]
  %v5936 = vld [vmem:[%s13 + $0x18] sm:$0xf]
  %v5937 = vld [vmem:[%s13 + $0x1c] sm:$0xf]
  %v5938 = vld [vmem:[%s13 + $0x20] sm:$0xf]
  %v5939 = vld [vmem:[%s13 + $0x24] sm:$0xf]
  %v5940 = vld [vmem:[%s13 + $0x28] sm:$0xf]
  %v5941 = vld [vmem:[%s13 + $0x2c] sm:$0xf]
  %v5942 = vld [vmem:[%s13 + $0x30] sm:$0xf]
  %v5943 = vld [vmem:[%s13 + $0x34] sm:$0xf]
  %v5944 = vld [vmem:[%s13 + $0x38] sm:$0xf]
  %v5945 = vld [vmem:[%s13 + $0x3c] sm:$0xf]
  %v5946 = vld [vmem:[%s13 + $0x40] sm:$0xf]
  %v5947 = vld [vmem:[%s13 + $0x44] sm:$0xf]
  %v5948 = vld [vmem:[%s13 + $0x48] sm:$0xf]
  %v5949 = vld [vmem:[%s13 + $0x4c] sm:$0xf]
  %v5950 = vld [vmem:[%s13 + $0x50] sm:$0xf]
  %v5951 = vld [vmem:[%s13 + $0x54] sm:$0xf]
  %v5952 = vld [vmem:[%s13 + $0x58] sm:$0xf]
  %v5953 = vld [vmem:[%s13 + $0x5c] sm:$0xf]
  %v5954 = vld [vmem:[%s13 + $0x60] sm:$0xf]
  %v5955 = vld [vmem:[%s13 + $0x64] sm:$0xf]
  %v5956 = vld [vmem:[%s13 + $0x68] sm:$0xf]
  %v5957 = vld [vmem:[%s13 + $0x6c] sm:$0xf]
  %v5958 = vld [vmem:[%s13 + $0x70] sm:$0xf]
  %v5959 = vld [vmem:[%s13 + $0x74] sm:$0xf]
  %v5960 = vld [vmem:[%s13 + $0x78] sm:$0xf]
  %v5961 = vld [vmem:[%s13 + $0x7c] sm:$0xf]
  %v5962 = vld [vmem:[%s13 + $0x80] sm:$0xf]
  %v5963 = vld [vmem:[%s13 + $0x84] sm:$0xf]
  %v5964 = vld [vmem:[%s13 + $0x88] sm:$0xf]
  %v5965 = vld [vmem:[%s13 + $0x8c] sm:$0xf]
  %v5966 = vld [vmem:[%s13 + $0x90] sm:$0xf]
  %v5967 = vld [vmem:[%s13 + $0x94] sm:$0xf]
  %v5968 = vld [vmem:[%s13 + $0x98] sm:$0xf]
  %v5969 = vld [vmem:[%s13 + $0x9c] sm:$0xf]
  %v5970 = vld [vmem:[%s13 + $0xa0] sm:$0xf]
  %v5971 = vld [vmem:[%s13 + $0xa4] sm:$0xf]
  %v5972 = vld [vmem:[%s13 + $0xa8] sm:$0xf]
  %v5973 = vld [vmem:[%s13 + $0xac] sm:$0xf]
  %v5974 = vld [vmem:[%s13 + $0xb0] sm:$0xf]
  %v5975 = vld [vmem:[%s13 + $0xb4] sm:$0xf]
  %v5976 = vld [vmem:[%s13 + $0xb8] sm:$0xf]
  %v5977 = vld [vmem:[%s13 + $0xbc] sm:$0xf]
  %v5978 = vld [vmem:[%s13 + $0xc0] sm:$0xf]
  %v5979 = vld [vmem:[%s13 + $0xc4] sm:$0xf]
  %v5980 = vld [vmem:[%s13 + $0xc8] sm:$0xf]
  %v5981 = vld [vmem:[%s13 + $0xcc] sm:$0xf]
  %v5982 = vld [vmem:[%s13 + $0xd0] sm:$0xf]
  %v5983 = vld [vmem:[%s13 + $0xd4] sm:$0xf]
  %v5984 = vld [vmem:[%s13 + $0xd8] sm:$0xf]
  %v5985 = vld [vmem:[%s13 + $0xdc] sm:$0xf]
  %v5986 = vld [vmem:[%s13 + $0xe0] sm:$0xf]
  %v5987 = vld [vmem:[%s13 + $0xe4] sm:$0xf]
  %v5988 = vld [vmem:[%s13 + $0xe8] sm:$0xf]
  %v5989 = vld [vmem:[%s13 + $0xec] sm:$0xf]
  %v5990 = vld [vmem:[%s13 + $0xf0] sm:$0xf]
  %v5991 = vld [vmem:[%s13 + $0xf4] sm:$0xf]
  %v5992 = vld [vmem:[%s13 + $0xf8] sm:$0xf]
  %v5993 = vld [vmem:[%s13 + $0xfc] sm:$0xf]
  %v5994 = vld [vmem:[%s13 + $0x100] sm:$0xf]
  %v5995 = vld [vmem:[%s13 + $0x104] sm:$0xf]
  %v5996 = vld [vmem:[%s13 + $0x108] sm:$0xf]
  %v5997 = vld [vmem:[%s13 + $0x10c] sm:$0xf]
  %v5998 = vld [vmem:[%s13 + $0x110] sm:$0xf]
  %v5999 = vld [vmem:[%s13 + $0x114] sm:$0xf]
  %v6000 = vld [vmem:[%s13 + $0x118] sm:$0xf]
  %v6001 = vld [vmem:[%s13 + $0x11c] sm:$0xf]
  %v6002 = vld [vmem:[%s14] sm:$0x1]
  %v6004 = vperm.slane %v6002, 0
  %6007 = vst [vmem:[#allocation1] ss:$9 sm:$0xff] %v5929
  %v6008 = vld [vmem:[#allocation1] sm:$0xff]
  %v6009 = vld [vmem:[#allocation1 + $0x9] sm:$0xff]
  %v6010 = vld [vmem:[#allocation1 + $0x12] sm:$0xff]
  %v6011 = vld [vmem:[#allocation1 + $0x1b] sm:$0xff]
  %v6012 = vld [vmem:[#allocation1 + $0x24] sm:$0xff]
  %v6089 = vunpack.c.l.b16 %v5930
  %v6090 = vunpack.c.l.b16 %v5931
  %v6091 = vunpack.c.l.b16 %v5932
  %v6092 = vunpack.c.l.b16 %v5933
  %v6093 = vunpack.c.l.b16 %v5934
  %v6094 = vunpack.c.l.b16 %v5935
  %v6095 = vunpack.c.l.b16 %v5936
  %v6096 = vunpack.c.l.b16 %v5937
  %v6097 = vunpack.c.l.b16 %v5938
  %v6098 = vunpack.c.l.b16 %v5939
  %v6099 = vunpack.c.l.b16 %v5940
  %v6100 = vunpack.c.l.b16 %v5941
  %v6101 = vunpack.c.l.b16 %v5942
  %v6102 = vunpack.c.l.b16 %v5943
  %v6103 = vunpack.c.l.b16 %v5944
  %v6104 = vunpack.c.l.b16 %v5945
  %v6105 = vunpack.c.l.b16 %v5946
  %v6106 = vunpack.c.l.b16 %v5947
  %v6107 = vunpack.c.l.b16 %v5948
  %v6108 = vunpack.c.l.b16 %v5949
  %v6109 = vunpack.c.l.b16 %v5950
  %v6110 = vunpack.c.l.b16 %v5951
  %v6111 = vunpack.c.l.b16 %v5952
  %v6112 = vunpack.c.l.b16 %v5953
  %v6113 = vunpack.c.l.b16 %v5954
  %v6114 = vunpack.c.l.b16 %v5955
  %v6115 = vunpack.c.l.b16 %v5956
  %v6116 = vunpack.c.l.b16 %v5957
  %v6117 = vunpack.c.l.b16 %v5958
  %v6118 = vunpack.c.l.b16 %v5959
  %v6119 = vunpack.c.l.b16 %v5960
  %v6120 = vunpack.c.l.b16 %v5961
  %v6121 = vunpack.c.l.b16 %v5962
  %v6122 = vunpack.c.l.b16 %v5963
  %v6123 = vunpack.c.l.b16 %v5964
  %v6124 = vunpack.c.l.b16 %v5965
  %v6125 = vunpack.c.l.b16 %v5966
  %v6126 = vunpack.c.l.b16 %v5967
  %v6127 = vunpack.c.l.b16 %v5968
  %v6128 = vunpack.c.l.b16 %v5969
  %v6129 = vunpack.c.l.b16 %v5970
  %v6130 = vunpack.c.l.b16 %v5971
  %v6131 = vunpack.c.l.b16 %v5972
  %v6132 = vunpack.c.l.b16 %v5973
  %v6133 = vunpack.c.l.b16 %v5974
  %v6134 = vunpack.c.l.b16 %v5975
  %v6135 = vunpack.c.l.b16 %v5976
  %v6136 = vunpack.c.l.b16 %v5977
  %v6137 = vunpack.c.l.b16 %v5978
  %v6138 = vunpack.c.l.b16 %v5979
  %v6139 = vunpack.c.l.b16 %v5980
  %v6140 = vunpack.c.l.b16 %v5981
  %v6141 = vunpack.c.l.b16 %v5982
  %v6142 = vunpack.c.l.b16 %v5983
  %v6143 = vunpack.c.l.b16 %v5984
  %v6144 = vunpack.c.l.b16 %v5985
  %v6145 = vunpack.c.l.b16 %v5986
  %v6146 = vunpack.c.l.b16 %v5987
  %v6147 = vunpack.c.l.b16 %v5988
  %v6148 = vunpack.c.l.b16 %v5989
  %v6149 = vunpack.c.l.b16 %v5990
  %v6150 = vunpack.c.l.b16 %v5991
  %v6151 = vunpack.c.l.b16 %v5992
  %v6152 = vunpack.c.l.b16 %v5993
  %v6153 = vunpack.c.l.b16 %v5994
  %v6154 = vunpack.c.l.b16 %v5995
  %v6155 = vunpack.c.l.b16 %v5996
  %v6156 = vunpack.c.l.b16 %v5997
  %v6157 = vunpack.c.l.b16 %v5998
  %v6158 = vunpack.c.l.b16 %v5999
  %v6159 = vunpack.c.l.b16 %v6000
  %v6160 = vunpack.c.l.b16 %v6001
  %v6161 = vpack.c.b16 %v6090, %v6089
  %v6162 = vpack.c.b16 %v6092, %v6091
  %v6163 = vpack.c.b16 %v6094, %v6093
  %v6164 = vpack.c.b16 %v6096, %v6095
  %v6165 = vpack.c.b16 %v6098, %v6097
  %v6166 = vpack.c.b16 %v6100, %v6099
  %v6167 = vpack.c.b16 %v6102, %v6101
  %v6168 = vpack.c.b16 %v6104, %v6103
  %v6169 = vpack.c.b16 %v6106, %v6105
  %v6170 = vpack.c.b16 %v6108, %v6107
  %v6171 = vpack.c.b16 %v6110, %v6109
  %v6172 = vpack.c.b16 %v6112, %v6111
  %v6173 = vpack.c.b16 %v6114, %v6113
  %v6174 = vpack.c.b16 %v6116, %v6115
  %v6175 = vpack.c.b16 %v6118, %v6117
  %v6176 = vpack.c.b16 %v6120, %v6119
  %v6177 = vpack.c.b16 %v6122, %v6121
  %v6178 = vpack.c.b16 %v6124, %v6123
  %v6179 = vpack.c.b16 %v6126, %v6125
  %v6180 = vpack.c.b16 %v6128, %v6127
  %v6181 = vpack.c.b16 %v6130, %v6129
  %v6182 = vpack.c.b16 %v6132, %v6131
  %v6183 = vpack.c.b16 %v6134, %v6133
  %v6184 = vpack.c.b16 %v6136, %v6135
  %v6185 = vpack.c.b16 %v6138, %v6137
  %v6186 = vpack.c.b16 %v6140, %v6139
  %v6187 = vpack.c.b16 %v6142, %v6141
  %v6188 = vpack.c.b16 %v6144, %v6143
  %v6189 = vpack.c.b16 %v6146, %v6145
  %v6190 = vpack.c.b16 %v6148, %v6147
  %v6191 = vpack.c.b16 %v6150, %v6149
  %v6192 = vpack.c.b16 %v6152, %v6151
  %v6193 = vpack.c.b16 %v6154, %v6153
  %v6194 = vpack.c.b16 %v6156, %v6155
  %v6195 = vpack.c.b16 %v6158, %v6157
  %v6196 = vpack.c.b16 %v6160, %v6159
  %v6233 = vsel %vm2100, %v6012, 0
  %6235 = vmatpush.bf16.msra.mxu0 %v6168
  %6236 = vmatpush.bf16.msra.mxu0 %v6167
  %6237 = vmatpush.bf16.msra.mxu0 %v6166
  %6238 = vmatpush.bf16.msra.mxu0 %v6165
  %6239 = vmatpush.bf16.msra.mxu0 %v6164
  %6240 = vmatpush.bf16.msra.mxu0 %v6163
  %6241 = vmatpush.bf16.msra.mxu0 %v6162
  %6242 = vmatpush.bf16.msra.mxu0 %v6161
  %6243 = vmatmul.bf16.gmra.mxu0 %v6008
  %v6244 = vpop.f32.mrf.mxu0
  %v6245 = vadd.f32 %v6004, %v6244
  %v6246 = vpop.f32.mrf.mxu0
  %6247 = vdwg.mxu0
  %6248 = vmatpush.bf16.msra.mxu0 %v6176
  %6249 = vmatpush.bf16.msra.mxu0 %v6175
  %6250 = vmatpush.bf16.msra.mxu0 %v6174
  %6251 = vmatpush.bf16.msra.mxu0 %v6173
  %6252 = vmatpush.bf16.msra.mxu0 %v6172
  %6253 = vmatpush.bf16.msra.mxu0 %v6171
  %6254 = vmatpush.bf16.msra.mxu0 %v6170
  %6255 = vmatpush.bf16.msra.mxu0 %v6169
  %6256 = vmatmul.bf16.gmra.mxu0 %v6009
  %v6257 = vpop.f32.mrf.mxu0
  %v6258 = vadd.f32 %v6245, %v6257
  %v6259 = vpop.f32.mrf.mxu0
  %6260 = vdwg.mxu0
  %6261 = vmatpush.bf16.msra.mxu0 %v6184
  %6262 = vmatpush.bf16.msra.mxu0 %v6183
  %6263 = vmatpush.bf16.msra.mxu0 %v6182
  %6264 = vmatpush.bf16.msra.mxu0 %v6181
  %6265 = vmatpush.bf16.msra.mxu0 %v6180
  %6266 = vmatpush.bf16.msra.mxu0 %v6179
  %6267 = vmatpush.bf16.msra.mxu0 %v6178
  %6268 = vmatpush.bf16.msra.mxu0 %v6177
  %6269 = vmatmul.bf16.gmra.mxu0 %v6010
  %v6270 = vpop.f32.mrf.mxu0
  %v6271 = vadd.f32 %v6258, %v6270
  %v6272 = vpop.f32.mrf.mxu0
  %6273 = vdwg.mxu0
  %6274 = vmatpush.bf16.msra.mxu0 %v6192
  %6275 = vmatpush.bf16.msra.mxu0 %v6191
  %6276 = vmatpush.bf16.msra.mxu0 %v6190
  %6277 = vmatpush.bf16.msra.mxu0 %v6189
  %6278 = vmatpush.bf16.msra.mxu0 %v6188
  %6279 = vmatpush.bf16.msra.mxu0 %v6187
  %6280 = vmatpush.bf16.msra.mxu0 %v6186
  %6281 = vmatpush.bf16.msra.mxu0 %v6185
  %6282 = vmatmul.bf16.gmra.mxu0 %v6011
  %v6283 = vpop.f32.mrf.mxu0
  %v6284 = vadd.f32 %v6271, %v6283
  %v6285 = vpop.f32.mrf.mxu0
  %6286 = vdwg.mxu0
  %6287 = vmatpush.bf16.msra.mxu0 0
  %6288 = vmatpush.bf16.msra.mxu0 0
  %6289 = vmatpush.bf16.msra.mxu0 0
  %6290 = vmatpush.bf16.msra.mxu0 0
  %6291 = vmatpush.bf16.msra.mxu0 %v6196
  %6292 = vmatpush.bf16.msra.mxu0 %v6195
  %6293 = vmatpush.bf16.msra.mxu0 %v6194
  %6294 = vmatpush.bf16.msra.mxu0 %v6193
  %6295 = vmatmul.bf16.gmra.mxu0 %v6233
  %v6296 = vpop.f32.mrf.mxu0
  %v6297 = vadd.f32 %v6284, %v6296
  %v6298 = vpop.f32.mrf.mxu0
  %6299 = vdwg.mxu0
  %v6300 = vmax.f32 %v6297, 0.0
  %v6301 = vld [vmem:[%s15] sm:$0x1]
  %v6302 = vld [vmem:[%s16] sm:$0x1]
  %v6303 = vsel %vm5823, %v6300, 0.0
  %v6304 = vrot.slane %v6303, 4
  %v6305 = vadd.f32 %v6303, %v6304
  %v6306 = vrot.slane %v6305, 2
  %v6307 = vadd.f32 %v6305, %v6306
  %v6308 = vrot.slane %v6307, 1
  %v6309 = vadd.f32 %v6307, %v6308
  %v6310 = vmul.f32 %v6309, 0.5
  %v6311 = vmul.f32 %v6300, %v6300
  %v6312 = vsel %vm5823, %v6311, 0.0
  %v6313 = vrot.slane %v6312, 4
  %v6314 = vadd.f32 %v6312, %v6313
  %v6315 = vrot.slane %v6314, 2
  %v6316 = vadd.f32 %v6314, %v6315
  %v6317 = vrot.slane %v6316, 1
  %v6318 = vadd.f32 %v6316, %v6317
  %v6319 = vmul.f32 %v6318, 0.5
  %v6320 = vmul.f32 %v6310, %v6310
  %v6321 = vsub.f32 %v6319, %v6320
  %v6322 = vmax.f32 %v6321, 0.0
  %v6323 = vsub.f32 %v6300, %v6310
  %v6325 = vperm.slane %v6301, 0
  %v6327 = vmul.f32 %v6325, %v6323
  %v6328 = vadd.f32 %v6322, 1e-05
  %v6329 = vrsqrt.pop %v6328
  %v6330 = vmul.f32 %v6329, %v6328
  %v6331 = vmul.f32 %v6330, %v6329
  %v6332 = vmul.f32 0.5, %v6331
  %v6333 = vsub.f32 1.5, %v6332
  %v6334 = vmul.f32 %v6329, %v6333
  %vm6335 = vweird.f32 %v6328
  %vm6336 = vweird.f32 %v6329
  %vm6337 = vmor %vm6335, %vm6336
  %v6338 = vsel %vm6337, %v6329, %v6334
  %v6339 = vmul.f32 %v6327, %v6338
  %v6341 = vperm.slane %v6302, 0
  %v6343 = vadd.f32 %v6339, %v6341
  %s6344 = smul.u32 4, 16
  %s6345 = smul.u32 %s6344, 8
  %s6346 = sshll.u32 %s6345, 4
  %6347 = dma.done [#allocation11], %s6346
  %v6348 = vpack.c.bf16 %v6343, %v6343
  %v6349 = vld [vmem:[#allocation8] sm:$0xff]
  %v6350 = vld [vmem:[#allocation8 + $0x8] sm:$0xff]
  %v6351 = vld [vmem:[#allocation8 + $0x10] sm:$0xff]
  %v6352 = vld [vmem:[#allocation8 + $0x18] sm:$0xff]
  %v6353 = vld [vmem:[#allocation8 + $0x20] sm:$0xff]
  %v6354 = vld [vmem:[#allocation8 + $0x28] sm:$0xff]
  %v6355 = vld [vmem:[#allocation8 + $0x30] sm:$0xff]
  %v6356 = vld [vmem:[#allocation8 + $0x38] sm:$0xff]
  %v6357 = vld [vmem:[#allocation8 + $0x40] sm:$0xff]
  %v6358 = vld [vmem:[#allocation8 + $0x48] sm:$0xff]
  %v6359 = vld [vmem:[#allocation8 + $0x50] sm:$0xff]
  %v6360 = vld [vmem:[#allocation8 + $0x58] sm:$0xff]
  %v6361 = vld [vmem:[#allocation8 + $0x60] sm:$0xff]
  %v6362 = vld [vmem:[#allocation8 + $0x68] sm:$0xff]
  %v6363 = vld [vmem:[#allocation8 + $0x70] sm:$0xff]
  %v6364 = vld [vmem:[#allocation8 + $0x78] sm:$0xff]
  %v6365 = vld [vmem:[#allocation8 + $0x80] sm:$0xff]
  %v6366 = vld [vmem:[#allocation8 + $0x88] sm:$0xff]
  %v6367 = vld [vmem:[#allocation8 + $0x90] sm:$0xff]
  %v6368 = vld [vmem:[#allocation8 + $0x98] sm:$0xff]
  %v6369 = vld [vmem:[#allocation8 + $0xa0] sm:$0xff]
  %v6370 = vld [vmem:[#allocation8 + $0xa8] sm:$0xff]
  %v6371 = vld [vmem:[#allocation8 + $0xb0] sm:$0xff]
  %v6372 = vld [vmem:[#allocation8 + $0xb8] sm:$0xff]
  %v6373 = vld [vmem:[#allocation8 + $0xc0] sm:$0xff]
  %v6374 = vld [vmem:[#allocation8 + $0xc8] sm:$0xff]
  %v6375 = vld [vmem:[#allocation8 + $0xd0] sm:$0xff]
  %v6376 = vld [vmem:[#allocation8 + $0xd8] sm:$0xff]
  %v6377 = vld [vmem:[#allocation8 + $0xe0] sm:$0xff]
  %v6378 = vld [vmem:[#allocation8 + $0xe8] sm:$0xff]
  %v6379 = vld [vmem:[#allocation8 + $0xf0] sm:$0xff]
  %v6380 = vld [vmem:[#allocation8 + $0xf8] sm:$0xff]
  %v6381 = vld [vmem:[#allocation8 + $0x100] sm:$0xff]
  %v6382 = vld [vmem:[#allocation8 + $0x108] sm:$0xff]
  %v6383 = vld [vmem:[#allocation8 + $0x110] sm:$0xff]
  %v6384 = vld [vmem:[#allocation8 + $0x118] sm:$0xff]
  %v6385 = vld [vmem:[#allocation8 + $0x120] sm:$0xff]
  %v6386 = vld [vmem:[#allocation8 + $0x128] sm:$0xff]
  %v6387 = vld [vmem:[#allocation8 + $0x130] sm:$0xff]
  %v6388 = vld [vmem:[#allocation8 + $0x138] sm:$0xff]
  %v6389 = vld [vmem:[#allocation8 + $0x140] sm:$0xff]
  %v6390 = vld [vmem:[#allocation8 + $0x148] sm:$0xff]
  %v6391 = vld [vmem:[#allocation8 + $0x150] sm:$0xff]
  %v6392 = vld [vmem:[#allocation8 + $0x158] sm:$0xff]
  %v6393 = vld [vmem:[#allocation8 + $0x160] sm:$0xff]
  %v6394 = vld [vmem:[#allocation8 + $0x168] sm:$0xff]
  %v6395 = vld [vmem:[#allocation8 + $0x170] sm:$0xff]
  %v6396 = vld [vmem:[#allocation8 + $0x178] sm:$0xff]
  %v6397 = vld [vmem:[#allocation8 + $0x180] sm:$0xff]
  %v6398 = vld [vmem:[#allocation8 + $0x188] sm:$0xff]
  %v6399 = vld [vmem:[#allocation8 + $0x190] sm:$0xff]
  %v6400 = vld [vmem:[#allocation8 + $0x198] sm:$0xff]
  %v6401 = vld [vmem:[#allocation8 + $0x1a0] sm:$0xff]
  %v6402 = vld [vmem:[#allocation8 + $0x1a8] sm:$0xff]
  %v6403 = vld [vmem:[#allocation8 + $0x1b0] sm:$0xff]
  %v6404 = vld [vmem:[#allocation8 + $0x1b8] sm:$0xff]
  %v6405 = vld [vmem:[#allocation8 + $0x1c0] sm:$0xff]
  %v6406 = vld [vmem:[#allocation8 + $0x1c8] sm:$0xff]
  %v6407 = vld [vmem:[#allocation8 + $0x1d0] sm:$0xff]
  %v6408 = vld [vmem:[#allocation8 + $0x1d8] sm:$0xff]
  %v6409 = vld [vmem:[#allocation8 + $0x1e0] sm:$0xff]
  %v6410 = vld [vmem:[#allocation8 + $0x1e8] sm:$0xff]
  %v6411 = vld [vmem:[#allocation8 + $0x1f0] sm:$0xff]
  %v6412 = vld [vmem:[#allocation8 + $0x1f8] sm:$0xff]
  %v6413 = vld [vmem:[%s17] sm:$0xff]
  %v6415 = vperm.slane %v6413, 0
  %v6416 = vperm.slane %v6413, 1
  %v6417 = vperm.slane %v6413, 2
  %v6418 = vperm.slane %v6413, 3
  %v6419 = vperm.slane %v6413, 4
  %v6420 = vperm.slane %v6413, 5
  %v6421 = vperm.slane %v6413, 6
  %v6422 = vperm.slane %v6413, 7
  %v6495 = vunpack.c.l.b16 %v6349
  %v6496 = vunpack.c.h.b16 %v6349
  %v6497 = vunpack.c.l.b16 %v6350
  %v6498 = vunpack.c.h.b16 %v6350
  %v6499 = vunpack.c.l.b16 %v6351
  %v6500 = vunpack.c.h.b16 %v6351
  %v6501 = vunpack.c.l.b16 %v6352
  %v6502 = vunpack.c.h.b16 %v6352
  %v6503 = vunpack.c.l.b16 %v6353
  %v6504 = vunpack.c.h.b16 %v6353
  %v6505 = vunpack.c.l.b16 %v6354
  %v6506 = vunpack.c.h.b16 %v6354
  %v6507 = vunpack.c.l.b16 %v6355
  %v6508 = vunpack.c.h.b16 %v6355
  %v6509 = vunpack.c.l.b16 %v6356
  %v6510 = vunpack.c.h.b16 %v6356
  %v6511 = vunpack.c.l.b16 %v6357
  %v6512 = vunpack.c.h.b16 %v6357
  %v6513 = vunpack.c.l.b16 %v6358
  %v6514 = vunpack.c.h.b16 %v6358
  %v6515 = vunpack.c.l.b16 %v6359
  %v6516 = vunpack.c.h.b16 %v6359
  %v6517 = vunpack.c.l.b16 %v6360
  %v6518 = vunpack.c.h.b16 %v6360
  %v6519 = vunpack.c.l.b16 %v6361
  %v6520 = vunpack.c.h.b16 %v6361
  %v6521 = vunpack.c.l.b16 %v6362
  %v6522 = vunpack.c.h.b16 %v6362
  %v6523 = vunpack.c.l.b16 %v6363
  %v6524 = vunpack.c.h.b16 %v6363
  %v6525 = vunpack.c.l.b16 %v6364
  %v6526 = vunpack.c.h.b16 %v6364
  %v6527 = vunpack.c.l.b16 %v6365
  %v6528 = vunpack.c.h.b16 %v6365
  %v6529 = vunpack.c.l.b16 %v6366
  %v6530 = vunpack.c.h.b16 %v6366
  %v6531 = vunpack.c.l.b16 %v6367
  %v6532 = vunpack.c.h.b16 %v6367
  %v6533 = vunpack.c.l.b16 %v6368
  %v6534 = vunpack.c.h.b16 %v6368
  %v6535 = vunpack.c.l.b16 %v6369
  %v6536 = vunpack.c.h.b16 %v6369
  %v6537 = vunpack.c.l.b16 %v6370
  %v6538 = vunpack.c.h.b16 %v6370
  %v6539 = vunpack.c.l.b16 %v6371
  %v6540 = vunpack.c.h.b16 %v6371
  %v6541 = vunpack.c.l.b16 %v6372
  %v6542 = vunpack.c.h.b16 %v6372
  %v6543 = vunpack.c.l.b16 %v6373
  %v6544 = vunpack.c.h.b16 %v6373
  %v6545 = vunpack.c.l.b16 %v6374
  %v6546 = vunpack.c.h.b16 %v6374
  %v6547 = vunpack.c.l.b16 %v6375
  %v6548 = vunpack.c.h.b16 %v6375
  %v6549 = vunpack.c.l.b16 %v6376
  %v6550 = vunpack.c.h.b16 %v6376
  %v6551 = vunpack.c.l.b16 %v6377
  %v6552 = vunpack.c.h.b16 %v6377
  %v6553 = vunpack.c.l.b16 %v6378
  %v6554 = vunpack.c.h.b16 %v6378
  %v6555 = vunpack.c.l.b16 %v6379
  %v6556 = vunpack.c.h.b16 %v6379
  %v6557 = vunpack.c.l.b16 %v6380
  %v6558 = vunpack.c.h.b16 %v6380
  %v6559 = vunpack.c.l.b16 %v6381
  %v6560 = vunpack.c.h.b16 %v6381
  %v6561 = vunpack.c.l.b16 %v6382
  %v6562 = vunpack.c.h.b16 %v6382
  %v6563 = vunpack.c.l.b16 %v6383
  %v6564 = vunpack.c.h.b16 %v6383
  %v6565 = vunpack.c.l.b16 %v6384
  %v6566 = vunpack.c.h.b16 %v6384
  %v6567 = vunpack.c.l.b16 %v6385
  %v6568 = vunpack.c.h.b16 %v6385
  %v6569 = vunpack.c.l.b16 %v6386
  %v6570 = vunpack.c.h.b16 %v6386
  %v6571 = vunpack.c.l.b16 %v6387
  %v6572 = vunpack.c.h.b16 %v6387
  %v6573 = vunpack.c.l.b16 %v6388
  %v6574 = vunpack.c.h.b16 %v6388
  %v6575 = vunpack.c.l.b16 %v6389
  %v6576 = vunpack.c.h.b16 %v6389
  %v6577 = vunpack.c.l.b16 %v6390
  %v6578 = vunpack.c.h.b16 %v6390
  %v6579 = vunpack.c.l.b16 %v6391
  %v6580 = vunpack.c.h.b16 %v6391
  %v6581 = vunpack.c.l.b16 %v6392
  %v6582 = vunpack.c.h.b16 %v6392
  %v6583 = vunpack.c.l.b16 %v6393
  %v6584 = vunpack.c.h.b16 %v6393
  %v6585 = vunpack.c.l.b16 %v6394
  %v6586 = vunpack.c.h.b16 %v6394
  %v6587 = vunpack.c.l.b16 %v6395
  %v6588 = vunpack.c.h.b16 %v6395
  %v6589 = vunpack.c.l.b16 %v6396
  %v6590 = vunpack.c.h.b16 %v6396
  %v6591 = vunpack.c.l.b16 %v6397
  %v6592 = vunpack.c.h.b16 %v6397
  %v6593 = vunpack.c.l.b16 %v6398
  %v6594 = vunpack.c.h.b16 %v6398
  %v6595 = vunpack.c.l.b16 %v6399
  %v6596 = vunpack.c.h.b16 %v6399
  %v6597 = vunpack.c.l.b16 %v6400
  %v6598 = vunpack.c.h.b16 %v6400
  %v6599 = vunpack.c.l.b16 %v6401
  %v6600 = vunpack.c.h.b16 %v6401
  %v6601 = vunpack.c.l.b16 %v6402
  %v6602 = vunpack.c.h.b16 %v6402
  %v6603 = vunpack.c.l.b16 %v6403
  %v6604 = vunpack.c.h.b16 %v6403
  %v6605 = vunpack.c.l.b16 %v6404
  %v6606 = vunpack.c.h.b16 %v6404
  %v6607 = vunpack.c.l.b16 %v6405
  %v6608 = vunpack.c.h.b16 %v6405
  %v6609 = vunpack.c.l.b16 %v6406
  %v6610 = vunpack.c.h.b16 %v6406
  %v6611 = vunpack.c.l.b16 %v6407
  %v6612 = vunpack.c.h.b16 %v6407
  %v6613 = vunpack.c.l.b16 %v6408
  %v6614 = vunpack.c.h.b16 %v6408
  %v6615 = vunpack.c.l.b16 %v6409
  %v6616 = vunpack.c.h.b16 %v6409
  %v6617 = vunpack.c.l.b16 %v6410
  %v6618 = vunpack.c.h.b16 %v6410
  %v6619 = vunpack.c.l.b16 %v6411
  %v6620 = vunpack.c.h.b16 %v6411
  %v6621 = vunpack.c.l.b16 %v6412
  %v6622 = vunpack.c.h.b16 %v6412
  %v6623 = vpack.c.b16 %v6503, %v6495
  %v6624 = vpack.c.b16 %v6504, %v6496
  %v6625 = vpack.c.b16 %v6505, %v6497
  %v6626 = vpack.c.b16 %v6506, %v6498
  %v6627 = vpack.c.b16 %v6507, %v6499
  %v6628 = vpack.c.b16 %v6508, %v6500
  %v6629 = vpack.c.b16 %v6509, %v6501
  %v6630 = vpack.c.b16 %v6510, %v6502
  %v6631 = vpack.c.b16 %v6519, %v6511
  %v6632 = vpack.c.b16 %v6520, %v6512
  %v6633 = vpack.c.b16 %v6521, %v6513
  %v6634 = vpack.c.b16 %v6522, %v6514
  %v6635 = vpack.c.b16 %v6523, %v6515
  %v6636 = vpack.c.b16 %v6524, %v6516
  %v6637 = vpack.c.b16 %v6525, %v6517
  %v6638 = vpack.c.b16 %v6526, %v6518
  %v6639 = vpack.c.b16 %v6535, %v6527
  %v6640 = vpack.c.b16 %v6536, %v6528
  %v6641 = vpack.c.b16 %v6537, %v6529
  %v6642 = vpack.c.b16 %v6538, %v6530
  %v6643 = vpack.c.b16 %v6539, %v6531
  %v6644 = vpack.c.b16 %v6540, %v6532
  %v6645 = vpack.c.b16 %v6541, %v6533
  %v6646 = vpack.c.b16 %v6542, %v6534
  %v6647 = vpack.c.b16 %v6551, %v6543
  %v6648 = vpack.c.b16 %v6552, %v6544
  %v6649 = vpack.c.b16 %v6553, %v6545
  %v6650 = vpack.c.b16 %v6554, %v6546
  %v6651 = vpack.c.b16 %v6555, %v6547
  %v6652 = vpack.c.b16 %v6556, %v6548
  %v6653 = vpack.c.b16 %v6557, %v6549
  %v6654 = vpack.c.b16 %v6558, %v6550
  %v6655 = vpack.c.b16 %v6567, %v6559
  %v6656 = vpack.c.b16 %v6568, %v6560
  %v6657 = vpack.c.b16 %v6569, %v6561
  %v6658 = vpack.c.b16 %v6570, %v6562
  %v6659 = vpack.c.b16 %v6571, %v6563
  %v6660 = vpack.c.b16 %v6572, %v6564
  %v6661 = vpack.c.b16 %v6573, %v6565
  %v6662 = vpack.c.b16 %v6574, %v6566
  %v6663 = vpack.c.b16 %v6583, %v6575
  %v6664 = vpack.c.b16 %v6584, %v6576
  %v6665 = vpack.c.b16 %v6585, %v6577
  %v6666 = vpack.c.b16 %v6586, %v6578
  %v6667 = vpack.c.b16 %v6587, %v6579
  %v6668 = vpack.c.b16 %v6588, %v6580
  %v6669 = vpack.c.b16 %v6589, %v6581
  %v6670 = vpack.c.b16 %v6590, %v6582
  %v6671 = vpack.c.b16 %v6599, %v6591
  %v6672 = vpack.c.b16 %v6600, %v6592
  %v6673 = vpack.c.b16 %v6601, %v6593
  %v6674 = vpack.c.b16 %v6602, %v6594
  %v6675 = vpack.c.b16 %v6603, %v6595
  %v6676 = vpack.c.b16 %v6604, %v6596
  %v6677 = vpack.c.b16 %v6605, %v6597
  %v6678 = vpack.c.b16 %v6606, %v6598
  %v6679 = vpack.c.b16 %v6615, %v6607
  %v6680 = vpack.c.b16 %v6616, %v6608
  %v6681 = vpack.c.b16 %v6617, %v6609
  %v6682 = vpack.c.b16 %v6618, %v6610
  %v6683 = vpack.c.b16 %v6619, %v6611
  %v6684 = vpack.c.b16 %v6620, %v6612
  %v6685 = vpack.c.b16 %v6621, %v6613
  %v6686 = vpack.c.b16 %v6622, %v6614
  %6751 = vmatpush.bf16.msra.mxu0 %v6679
  %6752 = vmatpush.bf16.msra.mxu0 %v6671
  %6753 = vmatpush.bf16.msra.mxu0 %v6663
  %6754 = vmatpush.bf16.msra.mxu0 %v6655
  %6755 = vmatpush.bf16.msra.mxu0 %v6647
  %6756 = vmatpush.bf16.msra.mxu0 %v6639
  %6757 = vmatpush.bf16.msra.mxu0 %v6631
  %6758 = vmatpush.bf16.msra.mxu0 %v6623
  %6759 = vmatmul.bf16.gmra.mxu0 %v6348
  %v6760 = vpop.f32.mrf.mxu0
  %v6761 = vadd.f32 %v6415, %v6760
  %v6762 = vpop.f32.mrf.mxu0
  %6763 = vdwg.mxu0
  %6764 = vmatpush.bf16.msra.mxu0 %v6680
  %6765 = vmatpush.bf16.msra.mxu0 %v6672
  %6766 = vmatpush.bf16.msra.mxu0 %v6664
  %6767 = vmatpush.bf16.msra.mxu0 %v6656
  %6768 = vmatpush.bf16.msra.mxu0 %v6648
  %6769 = vmatpush.bf16.msra.mxu0 %v6640
  %6770 = vmatpush.bf16.msra.mxu0 %v6632
  %6771 = vmatpush.bf16.msra.mxu0 %v6624
  %6772 = vmatmul.bf16.gmra.mxu0 %v6348
  %v6773 = vpop.f32.mrf.mxu0
  %v6774 = vadd.f32 %v6416, %v6773
  %v6775 = vpop.f32.mrf.mxu0
  %6776 = vdwg.mxu0
  %6777 = vmatpush.bf16.msra.mxu0 %v6681
  %6778 = vmatpush.bf16.msra.mxu0 %v6673
  %6779 = vmatpush.bf16.msra.mxu0 %v6665
  %6780 = vmatpush.bf16.msra.mxu0 %v6657
  %6781 = vmatpush.bf16.msra.mxu0 %v6649
  %6782 = vmatpush.bf16.msra.mxu0 %v6641
  %6783 = vmatpush.bf16.msra.mxu0 %v6633
  %6784 = vmatpush.bf16.msra.mxu0 %v6625
  %6785 = vmatmul.bf16.gmra.mxu0 %v6348
  %v6786 = vpop.f32.mrf.mxu0
  %v6787 = vadd.f32 %v6417, %v6786
  %v6788 = vpop.f32.mrf.mxu0
  %6789 = vdwg.mxu0
  %6790 = vmatpush.bf16.msra.mxu0 %v6682
  %6791 = vmatpush.bf16.msra.mxu0 %v6674
  %6792 = vmatpush.bf16.msra.mxu0 %v6666
  %6793 = vmatpush.bf16.msra.mxu0 %v6658
  %6794 = vmatpush.bf16.msra.mxu0 %v6650
  %6795 = vmatpush.bf16.msra.mxu0 %v6642
  %6796 = vmatpush.bf16.msra.mxu0 %v6634
  %6797 = vmatpush.bf16.msra.mxu0 %v6626
  %6798 = vmatmul.bf16.gmra.mxu0 %v6348
  %v6799 = vpop.f32.mrf.mxu0
  %v6800 = vadd.f32 %v6418, %v6799
  %v6801 = vpop.f32.mrf.mxu0
  %6802 = vdwg.mxu0
  %6803 = vmatpush.bf16.msra.mxu0 %v6683
  %6804 = vmatpush.bf16.msra.mxu0 %v6675
  %6805 = vmatpush.bf16.msra.mxu0 %v6667
  %6806 = vmatpush.bf16.msra.mxu0 %v6659
  %6807 = vmatpush.bf16.msra.mxu0 %v6651
  %6808 = vmatpush.bf16.msra.mxu0 %v6643
  %6809 = vmatpush.bf16.msra.mxu0 %v6635
  %6810 = vmatpush.bf16.msra.mxu0 %v6627
  %6811 = vmatmul.bf16.gmra.mxu0 %v6348
  %v6812 = vpop.f32.mrf.mxu0
  %v6813 = vadd.f32 %v6419, %v6812
  %v6814 = vpop.f32.mrf.mxu0
  %6815 = vdwg.mxu0
  %6816 = vmatpush.bf16.msra.mxu0 %v6684
  %6817 = vmatpush.bf16.msra.mxu0 %v6676
  %6818 = vmatpush.bf16.msra.mxu0 %v6668
  %6819 = vmatpush.bf16.msra.mxu0 %v6660
  %6820 = vmatpush.bf16.msra.mxu0 %v6652
  %6821 = vmatpush.bf16.msra.mxu0 %v6644
  %6822 = vmatpush.bf16.msra.mxu0 %v6636
  %6823 = vmatpush.bf16.msra.mxu0 %v6628
  %6824 = vmatmul.bf16.gmra.mxu0 %v6348
  %v6825 = vpop.f32.mrf.mxu0
  %v6826 = vadd.f32 %v6420, %v6825
  %v6827 = vpop.f32.mrf.mxu0
  %6828 = vdwg.mxu0
  %6829 = vmatpush.bf16.msra.mxu0 %v6685
  %6830 = vmatpush.bf16.msra.mxu0 %v6677
  %6831 = vmatpush.bf16.msra.mxu0 %v6669
  %6832 = vmatpush.bf16.msra.mxu0 %v6661
  %6833 = vmatpush.bf16.msra.mxu0 %v6653
  %6834 = vmatpush.bf16.msra.mxu0 %v6645
  %6835 = vmatpush.bf16.msra.mxu0 %v6637
  %6836 = vmatpush.bf16.msra.mxu0 %v6629
  %6837 = vmatmul.bf16.gmra.mxu0 %v6348
  %v6838 = vpop.f32.mrf.mxu0
  %v6839 = vadd.f32 %v6421, %v6838
  %v6840 = vpop.f32.mrf.mxu0
  %6841 = vdwg.mxu0
  %6842 = vmatpush.bf16.msra.mxu0 %v6686
  %6843 = vmatpush.bf16.msra.mxu0 %v6678
  %6844 = vmatpush.bf16.msra.mxu0 %v6670
  %6845 = vmatpush.bf16.msra.mxu0 %v6662
  %6846 = vmatpush.bf16.msra.mxu0 %v6654
  %6847 = vmatpush.bf16.msra.mxu0 %v6646
  %6848 = vmatpush.bf16.msra.mxu0 %v6638
  %6849 = vmatpush.bf16.msra.mxu0 %v6630
  %6850 = vmatmul.bf16.gmra.mxu0 %v6348
  %v6851 = vpop.f32.mrf.mxu0
  %v6852 = vadd.f32 %v6422, %v6851
  %v6853 = vpop.f32.mrf.mxu0
  %6854 = vdwg.mxu0
  %v6855 = vmax.f32 %v6761, 0.0
  %v6856 = vmax.f32 %v6774, 0.0
  %v6857 = vmax.f32 %v6787, 0.0
  %v6858 = vmax.f32 %v6800, 0.0
  %v6859 = vmax.f32 %v6813, 0.0
  %v6860 = vmax.f32 %v6826, 0.0
  %v6861 = vmax.f32 %v6839, 0.0
  %v6862 = vmax.f32 %v6852, 0.0
  %s6863 = smul.u32 4, 128
  %s6864 = smul.u32 %s6863, 4
  %s6865 = sshll.u32 %s6864, 4
  %6866 = dma.done %s213, %s6865
  %v6867 = vpack.c.bf16 %v6855, %v6855
  %v6868 = vpack.c.bf16 %v6856, %v6856
  %v6869 = vpack.c.bf16 %v6857, %v6857
  %v6870 = vpack.c.bf16 %v6858, %v6858
  %v6871 = vpack.c.bf16 %v6859, %v6859
  %v6872 = vpack.c.bf16 %v6860, %v6860
  %v6873 = vpack.c.bf16 %v6861, %v6861
  %v6874 = vpack.c.bf16 %v6862, %v6862
  %v6875 = vld [vmem:[#allocation9] sm:$0xff]
  %v6876 = vld [vmem:[#allocation9 + $0x8] sm:$0xff]
  %v6877 = vld [vmem:[#allocation9 + $0x10] sm:$0xff]
  %v6878 = vld [vmem:[#allocation9 + $0x18] sm:$0xff]
  %v6879 = vld [vmem:[#allocation9 + $0x20] sm:$0xff]
  %v6880 = vld [vmem:[#allocation9 + $0x28] sm:$0xff]
  %v6881 = vld [vmem:[#allocation9 + $0x30] sm:$0xff]
  %v6882 = vld [vmem:[#allocation9 + $0x38] sm:$0xff]
  %v6883 = vld [vmem:[#allocation9 + $0x40] sm:$0xff]
  %v6884 = vld [vmem:[#allocation9 + $0x48] sm:$0xff]
  %v6885 = vld [vmem:[#allocation9 + $0x50] sm:$0xff]
  %v6886 = vld [vmem:[#allocation9 + $0x58] sm:$0xff]
  %v6887 = vld [vmem:[#allocation9 + $0x60] sm:$0xff]
  %v6888 = vld [vmem:[#allocation9 + $0x68] sm:$0xff]
  %v6889 = vld [vmem:[#allocation9 + $0x70] sm:$0xff]
  %v6890 = vld [vmem:[#allocation9 + $0x78] sm:$0xff]
  %v6891 = vld [vmem:[#allocation9 + $0x80] sm:$0xff]
  %v6892 = vld [vmem:[#allocation9 + $0x88] sm:$0xff]
  %v6893 = vld [vmem:[#allocation9 + $0x90] sm:$0xff]
  %v6894 = vld [vmem:[#allocation9 + $0x98] sm:$0xff]
  %v6895 = vld [vmem:[#allocation9 + $0xa0] sm:$0xff]
  %v6896 = vld [vmem:[#allocation9 + $0xa8] sm:$0xff]
  %v6897 = vld [vmem:[#allocation9 + $0xb0] sm:$0xff]
  %v6898 = vld [vmem:[#allocation9 + $0xb8] sm:$0xff]
  %v6899 = vld [vmem:[#allocation9 + $0xc0] sm:$0xff]
  %v6900 = vld [vmem:[#allocation9 + $0xc8] sm:$0xff]
  %v6901 = vld [vmem:[#allocation9 + $0xd0] sm:$0xff]
  %v6902 = vld [vmem:[#allocation9 + $0xd8] sm:$0xff]
  %v6903 = vld [vmem:[#allocation9 + $0xe0] sm:$0xff]
  %v6904 = vld [vmem:[#allocation9 + $0xe8] sm:$0xff]
  %v6905 = vld [vmem:[#allocation9 + $0xf0] sm:$0xff]
  %v6906 = vld [vmem:[#allocation9 + $0xf8] sm:$0xff]
  %v6907 = vld [vmem:[#allocation9 + $0x100] sm:$0xff]
  %v6908 = vld [vmem:[#allocation9 + $0x108] sm:$0xff]
  %v6909 = vld [vmem:[#allocation9 + $0x110] sm:$0xff]
  %v6910 = vld [vmem:[#allocation9 + $0x118] sm:$0xff]
  %v6911 = vld [vmem:[#allocation9 + $0x120] sm:$0xff]
  %v6912 = vld [vmem:[#allocation9 + $0x128] sm:$0xff]
  %v6913 = vld [vmem:[#allocation9 + $0x130] sm:$0xff]
  %v6914 = vld [vmem:[#allocation9 + $0x138] sm:$0xff]
  %v6915 = vld [vmem:[#allocation9 + $0x140] sm:$0xff]
  %v6916 = vld [vmem:[#allocation9 + $0x148] sm:$0xff]
  %v6917 = vld [vmem:[#allocation9 + $0x150] sm:$0xff]
  %v6918 = vld [vmem:[#allocation9 + $0x158] sm:$0xff]
  %v6919 = vld [vmem:[#allocation9 + $0x160] sm:$0xff]
  %v6920 = vld [vmem:[#allocation9 + $0x168] sm:$0xff]
  %v6921 = vld [vmem:[#allocation9 + $0x170] sm:$0xff]
  %v6922 = vld [vmem:[#allocation9 + $0x178] sm:$0xff]
  %v6923 = vld [vmem:[#allocation9 + $0x180] sm:$0xff]
  %v6924 = vld [vmem:[#allocation9 + $0x188] sm:$0xff]
  %v6925 = vld [vmem:[#allocation9 + $0x190] sm:$0xff]
  %v6926 = vld [vmem:[#allocation9 + $0x198] sm:$0xff]
  %v6927 = vld [vmem:[#allocation9 + $0x1a0] sm:$0xff]
  %v6928 = vld [vmem:[#allocation9 + $0x1a8] sm:$0xff]
  %v6929 = vld [vmem:[#allocation9 + $0x1b0] sm:$0xff]
  %v6930 = vld [vmem:[#allocation9 + $0x1b8] sm:$0xff]
  %v6931 = vld [vmem:[#allocation9 + $0x1c0] sm:$0xff]
  %v6932 = vld [vmem:[#allocation9 + $0x1c8] sm:$0xff]
  %v6933 = vld [vmem:[#allocation9 + $0x1d0] sm:$0xff]
  %v6934 = vld [vmem:[#allocation9 + $0x1d8] sm:$0xff]
  %v6935 = vld [vmem:[#allocation9 + $0x1e0] sm:$0xff]
  %v6936 = vld [vmem:[#allocation9 + $0x1e8] sm:$0xff]
  %v6937 = vld [vmem:[#allocation9 + $0x1f0] sm:$0xff]
  %v6938 = vld [vmem:[#allocation9 + $0x1f8] sm:$0xff]
  %v6939 = vld [vmem:[#allocation9 + $0x200] sm:$0xff]
  %v6940 = vld [vmem:[#allocation9 + $0x208] sm:$0xff]
  %v6941 = vld [vmem:[#allocation9 + $0x210] sm:$0xff]
  %v6942 = vld [vmem:[#allocation9 + $0x218] sm:$0xff]
  %v6943 = vld [vmem:[#allocation9 + $0x220] sm:$0xff]
  %v6944 = vld [vmem:[#allocation9 + $0x228] sm:$0xff]
  %v6945 = vld [vmem:[#allocation9 + $0x230] sm:$0xff]
  %v6946 = vld [vmem:[#allocation9 + $0x238] sm:$0xff]
  %v6947 = vld [vmem:[#allocation9 + $0x240] sm:$0xff]
  %v6948 = vld [vmem:[#allocation9 + $0x248] sm:$0xff]
  %v6949 = vld [vmem:[#allocation9 + $0x250] sm:$0xff]
  %v6950 = vld [vmem:[#allocation9 + $0x258] sm:$0xff]
  %v6951 = vld [vmem:[#allocation9 + $0x260] sm:$0xff]
  %v6952 = vld [vmem:[#allocation9 + $0x268] sm:$0xff]
  %v6953 = vld [vmem:[#allocation9 + $0x270] sm:$0xff]
  %v6954 = vld [vmem:[#allocation9 + $0x278] sm:$0xff]
  %v6955 = vld [vmem:[#allocation9 + $0x280] sm:$0xff]
  %v6956 = vld [vmem:[#allocation9 + $0x288] sm:$0xff]
  %v6957 = vld [vmem:[#allocation9 + $0x290] sm:$0xff]
  %v6958 = vld [vmem:[#allocation9 + $0x298] sm:$0xff]
  %v6959 = vld [vmem:[#allocation9 + $0x2a0] sm:$0xff]
  %v6960 = vld [vmem:[#allocation9 + $0x2a8] sm:$0xff]
  %v6961 = vld [vmem:[#allocation9 + $0x2b0] sm:$0xff]
  %v6962 = vld [vmem:[#allocation9 + $0x2b8] sm:$0xff]
  %v6963 = vld [vmem:[#allocation9 + $0x2c0] sm:$0xff]
  %v6964 = vld [vmem:[#allocation9 + $0x2c8] sm:$0xff]
  %v6965 = vld [vmem:[#allocation9 + $0x2d0] sm:$0xff]
  %v6966 = vld [vmem:[#allocation9 + $0x2d8] sm:$0xff]
  %v6967 = vld [vmem:[#allocation9 + $0x2e0] sm:$0xff]
  %v6968 = vld [vmem:[#allocation9 + $0x2e8] sm:$0xff]
  %v6969 = vld [vmem:[#allocation9 + $0x2f0] sm:$0xff]
  %v6970 = vld [vmem:[#allocation9 + $0x2f8] sm:$0xff]
  %v6971 = vld [vmem:[#allocation9 + $0x300] sm:$0xff]
  %v6972 = vld [vmem:[#allocation9 + $0x308] sm:$0xff]
  %v6973 = vld [vmem:[#allocation9 + $0x310] sm:$0xff]
  %v6974 = vld [vmem:[#allocation9 + $0x318] sm:$0xff]
  %v6975 = vld [vmem:[#allocation9 + $0x320] sm:$0xff]
  %v6976 = vld [vmem:[#allocation9 + $0x328] sm:$0xff]
  %v6977 = vld [vmem:[#allocation9 + $0x330] sm:$0xff]
  %v6978 = vld [vmem:[#allocation9 + $0x338] sm:$0xff]
  %v6979 = vld [vmem:[#allocation9 + $0x340] sm:$0xff]
  %v6980 = vld [vmem:[#allocation9 + $0x348] sm:$0xff]
  %v6981 = vld [vmem:[#allocation9 + $0x350] sm:$0xff]
  %v6982 = vld [vmem:[#allocation9 + $0x358] sm:$0xff]
  %v6983 = vld [vmem:[#allocation9 + $0x360] sm:$0xff]
  %v6984 = vld [vmem:[#allocation9 + $0x368] sm:$0xff]
  %v6985 = vld [vmem:[#allocation9 + $0x370] sm:$0xff]
  %v6986 = vld [vmem:[#allocation9 + $0x378] sm:$0xff]
  %v6987 = vld [vmem:[#allocation9 + $0x380] sm:$0xff]
  %v6988 = vld [vmem:[#allocation9 + $0x388] sm:$0xff]
  %v6989 = vld [vmem:[#allocation9 + $0x390] sm:$0xff]
  %v6990 = vld [vmem:[#allocation9 + $0x398] sm:$0xff]
  %v6991 = vld [vmem:[#allocation9 + $0x3a0] sm:$0xff]
  %v6992 = vld [vmem:[#allocation9 + $0x3a8] sm:$0xff]
  %v6993 = vld [vmem:[#allocation9 + $0x3b0] sm:$0xff]
  %v6994 = vld [vmem:[#allocation9 + $0x3b8] sm:$0xff]
  %v6995 = vld [vmem:[#allocation9 + $0x3c0] sm:$0xff]
  %v6996 = vld [vmem:[#allocation9 + $0x3c8] sm:$0xff]
  %v6997 = vld [vmem:[#allocation9 + $0x3d0] sm:$0xff]
  %v6998 = vld [vmem:[#allocation9 + $0x3d8] sm:$0xff]
  %v6999 = vld [vmem:[#allocation9 + $0x3e0] sm:$0xff]
  %v7000 = vld [vmem:[#allocation9 + $0x3e8] sm:$0xff]
  %v7001 = vld [vmem:[#allocation9 + $0x3f0] sm:$0xff]
  %v7002 = vld [vmem:[#allocation9 + $0x3f8] sm:$0xff]
  %v7003 = vld [vmem:[#allocation9 + $0x400] sm:$0xff]
  %v7004 = vld [vmem:[#allocation9 + $0x408] sm:$0xff]
  %v7005 = vld [vmem:[#allocation9 + $0x410] sm:$0xff]
  %v7006 = vld [vmem:[#allocation9 + $0x418] sm:$0xff]
  %v7007 = vld [vmem:[#allocation9 + $0x420] sm:$0xff]
  %v7008 = vld [vmem:[#allocation9 + $0x428] sm:$0xff]
  %v7009 = vld [vmem:[#allocation9 + $0x430] sm:$0xff]
  %v7010 = vld [vmem:[#allocation9 + $0x438] sm:$0xff]
  %v7011 = vld [vmem:[#allocation9 + $0x440] sm:$0xff]
  %v7012 = vld [vmem:[#allocation9 + $0x448] sm:$0xff]
  %v7013 = vld [vmem:[#allocation9 + $0x450] sm:$0xff]
  %v7014 = vld [vmem:[#allocation9 + $0x458] sm:$0xff]
  %v7015 = vld [vmem:[#allocation9 + $0x460] sm:$0xff]
  %v7016 = vld [vmem:[#allocation9 + $0x468] sm:$0xff]
  %v7017 = vld [vmem:[#allocation9 + $0x470] sm:$0xff]
  %v7018 = vld [vmem:[#allocation9 + $0x478] sm:$0xff]
  %v7019 = vld [vmem:[#allocation9 + $0x480] sm:$0xff]
  %v7020 = vld [vmem:[#allocation9 + $0x488] sm:$0xff]
  %v7021 = vld [vmem:[#allocation9 + $0x490] sm:$0xff]
  %v7022 = vld [vmem:[#allocation9 + $0x498] sm:$0xff]
  %v7023 = vld [vmem:[#allocation9 + $0x4a0] sm:$0xff]
  %v7024 = vld [vmem:[#allocation9 + $0x4a8] sm:$0xff]
  %v7025 = vld [vmem:[#allocation9 + $0x4b0] sm:$0xff]
  %v7026 = vld [vmem:[#allocation9 + $0x4b8] sm:$0xff]
  %v7027 = vld [vmem:[#allocation9 + $0x4c0] sm:$0xff]
  %v7028 = vld [vmem:[#allocation9 + $0x4c8] sm:$0xff]
  %v7029 = vld [vmem:[#allocation9 + $0x4d0] sm:$0xff]
  %v7030 = vld [vmem:[#allocation9 + $0x4d8] sm:$0xff]
  %v7031 = vld [vmem:[#allocation9 + $0x4e0] sm:$0xff]
  %v7032 = vld [vmem:[#allocation9 + $0x4e8] sm:$0xff]
  %v7033 = vld [vmem:[#allocation9 + $0x4f0] sm:$0xff]
  %v7034 = vld [vmem:[#allocation9 + $0x4f8] sm:$0xff]
  %v7035 = vld [vmem:[#allocation9 + $0x500] sm:$0xff]
  %v7036 = vld [vmem:[#allocation9 + $0x508] sm:$0xff]
  %v7037 = vld [vmem:[#allocation9 + $0x510] sm:$0xff]
  %v7038 = vld [vmem:[#allocation9 + $0x518] sm:$0xff]
  %v7039 = vld [vmem:[#allocation9 + $0x520] sm:$0xff]
  %v7040 = vld [vmem:[#allocation9 + $0x528] sm:$0xff]
  %v7041 = vld [vmem:[#allocation9 + $0x530] sm:$0xff]
  %v7042 = vld [vmem:[#allocation9 + $0x538] sm:$0xff]
  %v7043 = vld [vmem:[#allocation9 + $0x540] sm:$0xff]
  %v7044 = vld [vmem:[#allocation9 + $0x548] sm:$0xff]
  %v7045 = vld [vmem:[#allocation9 + $0x550] sm:$0xff]
  %v7046 = vld [vmem:[#allocation9 + $0x558] sm:$0xff]
  %v7047 = vld [vmem:[#allocation9 + $0x560] sm:$0xff]
  %v7048 = vld [vmem:[#allocation9 + $0x568] sm:$0xff]
  %v7049 = vld [vmem:[#allocation9 + $0x570] sm:$0xff]
  %v7050 = vld [vmem:[#allocation9 + $0x578] sm:$0xff]
  %v7051 = vld [vmem:[#allocation9 + $0x580] sm:$0xff]
  %v7052 = vld [vmem:[#allocation9 + $0x588] sm:$0xff]
  %v7053 = vld [vmem:[#allocation9 + $0x590] sm:$0xff]
  %v7054 = vld [vmem:[#allocation9 + $0x598] sm:$0xff]
  %v7055 = vld [vmem:[#allocation9 + $0x5a0] sm:$0xff]
  %v7056 = vld [vmem:[#allocation9 + $0x5a8] sm:$0xff]
  %v7057 = vld [vmem:[#allocation9 + $0x5b0] sm:$0xff]
  %v7058 = vld [vmem:[#allocation9 + $0x5b8] sm:$0xff]
  %v7059 = vld [vmem:[#allocation9 + $0x5c0] sm:$0xff]
  %v7060 = vld [vmem:[#allocation9 + $0x5c8] sm:$0xff]
  %v7061 = vld [vmem:[#allocation9 + $0x5d0] sm:$0xff]
  %v7062 = vld [vmem:[#allocation9 + $0x5d8] sm:$0xff]
  %v7063 = vld [vmem:[#allocation9 + $0x5e0] sm:$0xff]
  %v7064 = vld [vmem:[#allocation9 + $0x5e8] sm:$0xff]
  %v7065 = vld [vmem:[#allocation9 + $0x5f0] sm:$0xff]
  %v7066 = vld [vmem:[#allocation9 + $0x5f8] sm:$0xff]
  %v7067 = vld [vmem:[#allocation9 + $0x600] sm:$0xff]
  %v7068 = vld [vmem:[#allocation9 + $0x608] sm:$0xff]
  %v7069 = vld [vmem:[#allocation9 + $0x610] sm:$0xff]
  %v7070 = vld [vmem:[#allocation9 + $0x618] sm:$0xff]
  %v7071 = vld [vmem:[#allocation9 + $0x620] sm:$0xff]
  %v7072 = vld [vmem:[#allocation9 + $0x628] sm:$0xff]
  %v7073 = vld [vmem:[#allocation9 + $0x630] sm:$0xff]
  %v7074 = vld [vmem:[#allocation9 + $0x638] sm:$0xff]
  %v7075 = vld [vmem:[#allocation9 + $0x640] sm:$0xff]
  %v7076 = vld [vmem:[#allocation9 + $0x648] sm:$0xff]
  %v7077 = vld [vmem:[#allocation9 + $0x650] sm:$0xff]
  %v7078 = vld [vmem:[#allocation9 + $0x658] sm:$0xff]
  %v7079 = vld [vmem:[#allocation9 + $0x660] sm:$0xff]
  %v7080 = vld [vmem:[#allocation9 + $0x668] sm:$0xff]
  %v7081 = vld [vmem:[#allocation9 + $0x670] sm:$0xff]
  %v7082 = vld [vmem:[#allocation9 + $0x678] sm:$0xff]
  %v7083 = vld [vmem:[#allocation9 + $0x680] sm:$0xff]
  %v7084 = vld [vmem:[#allocation9 + $0x688] sm:$0xff]
  %v7085 = vld [vmem:[#allocation9 + $0x690] sm:$0xff]
  %v7086 = vld [vmem:[#allocation9 + $0x698] sm:$0xff]
  %v7087 = vld [vmem:[#allocation9 + $0x6a0] sm:$0xff]
  %v7088 = vld [vmem:[#allocation9 + $0x6a8] sm:$0xff]
  %v7089 = vld [vmem:[#allocation9 + $0x6b0] sm:$0xff]
  %v7090 = vld [vmem:[#allocation9 + $0x6b8] sm:$0xff]
  %v7091 = vld [vmem:[#allocation9 + $0x6c0] sm:$0xff]
  %v7092 = vld [vmem:[#allocation9 + $0x6c8] sm:$0xff]
  %v7093 = vld [vmem:[#allocation9 + $0x6d0] sm:$0xff]
  %v7094 = vld [vmem:[#allocation9 + $0x6d8] sm:$0xff]
  %v7095 = vld [vmem:[#allocation9 + $0x6e0] sm:$0xff]
  %v7096 = vld [vmem:[#allocation9 + $0x6e8] sm:$0xff]
  %v7097 = vld [vmem:[#allocation9 + $0x6f0] sm:$0xff]
  %v7098 = vld [vmem:[#allocation9 + $0x6f8] sm:$0xff]
  %v7099 = vld [vmem:[#allocation9 + $0x700] sm:$0xff]
  %v7100 = vld [vmem:[#allocation9 + $0x708] sm:$0xff]
  %v7101 = vld [vmem:[#allocation9 + $0x710] sm:$0xff]
  %v7102 = vld [vmem:[#allocation9 + $0x718] sm:$0xff]
  %v7103 = vld [vmem:[#allocation9 + $0x720] sm:$0xff]
  %v7104 = vld [vmem:[#allocation9 + $0x728] sm:$0xff]
  %v7105 = vld [vmem:[#allocation9 + $0x730] sm:$0xff]
  %v7106 = vld [vmem:[#allocation9 + $0x738] sm:$0xff]
  %v7107 = vld [vmem:[#allocation9 + $0x740] sm:$0xff]
  %v7108 = vld [vmem:[#allocation9 + $0x748] sm:$0xff]
  %v7109 = vld [vmem:[#allocation9 + $0x750] sm:$0xff]
  %v7110 = vld [vmem:[#allocation9 + $0x758] sm:$0xff]
  %v7111 = vld [vmem:[#allocation9 + $0x760] sm:$0xff]
  %v7112 = vld [vmem:[#allocation9 + $0x768] sm:$0xff]
  %v7113 = vld [vmem:[#allocation9 + $0x770] sm:$0xff]
  %v7114 = vld [vmem:[#allocation9 + $0x778] sm:$0xff]
  %v7115 = vld [vmem:[#allocation9 + $0x780] sm:$0xff]
  %v7116 = vld [vmem:[#allocation9 + $0x788] sm:$0xff]
  %v7117 = vld [vmem:[#allocation9 + $0x790] sm:$0xff]
  %v7118 = vld [vmem:[#allocation9 + $0x798] sm:$0xff]
  %v7119 = vld [vmem:[#allocation9 + $0x7a0] sm:$0xff]
  %v7120 = vld [vmem:[#allocation9 + $0x7a8] sm:$0xff]
  %v7121 = vld [vmem:[#allocation9 + $0x7b0] sm:$0xff]
  %v7122 = vld [vmem:[#allocation9 + $0x7b8] sm:$0xff]
  %v7123 = vld [vmem:[#allocation9 + $0x7c0] sm:$0xff]
  %v7124 = vld [vmem:[#allocation9 + $0x7c8] sm:$0xff]
  %v7125 = vld [vmem:[#allocation9 + $0x7d0] sm:$0xff]
  %v7126 = vld [vmem:[#allocation9 + $0x7d8] sm:$0xff]
  %v7127 = vld [vmem:[#allocation9 + $0x7e0] sm:$0xff]
  %v7128 = vld [vmem:[#allocation9 + $0x7e8] sm:$0xff]
  %v7129 = vld [vmem:[#allocation9 + $0x7f0] sm:$0xff]
  %v7130 = vld [vmem:[#allocation9 + $0x7f8] sm:$0xff]
  %v7131 = vld [vmem:[%s18] sm:$0xf]
  %v7133 = vperm.slane %v7131, 0
  %v7134 = vperm.slane %v7131, 1
  %v7135 = vperm.slane %v7131, 2
  %v7136 = vperm.slane %v7131, 3
  %v7397 = vunpack.c.l.b16 %v6875
  %v7398 = vunpack.c.h.b16 %v6875
  %v7399 = vunpack.c.l.b16 %v6876
  %v7400 = vunpack.c.h.b16 %v6876
  %v7401 = vunpack.c.l.b16 %v6877
  %v7402 = vunpack.c.h.b16 %v6877
  %v7403 = vunpack.c.l.b16 %v6878
  %v7404 = vunpack.c.h.b16 %v6878
  %v7405 = vunpack.c.l.b16 %v6879
  %v7406 = vunpack.c.h.b16 %v6879
  %v7407 = vunpack.c.l.b16 %v6880
  %v7408 = vunpack.c.h.b16 %v6880
  %v7409 = vunpack.c.l.b16 %v6881
  %v7410 = vunpack.c.h.b16 %v6881
  %v7411 = vunpack.c.l.b16 %v6882
  %v7412 = vunpack.c.h.b16 %v6882
  %v7413 = vunpack.c.l.b16 %v6883
  %v7414 = vunpack.c.h.b16 %v6883
  %v7415 = vunpack.c.l.b16 %v6884
  %v7416 = vunpack.c.h.b16 %v6884
  %v7417 = vunpack.c.l.b16 %v6885
  %v7418 = vunpack.c.h.b16 %v6885
  %v7419 = vunpack.c.l.b16 %v6886
  %v7420 = vunpack.c.h.b16 %v6886
  %v7421 = vunpack.c.l.b16 %v6887
  %v7422 = vunpack.c.h.b16 %v6887
  %v7423 = vunpack.c.l.b16 %v6888
  %v7424 = vunpack.c.h.b16 %v6888
  %v7425 = vunpack.c.l.b16 %v6889
  %v7426 = vunpack.c.h.b16 %v6889
  %v7427 = vunpack.c.l.b16 %v6890
  %v7428 = vunpack.c.h.b16 %v6890
  %v7429 = vunpack.c.l.b16 %v6891
  %v7430 = vunpack.c.h.b16 %v6891
  %v7431 = vunpack.c.l.b16 %v6892
  %v7432 = vunpack.c.h.b16 %v6892
  %v7433 = vunpack.c.l.b16 %v6893
  %v7434 = vunpack.c.h.b16 %v6893
  %v7435 = vunpack.c.l.b16 %v6894
  %v7436 = vunpack.c.h.b16 %v6894
  %v7437 = vunpack.c.l.b16 %v6895
  %v7438 = vunpack.c.h.b16 %v6895
  %v7439 = vunpack.c.l.b16 %v6896
  %v7440 = vunpack.c.h.b16 %v6896
  %v7441 = vunpack.c.l.b16 %v6897
  %v7442 = vunpack.c.h.b16 %v6897
  %v7443 = vunpack.c.l.b16 %v6898
  %v7444 = vunpack.c.h.b16 %v6898
  %v7445 = vunpack.c.l.b16 %v6899
  %v7446 = vunpack.c.h.b16 %v6899
  %v7447 = vunpack.c.l.b16 %v6900
  %v7448 = vunpack.c.h.b16 %v6900
  %v7449 = vunpack.c.l.b16 %v6901
  %v7450 = vunpack.c.h.b16 %v6901
  %v7451 = vunpack.c.l.b16 %v6902
  %v7452 = vunpack.c.h.b16 %v6902
  %v7453 = vunpack.c.l.b16 %v6903
  %v7454 = vunpack.c.h.b16 %v6903
  %v7455 = vunpack.c.l.b16 %v6904
  %v7456 = vunpack.c.h.b16 %v6904
  %v7457 = vunpack.c.l.b16 %v6905
  %v7458 = vunpack.c.h.b16 %v6905
  %v7459 = vunpack.c.l.b16 %v6906
  %v7460 = vunpack.c.h.b16 %v6906
  %v7461 = vunpack.c.l.b16 %v6907
  %v7462 = vunpack.c.h.b16 %v6907
  %v7463 = vunpack.c.l.b16 %v6908
  %v7464 = vunpack.c.h.b16 %v6908
  %v7465 = vunpack.c.l.b16 %v6909
  %v7466 = vunpack.c.h.b16 %v6909
  %v7467 = vunpack.c.l.b16 %v6910
  %v7468 = vunpack.c.h.b16 %v6910
  %v7469 = vunpack.c.l.b16 %v6911
  %v7470 = vunpack.c.h.b16 %v6911
  %v7471 = vunpack.c.l.b16 %v6912
  %v7472 = vunpack.c.h.b16 %v6912
  %v7473 = vunpack.c.l.b16 %v6913
  %v7474 = vunpack.c.h.b16 %v6913
  %v7475 = vunpack.c.l.b16 %v6914
  %v7476 = vunpack.c.h.b16 %v6914
  %v7477 = vunpack.c.l.b16 %v6915
  %v7478 = vunpack.c.h.b16 %v6915
  %v7479 = vunpack.c.l.b16 %v6916
  %v7480 = vunpack.c.h.b16 %v6916
  %v7481 = vunpack.c.l.b16 %v6917
  %v7482 = vunpack.c.h.b16 %v6917
  %v7483 = vunpack.c.l.b16 %v6918
  %v7484 = vunpack.c.h.b16 %v6918
  %v7485 = vunpack.c.l.b16 %v6919
  %v7486 = vunpack.c.h.b16 %v6919
  %v7487 = vunpack.c.l.b16 %v6920
  %v7488 = vunpack.c.h.b16 %v6920
  %v7489 = vunpack.c.l.b16 %v6921
  %v7490 = vunpack.c.h.b16 %v6921
  %v7491 = vunpack.c.l.b16 %v6922
  %v7492 = vunpack.c.h.b16 %v6922
  %v7493 = vunpack.c.l.b16 %v6923
  %v7494 = vunpack.c.h.b16 %v6923
  %v7495 = vunpack.c.l.b16 %v6924
  %v7496 = vunpack.c.h.b16 %v6924
  %v7497 = vunpack.c.l.b16 %v6925
  %v7498 = vunpack.c.h.b16 %v6925
  %v7499 = vunpack.c.l.b16 %v6926
  %v7500 = vunpack.c.h.b16 %v6926
  %v7501 = vunpack.c.l.b16 %v6927
  %v7502 = vunpack.c.h.b16 %v6927
  %v7503 = vunpack.c.l.b16 %v6928
  %v7504 = vunpack.c.h.b16 %v6928
  %v7505 = vunpack.c.l.b16 %v6929
  %v7506 = vunpack.c.h.b16 %v6929
  %v7507 = vunpack.c.l.b16 %v6930
  %v7508 = vunpack.c.h.b16 %v6930
  %v7509 = vunpack.c.l.b16 %v6931
  %v7510 = vunpack.c.h.b16 %v6931
  %v7511 = vunpack.c.l.b16 %v6932
  %v7512 = vunpack.c.h.b16 %v6932
  %v7513 = vunpack.c.l.b16 %v6933
  %v7514 = vunpack.c.h.b16 %v6933
  %v7515 = vunpack.c.l.b16 %v6934
  %v7516 = vunpack.c.h.b16 %v6934
  %v7517 = vunpack.c.l.b16 %v6935
  %v7518 = vunpack.c.h.b16 %v6935
  %v7519 = vunpack.c.l.b16 %v6936
  %v7520 = vunpack.c.h.b16 %v6936
  %v7521 = vunpack.c.l.b16 %v6937
  %v7522 = vunpack.c.h.b16 %v6937
  %v7523 = vunpack.c.l.b16 %v6938
  %v7524 = vunpack.c.h.b16 %v6938
  %v7525 = vunpack.c.l.b16 %v6939
  %v7526 = vunpack.c.h.b16 %v6939
  %v7527 = vunpack.c.l.b16 %v6940
  %v7528 = vunpack.c.h.b16 %v6940
  %v7529 = vunpack.c.l.b16 %v6941
  %v7530 = vunpack.c.h.b16 %v6941
  %v7531 = vunpack.c.l.b16 %v6942
  %v7532 = vunpack.c.h.b16 %v6942
  %v7533 = vunpack.c.l.b16 %v6943
  %v7534 = vunpack.c.h.b16 %v6943
  %v7535 = vunpack.c.l.b16 %v6944
  %v7536 = vunpack.c.h.b16 %v6944
  %v7537 = vunpack.c.l.b16 %v6945
  %v7538 = vunpack.c.h.b16 %v6945
  %v7539 = vunpack.c.l.b16 %v6946
  %v7540 = vunpack.c.h.b16 %v6946
  %v7541 = vunpack.c.l.b16 %v6947
  %v7542 = vunpack.c.h.b16 %v6947
  %v7543 = vunpack.c.l.b16 %v6948
  %v7544 = vunpack.c.h.b16 %v6948
  %v7545 = vunpack.c.l.b16 %v6949
  %v7546 = vunpack.c.h.b16 %v6949
  %v7547 = vunpack.c.l.b16 %v6950
  %v7548 = vunpack.c.h.b16 %v6950
  %v7549 = vunpack.c.l.b16 %v6951
  %v7550 = vunpack.c.h.b16 %v6951
  %v7551 = vunpack.c.l.b16 %v6952
  %v7552 = vunpack.c.h.b16 %v6952
  %v7553 = vunpack.c.l.b16 %v6953
  %v7554 = vunpack.c.h.b16 %v6953
  %v7555 = vunpack.c.l.b16 %v6954
  %v7556 = vunpack.c.h.b16 %v6954
  %v7557 = vunpack.c.l.b16 %v6955
  %v7558 = vunpack.c.h.b16 %v6955
  %v7559 = vunpack.c.l.b16 %v6956
  %v7560 = vunpack.c.h.b16 %v6956
  %v7561 = vunpack.c.l.b16 %v6957
  %v7562 = vunpack.c.h.b16 %v6957
  %v7563 = vunpack.c.l.b16 %v6958
  %v7564 = vunpack.c.h.b16 %v6958
  %v7565 = vunpack.c.l.b16 %v6959
  %v7566 = vunpack.c.h.b16 %v6959
  %v7567 = vunpack.c.l.b16 %v6960
  %v7568 = vunpack.c.h.b16 %v6960
  %v7569 = vunpack.c.l.b16 %v6961
  %v7570 = vunpack.c.h.b16 %v6961
  %v7571 = vunpack.c.l.b16 %v6962
  %v7572 = vunpack.c.h.b16 %v6962
  %v7573 = vunpack.c.l.b16 %v6963
  %v7574 = vunpack.c.h.b16 %v6963
  %v7575 = vunpack.c.l.b16 %v6964
  %v7576 = vunpack.c.h.b16 %v6964
  %v7577 = vunpack.c.l.b16 %v6965
  %v7578 = vunpack.c.h.b16 %v6965
  %v7579 = vunpack.c.l.b16 %v6966
  %v7580 = vunpack.c.h.b16 %v6966
  %v7581 = vunpack.c.l.b16 %v6967
  %v7582 = vunpack.c.h.b16 %v6967
  %v7583 = vunpack.c.l.b16 %v6968
  %v7584 = vunpack.c.h.b16 %v6968
  %v7585 = vunpack.c.l.b16 %v6969
  %v7586 = vunpack.c.h.b16 %v6969
  %v7587 = vunpack.c.l.b16 %v6970
  %v7588 = vunpack.c.h.b16 %v6970
  %v7589 = vunpack.c.l.b16 %v6971
  %v7590 = vunpack.c.h.b16 %v6971
  %v7591 = vunpack.c.l.b16 %v6972
  %v7592 = vunpack.c.h.b16 %v6972
  %v7593 = vunpack.c.l.b16 %v6973
  %v7594 = vunpack.c.h.b16 %v6973
  %v7595 = vunpack.c.l.b16 %v6974
  %v7596 = vunpack.c.h.b16 %v6974
  %v7597 = vunpack.c.l.b16 %v6975
  %v7598 = vunpack.c.h.b16 %v6975
  %v7599 = vunpack.c.l.b16 %v6976
  %v7600 = vunpack.c.h.b16 %v6976
  %v7601 = vunpack.c.l.b16 %v6977
  %v7602 = vunpack.c.h.b16 %v6977
  %v7603 = vunpack.c.l.b16 %v6978
  %v7604 = vunpack.c.h.b16 %v6978
  %v7605 = vunpack.c.l.b16 %v6979
  %v7606 = vunpack.c.h.b16 %v6979
  %v7607 = vunpack.c.l.b16 %v6980
  %v7608 = vunpack.c.h.b16 %v6980
  %v7609 = vunpack.c.l.b16 %v6981
  %v7610 = vunpack.c.h.b16 %v6981
  %v7611 = vunpack.c.l.b16 %v6982
  %v7612 = vunpack.c.h.b16 %v6982
  %v7613 = vunpack.c.l.b16 %v6983
  %v7614 = vunpack.c.h.b16 %v6983
  %v7615 = vunpack.c.l.b16 %v6984
  %v7616 = vunpack.c.h.b16 %v6984
  %v7617 = vunpack.c.l.b16 %v6985
  %v7618 = vunpack.c.h.b16 %v6985
  %v7619 = vunpack.c.l.b16 %v6986
  %v7620 = vunpack.c.h.b16 %v6986
  %v7621 = vunpack.c.l.b16 %v6987
  %v7622 = vunpack.c.h.b16 %v6987
  %v7623 = vunpack.c.l.b16 %v6988
  %v7624 = vunpack.c.h.b16 %v6988
  %v7625 = vunpack.c.l.b16 %v6989
  %v7626 = vunpack.c.h.b16 %v6989
  %v7627 = vunpack.c.l.b16 %v6990
  %v7628 = vunpack.c.h.b16 %v6990
  %v7629 = vunpack.c.l.b16 %v6991
  %v7630 = vunpack.c.h.b16 %v6991
  %v7631 = vunpack.c.l.b16 %v6992
  %v7632 = vunpack.c.h.b16 %v6992
  %v7633 = vunpack.c.l.b16 %v6993
  %v7634 = vunpack.c.h.b16 %v6993
  %v7635 = vunpack.c.l.b16 %v6994
  %v7636 = vunpack.c.h.b16 %v6994
  %v7637 = vunpack.c.l.b16 %v6995
  %v7638 = vunpack.c.h.b16 %v6995
  %v7639 = vunpack.c.l.b16 %v6996
  %v7640 = vunpack.c.h.b16 %v6996
  %v7641 = vunpack.c.l.b16 %v6997
  %v7642 = vunpack.c.h.b16 %v6997
  %v7643 = vunpack.c.l.b16 %v6998
  %v7644 = vunpack.c.h.b16 %v6998
  %v7645 = vunpack.c.l.b16 %v6999
  %v7646 = vunpack.c.h.b16 %v6999
  %v7647 = vunpack.c.l.b16 %v7000
  %v7648 = vunpack.c.h.b16 %v7000
  %v7649 = vunpack.c.l.b16 %v7001
  %v7650 = vunpack.c.h.b16 %v7001
  %v7651 = vunpack.c.l.b16 %v7002
  %v7652 = vunpack.c.h.b16 %v7002
  %v7653 = vunpack.c.l.b16 %v7003
  %v7654 = vunpack.c.h.b16 %v7003
  %v7655 = vunpack.c.l.b16 %v7004
  %v7656 = vunpack.c.h.b16 %v7004
  %v7657 = vunpack.c.l.b16 %v7005
  %v7658 = vunpack.c.h.b16 %v7005
  %v7659 = vunpack.c.l.b16 %v7006
  %v7660 = vunpack.c.h.b16 %v7006
  %v7661 = vunpack.c.l.b16 %v7007
  %v7662 = vunpack.c.h.b16 %v7007
  %v7663 = vunpack.c.l.b16 %v7008
  %v7664 = vunpack.c.h.b16 %v7008
  %v7665 = vunpack.c.l.b16 %v7009
  %v7666 = vunpack.c.h.b16 %v7009
  %v7667 = vunpack.c.l.b16 %v7010
  %v7668 = vunpack.c.h.b16 %v7010
  %v7669 = vunpack.c.l.b16 %v7011
  %v7670 = vunpack.c.h.b16 %v7011
  %v7671 = vunpack.c.l.b16 %v7012
  %v7672 = vunpack.c.h.b16 %v7012
  %v7673 = vunpack.c.l.b16 %v7013
  %v7674 = vunpack.c.h.b16 %v7013
  %v7675 = vunpack.c.l.b16 %v7014
  %v7676 = vunpack.c.h.b16 %v7014
  %v7677 = vunpack.c.l.b16 %v7015
  %v7678 = vunpack.c.h.b16 %v7015
  %v7679 = vunpack.c.l.b16 %v7016
  %v7680 = vunpack.c.h.b16 %v7016
  %v7681 = vunpack.c.l.b16 %v7017
  %v7682 = vunpack.c.h.b16 %v7017
  %v7683 = vunpack.c.l.b16 %v7018
  %v7684 = vunpack.c.h.b16 %v7018
  %v7685 = vunpack.c.l.b16 %v7019
  %v7686 = vunpack.c.h.b16 %v7019
  %v7687 = vunpack.c.l.b16 %v7020
  %v7688 = vunpack.c.h.b16 %v7020
  %v7689 = vunpack.c.l.b16 %v7021
  %v7690 = vunpack.c.h.b16 %v7021
  %v7691 = vunpack.c.l.b16 %v7022
  %v7692 = vunpack.c.h.b16 %v7022
  %v7693 = vunpack.c.l.b16 %v7023
  %v7694 = vunpack.c.h.b16 %v7023
  %v7695 = vunpack.c.l.b16 %v7024
  %v7696 = vunpack.c.h.b16 %v7024
  %v7697 = vunpack.c.l.b16 %v7025
  %v7698 = vunpack.c.h.b16 %v7025
  %v7699 = vunpack.c.l.b16 %v7026
  %v7700 = vunpack.c.h.b16 %v7026
  %v7701 = vunpack.c.l.b16 %v7027
  %v7702 = vunpack.c.h.b16 %v7027
  %v7703 = vunpack.c.l.b16 %v7028
  %v7704 = vunpack.c.h.b16 %v7028
  %v7705 = vunpack.c.l.b16 %v7029
  %v7706 = vunpack.c.h.b16 %v7029
  %v7707 = vunpack.c.l.b16 %v7030
  %v7708 = vunpack.c.h.b16 %v7030
  %v7709 = vunpack.c.l.b16 %v7031
  %v7710 = vunpack.c.h.b16 %v7031
  %v7711 = vunpack.c.l.b16 %v7032
  %v7712 = vunpack.c.h.b16 %v7032
  %v7713 = vunpack.c.l.b16 %v7033
  %v7714 = vunpack.c.h.b16 %v7033
  %v7715 = vunpack.c.l.b16 %v7034
  %v7716 = vunpack.c.h.b16 %v7034
  %v7717 = vunpack.c.l.b16 %v7035
  %v7718 = vunpack.c.h.b16 %v7035
  %v7719 = vunpack.c.l.b16 %v7036
  %v7720 = vunpack.c.h.b16 %v7036
  %v7721 = vunpack.c.l.b16 %v7037
  %v7722 = vunpack.c.h.b16 %v7037
  %v7723 = vunpack.c.l.b16 %v7038
  %v7724 = vunpack.c.h.b16 %v7038
  %v7725 = vunpack.c.l.b16 %v7039
  %v7726 = vunpack.c.h.b16 %v7039
  %v7727 = vunpack.c.l.b16 %v7040
  %v7728 = vunpack.c.h.b16 %v7040
  %v7729 = vunpack.c.l.b16 %v7041
  %v7730 = vunpack.c.h.b16 %v7041
  %v7731 = vunpack.c.l.b16 %v7042
  %v7732 = vunpack.c.h.b16 %v7042
  %v7733 = vunpack.c.l.b16 %v7043
  %v7734 = vunpack.c.h.b16 %v7043
  %v7735 = vunpack.c.l.b16 %v7044
  %v7736 = vunpack.c.h.b16 %v7044
  %v7737 = vunpack.c.l.b16 %v7045
  %v7738 = vunpack.c.h.b16 %v7045
  %v7739 = vunpack.c.l.b16 %v7046
  %v7740 = vunpack.c.h.b16 %v7046
  %v7741 = vunpack.c.l.b16 %v7047
  %v7742 = vunpack.c.h.b16 %v7047
  %v7743 = vunpack.c.l.b16 %v7048
  %v7744 = vunpack.c.h.b16 %v7048
  %v7745 = vunpack.c.l.b16 %v7049
  %v7746 = vunpack.c.h.b16 %v7049
  %v7747 = vunpack.c.l.b16 %v7050
  %v7748 = vunpack.c.h.b16 %v7050
  %v7749 = vunpack.c.l.b16 %v7051
  %v7750 = vunpack.c.h.b16 %v7051
  %v7751 = vunpack.c.l.b16 %v7052
  %v7752 = vunpack.c.h.b16 %v7052
  %v7753 = vunpack.c.l.b16 %v7053
  %v7754 = vunpack.c.h.b16 %v7053
  %v7755 = vunpack.c.l.b16 %v7054
  %v7756 = vunpack.c.h.b16 %v7054
  %v7757 = vunpack.c.l.b16 %v7055
  %v7758 = vunpack.c.h.b16 %v7055
  %v7759 = vunpack.c.l.b16 %v7056
  %v7760 = vunpack.c.h.b16 %v7056
  %v7761 = vunpack.c.l.b16 %v7057
  %v7762 = vunpack.c.h.b16 %v7057
  %v7763 = vunpack.c.l.b16 %v7058
  %v7764 = vunpack.c.h.b16 %v7058
  %v7765 = vunpack.c.l.b16 %v7059
  %v7766 = vunpack.c.h.b16 %v7059
  %v7767 = vunpack.c.l.b16 %v7060
  %v7768 = vunpack.c.h.b16 %v7060
  %v7769 = vunpack.c.l.b16 %v7061
  %v7770 = vunpack.c.h.b16 %v7061
  %v7771 = vunpack.c.l.b16 %v7062
  %v7772 = vunpack.c.h.b16 %v7062
  %v7773 = vunpack.c.l.b16 %v7063
  %v7774 = vunpack.c.h.b16 %v7063
  %v7775 = vunpack.c.l.b16 %v7064
  %v7776 = vunpack.c.h.b16 %v7064
  %v7777 = vunpack.c.l.b16 %v7065
  %v7778 = vunpack.c.h.b16 %v7065
  %v7779 = vunpack.c.l.b16 %v7066
  %v7780 = vunpack.c.h.b16 %v7066
  %v7781 = vunpack.c.l.b16 %v7067
  %v7782 = vunpack.c.h.b16 %v7067
  %v7783 = vunpack.c.l.b16 %v7068
  %v7784 = vunpack.c.h.b16 %v7068
  %v7785 = vunpack.c.l.b16 %v7069
  %v7786 = vunpack.c.h.b16 %v7069
  %v7787 = vunpack.c.l.b16 %v7070
  %v7788 = vunpack.c.h.b16 %v7070
  %v7789 = vunpack.c.l.b16 %v7071
  %v7790 = vunpack.c.h.b16 %v7071
  %v7791 = vunpack.c.l.b16 %v7072
  %v7792 = vunpack.c.h.b16 %v7072
  %v7793 = vunpack.c.l.b16 %v7073
  %v7794 = vunpack.c.h.b16 %v7073
  %v7795 = vunpack.c.l.b16 %v7074
  %v7796 = vunpack.c.h.b16 %v7074
  %v7797 = vunpack.c.l.b16 %v7075
  %v7798 = vunpack.c.h.b16 %v7075
  %v7799 = vunpack.c.l.b16 %v7076
  %v7800 = vunpack.c.h.b16 %v7076
  %v7801 = vunpack.c.l.b16 %v7077
  %v7802 = vunpack.c.h.b16 %v7077
  %v7803 = vunpack.c.l.b16 %v7078
  %v7804 = vunpack.c.h.b16 %v7078
  %v7805 = vunpack.c.l.b16 %v7079
  %v7806 = vunpack.c.h.b16 %v7079
  %v7807 = vunpack.c.l.b16 %v7080
  %v7808 = vunpack.c.h.b16 %v7080
  %v7809 = vunpack.c.l.b16 %v7081
  %v7810 = vunpack.c.h.b16 %v7081
  %v7811 = vunpack.c.l.b16 %v7082
  %v7812 = vunpack.c.h.b16 %v7082
  %v7813 = vunpack.c.l.b16 %v7083
  %v7814 = vunpack.c.h.b16 %v7083
  %v7815 = vunpack.c.l.b16 %v7084
  %v7816 = vunpack.c.h.b16 %v7084
  %v7817 = vunpack.c.l.b16 %v7085
  %v7818 = vunpack.c.h.b16 %v7085
  %v7819 = vunpack.c.l.b16 %v7086
  %v7820 = vunpack.c.h.b16 %v7086
  %v7821 = vunpack.c.l.b16 %v7087
  %v7822 = vunpack.c.h.b16 %v7087
  %v7823 = vunpack.c.l.b16 %v7088
  %v7824 = vunpack.c.h.b16 %v7088
  %v7825 = vunpack.c.l.b16 %v7089
  %v7826 = vunpack.c.h.b16 %v7089
  %v7827 = vunpack.c.l.b16 %v7090
  %v7828 = vunpack.c.h.b16 %v7090
  %v7829 = vunpack.c.l.b16 %v7091
  %v7830 = vunpack.c.h.b16 %v7091
  %v7831 = vunpack.c.l.b16 %v7092
  %v7832 = vunpack.c.h.b16 %v7092
  %v7833 = vunpack.c.l.b16 %v7093
  %v7834 = vunpack.c.h.b16 %v7093
  %v7835 = vunpack.c.l.b16 %v7094
  %v7836 = vunpack.c.h.b16 %v7094
  %v7837 = vunpack.c.l.b16 %v7095
  %v7838 = vunpack.c.h.b16 %v7095
  %v7839 = vunpack.c.l.b16 %v7096
  %v7840 = vunpack.c.h.b16 %v7096
  %v7841 = vunpack.c.l.b16 %v7097
  %v7842 = vunpack.c.h.b16 %v7097
  %v7843 = vunpack.c.l.b16 %v7098
  %v7844 = vunpack.c.h.b16 %v7098
  %v7845 = vunpack.c.l.b16 %v7099
  %v7846 = vunpack.c.h.b16 %v7099
  %v7847 = vunpack.c.l.b16 %v7100
  %v7848 = vunpack.c.h.b16 %v7100
  %v7849 = vunpack.c.l.b16 %v7101
  %v7850 = vunpack.c.h.b16 %v7101
  %v7851 = vunpack.c.l.b16 %v7102
  %v7852 = vunpack.c.h.b16 %v7102
  %v7853 = vunpack.c.l.b16 %v7103
  %v7854 = vunpack.c.h.b16 %v7103
  %v7855 = vunpack.c.l.b16 %v7104
  %v7856 = vunpack.c.h.b16 %v7104
  %v7857 = vunpack.c.l.b16 %v7105
  %v7858 = vunpack.c.h.b16 %v7105
  %v7859 = vunpack.c.l.b16 %v7106
  %v7860 = vunpack.c.h.b16 %v7106
  %v7861 = vunpack.c.l.b16 %v7107
  %v7862 = vunpack.c.h.b16 %v7107
  %v7863 = vunpack.c.l.b16 %v7108
  %v7864 = vunpack.c.h.b16 %v7108
  %v7865 = vunpack.c.l.b16 %v7109
  %v7866 = vunpack.c.h.b16 %v7109
  %v7867 = vunpack.c.l.b16 %v7110
  %v7868 = vunpack.c.h.b16 %v7110
  %v7869 = vunpack.c.l.b16 %v7111
  %v7870 = vunpack.c.h.b16 %v7111
  %v7871 = vunpack.c.l.b16 %v7112
  %v7872 = vunpack.c.h.b16 %v7112
  %v7873 = vunpack.c.l.b16 %v7113
  %v7874 = vunpack.c.h.b16 %v7113
  %v7875 = vunpack.c.l.b16 %v7114
  %v7876 = vunpack.c.h.b16 %v7114
  %v7877 = vunpack.c.l.b16 %v7115
  %v7878 = vunpack.c.h.b16 %v7115
  %v7879 = vunpack.c.l.b16 %v7116
  %v7880 = vunpack.c.h.b16 %v7116
  %v7881 = vunpack.c.l.b16 %v7117
  %v7882 = vunpack.c.h.b16 %v7117
  %v7883 = vunpack.c.l.b16 %v7118
  %v7884 = vunpack.c.h.b16 %v7118
  %v7885 = vunpack.c.l.b16 %v7119
  %v7886 = vunpack.c.h.b16 %v7119
  %v7887 = vunpack.c.l.b16 %v7120
  %v7888 = vunpack.c.h.b16 %v7120
  %v7889 = vunpack.c.l.b16 %v7121
  %v7890 = vunpack.c.h.b16 %v7121
  %v7891 = vunpack.c.l.b16 %v7122
  %v7892 = vunpack.c.h.b16 %v7122
  %v7893 = vunpack.c.l.b16 %v7123
  %v7894 = vunpack.c.h.b16 %v7123
  %v7895 = vunpack.c.l.b16 %v7124
  %v7896 = vunpack.c.h.b16 %v7124
  %v7897 = vunpack.c.l.b16 %v7125
  %v7898 = vunpack.c.h.b16 %v7125
  %v7899 = vunpack.c.l.b16 %v7126
  %v7900 = vunpack.c.h.b16 %v7126
  %v7901 = vunpack.c.l.b16 %v7127
  %v7902 = vunpack.c.h.b16 %v7127
  %v7903 = vunpack.c.l.b16 %v7128
  %v7904 = vunpack.c.h.b16 %v7128
  %v7905 = vunpack.c.l.b16 %v7129
  %v7906 = vunpack.c.h.b16 %v7129
  %v7907 = vunpack.c.l.b16 %v7130
  %v7908 = vunpack.c.h.b16 %v7130
  %v7909 = vpack.c.b16 %v7401, %v7397
  %v7910 = vpack.c.b16 %v7402, %v7398
  %v7911 = vpack.c.b16 %v7403, %v7399
  %v7912 = vpack.c.b16 %v7404, %v7400
  %v7913 = vpack.c.b16 %v7409, %v7405
  %v7914 = vpack.c.b16 %v7410, %v7406
  %v7915 = vpack.c.b16 %v7411, %v7407
  %v7916 = vpack.c.b16 %v7412, %v7408
  %v7917 = vpack.c.b16 %v7417, %v7413
  %v7918 = vpack.c.b16 %v7418, %v7414
  %v7919 = vpack.c.b16 %v7419, %v7415
  %v7920 = vpack.c.b16 %v7420, %v7416
  %v7921 = vpack.c.b16 %v7425, %v7421
  %v7922 = vpack.c.b16 %v7426, %v7422
  %v7923 = vpack.c.b16 %v7427, %v7423
  %v7924 = vpack.c.b16 %v7428, %v7424
  %v7925 = vpack.c.b16 %v7433, %v7429
  %v7926 = vpack.c.b16 %v7434, %v7430
  %v7927 = vpack.c.b16 %v7435, %v7431
  %v7928 = vpack.c.b16 %v7436, %v7432
  %v7929 = vpack.c.b16 %v7441, %v7437
  %v7930 = vpack.c.b16 %v7442, %v7438
  %v7931 = vpack.c.b16 %v7443, %v7439
  %v7932 = vpack.c.b16 %v7444, %v7440
  %v7933 = vpack.c.b16 %v7449, %v7445
  %v7934 = vpack.c.b16 %v7450, %v7446
  %v7935 = vpack.c.b16 %v7451, %v7447
  %v7936 = vpack.c.b16 %v7452, %v7448
  %v7937 = vpack.c.b16 %v7457, %v7453
  %v7938 = vpack.c.b16 %v7458, %v7454
  %v7939 = vpack.c.b16 %v7459, %v7455
  %v7940 = vpack.c.b16 %v7460, %v7456
  %v7941 = vpack.c.b16 %v7465, %v7461
  %v7942 = vpack.c.b16 %v7466, %v7462
  %v7943 = vpack.c.b16 %v7467, %v7463
  %v7944 = vpack.c.b16 %v7468, %v7464
  %v7945 = vpack.c.b16 %v7473, %v7469
  %v7946 = vpack.c.b16 %v7474, %v7470
  %v7947 = vpack.c.b16 %v7475, %v7471
  %v7948 = vpack.c.b16 %v7476, %v7472
  %v7949 = vpack.c.b16 %v7481, %v7477
  %v7950 = vpack.c.b16 %v7482, %v7478
  %v7951 = vpack.c.b16 %v7483, %v7479
  %v7952 = vpack.c.b16 %v7484, %v7480
  %v7953 = vpack.c.b16 %v7489, %v7485
  %v7954 = vpack.c.b16 %v7490, %v7486
  %v7955 = vpack.c.b16 %v7491, %v7487
  %v7956 = vpack.c.b16 %v7492, %v7488
  %v7957 = vpack.c.b16 %v7497, %v7493
  %v7958 = vpack.c.b16 %v7498, %v7494
  %v7959 = vpack.c.b16 %v7499, %v7495
  %v7960 = vpack.c.b16 %v7500, %v7496
  %v7961 = vpack.c.b16 %v7505, %v7501
  %v7962 = vpack.c.b16 %v7506, %v7502
  %v7963 = vpack.c.b16 %v7507, %v7503
  %v7964 = vpack.c.b16 %v7508, %v7504
  %v7965 = vpack.c.b16 %v7513, %v7509
  %v7966 = vpack.c.b16 %v7514, %v7510
  %v7967 = vpack.c.b16 %v7515, %v7511
  %v7968 = vpack.c.b16 %v7516, %v7512
  %v7969 = vpack.c.b16 %v7521, %v7517
  %v7970 = vpack.c.b16 %v7522, %v7518
  %v7971 = vpack.c.b16 %v7523, %v7519
  %v7972 = vpack.c.b16 %v7524, %v7520
  %v7973 = vpack.c.b16 %v7529, %v7525
  %v7974 = vpack.c.b16 %v7530, %v7526
  %v7975 = vpack.c.b16 %v7531, %v7527
  %v7976 = vpack.c.b16 %v7532, %v7528
  %v7977 = vpack.c.b16 %v7537, %v7533
  %v7978 = vpack.c.b16 %v7538, %v7534
  %v7979 = vpack.c.b16 %v7539, %v7535
  %v7980 = vpack.c.b16 %v7540, %v7536
  %v7981 = vpack.c.b16 %v7545, %v7541
  %v7982 = vpack.c.b16 %v7546, %v7542
  %v7983 = vpack.c.b16 %v7547, %v7543
  %v7984 = vpack.c.b16 %v7548, %v7544
  %v7985 = vpack.c.b16 %v7553, %v7549
  %v7986 = vpack.c.b16 %v7554, %v7550
  %v7987 = vpack.c.b16 %v7555, %v7551
  %v7988 = vpack.c.b16 %v7556, %v7552
  %v7989 = vpack.c.b16 %v7561, %v7557
  %v7990 = vpack.c.b16 %v7562, %v7558
  %v7991 = vpack.c.b16 %v7563, %v7559
  %v7992 = vpack.c.b16 %v7564, %v7560
  %v7993 = vpack.c.b16 %v7569, %v7565
  %v7994 = vpack.c.b16 %v7570, %v7566
  %v7995 = vpack.c.b16 %v7571, %v7567
  %v7996 = vpack.c.b16 %v7572, %v7568
  %v7997 = vpack.c.b16 %v7577, %v7573
  %v7998 = vpack.c.b16 %v7578, %v7574
  %v7999 = vpack.c.b16 %v7579, %v7575
  %v8000 = vpack.c.b16 %v7580, %v7576
  %v8001 = vpack.c.b16 %v7585, %v7581
  %v8002 = vpack.c.b16 %v7586, %v7582
  %v8003 = vpack.c.b16 %v7587, %v7583
  %v8004 = vpack.c.b16 %v7588, %v7584
  %v8005 = vpack.c.b16 %v7593, %v7589
  %v8006 = vpack.c.b16 %v7594, %v7590
  %v8007 = vpack.c.b16 %v7595, %v7591
  %v8008 = vpack.c.b16 %v7596, %v7592
  %v8009 = vpack.c.b16 %v7601, %v7597
  %v8010 = vpack.c.b16 %v7602, %v7598
  %v8011 = vpack.c.b16 %v7603, %v7599
  %v8012 = vpack.c.b16 %v7604, %v7600
  %v8013 = vpack.c.b16 %v7609, %v7605
  %v8014 = vpack.c.b16 %v7610, %v7606
  %v8015 = vpack.c.b16 %v7611, %v7607
  %v8016 = vpack.c.b16 %v7612, %v7608
  %v8017 = vpack.c.b16 %v7617, %v7613
  %v8018 = vpack.c.b16 %v7618, %v7614
  %v8019 = vpack.c.b16 %v7619, %v7615
  %v8020 = vpack.c.b16 %v7620, %v7616
  %v8021 = vpack.c.b16 %v7625, %v7621
  %v8022 = vpack.c.b16 %v7626, %v7622
  %v8023 = vpack.c.b16 %v7627, %v7623
  %v8024 = vpack.c.b16 %v7628, %v7624
  %v8025 = vpack.c.b16 %v7633, %v7629
  %v8026 = vpack.c.b16 %v7634, %v7630
  %v8027 = vpack.c.b16 %v7635, %v7631
  %v8028 = vpack.c.b16 %v7636, %v7632
  %v8029 = vpack.c.b16 %v7641, %v7637
  %v8030 = vpack.c.b16 %v7642, %v7638
  %v8031 = vpack.c.b16 %v7643, %v7639
  %v8032 = vpack.c.b16 %v7644, %v7640
  %v8033 = vpack.c.b16 %v7649, %v7645
  %v8034 = vpack.c.b16 %v7650, %v7646
  %v8035 = vpack.c.b16 %v7651, %v7647
  %v8036 = vpack.c.b16 %v7652, %v7648
  %v8037 = vpack.c.b16 %v7657, %v7653
  %v8038 = vpack.c.b16 %v7658, %v7654
  %v8039 = vpack.c.b16 %v7659, %v7655
  %v8040 = vpack.c.b16 %v7660, %v7656
  %v8041 = vpack.c.b16 %v7665, %v7661
  %v8042 = vpack.c.b16 %v7666, %v7662
  %v8043 = vpack.c.b16 %v7667, %v7663
  %v8044 = vpack.c.b16 %v7668, %v7664
  %v8045 = vpack.c.b16 %v7673, %v7669
  %v8046 = vpack.c.b16 %v7674, %v7670
  %v8047 = vpack.c.b16 %v7675, %v7671
  %v8048 = vpack.c.b16 %v7676, %v7672
  %v8049 = vpack.c.b16 %v7681, %v7677
  %v8050 = vpack.c.b16 %v7682, %v7678
  %v8051 = vpack.c.b16 %v7683, %v7679
  %v8052 = vpack.c.b16 %v7684, %v7680
  %v8053 = vpack.c.b16 %v7689, %v7685
  %v8054 = vpack.c.b16 %v7690, %v7686
  %v8055 = vpack.c.b16 %v7691, %v7687
  %v8056 = vpack.c.b16 %v7692, %v7688
  %v8057 = vpack.c.b16 %v7697, %v7693
  %v8058 = vpack.c.b16 %v7698, %v7694
  %v8059 = vpack.c.b16 %v7699, %v7695
  %v8060 = vpack.c.b16 %v7700, %v7696
  %v8061 = vpack.c.b16 %v7705, %v7701
  %v8062 = vpack.c.b16 %v7706, %v7702
  %v8063 = vpack.c.b16 %v7707, %v7703
  %v8064 = vpack.c.b16 %v7708, %v7704
  %v8065 = vpack.c.b16 %v7713, %v7709
  %v8066 = vpack.c.b16 %v7714, %v7710
  %v8067 = vpack.c.b16 %v7715, %v7711
  %v8068 = vpack.c.b16 %v7716, %v7712
  %v8069 = vpack.c.b16 %v7721, %v7717
  %v8070 = vpack.c.b16 %v7722, %v7718
  %v8071 = vpack.c.b16 %v7723, %v7719
  %v8072 = vpack.c.b16 %v7724, %v7720
  %v8073 = vpack.c.b16 %v7729, %v7725
  %v8074 = vpack.c.b16 %v7730, %v7726
  %v8075 = vpack.c.b16 %v7731, %v7727
  %v8076 = vpack.c.b16 %v7732, %v7728
  %v8077 = vpack.c.b16 %v7737, %v7733
  %v8078 = vpack.c.b16 %v7738, %v7734
  %v8079 = vpack.c.b16 %v7739, %v7735
  %v8080 = vpack.c.b16 %v7740, %v7736
  %v8081 = vpack.c.b16 %v7745, %v7741
  %v8082 = vpack.c.b16 %v7746, %v7742
  %v8083 = vpack.c.b16 %v7747, %v7743
  %v8084 = vpack.c.b16 %v7748, %v7744
  %v8085 = vpack.c.b16 %v7753, %v7749
  %v8086 = vpack.c.b16 %v7754, %v7750
  %v8087 = vpack.c.b16 %v7755, %v7751
  %v8088 = vpack.c.b16 %v7756, %v7752
  %v8089 = vpack.c.b16 %v7761, %v7757
  %v8090 = vpack.c.b16 %v7762, %v7758
  %v8091 = vpack.c.b16 %v7763, %v7759
  %v8092 = vpack.c.b16 %v7764, %v7760
  %v8093 = vpack.c.b16 %v7769, %v7765
  %v8094 = vpack.c.b16 %v7770, %v7766
  %v8095 = vpack.c.b16 %v7771, %v7767
  %v8096 = vpack.c.b16 %v7772, %v7768
  %v8097 = vpack.c.b16 %v7777, %v7773
  %v8098 = vpack.c.b16 %v7778, %v7774
  %v8099 = vpack.c.b16 %v7779, %v7775
  %v8100 = vpack.c.b16 %v7780, %v7776
  %v8101 = vpack.c.b16 %v7785, %v7781
  %v8102 = vpack.c.b16 %v7786, %v7782
  %v8103 = vpack.c.b16 %v7787, %v7783
  %v8104 = vpack.c.b16 %v7788, %v7784
  %v8105 = vpack.c.b16 %v7793, %v7789
  %v8106 = vpack.c.b16 %v7794, %v7790
  %v8107 = vpack.c.b16 %v7795, %v7791
  %v8108 = vpack.c.b16 %v7796, %v7792
  %v8109 = vpack.c.b16 %v7801, %v7797
  %v8110 = vpack.c.b16 %v7802, %v7798
  %v8111 = vpack.c.b16 %v7803, %v7799
  %v8112 = vpack.c.b16 %v7804, %v7800
  %v8113 = vpack.c.b16 %v7809, %v7805
  %v8114 = vpack.c.b16 %v7810, %v7806
  %v8115 = vpack.c.b16 %v7811, %v7807
  %v8116 = vpack.c.b16 %v7812, %v7808
  %v8117 = vpack.c.b16 %v7817, %v7813
  %v8118 = vpack.c.b16 %v7818, %v7814
  %v8119 = vpack.c.b16 %v7819, %v7815
  %v8120 = vpack.c.b16 %v7820, %v7816
  %v8121 = vpack.c.b16 %v7825, %v7821
  %v8122 = vpack.c.b16 %v7826, %v7822
  %v8123 = vpack.c.b16 %v7827, %v7823
  %v8124 = vpack.c.b16 %v7828, %v7824
  %v8125 = vpack.c.b16 %v7833, %v7829
  %v8126 = vpack.c.b16 %v7834, %v7830
  %v8127 = vpack.c.b16 %v7835, %v7831
  %v8128 = vpack.c.b16 %v7836, %v7832
  %v8129 = vpack.c.b16 %v7841, %v7837
  %v8130 = vpack.c.b16 %v7842, %v7838
  %v8131 = vpack.c.b16 %v7843, %v7839
  %v8132 = vpack.c.b16 %v7844, %v7840
  %v8133 = vpack.c.b16 %v7849, %v7845
  %v8134 = vpack.c.b16 %v7850, %v7846
  %v8135 = vpack.c.b16 %v7851, %v7847
  %v8136 = vpack.c.b16 %v7852, %v7848
  %v8137 = vpack.c.b16 %v7857, %v7853
  %v8138 = vpack.c.b16 %v7858, %v7854
  %v8139 = vpack.c.b16 %v7859, %v7855
  %v8140 = vpack.c.b16 %v7860, %v7856
  %v8141 = vpack.c.b16 %v7865, %v7861
  %v8142 = vpack.c.b16 %v7866, %v7862
  %v8143 = vpack.c.b16 %v7867, %v7863
  %v8144 = vpack.c.b16 %v7868, %v7864
  %v8145 = vpack.c.b16 %v7873, %v7869
  %v8146 = vpack.c.b16 %v7874, %v7870
  %v8147 = vpack.c.b16 %v7875, %v7871
  %v8148 = vpack.c.b16 %v7876, %v7872
  %v8149 = vpack.c.b16 %v7881, %v7877
  %v8150 = vpack.c.b16 %v7882, %v7878
  %v8151 = vpack.c.b16 %v7883, %v7879
  %v8152 = vpack.c.b16 %v7884, %v7880
  %v8153 = vpack.c.b16 %v7889, %v7885
  %v8154 = vpack.c.b16 %v7890, %v7886
  %v8155 = vpack.c.b16 %v7891, %v7887
  %v8156 = vpack.c.b16 %v7892, %v7888
  %v8157 = vpack.c.b16 %v7897, %v7893
  %v8158 = vpack.c.b16 %v7898, %v7894
  %v8159 = vpack.c.b16 %v7899, %v7895
  %v8160 = vpack.c.b16 %v7900, %v7896
  %v8161 = vpack.c.b16 %v7905, %v7901
  %v8162 = vpack.c.b16 %v7906, %v7902
  %v8163 = vpack.c.b16 %v7907, %v7903
  %v8164 = vpack.c.b16 %v7908, %v7904
  %8421 = vmatpush.bf16.msra.mxu0 %v7937
  %8422 = vmatpush.bf16.msra.mxu0 %v7933
  %8423 = vmatpush.bf16.msra.mxu0 %v7929
  %8424 = vmatpush.bf16.msra.mxu0 %v7925
  %8425 = vmatpush.bf16.msra.mxu0 %v7921
  %8426 = vmatpush.bf16.msra.mxu0 %v7917
  %8427 = vmatpush.bf16.msra.mxu0 %v7913
  %8428 = vmatpush.bf16.msra.mxu0 %v7909
  %8429 = vmatmul.bf16.gmra.mxu0 %v6867
  %v8430 = vpop.f32.mrf.mxu0
  %v8431 = vadd.f32 %v7133, %v8430
  %v8432 = vpop.f32.mrf.mxu0
  %8433 = vdwg.mxu0
  %8434 = vmatpush.bf16.msra.mxu0 %v7969
  %8435 = vmatpush.bf16.msra.mxu0 %v7965
  %8436 = vmatpush.bf16.msra.mxu0 %v7961
  %8437 = vmatpush.bf16.msra.mxu0 %v7957
  %8438 = vmatpush.bf16.msra.mxu0 %v7953
  %8439 = vmatpush.bf16.msra.mxu0 %v7949
  %8440 = vmatpush.bf16.msra.mxu0 %v7945
  %8441 = vmatpush.bf16.msra.mxu0 %v7941
  %8442 = vmatmul.bf16.gmra.mxu0 %v6868
  %v8443 = vpop.f32.mrf.mxu0
  %v8444 = vadd.f32 %v8431, %v8443
  %v8445 = vpop.f32.mrf.mxu0
  %8446 = vdwg.mxu0
  %8447 = vmatpush.bf16.msra.mxu0 %v8001
  %8448 = vmatpush.bf16.msra.mxu0 %v7997
  %8449 = vmatpush.bf16.msra.mxu0 %v7993
  %8450 = vmatpush.bf16.msra.mxu0 %v7989
  %8451 = vmatpush.bf16.msra.mxu0 %v7985
  %8452 = vmatpush.bf16.msra.mxu0 %v7981
  %8453 = vmatpush.bf16.msra.mxu0 %v7977
  %8454 = vmatpush.bf16.msra.mxu0 %v7973
  %8455 = vmatmul.bf16.gmra.mxu0 %v6869
  %v8456 = vpop.f32.mrf.mxu0
  %v8457 = vadd.f32 %v8444, %v8456
  %v8458 = vpop.f32.mrf.mxu0
  %8459 = vdwg.mxu0
  %8460 = vmatpush.bf16.msra.mxu0 %v8033
  %8461 = vmatpush.bf16.msra.mxu0 %v8029
  %8462 = vmatpush.bf16.msra.mxu0 %v8025
  %8463 = vmatpush.bf16.msra.mxu0 %v8021
  %8464 = vmatpush.bf16.msra.mxu0 %v8017
  %8465 = vmatpush.bf16.msra.mxu0 %v8013
  %8466 = vmatpush.bf16.msra.mxu0 %v8009
  %8467 = vmatpush.bf16.msra.mxu0 %v8005
  %8468 = vmatmul.bf16.gmra.mxu0 %v6870
  %v8469 = vpop.f32.mrf.mxu0
  %v8470 = vadd.f32 %v8457, %v8469
  %v8471 = vpop.f32.mrf.mxu0
  %8472 = vdwg.mxu0
  %8473 = vmatpush.bf16.msra.mxu0 %v8065
  %8474 = vmatpush.bf16.msra.mxu0 %v8061
  %8475 = vmatpush.bf16.msra.mxu0 %v8057
  %8476 = vmatpush.bf16.msra.mxu0 %v8053
  %8477 = vmatpush.bf16.msra.mxu0 %v8049
  %8478 = vmatpush.bf16.msra.mxu0 %v8045
  %8479 = vmatpush.bf16.msra.mxu0 %v8041
  %8480 = vmatpush.bf16.msra.mxu0 %v8037
  %8481 = vmatmul.bf16.gmra.mxu0 %v6871
  %v8482 = vpop.f32.mrf.mxu0
  %v8483 = vadd.f32 %v8470, %v8482
  %v8484 = vpop.f32.mrf.mxu0
  %8485 = vdwg.mxu0
  %8486 = vmatpush.bf16.msra.mxu0 %v8097
  %8487 = vmatpush.bf16.msra.mxu0 %v8093
  %8488 = vmatpush.bf16.msra.mxu0 %v8089
  %8489 = vmatpush.bf16.msra.mxu0 %v8085
  %8490 = vmatpush.bf16.msra.mxu0 %v8081
  %8491 = vmatpush.bf16.msra.mxu0 %v8077
  %8492 = vmatpush.bf16.msra.mxu0 %v8073
  %8493 = vmatpush.bf16.msra.mxu0 %v8069
  %8494 = vmatmul.bf16.gmra.mxu0 %v6872
  %v8495 = vpop.f32.mrf.mxu0
  %v8496 = vadd.f32 %v8483, %v8495
  %v8497 = vpop.f32.mrf.mxu0
  %8498 = vdwg.mxu0
  %8499 = vmatpush.bf16.msra.mxu0 %v8129
  %8500 = vmatpush.bf16.msra.mxu0 %v8125
  %8501 = vmatpush.bf16.msra.mxu0 %v8121
  %8502 = vmatpush.bf16.msra.mxu0 %v8117
  %8503 = vmatpush.bf16.msra.mxu0 %v8113
  %8504 = vmatpush.bf16.msra.mxu0 %v8109
  %8505 = vmatpush.bf16.msra.mxu0 %v8105
  %8506 = vmatpush.bf16.msra.mxu0 %v8101
  %8507 = vmatmul.bf16.gmra.mxu0 %v6873
  %v8508 = vpop.f32.mrf.mxu0
  %v8509 = vadd.f32 %v8496, %v8508
  %v8510 = vpop.f32.mrf.mxu0
  %8511 = vdwg.mxu0
  %8512 = vmatpush.bf16.msra.mxu0 %v8161
  %8513 = vmatpush.bf16.msra.mxu0 %v8157
  %8514 = vmatpush.bf16.msra.mxu0 %v8153
  %8515 = vmatpush.bf16.msra.mxu0 %v8149
  %8516 = vmatpush.bf16.msra.mxu0 %v8145
  %8517 = vmatpush.bf16.msra.mxu0 %v8141
  %8518 = vmatpush.bf16.msra.mxu0 %v8137
  %8519 = vmatpush.bf16.msra.mxu0 %v8133
  %8520 = vmatmul.bf16.gmra.mxu0 %v6874
  %v8521 = vpop.f32.mrf.mxu0
  %v8522 = vadd.f32 %v8509, %v8521
  %v8523 = vpop.f32.mrf.mxu0
  %8524 = vdwg.mxu0
  %8525 = vmatpush.bf16.msra.mxu0 %v7938
  %8526 = vmatpush.bf16.msra.mxu0 %v7934
  %8527 = vmatpush.bf16.msra.mxu0 %v7930
  %8528 = vmatpush.bf16.msra.mxu0 %v7926
  %8529 = vmatpush.bf16.msra.mxu0 %v7922
  %8530 = vmatpush.bf16.msra.mxu0 %v7918
  %8531 = vmatpush.bf16.msra.mxu0 %v7914
  %8532 = vmatpush.bf16.msra.mxu0 %v7910
  %8533 = vmatmul.bf16.gmra.mxu0 %v6867
  %v8534 = vpop.f32.mrf.mxu0
  %v8535 = vadd.f32 %v7134, %v8534
  %v8536 = vpop.f32.mrf.mxu0
  %8537 = vdwg.mxu0
  %8538 = vmatpush.bf16.msra.mxu0 %v7970
  %8539 = vmatpush.bf16.msra.mxu0 %v7966
  %8540 = vmatpush.bf16.msra.mxu0 %v7962
  %8541 = vmatpush.bf16.msra.mxu0 %v7958
  %8542 = vmatpush.bf16.msra.mxu0 %v7954
  %8543 = vmatpush.bf16.msra.mxu0 %v7950
  %8544 = vmatpush.bf16.msra.mxu0 %v7946
  %8545 = vmatpush.bf16.msra.mxu0 %v7942
  %8546 = vmatmul.bf16.gmra.mxu0 %v6868
  %v8547 = vpop.f32.mrf.mxu0
  %v8548 = vadd.f32 %v8535, %v8547
  %v8549 = vpop.f32.mrf.mxu0
  %8550 = vdwg.mxu0
  %8551 = vmatpush.bf16.msra.mxu0 %v8002
  %8552 = vmatpush.bf16.msra.mxu0 %v7998
  %8553 = vmatpush.bf16.msra.mxu0 %v7994
  %8554 = vmatpush.bf16.msra.mxu0 %v7990
  %8555 = vmatpush.bf16.msra.mxu0 %v7986
  %8556 = vmatpush.bf16.msra.mxu0 %v7982
  %8557 = vmatpush.bf16.msra.mxu0 %v7978
  %8558 = vmatpush.bf16.msra.mxu0 %v7974
  %8559 = vmatmul.bf16.gmra.mxu0 %v6869
  %v8560 = vpop.f32.mrf.mxu0
  %v8561 = vadd.f32 %v8548, %v8560
  %v8562 = vpop.f32.mrf.mxu0
  %8563 = vdwg.mxu0
  %8564 = vmatpush.bf16.msra.mxu0 %v8034
  %8565 = vmatpush.bf16.msra.mxu0 %v8030
  %8566 = vmatpush.bf16.msra.mxu0 %v8026
  %8567 = vmatpush.bf16.msra.mxu0 %v8022
  %8568 = vmatpush.bf16.msra.mxu0 %v8018
  %8569 = vmatpush.bf16.msra.mxu0 %v8014
  %8570 = vmatpush.bf16.msra.mxu0 %v8010
  %8571 = vmatpush.bf16.msra.mxu0 %v8006
  %8572 = vmatmul.bf16.gmra.mxu0 %v6870
  %v8573 = vpop.f32.mrf.mxu0
  %v8574 = vadd.f32 %v8561, %v8573
  %v8575 = vpop.f32.mrf.mxu0
  %8576 = vdwg.mxu0
  %8577 = vmatpush.bf16.msra.mxu0 %v8066
  %8578 = vmatpush.bf16.msra.mxu0 %v8062
  %8579 = vmatpush.bf16.msra.mxu0 %v8058
  %8580 = vmatpush.bf16.msra.mxu0 %v8054
  %8581 = vmatpush.bf16.msra.mxu0 %v8050
  %8582 = vmatpush.bf16.msra.mxu0 %v8046
  %8583 = vmatpush.bf16.msra.mxu0 %v8042
  %8584 = vmatpush.bf16.msra.mxu0 %v8038
  %8585 = vmatmul.bf16.gmra.mxu0 %v6871
  %v8586 = vpop.f32.mrf.mxu0
  %v8587 = vadd.f32 %v8574, %v8586
  %v8588 = vpop.f32.mrf.mxu0
  %8589 = vdwg.mxu0
  %8590 = vmatpush.bf16.msra.mxu0 %v8098
  %8591 = vmatpush.bf16.msra.mxu0 %v8094
  %8592 = vmatpush.bf16.msra.mxu0 %v8090
  %8593 = vmatpush.bf16.msra.mxu0 %v8086
  %8594 = vmatpush.bf16.msra.mxu0 %v8082
  %8595 = vmatpush.bf16.msra.mxu0 %v8078
  %8596 = vmatpush.bf16.msra.mxu0 %v8074
  %8597 = vmatpush.bf16.msra.mxu0 %v8070
  %8598 = vmatmul.bf16.gmra.mxu0 %v6872
  %v8599 = vpop.f32.mrf.mxu0
  %v8600 = vadd.f32 %v8587, %v8599
  %v8601 = vpop.f32.mrf.mxu0
  %8602 = vdwg.mxu0
  %8603 = vmatpush.bf16.msra.mxu0 %v8130
  %8604 = vmatpush.bf16.msra.mxu0 %v8126
  %8605 = vmatpush.bf16.msra.mxu0 %v8122
  %8606 = vmatpush.bf16.msra.mxu0 %v8118
  %8607 = vmatpush.bf16.msra.mxu0 %v8114
  %8608 = vmatpush.bf16.msra.mxu0 %v8110
  %8609 = vmatpush.bf16.msra.mxu0 %v8106
  %8610 = vmatpush.bf16.msra.mxu0 %v8102
  %8611 = vmatmul.bf16.gmra.mxu0 %v6873
  %v8612 = vpop.f32.mrf.mxu0
  %v8613 = vadd.f32 %v8600, %v8612
  %v8614 = vpop.f32.mrf.mxu0
  %8615 = vdwg.mxu0
  %8616 = vmatpush.bf16.msra.mxu0 %v8162
  %8617 = vmatpush.bf16.msra.mxu0 %v8158
  %8618 = vmatpush.bf16.msra.mxu0 %v8154
  %8619 = vmatpush.bf16.msra.mxu0 %v8150
  %8620 = vmatpush.bf16.msra.mxu0 %v8146
  %8621 = vmatpush.bf16.msra.mxu0 %v8142
  %8622 = vmatpush.bf16.msra.mxu0 %v8138
  %8623 = vmatpush.bf16.msra.mxu0 %v8134
  %8624 = vmatmul.bf16.gmra.mxu0 %v6874
  %v8625 = vpop.f32.mrf.mxu0
  %v8626 = vadd.f32 %v8613, %v8625
  %v8627 = vpop.f32.mrf.mxu0
  %8628 = vdwg.mxu0
  %8629 = vmatpush.bf16.msra.mxu0 %v7939
  %8630 = vmatpush.bf16.msra.mxu0 %v7935
  %8631 = vmatpush.bf16.msra.mxu0 %v7931
  %8632 = vmatpush.bf16.msra.mxu0 %v7927
  %8633 = vmatpush.bf16.msra.mxu0 %v7923
  %8634 = vmatpush.bf16.msra.mxu0 %v7919
  %8635 = vmatpush.bf16.msra.mxu0 %v7915
  %8636 = vmatpush.bf16.msra.mxu0 %v7911
  %8637 = vmatmul.bf16.gmra.mxu0 %v6867
  %v8638 = vpop.f32.mrf.mxu0
  %v8639 = vadd.f32 %v7135, %v8638
  %v8640 = vpop.f32.mrf.mxu0
  %8641 = vdwg.mxu0
  %8642 = vmatpush.bf16.msra.mxu0 %v7971
  %8643 = vmatpush.bf16.msra.mxu0 %v7967
  %8644 = vmatpush.bf16.msra.mxu0 %v7963
  %8645 = vmatpush.bf16.msra.mxu0 %v7959
  %8646 = vmatpush.bf16.msra.mxu0 %v7955
  %8647 = vmatpush.bf16.msra.mxu0 %v7951
  %8648 = vmatpush.bf16.msra.mxu0 %v7947
  %8649 = vmatpush.bf16.msra.mxu0 %v7943
  %8650 = vmatmul.bf16.gmra.mxu0 %v6868
  %v8651 = vpop.f32.mrf.mxu0
  %v8652 = vadd.f32 %v8639, %v8651
  %v8653 = vpop.f32.mrf.mxu0
  %8654 = vdwg.mxu0
  %8655 = vmatpush.bf16.msra.mxu0 %v8003
  %8656 = vmatpush.bf16.msra.mxu0 %v7999
  %8657 = vmatpush.bf16.msra.mxu0 %v7995
  %8658 = vmatpush.bf16.msra.mxu0 %v7991
  %8659 = vmatpush.bf16.msra.mxu0 %v7987
  %8660 = vmatpush.bf16.msra.mxu0 %v7983
  %8661 = vmatpush.bf16.msra.mxu0 %v7979
  %8662 = vmatpush.bf16.msra.mxu0 %v7975
  %8663 = vmatmul.bf16.gmra.mxu0 %v6869
  %v8664 = vpop.f32.mrf.mxu0
  %v8665 = vadd.f32 %v8652, %v8664
  %v8666 = vpop.f32.mrf.mxu0
  %8667 = vdwg.mxu0
  %8668 = vmatpush.bf16.msra.mxu0 %v8035
  %8669 = vmatpush.bf16.msra.mxu0 %v8031
  %8670 = vmatpush.bf16.msra.mxu0 %v8027
  %8671 = vmatpush.bf16.msra.mxu0 %v8023
  %8672 = vmatpush.bf16.msra.mxu0 %v8019
  %8673 = vmatpush.bf16.msra.mxu0 %v8015
  %8674 = vmatpush.bf16.msra.mxu0 %v8011
  %8675 = vmatpush.bf16.msra.mxu0 %v8007
  %8676 = vmatmul.bf16.gmra.mxu0 %v6870
  %v8677 = vpop.f32.mrf.mxu0
  %v8678 = vadd.f32 %v8665, %v8677
  %v8679 = vpop.f32.mrf.mxu0
  %8680 = vdwg.mxu0
  %8681 = vmatpush.bf16.msra.mxu0 %v8067
  %8682 = vmatpush.bf16.msra.mxu0 %v8063
  %8683 = vmatpush.bf16.msra.mxu0 %v8059
  %8684 = vmatpush.bf16.msra.mxu0 %v8055
  %8685 = vmatpush.bf16.msra.mxu0 %v8051
  %8686 = vmatpush.bf16.msra.mxu0 %v8047
  %8687 = vmatpush.bf16.msra.mxu0 %v8043
  %8688 = vmatpush.bf16.msra.mxu0 %v8039
  %8689 = vmatmul.bf16.gmra.mxu0 %v6871
  %v8690 = vpop.f32.mrf.mxu0
  %v8691 = vadd.f32 %v8678, %v8690
  %v8692 = vpop.f32.mrf.mxu0
  %8693 = vdwg.mxu0
  %8694 = vmatpush.bf16.msra.mxu0 %v8099
  %8695 = vmatpush.bf16.msra.mxu0 %v8095
  %8696 = vmatpush.bf16.msra.mxu0 %v8091
  %8697 = vmatpush.bf16.msra.mxu0 %v8087
  %8698 = vmatpush.bf16.msra.mxu0 %v8083
  %8699 = vmatpush.bf16.msra.mxu0 %v8079
  %8700 = vmatpush.bf16.msra.mxu0 %v8075
  %8701 = vmatpush.bf16.msra.mxu0 %v8071
  %8702 = vmatmul.bf16.gmra.mxu0 %v6872
  %v8703 = vpop.f32.mrf.mxu0
  %v8704 = vadd.f32 %v8691, %v8703
  %v8705 = vpop.f32.mrf.mxu0
  %8706 = vdwg.mxu0
  %8707 = vmatpush.bf16.msra.mxu0 %v8131
  %8708 = vmatpush.bf16.msra.mxu0 %v8127
  %8709 = vmatpush.bf16.msra.mxu0 %v8123
  %8710 = vmatpush.bf16.msra.mxu0 %v8119
  %8711 = vmatpush.bf16.msra.mxu0 %v8115
  %8712 = vmatpush.bf16.msra.mxu0 %v8111
  %8713 = vmatpush.bf16.msra.mxu0 %v8107
  %8714 = vmatpush.bf16.msra.mxu0 %v8103
  %8715 = vmatmul.bf16.gmra.mxu0 %v6873
  %v8716 = vpop.f32.mrf.mxu0
  %v8717 = vadd.f32 %v8704, %v8716
  %v8718 = vpop.f32.mrf.mxu0
  %8719 = vdwg.mxu0
  %8720 = vmatpush.bf16.msra.mxu0 %v8163
  %8721 = vmatpush.bf16.msra.mxu0 %v8159
  %8722 = vmatpush.bf16.msra.mxu0 %v8155
  %8723 = vmatpush.bf16.msra.mxu0 %v8151
  %8724 = vmatpush.bf16.msra.mxu0 %v8147
  %8725 = vmatpush.bf16.msra.mxu0 %v8143
  %8726 = vmatpush.bf16.msra.mxu0 %v8139
  %8727 = vmatpush.bf16.msra.mxu0 %v8135
  %8728 = vmatmul.bf16.gmra.mxu0 %v6874
  %v8729 = vpop.f32.mrf.mxu0
  %v8730 = vadd.f32 %v8717, %v8729
  %v8731 = vpop.f32.mrf.mxu0
  %8732 = vdwg.mxu0
  %8733 = vmatpush.bf16.msra.mxu0 %v7940
  %8734 = vmatpush.bf16.msra.mxu0 %v7936
  %8735 = vmatpush.bf16.msra.mxu0 %v7932
  %8736 = vmatpush.bf16.msra.mxu0 %v7928
  %8737 = vmatpush.bf16.msra.mxu0 %v7924
  %8738 = vmatpush.bf16.msra.mxu0 %v7920
  %8739 = vmatpush.bf16.msra.mxu0 %v7916
  %8740 = vmatpush.bf16.msra.mxu0 %v7912
  %8741 = vmatmul.bf16.gmra.mxu0 %v6867
  %v8742 = vpop.f32.mrf.mxu0
  %v8743 = vadd.f32 %v7136, %v8742
  %v8744 = vpop.f32.mrf.mxu0
  %8745 = vdwg.mxu0
  %8746 = vmatpush.bf16.msra.mxu0 %v7972
  %8747 = vmatpush.bf16.msra.mxu0 %v7968
  %8748 = vmatpush.bf16.msra.mxu0 %v7964
  %8749 = vmatpush.bf16.msra.mxu0 %v7960
  %8750 = vmatpush.bf16.msra.mxu0 %v7956
  %8751 = vmatpush.bf16.msra.mxu0 %v7952
  %8752 = vmatpush.bf16.msra.mxu0 %v7948
  %8753 = vmatpush.bf16.msra.mxu0 %v7944
  %8754 = vmatmul.bf16.gmra.mxu0 %v6868
  %v8755 = vpop.f32.mrf.mxu0
  %v8756 = vadd.f32 %v8743, %v8755
  %v8757 = vpop.f32.mrf.mxu0
  %8758 = vdwg.mxu0
  %8759 = vmatpush.bf16.msra.mxu0 %v8004
  %8760 = vmatpush.bf16.msra.mxu0 %v8000
  %8761 = vmatpush.bf16.msra.mxu0 %v7996
  %8762 = vmatpush.bf16.msra.mxu0 %v7992
  %8763 = vmatpush.bf16.msra.mxu0 %v7988
  %8764 = vmatpush.bf16.msra.mxu0 %v7984
  %8765 = vmatpush.bf16.msra.mxu0 %v7980
  %8766 = vmatpush.bf16.msra.mxu0 %v7976
  %8767 = vmatmul.bf16.gmra.mxu0 %v6869
  %v8768 = vpop.f32.mrf.mxu0
  %v8769 = vadd.f32 %v8756, %v8768
  %v8770 = vpop.f32.mrf.mxu0
  %8771 = vdwg.mxu0
  %8772 = vmatpush.bf16.msra.mxu0 %v8036
  %8773 = vmatpush.bf16.msra.mxu0 %v8032
  %8774 = vmatpush.bf16.msra.mxu0 %v8028
  %8775 = vmatpush.bf16.msra.mxu0 %v8024
  %8776 = vmatpush.bf16.msra.mxu0 %v8020
  %8777 = vmatpush.bf16.msra.mxu0 %v8016
  %8778 = vmatpush.bf16.msra.mxu0 %v8012
  %8779 = vmatpush.bf16.msra.mxu0 %v8008
  %8780 = vmatmul.bf16.gmra.mxu0 %v6870
  %v8781 = vpop.f32.mrf.mxu0
  %v8782 = vadd.f32 %v8769, %v8781
  %v8783 = vpop.f32.mrf.mxu0
  %8784 = vdwg.mxu0
  %8785 = vmatpush.bf16.msra.mxu0 %v8068
  %8786 = vmatpush.bf16.msra.mxu0 %v8064
  %8787 = vmatpush.bf16.msra.mxu0 %v8060
  %8788 = vmatpush.bf16.msra.mxu0 %v8056
  %8789 = vmatpush.bf16.msra.mxu0 %v8052
  %8790 = vmatpush.bf16.msra.mxu0 %v8048
  %8791 = vmatpush.bf16.msra.mxu0 %v8044
  %8792 = vmatpush.bf16.msra.mxu0 %v8040
  %8793 = vmatmul.bf16.gmra.mxu0 %v6871
  %v8794 = vpop.f32.mrf.mxu0
  %v8795 = vadd.f32 %v8782, %v8794
  %v8796 = vpop.f32.mrf.mxu0
  %8797 = vdwg.mxu0
  %8798 = vmatpush.bf16.msra.mxu0 %v8100
  %8799 = vmatpush.bf16.msra.mxu0 %v8096
  %8800 = vmatpush.bf16.msra.mxu0 %v8092
  %8801 = vmatpush.bf16.msra.mxu0 %v8088
  %8802 = vmatpush.bf16.msra.mxu0 %v8084
  %8803 = vmatpush.bf16.msra.mxu0 %v8080
  %8804 = vmatpush.bf16.msra.mxu0 %v8076
  %8805 = vmatpush.bf16.msra.mxu0 %v8072
  %8806 = vmatmul.bf16.gmra.mxu0 %v6872
  %v8807 = vpop.f32.mrf.mxu0
  %v8808 = vadd.f32 %v8795, %v8807
  %v8809 = vpop.f32.mrf.mxu0
  %8810 = vdwg.mxu0
  %8811 = vmatpush.bf16.msra.mxu0 %v8132
  %8812 = vmatpush.bf16.msra.mxu0 %v8128
  %8813 = vmatpush.bf16.msra.mxu0 %v8124
  %8814 = vmatpush.bf16.msra.mxu0 %v8120
  %8815 = vmatpush.bf16.msra.mxu0 %v8116
  %8816 = vmatpush.bf16.msra.mxu0 %v8112
  %8817 = vmatpush.bf16.msra.mxu0 %v8108
  %8818 = vmatpush.bf16.msra.mxu0 %v8104
  %8819 = vmatmul.bf16.gmra.mxu0 %v6873
  %v8820 = vpop.f32.mrf.mxu0
  %v8821 = vadd.f32 %v8808, %v8820
  %v8822 = vpop.f32.mrf.mxu0
  %8823 = vdwg.mxu0
  %8824 = vmatpush.bf16.msra.mxu0 %v8164
  %8825 = vmatpush.bf16.msra.mxu0 %v8160
  %8826 = vmatpush.bf16.msra.mxu0 %v8156
  %8827 = vmatpush.bf16.msra.mxu0 %v8152
  %8828 = vmatpush.bf16.msra.mxu0 %v8148
  %8829 = vmatpush.bf16.msra.mxu0 %v8144
  %8830 = vmatpush.bf16.msra.mxu0 %v8140
  %8831 = vmatpush.bf16.msra.mxu0 %v8136
  %8832 = vmatmul.bf16.gmra.mxu0 %v6874
  %v8833 = vpop.f32.mrf.mxu0
  %v8834 = vadd.f32 %v8821, %v8833
  %v8835 = vpop.f32.mrf.mxu0
  %8836 = vdwg.mxu0
  %v8837 = vmax.f32 %v8522, 0.0
  %v8838 = vmax.f32 %v8626, 0.0
  %v8839 = vmax.f32 %v8730, 0.0
  %v8840 = vmax.f32 %v8834, 0.0
  %s8841 = smul.u32 4, 64
  %s8842 = smul.u32 %s8841, 3
  %s8843 = sshll.u32 %s8842, 4
  %8844 = dma.done %s742, %s8843
  %v8845 = vpack.c.bf16 %v8837, %v8837
  %v8846 = vpack.c.bf16 %v8838, %v8838
  %v8847 = vpack.c.bf16 %v8839, %v8839
  %v8848 = vpack.c.bf16 %v8840, %v8840
  %v8849 = vld [vmem:[#allocation10] sm:$0xff]
  %v8850 = vld [vmem:[#allocation10 + $0x8] sm:$0xf]
  %v8851 = vld [vmem:[#allocation10 + $0xc] sm:$0xff]
  %v8852 = vld [vmem:[#allocation10 + $0x14] sm:$0xf]
  %v8853 = vld [vmem:[#allocation10 + $0x18] sm:$0xff]
  %v8854 = vld [vmem:[#allocation10 + $0x20] sm:$0xf]
  %v8855 = vld [vmem:[#allocation10 + $0x24] sm:$0xff]
  %v8856 = vld [vmem:[#allocation10 + $0x2c] sm:$0xf]
  %v8857 = vld [vmem:[#allocation10 + $0x30] sm:$0xff]
  %v8858 = vld [vmem:[#allocation10 + $0x38] sm:$0xf]
  %v8859 = vld [vmem:[#allocation10 + $0x3c] sm:$0xff]
  %v8860 = vld [vmem:[#allocation10 + $0x44] sm:$0xf]
  %v8861 = vld [vmem:[#allocation10 + $0x48] sm:$0xff]
  %v8862 = vld [vmem:[#allocation10 + $0x50] sm:$0xf]
  %v8863 = vld [vmem:[#allocation10 + $0x54] sm:$0xff]
  %v8864 = vld [vmem:[#allocation10 + $0x5c] sm:$0xf]
  %v8865 = vld [vmem:[#allocation10 + $0x60] sm:$0xff]
  %v8866 = vld [vmem:[#allocation10 + $0x68] sm:$0xf]
  %v8867 = vld [vmem:[#allocation10 + $0x6c] sm:$0xff]
  %v8868 = vld [vmem:[#allocation10 + $0x74] sm:$0xf]
  %v8869 = vld [vmem:[#allocation10 + $0x78] sm:$0xff]
  %v8870 = vld [vmem:[#allocation10 + $0x80] sm:$0xf]
  %v8871 = vld [vmem:[#allocation10 + $0x84] sm:$0xff]
  %v8872 = vld [vmem:[#allocation10 + $0x8c] sm:$0xf]
  %v8873 = vld [vmem:[#allocation10 + $0x90] sm:$0xff]
  %v8874 = vld [vmem:[#allocation10 + $0x98] sm:$0xf]
  %v8875 = vld [vmem:[#allocation10 + $0x9c] sm:$0xff]
  %v8876 = vld [vmem:[#allocation10 + $0xa4] sm:$0xf]
  %v8877 = vld [vmem:[#allocation10 + $0xa8] sm:$0xff]
  %v8878 = vld [vmem:[#allocation10 + $0xb0] sm:$0xf]
  %v8879 = vld [vmem:[#allocation10 + $0xb4] sm:$0xff]
  %v8880 = vld [vmem:[#allocation10 + $0xbc] sm:$0xf]
  %v8881 = vld [vmem:[#allocation10 + $0xc0] sm:$0xff]
  %v8882 = vld [vmem:[#allocation10 + $0xc8] sm:$0xf]
  %v8883 = vld [vmem:[#allocation10 + $0xcc] sm:$0xff]
  %v8884 = vld [vmem:[#allocation10 + $0xd4] sm:$0xf]
  %v8885 = vld [vmem:[#allocation10 + $0xd8] sm:$0xff]
  %v8886 = vld [vmem:[#allocation10 + $0xe0] sm:$0xf]
  %v8887 = vld [vmem:[#allocation10 + $0xe4] sm:$0xff]
  %v8888 = vld [vmem:[#allocation10 + $0xec] sm:$0xf]
  %v8889 = vld [vmem:[#allocation10 + $0xf0] sm:$0xff]
  %v8890 = vld [vmem:[#allocation10 + $0xf8] sm:$0xf]
  %v8891 = vld [vmem:[#allocation10 + $0xfc] sm:$0xff]
  %v8892 = vld [vmem:[#allocation10 + $0x104] sm:$0xf]
  %v8893 = vld [vmem:[#allocation10 + $0x108] sm:$0xff]
  %v8894 = vld [vmem:[#allocation10 + $0x110] sm:$0xf]
  %v8895 = vld [vmem:[#allocation10 + $0x114] sm:$0xff]
  %v8896 = vld [vmem:[#allocation10 + $0x11c] sm:$0xf]
  %v8897 = vld [vmem:[#allocation10 + $0x120] sm:$0xff]
  %v8898 = vld [vmem:[#allocation10 + $0x128] sm:$0xf]
  %v8899 = vld [vmem:[#allocation10 + $0x12c] sm:$0xff]
  %v8900 = vld [vmem:[#allocation10 + $0x134] sm:$0xf]
  %v8901 = vld [vmem:[#allocation10 + $0x138] sm:$0xff]
  %v8902 = vld [vmem:[#allocation10 + $0x140] sm:$0xf]
  %v8903 = vld [vmem:[#allocation10 + $0x144] sm:$0xff]
  %v8904 = vld [vmem:[#allocation10 + $0x14c] sm:$0xf]
  %v8905 = vld [vmem:[#allocation10 + $0x150] sm:$0xff]
  %v8906 = vld [vmem:[#allocation10 + $0x158] sm:$0xf]
  %v8907 = vld [vmem:[#allocation10 + $0x15c] sm:$0xff]
  %v8908 = vld [vmem:[#allocation10 + $0x164] sm:$0xf]
  %v8909 = vld [vmem:[#allocation10 + $0x168] sm:$0xff]
  %v8910 = vld [vmem:[#allocation10 + $0x170] sm:$0xf]
  %v8911 = vld [vmem:[#allocation10 + $0x174] sm:$0xff]
  %v8912 = vld [vmem:[#allocation10 + $0x17c] sm:$0xf]
  %v8913 = vld [vmem:[#allocation10 + $0x180] sm:$0xff]
  %v8914 = vld [vmem:[#allocation10 + $0x188] sm:$0xf]
  %v8915 = vld [vmem:[#allocation10 + $0x18c] sm:$0xff]
  %v8916 = vld [vmem:[#allocation10 + $0x194] sm:$0xf]
  %v8917 = vld [vmem:[#allocation10 + $0x198] sm:$0xff]
  %v8918 = vld [vmem:[#allocation10 + $0x1a0] sm:$0xf]
  %v8919 = vld [vmem:[#allocation10 + $0x1a4] sm:$0xff]
  %v8920 = vld [vmem:[#allocation10 + $0x1ac] sm:$0xf]
  %v8921 = vld [vmem:[#allocation10 + $0x1b0] sm:$0xff]
  %v8922 = vld [vmem:[#allocation10 + $0x1b8] sm:$0xf]
  %v8923 = vld [vmem:[#allocation10 + $0x1bc] sm:$0xff]
  %v8924 = vld [vmem:[#allocation10 + $0x1c4] sm:$0xf]
  %v8925 = vld [vmem:[#allocation10 + $0x1c8] sm:$0xff]
  %v8926 = vld [vmem:[#allocation10 + $0x1d0] sm:$0xf]
  %v8927 = vld [vmem:[#allocation10 + $0x1d4] sm:$0xff]
  %v8928 = vld [vmem:[#allocation10 + $0x1dc] sm:$0xf]
  %v8929 = vld [vmem:[#allocation10 + $0x1e0] sm:$0xff]
  %v8930 = vld [vmem:[#allocation10 + $0x1e8] sm:$0xf]
  %v8931 = vld [vmem:[#allocation10 + $0x1ec] sm:$0xff]
  %v8932 = vld [vmem:[#allocation10 + $0x1f4] sm:$0xf]
  %v8933 = vld [vmem:[#allocation10 + $0x1f8] sm:$0xff]
  %v8934 = vld [vmem:[#allocation10 + $0x200] sm:$0xf]
  %v8935 = vld [vmem:[#allocation10 + $0x204] sm:$0xff]
  %v8936 = vld [vmem:[#allocation10 + $0x20c] sm:$0xf]
  %v8937 = vld [vmem:[#allocation10 + $0x210] sm:$0xff]
  %v8938 = vld [vmem:[#allocation10 + $0x218] sm:$0xf]
  %v8939 = vld [vmem:[#allocation10 + $0x21c] sm:$0xff]
  %v8940 = vld [vmem:[#allocation10 + $0x224] sm:$0xf]
  %v8941 = vld [vmem:[#allocation10 + $0x228] sm:$0xff]
  %v8942 = vld [vmem:[#allocation10 + $0x230] sm:$0xf]
  %v8943 = vld [vmem:[#allocation10 + $0x234] sm:$0xff]
  %v8944 = vld [vmem:[#allocation10 + $0x23c] sm:$0xf]
  %v8945 = vld [vmem:[#allocation10 + $0x240] sm:$0xff]
  %v8946 = vld [vmem:[#allocation10 + $0x248] sm:$0xf]
  %v8947 = vld [vmem:[#allocation10 + $0x24c] sm:$0xff]
  %v8948 = vld [vmem:[#allocation10 + $0x254] sm:$0xf]
  %v8949 = vld [vmem:[#allocation10 + $0x258] sm:$0xff]
  %v8950 = vld [vmem:[#allocation10 + $0x260] sm:$0xf]
  %v8951 = vld [vmem:[#allocation10 + $0x264] sm:$0xff]
  %v8952 = vld [vmem:[#allocation10 + $0x26c] sm:$0xf]
  %v8953 = vld [vmem:[#allocation10 + $0x270] sm:$0xff]
  %v8954 = vld [vmem:[#allocation10 + $0x278] sm:$0xf]
  %v8955 = vld [vmem:[#allocation10 + $0x27c] sm:$0xff]
  %v8956 = vld [vmem:[#allocation10 + $0x284] sm:$0xf]
  %v8957 = vld [vmem:[#allocation10 + $0x288] sm:$0xff]
  %v8958 = vld [vmem:[#allocation10 + $0x290] sm:$0xf]
  %v8959 = vld [vmem:[#allocation10 + $0x294] sm:$0xff]
  %v8960 = vld [vmem:[#allocation10 + $0x29c] sm:$0xf]
  %v8961 = vld [vmem:[#allocation10 + $0x2a0] sm:$0xff]
  %v8962 = vld [vmem:[#allocation10 + $0x2a8] sm:$0xf]
  %v8963 = vld [vmem:[#allocation10 + $0x2ac] sm:$0xff]
  %v8964 = vld [vmem:[#allocation10 + $0x2b4] sm:$0xf]
  %v8965 = vld [vmem:[#allocation10 + $0x2b8] sm:$0xff]
  %v8966 = vld [vmem:[#allocation10 + $0x2c0] sm:$0xf]
  %v8967 = vld [vmem:[#allocation10 + $0x2c4] sm:$0xff]
  %v8968 = vld [vmem:[#allocation10 + $0x2cc] sm:$0xf]
  %v8969 = vld [vmem:[#allocation10 + $0x2d0] sm:$0xff]
  %v8970 = vld [vmem:[#allocation10 + $0x2d8] sm:$0xf]
  %v8971 = vld [vmem:[#allocation10 + $0x2dc] sm:$0xff]
  %v8972 = vld [vmem:[#allocation10 + $0x2e4] sm:$0xf]
  %v8973 = vld [vmem:[#allocation10 + $0x2e8] sm:$0xff]
  %v8974 = vld [vmem:[#allocation10 + $0x2f0] sm:$0xf]
  %v8975 = vld [vmem:[#allocation10 + $0x2f4] sm:$0xff]
  %v8976 = vld [vmem:[#allocation10 + $0x2fc] sm:$0xf]
  %v8977 = vld [vmem:[%s19] sm:$0x7]
  %v8979 = vperm.slane %v8977, 0
  %v8980 = vperm.slane %v8977, 1
  %v8981 = vperm.slane %v8977, 2
  %v9113 = vunpack.c.l.b16 %v8849
  %v9114 = vunpack.c.h.b16 %v8849
  %v9115 = vunpack.c.l.b16 %v8850
  %v9116 = vunpack.c.l.b16 %v8851
  %v9117 = vunpack.c.h.b16 %v8851
  %v9118 = vunpack.c.l.b16 %v8852
  %v9119 = vunpack.c.l.b16 %v8853
  %v9120 = vunpack.c.h.b16 %v8853
  %v9121 = vunpack.c.l.b16 %v8854
  %v9122 = vunpack.c.l.b16 %v8855
  %v9123 = vunpack.c.h.b16 %v8855
  %v9124 = vunpack.c.l.b16 %v8856
  %v9125 = vunpack.c.l.b16 %v8857
  %v9126 = vunpack.c.h.b16 %v8857
  %v9127 = vunpack.c.l.b16 %v8858
  %v9128 = vunpack.c.l.b16 %v8859
  %v9129 = vunpack.c.h.b16 %v8859
  %v9130 = vunpack.c.l.b16 %v8860
  %v9131 = vunpack.c.l.b16 %v8861
  %v9132 = vunpack.c.h.b16 %v8861
  %v9133 = vunpack.c.l.b16 %v8862
  %v9134 = vunpack.c.l.b16 %v8863
  %v9135 = vunpack.c.h.b16 %v8863
  %v9136 = vunpack.c.l.b16 %v8864
  %v9137 = vunpack.c.l.b16 %v8865
  %v9138 = vunpack.c.h.b16 %v8865
  %v9139 = vunpack.c.l.b16 %v8866
  %v9140 = vunpack.c.l.b16 %v8867
  %v9141 = vunpack.c.h.b16 %v8867
  %v9142 = vunpack.c.l.b16 %v8868
  %v9143 = vunpack.c.l.b16 %v8869
  %v9144 = vunpack.c.h.b16 %v8869
  %v9145 = vunpack.c.l.b16 %v8870
  %v9146 = vunpack.c.l.b16 %v8871
  %v9147 = vunpack.c.h.b16 %v8871
  %v9148 = vunpack.c.l.b16 %v8872
  %v9149 = vunpack.c.l.b16 %v8873
  %v9150 = vunpack.c.h.b16 %v8873
  %v9151 = vunpack.c.l.b16 %v8874
  %v9152 = vunpack.c.l.b16 %v8875
  %v9153 = vunpack.c.h.b16 %v8875
  %v9154 = vunpack.c.l.b16 %v8876
  %v9155 = vunpack.c.l.b16 %v8877
  %v9156 = vunpack.c.h.b16 %v8877
  %v9157 = vunpack.c.l.b16 %v8878
  %v9158 = vunpack.c.l.b16 %v8879
  %v9159 = vunpack.c.h.b16 %v8879
  %v9160 = vunpack.c.l.b16 %v8880
  %v9161 = vunpack.c.l.b16 %v8881
  %v9162 = vunpack.c.h.b16 %v8881
  %v9163 = vunpack.c.l.b16 %v8882
  %v9164 = vunpack.c.l.b16 %v8883
  %v9165 = vunpack.c.h.b16 %v8883
  %v9166 = vunpack.c.l.b16 %v8884
  %v9167 = vunpack.c.l.b16 %v8885
  %v9168 = vunpack.c.h.b16 %v8885
  %v9169 = vunpack.c.l.b16 %v8886
  %v9170 = vunpack.c.l.b16 %v8887
  %v9171 = vunpack.c.h.b16 %v8887
  %v9172 = vunpack.c.l.b16 %v8888
  %v9173 = vunpack.c.l.b16 %v8889
  %v9174 = vunpack.c.h.b16 %v8889
  %v9175 = vunpack.c.l.b16 %v8890
  %v9176 = vunpack.c.l.b16 %v8891
  %v9177 = vunpack.c.h.b16 %v8891
  %v9178 = vunpack.c.l.b16 %v8892
  %v9179 = vunpack.c.l.b16 %v8893
  %v9180 = vunpack.c.h.b16 %v8893
  %v9181 = vunpack.c.l.b16 %v8894
  %v9182 = vunpack.c.l.b16 %v8895
  %v9183 = vunpack.c.h.b16 %v8895
  %v9184 = vunpack.c.l.b16 %v8896
  %v9185 = vunpack.c.l.b16 %v8897
  %v9186 = vunpack.c.h.b16 %v8897
  %v9187 = vunpack.c.l.b16 %v8898
  %v9188 = vunpack.c.l.b16 %v8899
  %v9189 = vunpack.c.h.b16 %v8899
  %v9190 = vunpack.c.l.b16 %v8900
  %v9191 = vunpack.c.l.b16 %v8901
  %v9192 = vunpack.c.h.b16 %v8901
  %v9193 = vunpack.c.l.b16 %v8902
  %v9194 = vunpack.c.l.b16 %v8903
  %v9195 = vunpack.c.h.b16 %v8903
  %v9196 = vunpack.c.l.b16 %v8904
  %v9197 = vunpack.c.l.b16 %v8905
  %v9198 = vunpack.c.h.b16 %v8905
  %v9199 = vunpack.c.l.b16 %v8906
  %v9200 = vunpack.c.l.b16 %v8907
  %v9201 = vunpack.c.h.b16 %v8907
  %v9202 = vunpack.c.l.b16 %v8908
  %v9203 = vunpack.c.l.b16 %v8909
  %v9204 = vunpack.c.h.b16 %v8909
  %v9205 = vunpack.c.l.b16 %v8910
  %v9206 = vunpack.c.l.b16 %v8911
  %v9207 = vunpack.c.h.b16 %v8911
  %v9208 = vunpack.c.l.b16 %v8912
  %v9209 = vunpack.c.l.b16 %v8913
  %v9210 = vunpack.c.h.b16 %v8913
  %v9211 = vunpack.c.l.b16 %v8914
  %v9212 = vunpack.c.l.b16 %v8915
  %v9213 = vunpack.c.h.b16 %v8915
  %v9214 = vunpack.c.l.b16 %v8916
  %v9215 = vunpack.c.l.b16 %v8917
  %v9216 = vunpack.c.h.b16 %v8917
  %v9217 = vunpack.c.l.b16 %v8918
  %v9218 = vunpack.c.l.b16 %v8919
  %v9219 = vunpack.c.h.b16 %v8919
  %v9220 = vunpack.c.l.b16 %v8920
  %v9221 = vunpack.c.l.b16 %v8921
  %v9222 = vunpack.c.h.b16 %v8921
  %v9223 = vunpack.c.l.b16 %v8922
  %v9224 = vunpack.c.l.b16 %v8923
  %v9225 = vunpack.c.h.b16 %v8923
  %v9226 = vunpack.c.l.b16 %v8924
  %v9227 = vunpack.c.l.b16 %v8925
  %v9228 = vunpack.c.h.b16 %v8925
  %v9229 = vunpack.c.l.b16 %v8926
  %v9230 = vunpack.c.l.b16 %v8927
  %v9231 = vunpack.c.h.b16 %v8927
  %v9232 = vunpack.c.l.b16 %v8928
  %v9233 = vunpack.c.l.b16 %v8929
  %v9234 = vunpack.c.h.b16 %v8929
  %v9235 = vunpack.c.l.b16 %v8930
  %v9236 = vunpack.c.l.b16 %v8931
  %v9237 = vunpack.c.h.b16 %v8931
  %v9238 = vunpack.c.l.b16 %v8932
  %v9239 = vunpack.c.l.b16 %v8933
  %v9240 = vunpack.c.h.b16 %v8933
  %v9241 = vunpack.c.l.b16 %v8934
  %v9242 = vunpack.c.l.b16 %v8935
  %v9243 = vunpack.c.h.b16 %v8935
  %v9244 = vunpack.c.l.b16 %v8936
  %v9245 = vunpack.c.l.b16 %v8937
  %v9246 = vunpack.c.h.b16 %v8937
  %v9247 = vunpack.c.l.b16 %v8938
  %v9248 = vunpack.c.l.b16 %v8939
  %v9249 = vunpack.c.h.b16 %v8939
  %v9250 = vunpack.c.l.b16 %v8940
  %v9251 = vunpack.c.l.b16 %v8941
  %v9252 = vunpack.c.h.b16 %v8941
  %v9253 = vunpack.c.l.b16 %v8942
  %v9254 = vunpack.c.l.b16 %v8943
  %v9255 = vunpack.c.h.b16 %v8943
  %v9256 = vunpack.c.l.b16 %v8944
  %v9257 = vunpack.c.l.b16 %v8945
  %v9258 = vunpack.c.h.b16 %v8945
  %v9259 = vunpack.c.l.b16 %v8946
  %v9260 = vunpack.c.l.b16 %v8947
  %v9261 = vunpack.c.h.b16 %v8947
  %v9262 = vunpack.c.l.b16 %v8948
  %v9263 = vunpack.c.l.b16 %v8949
  %v9264 = vunpack.c.h.b16 %v8949
  %v9265 = vunpack.c.l.b16 %v8950
  %v9266 = vunpack.c.l.b16 %v8951
  %v9267 = vunpack.c.h.b16 %v8951
  %v9268 = vunpack.c.l.b16 %v8952
  %v9269 = vunpack.c.l.b16 %v8953
  %v9270 = vunpack.c.h.b16 %v8953
  %v9271 = vunpack.c.l.b16 %v8954
  %v9272 = vunpack.c.l.b16 %v8955
  %v9273 = vunpack.c.h.b16 %v8955
  %v9274 = vunpack.c.l.b16 %v8956
  %v9275 = vunpack.c.l.b16 %v8957
  %v9276 = vunpack.c.h.b16 %v8957
  %v9277 = vunpack.c.l.b16 %v8958
  %v9278 = vunpack.c.l.b16 %v8959
  %v9279 = vunpack.c.h.b16 %v8959
  %v9280 = vunpack.c.l.b16 %v8960
  %v9281 = vunpack.c.l.b16 %v8961
  %v9282 = vunpack.c.h.b16 %v8961
  %v9283 = vunpack.c.l.b16 %v8962
  %v9284 = vunpack.c.l.b16 %v8963
  %v9285 = vunpack.c.h.b16 %v8963
  %v9286 = vunpack.c.l.b16 %v8964
  %v9287 = vunpack.c.l.b16 %v8965
  %v9288 = vunpack.c.h.b16 %v8965
  %v9289 = vunpack.c.l.b16 %v8966
  %v9290 = vunpack.c.l.b16 %v8967
  %v9291 = vunpack.c.h.b16 %v8967
  %v9292 = vunpack.c.l.b16 %v8968
  %v9293 = vunpack.c.l.b16 %v8969
  %v9294 = vunpack.c.h.b16 %v8969
  %v9295 = vunpack.c.l.b16 %v8970
  %v9296 = vunpack.c.l.b16 %v8971
  %v9297 = vunpack.c.h.b16 %v8971
  %v9298 = vunpack.c.l.b16 %v8972
  %v9299 = vunpack.c.l.b16 %v8973
  %v9300 = vunpack.c.h.b16 %v8973
  %v9301 = vunpack.c.l.b16 %v8974
  %v9302 = vunpack.c.l.b16 %v8975
  %v9303 = vunpack.c.h.b16 %v8975
  %v9304 = vunpack.c.l.b16 %v8976
  %v9305 = vpack.c.b16 %v9116, %v9113
  %v9306 = vpack.c.b16 %v9117, %v9114
  %v9307 = vpack.c.b16 %v9118, %v9115
  %v9308 = vpack.c.b16 %v9122, %v9119
  %v9309 = vpack.c.b16 %v9123, %v9120
  %v9310 = vpack.c.b16 %v9124, %v9121
  %v9311 = vpack.c.b16 %v9128, %v9125
  %v9312 = vpack.c.b16 %v9129, %v9126
  %v9313 = vpack.c.b16 %v9130, %v9127
  %v9314 = vpack.c.b16 %v9134, %v9131
  %v9315 = vpack.c.b16 %v9135, %v9132
  %v9316 = vpack.c.b16 %v9136, %v9133
  %v9317 = vpack.c.b16 %v9140, %v9137
  %v9318 = vpack.c.b16 %v9141, %v9138
  %v9319 = vpack.c.b16 %v9142, %v9139
  %v9320 = vpack.c.b16 %v9146, %v9143
  %v9321 = vpack.c.b16 %v9147, %v9144
  %v9322 = vpack.c.b16 %v9148, %v9145
  %v9323 = vpack.c.b16 %v9152, %v9149
  %v9324 = vpack.c.b16 %v9153, %v9150
  %v9325 = vpack.c.b16 %v9154, %v9151
  %v9326 = vpack.c.b16 %v9158, %v9155
  %v9327 = vpack.c.b16 %v9159, %v9156
  %v9328 = vpack.c.b16 %v9160, %v9157
  %v9329 = vpack.c.b16 %v9164, %v9161
  %v9330 = vpack.c.b16 %v9165, %v9162
  %v9331 = vpack.c.b16 %v9166, %v9163
  %v9332 = vpack.c.b16 %v9170, %v9167
  %v9333 = vpack.c.b16 %v9171, %v9168
  %v9334 = vpack.c.b16 %v9172, %v9169
  %v9335 = vpack.c.b16 %v9176, %v9173
  %v9336 = vpack.c.b16 %v9177, %v9174
  %v9337 = vpack.c.b16 %v9178, %v9175
  %v9338 = vpack.c.b16 %v9182, %v9179
  %v9339 = vpack.c.b16 %v9183, %v9180
  %v9340 = vpack.c.b16 %v9184, %v9181
  %v9341 = vpack.c.b16 %v9188, %v9185
  %v9342 = vpack.c.b16 %v9189, %v9186
  %v9343 = vpack.c.b16 %v9190, %v9187
  %v9344 = vpack.c.b16 %v9194, %v9191
  %v9345 = vpack.c.b16 %v9195, %v9192
  %v9346 = vpack.c.b16 %v9196, %v9193
  %v9347 = vpack.c.b16 %v9200, %v9197
  %v9348 = vpack.c.b16 %v9201, %v9198
  %v9349 = vpack.c.b16 %v9202, %v9199
  %v9350 = vpack.c.b16 %v9206, %v9203
  %v9351 = vpack.c.b16 %v9207, %v9204
  %v9352 = vpack.c.b16 %v9208, %v9205
  %v9353 = vpack.c.b16 %v9212, %v9209
  %v9354 = vpack.c.b16 %v9213, %v9210
  %v9355 = vpack.c.b16 %v9214, %v9211
  %v9356 = vpack.c.b16 %v9218, %v9215
  %v9357 = vpack.c.b16 %v9219, %v9216
  %v9358 = vpack.c.b16 %v9220, %v9217
  %v9359 = vpack.c.b16 %v9224, %v9221
  %v9360 = vpack.c.b16 %v9225, %v9222
  %v9361 = vpack.c.b16 %v9226, %v9223
  %v9362 = vpack.c.b16 %v9230, %v9227
  %v9363 = vpack.c.b16 %v9231, %v9228
  %v9364 = vpack.c.b16 %v9232, %v9229
  %v9365 = vpack.c.b16 %v9236, %v9233
  %v9366 = vpack.c.b16 %v9237, %v9234
  %v9367 = vpack.c.b16 %v9238, %v9235
  %v9368 = vpack.c.b16 %v9242, %v9239
  %v9369 = vpack.c.b16 %v9243, %v9240
  %v9370 = vpack.c.b16 %v9244, %v9241
  %v9371 = vpack.c.b16 %v9248, %v9245
  %v9372 = vpack.c.b16 %v9249, %v9246
  %v9373 = vpack.c.b16 %v9250, %v9247
  %v9374 = vpack.c.b16 %v9254, %v9251
  %v9375 = vpack.c.b16 %v9255, %v9252
  %v9376 = vpack.c.b16 %v9256, %v9253
  %v9377 = vpack.c.b16 %v9260, %v9257
  %v9378 = vpack.c.b16 %v9261, %v9258
  %v9379 = vpack.c.b16 %v9262, %v9259
  %v9380 = vpack.c.b16 %v9266, %v9263
  %v9381 = vpack.c.b16 %v9267, %v9264
  %v9382 = vpack.c.b16 %v9268, %v9265
  %v9383 = vpack.c.b16 %v9272, %v9269
  %v9384 = vpack.c.b16 %v9273, %v9270
  %v9385 = vpack.c.b16 %v9274, %v9271
  %v9386 = vpack.c.b16 %v9278, %v9275
  %v9387 = vpack.c.b16 %v9279, %v9276
  %v9388 = vpack.c.b16 %v9280, %v9277
  %v9389 = vpack.c.b16 %v9284, %v9281
  %v9390 = vpack.c.b16 %v9285, %v9282
  %v9391 = vpack.c.b16 %v9286, %v9283
  %v9392 = vpack.c.b16 %v9290, %v9287
  %v9393 = vpack.c.b16 %v9291, %v9288
  %v9394 = vpack.c.b16 %v9292, %v9289
  %v9395 = vpack.c.b16 %v9296, %v9293
  %v9396 = vpack.c.b16 %v9297, %v9294
  %v9397 = vpack.c.b16 %v9298, %v9295
  %v9398 = vpack.c.b16 %v9302, %v9299
  %v9399 = vpack.c.b16 %v9303, %v9300
  %v9400 = vpack.c.b16 %v9304, %v9301
  %9497 = vmatpush.bf16.msra.mxu0 %v9326
  %9498 = vmatpush.bf16.msra.mxu0 %v9323
  %9499 = vmatpush.bf16.msra.mxu0 %v9320
  %9500 = vmatpush.bf16.msra.mxu0 %v9317
  %9501 = vmatpush.bf16.msra.mxu0 %v9314
  %9502 = vmatpush.bf16.msra.mxu0 %v9311
  %9503 = vmatpush.bf16.msra.mxu0 %v9308
  %9504 = vmatpush.bf16.msra.mxu0 %v9305
  %9505 = vmatmul.bf16.gmra.mxu0 %v8845
  %v9506 = vpop.f32.mrf.mxu0
  %v9507 = vadd.f32 %v8979, %v9506
  %v9508 = vpop.f32.mrf.mxu0
  %9509 = vdwg.mxu0
  %9510 = vmatpush.bf16.msra.mxu0 %v9350
  %9511 = vmatpush.bf16.msra.mxu0 %v9347
  %9512 = vmatpush.bf16.msra.mxu0 %v9344
  %9513 = vmatpush.bf16.msra.mxu0 %v9341
  %9514 = vmatpush.bf16.msra.mxu0 %v9338
  %9515 = vmatpush.bf16.msra.mxu0 %v9335
  %9516 = vmatpush.bf16.msra.mxu0 %v9332
  %9517 = vmatpush.bf16.msra.mxu0 %v9329
  %9518 = vmatmul.bf16.gmra.mxu0 %v8846
  %v9519 = vpop.f32.mrf.mxu0
  %v9520 = vadd.f32 %v9507, %v9519
  %v9521 = vpop.f32.mrf.mxu0
  %9522 = vdwg.mxu0
  %9523 = vmatpush.bf16.msra.mxu0 %v9374
  %9524 = vmatpush.bf16.msra.mxu0 %v9371
  %9525 = vmatpush.bf16.msra.mxu0 %v9368
  %9526 = vmatpush.bf16.msra.mxu0 %v9365
  %9527 = vmatpush.bf16.msra.mxu0 %v9362
  %9528 = vmatpush.bf16.msra.mxu0 %v9359
  %9529 = vmatpush.bf16.msra.mxu0 %v9356
  %9530 = vmatpush.bf16.msra.mxu0 %v9353
  %9531 = vmatmul.bf16.gmra.mxu0 %v8847
  %v9532 = vpop.f32.mrf.mxu0
  %v9533 = vadd.f32 %v9520, %v9532
  %v9534 = vpop.f32.mrf.mxu0
  %9535 = vdwg.mxu0
  %9536 = vmatpush.bf16.msra.mxu0 %v9398
  %9537 = vmatpush.bf16.msra.mxu0 %v9395
  %9538 = vmatpush.bf16.msra.mxu0 %v9392
  %9539 = vmatpush.bf16.msra.mxu0 %v9389
  %9540 = vmatpush.bf16.msra.mxu0 %v9386
  %9541 = vmatpush.bf16.msra.mxu0 %v9383
  %9542 = vmatpush.bf16.msra.mxu0 %v9380
  %9543 = vmatpush.bf16.msra.mxu0 %v9377
  %9544 = vmatmul.bf16.gmra.mxu0 %v8848
  %v9545 = vpop.f32.mrf.mxu0
  %v9546 = vadd.f32 %v9533, %v9545
  %v9547 = vpop.f32.mrf.mxu0
  %9548 = vdwg.mxu0
  %9549 = vmatpush.bf16.msra.mxu0 %v9327
  %9550 = vmatpush.bf16.msra.mxu0 %v9324
  %9551 = vmatpush.bf16.msra.mxu0 %v9321
  %9552 = vmatpush.bf16.msra.mxu0 %v9318
  %9553 = vmatpush.bf16.msra.mxu0 %v9315
  %9554 = vmatpush.bf16.msra.mxu0 %v9312
  %9555 = vmatpush.bf16.msra.mxu0 %v9309
  %9556 = vmatpush.bf16.msra.mxu0 %v9306
  %9557 = vmatmul.bf16.gmra.mxu0 %v8845
  %v9558 = vpop.f32.mrf.mxu0
  %v9559 = vadd.f32 %v8980, %v9558
  %v9560 = vpop.f32.mrf.mxu0
  %9561 = vdwg.mxu0
  %9562 = vmatpush.bf16.msra.mxu0 %v9351
  %9563 = vmatpush.bf16.msra.mxu0 %v9348
  %9564 = vmatpush.bf16.msra.mxu0 %v9345
  %9565 = vmatpush.bf16.msra.mxu0 %v9342
  %9566 = vmatpush.bf16.msra.mxu0 %v9339
  %9567 = vmatpush.bf16.msra.mxu0 %v9336
  %9568 = vmatpush.bf16.msra.mxu0 %v9333
  %9569 = vmatpush.bf16.msra.mxu0 %v9330
  %9570 = vmatmul.bf16.gmra.mxu0 %v8846
  %v9571 = vpop.f32.mrf.mxu0
  %v9572 = vadd.f32 %v9559, %v9571
  %v9573 = vpop.f32.mrf.mxu0
  %9574 = vdwg.mxu0
  %9575 = vmatpush.bf16.msra.mxu0 %v9375
  %9576 = vmatpush.bf16.msra.mxu0 %v9372
  %9577 = vmatpush.bf16.msra.mxu0 %v9369
  %9578 = vmatpush.bf16.msra.mxu0 %v9366
  %9579 = vmatpush.bf16.msra.mxu0 %v9363
  %9580 = vmatpush.bf16.msra.mxu0 %v9360
  %9581 = vmatpush.bf16.msra.mxu0 %v9357
  %9582 = vmatpush.bf16.msra.mxu0 %v9354
  %9583 = vmatmul.bf16.gmra.mxu0 %v8847
  %v9584 = vpop.f32.mrf.mxu0
  %v9585 = vadd.f32 %v9572, %v9584
  %v9586 = vpop.f32.mrf.mxu0
  %9587 = vdwg.mxu0
  %9588 = vmatpush.bf16.msra.mxu0 %v9399
  %9589 = vmatpush.bf16.msra.mxu0 %v9396
  %9590 = vmatpush.bf16.msra.mxu0 %v9393
  %9591 = vmatpush.bf16.msra.mxu0 %v9390
  %9592 = vmatpush.bf16.msra.mxu0 %v9387
  %9593 = vmatpush.bf16.msra.mxu0 %v9384
  %9594 = vmatpush.bf16.msra.mxu0 %v9381
  %9595 = vmatpush.bf16.msra.mxu0 %v9378
  %9596 = vmatmul.bf16.gmra.mxu0 %v8848
  %v9597 = vpop.f32.mrf.mxu0
  %v9598 = vadd.f32 %v9585, %v9597
  %v9599 = vpop.f32.mrf.mxu0
  %9600 = vdwg.mxu0
  %9601 = vmatpush.bf16.msra.mxu0 %v9328
  %9602 = vmatpush.bf16.msra.mxu0 %v9325
  %9603 = vmatpush.bf16.msra.mxu0 %v9322
  %9604 = vmatpush.bf16.msra.mxu0 %v9319
  %9605 = vmatpush.bf16.msra.mxu0 %v9316
  %9606 = vmatpush.bf16.msra.mxu0 %v9313
  %9607 = vmatpush.bf16.msra.mxu0 %v9310
  %9608 = vmatpush.bf16.msra.mxu0 %v9307
  %9609 = vmatmul.bf16.gmra.mxu0 %v8845
  %v9610 = vpop.f32.mrf.mxu0
  %v9611 = vadd.f32 %v8981, %v9610
  %v9612 = vpop.f32.mrf.mxu0
  %9613 = vdwg.mxu0
  %9614 = vmatpush.bf16.msra.mxu0 %v9352
  %9615 = vmatpush.bf16.msra.mxu0 %v9349
  %9616 = vmatpush.bf16.msra.mxu0 %v9346
  %9617 = vmatpush.bf16.msra.mxu0 %v9343
  %9618 = vmatpush.bf16.msra.mxu0 %v9340
  %9619 = vmatpush.bf16.msra.mxu0 %v9337
  %9620 = vmatpush.bf16.msra.mxu0 %v9334
  %9621 = vmatpush.bf16.msra.mxu0 %v9331
  %9622 = vmatmul.bf16.gmra.mxu0 %v8846
  %v9623 = vpop.f32.mrf.mxu0
  %v9624 = vadd.f32 %v9611, %v9623
  %v9625 = vpop.f32.mrf.mxu0
  %9626 = vdwg.mxu0
  %9627 = vmatpush.bf16.msra.mxu0 %v9376
  %9628 = vmatpush.bf16.msra.mxu0 %v9373
  %9629 = vmatpush.bf16.msra.mxu0 %v9370
  %9630 = vmatpush.bf16.msra.mxu0 %v9367
  %9631 = vmatpush.bf16.msra.mxu0 %v9364
  %9632 = vmatpush.bf16.msra.mxu0 %v9361
  %9633 = vmatpush.bf16.msra.mxu0 %v9358
  %9634 = vmatpush.bf16.msra.mxu0 %v9355
  %9635 = vmatmul.bf16.gmra.mxu0 %v8847
  %v9636 = vpop.f32.mrf.mxu0
  %v9637 = vadd.f32 %v9624, %v9636
  %v9638 = vpop.f32.mrf.mxu0
  %9639 = vdwg.mxu0
  %9640 = vmatpush.bf16.msra.mxu0 %v9400
  %9641 = vmatpush.bf16.msra.mxu0 %v9397
  %9642 = vmatpush.bf16.msra.mxu0 %v9394
  %9643 = vmatpush.bf16.msra.mxu0 %v9391
  %9644 = vmatpush.bf16.msra.mxu0 %v9388
  %9645 = vmatpush.bf16.msra.mxu0 %v9385
  %9646 = vmatpush.bf16.msra.mxu0 %v9382
  %9647 = vmatpush.bf16.msra.mxu0 %v9379
  %9648 = vmatmul.bf16.gmra.mxu0 %v8848
  %v9649 = vpop.f32.mrf.mxu0
  %v9650 = vadd.f32 %v9637, %v9649
  %v9651 = vpop.f32.mrf.mxu0
  %9652 = vdwg.mxu0
  %vm9653 = vcmask 410624
  %v9654 = vsel %vm9653, %v9546, -inf
  %9655 = vmax.xlane.f32.xlu0 %v9654
  %v9656 = vpop.xlane.xlu0 %9655
  %v9657 = vsub.f32 %v9546, %v9656
  %v9658 = vmul.f32 %v9657, 1.442695
  %v9659 = vpow.pop %v9658
  %v9660 = vsel %vm9653, %v9659, 0.0
  %9661 = vadd.xlane.f32.xlu0 %v9660
  %v9662 = vpop.xlane.xlu0 %9661
  %v9663 = vrcp.pop %v9662
  %v9664 = vmul.f32 %v9662, %v9663
  %v9665 = vsub.f32 1.0, %v9664
  %v9666 = vmul.f32 %v9663, %v9665
  %v9667 = vadd.f32 %v9663, %v9666
  %vm9668 = vweird.f32 %v9662
  %vm9669 = vweird.f32 %v9663
  %vm9670 = vmor %vm9668, %vm9669
  %v9671 = vsel %vm9670, %v9663, %v9667
  %v9672 = vand.u32 2147483647, %v9662
  %vm9673 = vcmp.eq.f32.partialorder %v9672, 8.507059e+37
  %v9674 = vand.u32 %v9662, 2147483648
  %v9675 = vor.u32 1.1754944e-38, %v9674
  %v9676 = vsel %vm9673, %v9675, %v9671
  %v9677 = vmul.f32 1.0, %v9676
  %v9678 = vmul.f32 %v9659, %v9677
  %vm9679 = vcmask 828824
  %v9680 = vsel %vm9679, %v9546, -inf
  %9681 = vmax.xlane.f32.xlu0 %v9680
  %v9682 = vpop.xlane.xlu0 %9681
  %v9683 = vsub.f32 %v9546, %v9682
  %v9684 = vmul.f32 %v9683, 1.442695
  %v9685 = vpow.pop %v9684
  %9687 = vrot.lane.b32.xlu0 %v9685, 77
  %v9688 = vpop.permute.xlu0 %9687
  %v9690 = vsel %vm9653, %v9688, 0.0
  %9691 = vadd.xlane.f32.xlu0 %v9690
  %v9692 = vpop.xlane.xlu0 %9691
  %v9693 = vrcp.pop %v9692
  %v9694 = vmul.f32 %v9692, %v9693
  %v9695 = vsub.f32 1.0, %v9694
  %v9696 = vmul.f32 %v9693, %v9695
  %v9697 = vadd.f32 %v9693, %v9696
  %vm9698 = vweird.f32 %v9692
  %vm9699 = vweird.f32 %v9693
  %vm9700 = vmor %vm9698, %vm9699
  %v9701 = vsel %vm9700, %v9693, %v9697
  %v9702 = vand.u32 2147483647, %v9692
  %vm9703 = vcmp.eq.f32.partialorder %v9702, 8.507059e+37
  %v9704 = vand.u32 %v9692, 2147483648
  %v9705 = vor.u32 1.1754944e-38, %v9704
  %v9706 = vsel %vm9703, %v9705, %v9701
  %v9707 = vmul.f32 1.0, %v9706
  %v9708 = vmul.f32 %v9685, %v9707
  %vm9709 = vcmask 1042224
  %v9710 = vsel %vm9709, %v9546, -inf
  %vm9711 = vcmask 197632
  %v9712 = vsel %vm9711, %v9598, -inf
  %v9713 = vmax.f32 %v9710, %v9712
  %9714 = vmax.xlane.f32.xlu0 %v9713
  %v9715 = vpop.xlane.xlu0 %9714
  %v9716 = vsub.f32 %v9546, %v9715
  %v9717 = vsub.f32 %v9598, %v9715
  %v9718 = vmul.f32 %v9716, 1.442695
  %v9719 = vpow.pop %v9718
  %v9720 = vmul.f32 %v9717, 1.442695
  %v9721 = vpow.pop %v9720
  %9724 = vrot.lane.b32.xlu0 %v9719, 26
  %v9725 = vpop.permute.xlu0 %9724
  %9726 = vrot.lane.b32.xlu0 %v9721, 26
  %v9727 = vpop.permute.xlu0 %9726
  %vm9728 = vcmask 211968
  %v9729 = vsel %vm9728, %v9725, %v9727
  %v9731 = vsel %vm9653, %v9729, 0.0
  %9732 = vadd.xlane.f32.xlu0 %v9731
  %v9733 = vpop.xlane.xlu0 %9732
  %v9734 = vrcp.pop %v9733
  %v9735 = vmul.f32 %v9733, %v9734
  %v9736 = vsub.f32 1.0, %v9735
  %v9737 = vmul.f32 %v9734, %v9736
  %v9738 = vadd.f32 %v9734, %v9737
  %vm9739 = vweird.f32 %v9733
  %vm9740 = vweird.f32 %v9734
  %vm9741 = vmor %vm9739, %vm9740
  %v9742 = vsel %vm9741, %v9734, %v9738
  %v9743 = vand.u32 2147483647, %v9733
  %vm9744 = vcmp.eq.f32.partialorder %v9743, 8.507059e+37
  %v9745 = vand.u32 %v9733, 2147483648
  %v9746 = vor.u32 1.1754944e-38, %v9745
  %v9747 = vsel %vm9744, %v9746, %v9742
  %v9748 = vmul.f32 1.0, %v9747
  %v9749 = vmul.f32 %v9719, %v9748
  %v9750 = vmul.f32 %v9721, %v9748
  %vm9751 = vcmask 615624
  %v9752 = vsel %vm9751, %v9598, -inf
  %9753 = vmax.xlane.f32.xlu0 %v9752
  %v9754 = vpop.xlane.xlu0 %9753
  %v9755 = vsub.f32 %v9598, %v9754
  %v9756 = vmul.f32 %v9755, 1.442695
  %v9757 = vpow.pop %v9756
  %9759 = vrot.lane.b32.xlu0 %v9757, 103
  %v9760 = vpop.permute.xlu0 %9759
  %v9762 = vsel %vm9653, %v9760, 0.0
  %9763 = vadd.xlane.f32.xlu0 %v9762
  %v9764 = vpop.xlane.xlu0 %9763
  %v9765 = vrcp.pop %v9764
  %v9766 = vmul.f32 %v9764, %v9765
  %v9767 = vsub.f32 1.0, %v9766
  %v9768 = vmul.f32 %v9765, %v9767
  %v9769 = vadd.f32 %v9765, %v9768
  %vm9770 = vweird.f32 %v9764
  %vm9771 = vweird.f32 %v9765
  %vm9772 = vmor %vm9770, %vm9771
  %v9773 = vsel %vm9772, %v9765, %v9769
  %v9774 = vand.u32 2147483647, %v9764
  %vm9775 = vcmp.eq.f32.partialorder %v9774, 8.507059e+37
  %v9776 = vand.u32 %v9764, 2147483648
  %v9777 = vor.u32 1.1754944e-38, %v9776
  %v9778 = vsel %vm9775, %v9777, %v9773
  %v9779 = vmul.f32 1.0, %v9778
  %v9780 = vmul.f32 %v9757, %v9779
  %vm9781 = vcmask 1033824
  %v9782 = vsel %vm9781, %v9598, -inf
  %9783 = vmax.xlane.f32.xlu0 %v9782
  %v9784 = vpop.xlane.xlu0 %9783
  %v9785 = vsub.f32 %v9598, %v9784
  %v9786 = vmul.f32 %v9785, 1.442695
  %v9787 = vpow.pop %v9786
  %9789 = vrot.lane.b32.xlu0 %v9787, 52
  %v9790 = vpop.permute.xlu0 %9789
  %v9792 = vsel %vm9653, %v9790, 0.0
  %9793 = vadd.xlane.f32.xlu0 %v9792
  %v9794 = vpop.xlane.xlu0 %9793
  %v9795 = vrcp.pop %v9794
  %v9796 = vmul.f32 %v9794, %v9795
  %v9797 = vsub.f32 1.0, %v9796
  %v9798 = vmul.f32 %v9795, %v9797
  %v9799 = vadd.f32 %v9795, %v9798
  %vm9800 = vweird.f32 %v9794
  %vm9801 = vweird.f32 %v9795
  %vm9802 = vmor %vm9800, %vm9801
  %v9803 = vsel %vm9802, %v9795, %v9799
  %v9804 = vand.u32 2147483647, %v9794
  %vm9805 = vcmp.eq.f32.partialorder %v9804, 8.507059e+37
  %v9806 = vand.u32 %v9794, 2147483648
  %v9807 = vor.u32 1.1754944e-38, %v9806
  %v9808 = vsel %vm9805, %v9807, %v9803
  %v9809 = vmul.f32 1.0, %v9808
  %v9810 = vmul.f32 %v9787, %v9809
  %vm9811 = vcmask 1042424
  %v9812 = vsel %vm9811, %v9598, -inf
  %vm9813 = vcmask 402432
  %v9814 = vsel %vm9813, %v9650, -inf
  %v9815 = vmax.f32 %v9812, %v9814
  %9816 = vmax.xlane.f32.xlu0 %v9815
  %v9817 = vpop.xlane.xlu0 %9816
  %v9818 = vsub.f32 %v9598, %v9817
  %v9819 = vsub.f32 %v9650, %v9817
  %v9820 = vmul.f32 %v9818, 1.442695
  %v9821 = vpow.pop %v9820
  %v9822 = vmul.f32 %v9819, 1.442695
  %v9823 = vpow.pop %v9822
  %9826 = vrot.lane.b32.xlu0 %v9821, 1
  %v9827 = vpop.permute.xlu0 %9826
  %9828 = vrot.lane.b32.xlu0 %v9823, 1
  %v9829 = vpop.permute.xlu0 %9828
  %vm9830 = vcmask 7168
  %v9831 = vsel %vm9830, %v9827, %v9829
  %v9833 = vsel %vm9653, %v9831, 0.0
  %9834 = vadd.xlane.f32.xlu0 %v9833
  %v9835 = vpop.xlane.xlu0 %9834
  %v9836 = vrcp.pop %v9835
  %v9837 = vmul.f32 %v9835, %v9836
  %v9838 = vsub.f32 1.0, %v9837
  %v9839 = vmul.f32 %v9836, %v9838
  %v9840 = vadd.f32 %v9836, %v9839
  %vm9841 = vweird.f32 %v9835
  %vm9842 = vweird.f32 %v9836
  %vm9843 = vmor %vm9841, %vm9842
  %v9844 = vsel %vm9843, %v9836, %v9840
  %v9845 = vand.u32 2147483647, %v9835
  %vm9846 = vcmp.eq.f32.partialorder %v9845, 8.507059e+37
  %v9847 = vand.u32 %v9835, 2147483648
  %v9848 = vor.u32 1.1754944e-38, %v9847
  %v9849 = vsel %vm9846, %v9848, %v9844
  %v9850 = vmul.f32 1.0, %v9849
  %v9851 = vmul.f32 %v9821, %v9850
  %v9852 = vmul.f32 %v9823, %v9850
  %vm9853 = vcmask 416768
  %v9854 = vsel %vm9853, %v9678, %v9708
  %vm9855 = vcmask 834560
  %v9856 = vsel %vm9855, %v9854, %v9749
  %vm9857 = vcmask 203776
  %v9858 = vsel %vm9857, %v9750, %v9780
  %vm9859 = vcmask 621568
  %v9860 = vsel %vm9859, %v9858, %v9810
  %vm9861 = vcmask 1039360
  %v9862 = vsel %vm9861, %v9860, %v9851
  %v9866 = vrot.slane %v9862, 6
  %v9867 = vrot.slane %v9852, 4
  %v9868 = vsel %vm5823, %v9856, %v9866
  %vm9869 = vcmask 1043456
  %v9870 = vsel %vm9869, %v9868, %v9867
  %vm9872 = vcmask 1043458
  %vm9873 = vmor %vm9872, %vm5823
  %vm9874 = vcmask 406532
  %vm9875 = vmor %vm9874, %vm9873
  %9876 = vst.msk [vmem:[%s23] sm:$0x3f] %vm9875, %v9870
  // Predicated region
  $region139: #{categorical_dqn_forward.1} parent=0 // pred_check
    _
  $region140: #{categorical_dqn_forward.1} parent=0 // pred_check_branch
    %9878 = sbr.rel (0) target = $region142
  $region141: #{categorical_dqn_forward.1} parent=0 // pred_region
    _
  $region142: #{categorical_dqn_forward.1} parent=0 // pred_fallthru
    _
  // Predicated region
  $region143: #{categorical_dqn_forward.1} parent=0 // pred_check
    _
  $region144: #{categorical_dqn_forward.1} parent=0 // pred_check_branch
    %9880 = sbr.rel (0) target = $region146
  $region145: #{categorical_dqn_forward.1} parent=0 // pred_region
    _
  $region146: #{categorical_dqn_forward.1} parent=0 // pred_fallthru
    _
  %9881 = vsyncmov [#allocation11]
  %s9882 = vpop.sfrf %9881
  %p9883 = scmp.eq.s32.totalorder %s9882, 0
  %p9884 = pneg %p9883
  %9886 = shalt.err (%p9884)
  %s9887 = scalar_lea.sflag [#allocation11], 1
  %9888 = vsyncmov %s9887
  %s9889 = vpop.sfrf %9888
  %p9890 = scmp.eq.s32.totalorder %s9889, 0
  %p9891 = pneg %p9890
  %9893 = shalt.err (%p9891)
  %s9894 = scalar_lea.sflag [#allocation11], 2
  %9895 = vsyncmov %s9894
  %s9896 = vpop.sfrf %9895
  %p9897 = scmp.eq.s32.totalorder %s9896, 0
  %p9898 = pneg %p9897
  %9900 = shalt.err (%p9898)

</llo_original>
